<compile_context>
chip_gen: v7x
topology: tpu7x:2x2x1
jax: 0.10.0
libtpu: 0.0.40
codegen_flags: <defaults>
</compile_context>

<pallas_src>
import functools

import jax
import jax.numpy as jnp
import numpy as np
from jax import lax
from jax.experimental import pallas as pl
from jax.experimental.pallas import tpu as pltpu


def _round_up(x, m):
    return ((x + m - 1) // m) * m


# -----------------------------------------------------------------------------
# Kernel 1: Conv2d(Cin,128,k=1,pad=1,bias=False) + BN(128) + MaxPool(3,2,1)
#           + ReLU over a tile of pooled output rows (bf16 in, f32 accum).
# -----------------------------------------------------------------------------
def _stage1_kernel(xt_ref, w_ref, b_ref, o_ref, *, c1):
    # xt: (rb, 9*Cin) bf16   -- 9 stride-2 pool taps gathered on the raw input
    # w : (9*Cin, 9*c1) bf16 -- block-diagonal copies of bf16(w1 * bn_scale)
    # b : (1, c1) f32        -- folded BN bias
    # o : (rb, c1) bf16
    z = jnp.dot(xt_ref[...], w_ref[...], preferred_element_type=jnp.float32)
    m = z[:, 0:c1]
    for t in range(1, 9):                       # max over the 9 pool taps
        m = jnp.maximum(m, z[:, t * c1:(t + 1) * c1])
    o_ref[...] = jnp.maximum(m + b_ref[...], 0.0).astype(o_ref.dtype)


# -----------------------------------------------------------------------------
# Kernel 2: Conv2d(128,1024,k=3,pad=1,bias=False) + BN + ReLU
#           + AdaptiveAvgPool2d((1,1)), gridded ("parallel") over tiles of the
#           1024 conv output channels; emits pooled features per tile.
# -----------------------------------------------------------------------------
def _stage2_kernel(wim_ref, w2_ref, b2_ref, mask_ref, pooled_ref, *,
                   n_img, wrow, hwr, kblk):
    # wim : (N, (Ho+2)*WROW, 3*C1) bf16  -- W-direction im2col (H not unrolled)
    # w2  : (9*C1, ct) bf16              -- kh-major folded conv2 weights
    # b2  : (1, ct) f32                  -- folded BN bias
    # mask: (hwr, 1) f32                 -- 1/(Ho*Wo) on valid rows, 0 on W pad
    # out : (1, n_img, ct) f32           -- pooled features for this tile
    b2 = b2_ref[...]
    mask = mask_ref[...]
    rows = []
    # TODO(synk): for large N collapse this per-image loop into one big dot
    # with a segment-sum pool matrix (minor for N=2).
    for n in range(n_img):
        # 3 kh-shifted, sublane-aligned dots replace the old 9x patch scratch.
        z = jnp.dot(wim_ref[n, 0:hwr, :], w2_ref[0:kblk, :],
                    preferred_element_type=jnp.float32)
        for kh in (1, 2):
            z = z + jnp.dot(wim_ref[n, kh * wrow:kh * wrow + hwr, :],
                            w2_ref[kh * kblk:(kh + 1) * kblk, :],
                            preferred_element_type=jnp.float32)
        y = jnp.maximum(z + b2, 0.0)                        # BN bias + ReLU
        rows.append(jnp.sum(y * mask, axis=0, keepdims=True))   # masked mean
    pooled_ref[...] = jnp.concatenate(rows, axis=0)[None]


# -----------------------------------------------------------------------------
# Kernel 3: Linear(1024 -> out_nc) micro-kernel on the pooled features.
# -----------------------------------------------------------------------------
def _linear_kernel(pooled_ref, wl_ref, bl_ref, out_ref, *, n_ct, ct):
    # pooled: (n_ct, N, ct) f32, wl: (1024, out_nc) bf16, bl: (1, out_nc) f32
    acc = jnp.broadcast_to(bl_ref[...], out_ref.shape)
    for c in range(n_ct):
        acc = acc + jnp.dot(pooled_ref[c].astype(jnp.bfloat16),
                            wl_ref[c * ct:(c + 1) * ct, :],
                            preferred_element_type=jnp.float32)
    out_ref[...] = acc


# -----------------------------------------------------------------------------
# Wrapper (layout transposes, tiny tap/W-im2col gathers, pallas_calls)
# -----------------------------------------------------------------------------
def condition_network2_forward(x_nchw, params, *, ct=512, rows_per_block=2048):
    # ct: stage-2 output-channel tile (512 suits v6e/v7x 256-wide MXU; 256 is a
    #     reasonable choice on v5e or for very large spatial sizes).
    N, Cin, H, W = x_nchw.shape
    C1, C2 = 128, 1024
    out_nc = params["blin"].shape[-1]

    # ---- stage 1 glue: gather the 9 stride-2 max-pool taps on the Cin input.
    # (1x1 conv commutes with tap extraction; -inf pool padding == clamped
    #  indices == 1-pixel edge padding.)  bf16 halves the HBM bytes.
    # TODO(synk): gather the taps in-kernel (strided pl.ds loads on the padded
    # input) to avoid this XLA-materialized, lane-sparse (rows, 9*Cin) slab.
    x = jnp.transpose(x_nchw, (0, 2, 3, 1)).astype(jnp.bfloat16)      # NHWC
    xp = jnp.pad(x, ((0, 0), (1, 1), (1, 1), (0, 0)))                 # conv pad
    Hp, Wp = H + 2, W + 2
    Ho, Wo = (Hp - 1) // 2 + 1, (Wp - 1) // 2 + 1                     # pool out
    xpe = jnp.pad(xp, ((0, 0), (1, 1), (1, 1), (0, 0)), mode="edge")
    taps = [xpe[:, kh:kh + 2 * Ho:2, kw:kw + 2 * Wo:2, :]
            for kh in range(3) for kw in range(3)]
    x_taps = jnp.concatenate(taps, axis=-1).reshape(N * Ho * Wo, 9 * Cin)

    R1 = N * Ho * Wo
    rb = min(rows_per_block, _round_up(R1, 16))      # bf16-friendly row tiles
    Rp = _round_up(R1, rb)
    if Rp != R1:
        x_taps = jnp.pad(x_taps, ((0, Rp - R1), (0, 0)))

    s1_need = (2 * (rb * 9 * Cin * 2 + 9 * Cin * 9 * C1 * 2 + C1 * 4
                    + rb * C1 * 2)
               + rb * 9 * C1 * 4 + rb * C1 * 4)           # f32 intermediates
    pooled = pl.pallas_call(
        functools.partial(_stage1_kernel, c1=C1),
        out_shape=jax.ShapeDtypeStruct((Rp, C1), jnp.bfloat16),
        grid=(Rp // rb,),
        in_specs=[pl.BlockSpec((rb, 9 * Cin), lambda i: (i, 0)),
                  pl.BlockSpec((9 * Cin, 9 * C1), lambda i: (0, 0)),
                  pl.BlockSpec((1, C1), lambda i: (0, 0))],
        out_specs=pl.BlockSpec((rb, C1), lambda i: (i, 0)),
        compiler_params=pltpu.CompilerParams(
            dimension_semantics=("parallel",),
            vmem_limit_bytes=int(min(max(2 * s1_need, 32 << 20), 64 << 20))),
    )(x_taps, params["w1blk"], params["bias1"])
    pooled = pooled[:R1].reshape(N, Ho, Wo, C1)                       # bf16

    # ---- stage 2 glue: W-direction-only im2col (3x of the tiny bf16 pooled
    # tensor); the kh (H-direction) unroll happens in-kernel as 3 shifted,
    # sublane-aligned dots.  W is padded to a multiple of 16 output columns so
    # those shifts stay bf16-aligned; padded columns are excluded from the
    # average pool via `mask` (1/area folded in).
    WROW = _round_up(Wo, 16)
    pp = jnp.pad(pooled, ((0, 0), (1, 1), (1, WROW + 1 - Wo), (0, 0)))
    wim = jnp.concatenate([pp[:, :, kw:kw + WROW, :] for kw in range(3)],
                          axis=-1)                     # (N, Ho+2, WROW, 3*C1)
    wim = wim.reshape(N, (Ho + 2) * WROW, 3 * C1)
    HWR = Ho * WROW
    assert C2 % ct == 0
    n_ct = C2 // ct

    col = jnp.arange(HWR, dtype=jnp.int32) % WROW
    mask = jnp.where(col < Wo, 1.0 / (Ho * Wo), 0.0).astype(jnp.float32)[:, None]

    # TODO(synk): single-buffer the constant-index wim block and/or add an
    # outer spatial row-tile "parallel" grid axis for very large N*Ho*Wo.
    s2_need = (2 * (wim.size * 2 + 9 * C1 * ct * 2 + ct * 4
                    + HWR * 128 * 4 + N * ct * 4)
               + 2 * HWR * ct * 4 + (4 << 20))            # f32 intermediates
    pooled_t = pl.pallas_call(
        functools.partial(_stage2_kernel, n_img=N, wrow=WROW, hwr=HWR,
                          kblk=3 * C1),
        out_shape=jax.ShapeDtypeStruct((n_ct, N, ct), jnp.float32),
        grid=(n_ct,),
        in_specs=[pl.BlockSpec((N, (Ho + 2) * WROW, 3 * C1),
                               lambda c: (0, 0, 0)),
                  pl.BlockSpec((9 * C1, ct), lambda c: (0, c)),
                  pl.BlockSpec((1, ct), lambda c: (0, c)),
                  pl.BlockSpec((HWR, 1), lambda c: (0, 0))],
        out_specs=pl.BlockSpec((1, N, ct), lambda c: (c, 0, 0)),
        compiler_params=pltpu.CompilerParams(
            dimension_semantics=("parallel",),
            vmem_limit_bytes=int(min(max(s2_need, 32 << 20), 64 << 20))),
    )(wim, params["w2col"], params["bias2"], mask)

    # ---- stage 3: Linear(1024 -> out_nc) on the pooled features.
    out = pl.pallas_call(
        functools.partial(_linear_kernel, n_ct=n_ct, ct=ct),
        out_shape=jax.ShapeDtypeStruct((N, out_nc), jnp.float32),
        grid=(1,),
        in_specs=[pl.BlockSpec((n_ct, N, ct), lambda i: (0, 0, 0)),
                  pl.BlockSpec((C2, out_nc), lambda i: (0, 0)),
                  pl.BlockSpec((1, out_nc), lambda i: (0, 0))],
        out_specs=pl.BlockSpec((N, out_nc), lambda i: (0, 0)),
        compiler_params=pltpu.CompilerParams(
            dimension_semantics=("arbitrary",)),
    )(pooled_t, params["wlin"], params["blin"])
    return out


# -----------------------------------------------------------------------------
# Deterministic parameter init.  BN scales are folded into the conv weights;
# conv/linear weights are stored in bf16.  The reference below uses the same
# effective (bf16-rounded, scale-folded) weights so the tolerance tests the
# kernel implementation rather than bf16 quantization vs. the f32 model.
# -----------------------------------------------------------------------------
def init_params(key, input_nc, output_nc):
    C1, C2, eps = 128, 1024, 1e-5
    ks = jax.random.split(key, 12)
    w1_t = 0.3 * jax.random.normal(ks[0], (C1, input_nc, 1, 1), jnp.float32)
    g1 = 1.0 + 0.1 * jax.random.normal(ks[1], (C1,), jnp.float32)
    b1 = 0.1 * jax.random.normal(ks[2], (C1,), jnp.float32)
    m1 = 0.1 * jax.random.normal(ks[3], (C1,), jnp.float32)
    v1 = jax.random.uniform(ks[4], (C1,), jnp.float32, 0.5, 1.5)
    w2_t = 0.05 * jax.random.normal(ks[5], (C2, C1, 3, 3), jnp.float32)
    g2 = 1.0 + 0.1 * jax.random.normal(ks[6], (C2,), jnp.float32)
    b2 = 0.1 * jax.random.normal(ks[7], (C2,), jnp.float32)
    m2 = 0.1 * jax.random.normal(ks[8], (C2,), jnp.float32)
    v2 = jax.random.uniform(ks[9], (C2,), jnp.float32, 0.5, 1.5)
    wl_t = 0.05 * jax.random.normal(ks[10], (output_nc, C2), jnp.float32)
    bl = 0.1 * jax.random.normal(ks[11], (output_nc,), jnp.float32)

    s1 = g1 / jnp.sqrt(v1 + eps)
    sh1 = b1 - m1 * s1
    s2 = g2 / jnp.sqrt(v2 + eps)
    sh2 = b2 - m2 * s2

    # Stage 1: fold BN scale into the 1x1 conv, quantize to bf16, then
    # block-diagonalize so the 9 pool taps are one (9*Cin, 9*C1) matmul.
    w1_eff = (w1_t * s1[:, None, None, None]).astype(jnp.bfloat16)    # OIHW
    w1f = jnp.transpose(w1_eff[:, :, 0, 0], (1, 0))                   # (Cin,C1)
    w1blk = jnp.kron(jnp.eye(9, dtype=jnp.bfloat16), w1f)             # bf16

    # Stage 2 / Linear: fold BN scale, store bf16 (weight-DMA-bound layers).
    w2_eff = (w2_t * s2[:, None, None, None]).astype(jnp.bfloat16)    # OIHW
    wl_eff = wl_t.astype(jnp.bfloat16)                                # (out,C2)

    params = dict(
        w1blk=w1blk,                                                   # bf16
        bias1=sh1[None, :],                                            # (1,128)
        w2col=jnp.transpose(w2_eff, (2, 3, 1, 0)).reshape(9 * C1, C2),  # bf16
        bias2=sh2[None, :],                                            # (1,1024)
        wlin=jnp.transpose(wl_eff, (1, 0)),                            # bf16
        blin=bl[None, :],                                              # (1,out)
    )
    ref_params = dict(w1_eff=w1_eff.astype(jnp.float32), sh1=sh1,
                      w2_eff=w2_eff.astype(jnp.float32), sh2=sh2,
                      wl_eff=wl_eff.astype(jnp.float32), bl=bl)
    return params, ref_params


# Independent plain-JAX reference (NCHW, mirrors the PyTorch graph with BN
# folded and the kernels' bf16 storage precision for weights / activations).
def reference_forward(x, rp):
    dn = ("NCHW", "OIHW", "NCHW")
    xb = x.astype(jnp.bfloat16).astype(jnp.float32)      # mirror bf16 input
    y = lax.conv_general_dilated(xb, rp["w1_eff"], (1, 1), ((1, 1), (1, 1)),
                                 dimension_numbers=dn)
    y = y + rp["sh1"][None, :, None, None]
    y = lax.reduce_window(y, -jnp.inf, lax.max, (1, 1, 3, 3), (1, 1, 2, 2),
                          ((0, 0), (0, 0), (1, 1), (1, 1)))
    y = jnp.maximum(y, 0.0)
    y = y.astype(jnp.bfloat16).astype(jnp.float32)       # mirror bf16 pooled
    z = lax.conv_general_dilated(y, rp["w2_eff"], (1, 1), ((1, 1), (1, 1)),
                                 dimension_numbers=dn)
    z = jnp.maximum(z + rp["sh2"][None, :, None, None], 0.0)
    pooled = jnp.mean(z, axis=(2, 3))
    pooled = pooled.astype(jnp.bfloat16).astype(jnp.float32)   # mirror bf16
    return pooled @ rp["wl_eff"].T + rp["bl"][None, :]


if __name__ == "__main__":
    input_nc, output_nc = 4, 8
    key = jax.random.PRNGKey(0)
    kx, kp = jax.random.split(key)
    x = jax.random.normal(kx, (2, input_nc, 16, 16), jnp.float32)
    params, ref_params = init_params(kp, input_nc, output_nc)

    fwd = jax.jit(condition_network2_forward)
    out = jax.block_until_ready(fwd(x, params))
    assert out.shape == (2, output_nc)

    ref = reference_forward(x, ref_params)
    np.testing.assert_allclose(np.asarray(out), np.asarray(ref),
                               rtol=2e-3, atol=2e-3)
    print("KERNEL_OK")
</pallas_src>

<mosaic_0001>
module attributes {stable_mosaic.version = 11 : i64} {
  func.func @_stage1_kernel(%arg0: i32, %arg1: memref<176x36xbf16, #tpu.memory_space<vmem>>, %arg2: memref<36x1152xbf16, #tpu.memory_space<vmem>>, %arg3: memref<1x128xf32, #tpu.memory_space<vmem>>, %arg4: memref<176x128xbf16, #tpu.memory_space<vmem>>) attributes {dimension_semantics = [#tpu.dimension_semantics<parallel>], iteration_bounds = array<i64: 1>, scalar_prefetch = 0 : i64, scratch_operands = 0 : i64, tpu.core_type = #tpu.core_type<tc>, window_params = [{transform_indices = @transform_0, window_bounds = array<i64: 176, 36>}, {pipeline_mode = #tpu.pipeline_mode<synchronous>, transform_indices = @transform_1, window_bounds = array<i64: 36, 1152>}, {pipeline_mode = #tpu.pipeline_mode<synchronous>, transform_indices = @transform_2, window_bounds = array<i64: 1, 128>}, {transform_indices = @transform_3, window_bounds = array<i64: 176, 128>}]} {
    %c0 = arith.constant 0 : index
    %c0_0 = arith.constant 0 : index
    %0 = vector.load %arg1[%c0, %c0_0] : memref<176x36xbf16, #tpu.memory_space<vmem>>, vector<176x36xbf16>
    %c0_1 = arith.constant 0 : index
    %c0_2 = arith.constant 0 : index
    %1 = vector.load %arg2[%c0_1, %c0_2] : memref<36x1152xbf16, #tpu.memory_space<vmem>>, vector<36x1152xbf16>
    %cst = arith.constant dense<0.000000e+00> : vector<176x1152xf32>
    %2 = tpu.matmul %0, %1, %cst {dimension_numbers = #tpu.dot_dimension_numbers<[1], [0], [0], [1], [0, 0, 1, 1], [], []>} : vector<176x36xbf16>, vector<36x1152xbf16>, vector<176x1152xf32> -> vector<176x1152xf32>
    %3 = vector.extract_strided_slice %2 {offsets = [0, 0], sizes = [176, 128], strides = [1, 1]} : vector<176x1152xf32> to vector<176x128xf32>
    %4 = vector.extract_strided_slice %2 {offsets = [0, 128], sizes = [176, 128], strides = [1, 1]} : vector<176x1152xf32> to vector<176x128xf32>
    %5 = arith.maximumf %3, %4 : vector<176x128xf32>
    %6 = vector.extract_strided_slice %2 {offsets = [0, 256], sizes = [176, 128], strides = [1, 1]} : vector<176x1152xf32> to vector<176x128xf32>
    %7 = arith.maximumf %5, %6 : vector<176x128xf32>
    %8 = vector.extract_strided_slice %2 {offsets = [0, 384], sizes = [176, 128], strides = [1, 1]} : vector<176x1152xf32> to vector<176x128xf32>
    %9 = arith.maximumf %7, %8 : vector<176x128xf32>
    %10 = vector.extract_strided_slice %2 {offsets = [0, 512], sizes = [176, 128], strides = [1, 1]} : vector<176x1152xf32> to vector<176x128xf32>
    %11 = arith.maximumf %9, %10 : vector<176x128xf32>
    %12 = vector.extract_strided_slice %2 {offsets = [0, 640], sizes = [176, 128], strides = [1, 1]} : vector<176x1152xf32> to vector<176x128xf32>
    %13 = arith.maximumf %11, %12 : vector<176x128xf32>
    %14 = vector.extract_strided_slice %2 {offsets = [0, 768], sizes = [176, 128], strides = [1, 1]} : vector<176x1152xf32> to vector<176x128xf32>
    %15 = arith.maximumf %13, %14 : vector<176x128xf32>
    %16 = vector.extract_strided_slice %2 {offsets = [0, 896], sizes = [176, 128], strides = [1, 1]} : vector<176x1152xf32> to vector<176x128xf32>
    %17 = arith.maximumf %15, %16 : vector<176x128xf32>
    %18 = vector.extract_strided_slice %2 {offsets = [0, 1024], sizes = [176, 128], strides = [1, 1]} : vector<176x1152xf32> to vector<176x128xf32>
    %19 = arith.maximumf %17, %18 : vector<176x128xf32>
    %c0_3 = arith.constant 0 : index
    %c0_4 = arith.constant 0 : index
    %20 = vector.load %arg3[%c0_3, %c0_4] : memref<1x128xf32, #tpu.memory_space<vmem>>, vector<1x128xf32>
    %21 = vector.broadcast %20 : vector<1x128xf32> to vector<176x128xf32>
    %22 = arith.addf %19, %21 : vector<176x128xf32>
    %cst_5 = arith.constant 0.000000e+00 : f32
    %23 = vector.broadcast %cst_5 : f32 to vector<176x128xf32>
    %24 = arith.maximumf %22, %23 : vector<176x128xf32>
    %25 = arith.truncf %24 : vector<176x128xf32> to vector<176x128xbf16>
    %c0_6 = arith.constant 0 : index
    %c0_7 = arith.constant 0 : index
    %26 = vector.load %arg4[%c0_6, %c0_7] : memref<176x128xbf16, #tpu.memory_space<vmem>>, vector<176x128xbf16>
    tpu.vector_store %arg4[%c0_6, %c0_7], %25 {strides = array<i32>} : memref<176x128xbf16, #tpu.memory_space<vmem>>, vector<176x128xbf16>,
    return
  }
  func.func @transform_0(%arg0: i32) -> (i32, i32) {
    %c0_i32 = arith.constant 0 : i32
    %c0_i32_0 = arith.constant 0 : i32
    return %arg0, %c0_i32 : i32, i32
  }
  func.func @transform_1(%arg0: i32) -> (i32, i32) {
    %c0_i32 = arith.constant 0 : i32
    %c0_i32_0 = arith.constant 0 : i32
    %c0_i32_1 = arith.constant 0 : i32
    return %c0_i32, %c0_i32_0 : i32, i32
  }
  func.func @transform_2(%arg0: i32) -> (i32, i32) {
    %c0_i32 = arith.constant 0 : i32
    %c0_i32_0 = arith.constant 0 : i32
    %c0_i32_1 = arith.constant 0 : i32
    return %c0_i32, %c0_i32_0 : i32, i32
  }
  func.func @transform_3(%arg0: i32) -> (i32, i32) {
    %c0_i32 = arith.constant 0 : i32
    %c0_i32_0 = arith.constant 0 : i32
    return %arg0, %c0_i32 : i32, i32
  }
}

module attributes {stable_mosaic.version = 11 : i64} {
  func.func @_stage2_kernel(%arg0: i32, %arg1: memref<2x176x384xbf16, #tpu.memory_space<vmem>>, %arg2: memref<1152x512xbf16, #tpu.memory_space<vmem>>, %arg3: memref<1x512xf32, #tpu.memory_space<vmem>>, %arg4: memref<144x1xf32, #tpu.memory_space<vmem>>, %arg5: memref<1x2x512xf32, #tpu.memory_space<vmem>>) attributes {dimension_semantics = [#tpu.dimension_semantics<parallel>], iteration_bounds = array<i64: 2>, scalar_prefetch = 0 : i64, scratch_operands = 0 : i64, tpu.core_type = #tpu.core_type<tc>, window_params = [{pipeline_mode = #tpu.pipeline_mode<synchronous>, transform_indices = @transform_0, window_bounds = array<i64: 2, 176, 384>}, {transform_indices = @transform_1, window_bounds = array<i64: 1152, 512>}, {transform_indices = @transform_2, window_bounds = array<i64: 1, 512>}, {pipeline_mode = #tpu.pipeline_mode<synchronous>, transform_indices = @transform_3, window_bounds = array<i64: 144, 1>}, {transform_indices = @transform_4, window_bounds = array<i64: 1, 2, 512>}]} {
    %c0 = arith.constant 0 : index
    %c0_0 = arith.constant 0 : index
    %0 = vector.load %arg3[%c0, %c0_0] : memref<1x512xf32, #tpu.memory_space<vmem>>, vector<1x512xf32>
    %c0_1 = arith.constant 0 : index
    %c0_2 = arith.constant 0 : index
    %1 = vector.load %arg4[%c0_1, %c0_2] : memref<144x1xf32, #tpu.memory_space<vmem>>, vector<144x1xf32>
    %c0_3 = arith.constant 0 : index
    %c0_4 = arith.constant 0 : index
    %c0_5 = arith.constant 0 : index
    %2 = vector.load %arg1[%c0_3, %c0_4, %c0_5] : memref<2x176x384xbf16, #tpu.memory_space<vmem>>, vector<1x144x384xbf16>
    %3 = vector.shape_cast %2 : vector<1x144x384xbf16> to vector<144x384xbf16>
    %c0_6 = arith.constant 0 : index
    %c0_7 = arith.constant 0 : index
    %4 = vector.load %arg2[%c0_6, %c0_7] : memref<1152x512xbf16, #tpu.memory_space<vmem>>, vector<384x512xbf16>
    %cst = arith.constant dense<0.000000e+00> : vector<144x512xf32>
    %5 = tpu.matmul %3, %4, %cst {dimension_numbers = #tpu.dot_dimension_numbers<[1], [0], [0], [1], [0, 0, 1, 1], [], []>} : vector<144x384xbf16>, vector<384x512xbf16>, vector<144x512xf32> -> vector<144x512xf32>
    %c0_8 = arith.constant 0 : index
    %c16 = arith.constant 16 : index
    %c0_9 = arith.constant 0 : index
    %6 = vector.load %arg1[%c0_8, %c16, %c0_9] : memref<2x176x384xbf16, #tpu.memory_space<vmem>>, vector<1x144x384xbf16>
    %7 = vector.shape_cast %6 : vector<1x144x384xbf16> to vector<144x384xbf16>
    %c384 = arith.constant 384 : index
    %c0_10 = arith.constant 0 : index
    %8 = vector.load %arg2[%c384, %c0_10] : memref<1152x512xbf16, #tpu.memory_space<vmem>>, vector<384x512xbf16>
    %cst_11 = arith.constant dense<0.000000e+00> : vector<144x512xf32>
    %9 = tpu.matmul %7, %8, %cst_11 {dimension_numbers = #tpu.dot_dimension_numbers<[1], [0], [0], [1], [0, 0, 1, 1], [], []>} : vector<144x384xbf16>, vector<384x512xbf16>, vector<144x512xf32> -> vector<144x512xf32>
    %10 = arith.addf %5, %9 : vector<144x512xf32>
    %c0_12 = arith.constant 0 : index
    %c32 = arith.constant 32 : index
    %c0_13 = arith.constant 0 : index
    %11 = vector.load %arg1[%c0_12, %c32, %c0_13] : memref<2x176x384xbf16, #tpu.memory_space<vmem>>, vector<1x144x384xbf16>
    %12 = vector.shape_cast %11 : vector<1x144x384xbf16> to vector<144x384xbf16>
    %c768 = arith.constant 768 : index
    %c0_14 = arith.constant 0 : index
    %13 = vector.load %arg2[%c768, %c0_14] : memref<1152x512xbf16, #tpu.memory_space<vmem>>, vector<384x512xbf16>
    %cst_15 = arith.constant dense<0.000000e+00> : vector<144x512xf32>
    %14 = tpu.matmul %12, %13, %cst_15 {dimension_numbers = #tpu.dot_dimension_numbers<[1], [0], [0], [1], [0, 0, 1, 1], [], []>} : vector<144x384xbf16>, vector<384x512xbf16>, vector<144x512xf32> -> vector<144x512xf32>
    %15 = arith.addf %10, %14 : vector<144x512xf32>
    %16 = vector.broadcast %0 : vector<1x512xf32> to vector<144x512xf32>
    %17 = arith.addf %15, %16 : vector<144x512xf32>
    %cst_16 = arith.constant 0.000000e+00 : f32
    %18 = vector.broadcast %cst_16 : f32 to vector<144x512xf32>
    %19 = arith.maximumf %17, %18 : vector<144x512xf32>
    %20 = vector.broadcast %1 : vector<144x1xf32> to vector<144x512xf32>
    %21 = arith.mulf %19, %20 : vector<144x512xf32>
    %cst_17 = arith.constant dense<0.000000e+00> : vector<512xf32>
    %22 = vector.multi_reduction <add>, %21, %cst_17 [0] : vector<144x512xf32> to vector<512xf32>
    %23 = vector.shape_cast %22 : vector<512xf32> to vector<1x512xf32>
    %c1 = arith.constant 1 : index
    %c0_18 = arith.constant 0 : index
    %c0_19 = arith.constant 0 : index
    %24 = vector.load %arg1[%c1, %c0_18, %c0_19] : memref<2x176x384xbf16, #tpu.memory_space<vmem>>, vector<1x144x384xbf16>
    %25 = vector.shape_cast %24 : vector<1x144x384xbf16> to vector<144x384xbf16>
    %c0_20 = arith.constant 0 : index
    %c0_21 = arith.constant 0 : index
    %26 = vector.load %arg2[%c0_20, %c0_21] : memref<1152x512xbf16, #tpu.memory_space<vmem>>, vector<384x512xbf16>
    %cst_22 = arith.constant dense<0.000000e+00> : vector<144x512xf32>
    %27 = tpu.matmul %25, %26, %cst_22 {dimension_numbers = #tpu.dot_dimension_numbers<[1], [0], [0], [1], [0, 0, 1, 1], [], []>} : vector<144x384xbf16>, vector<384x512xbf16>, vector<144x512xf32> -> vector<144x512xf32>
    %c1_23 = arith.constant 1 : index
    %c16_24 = arith.constant 16 : index
    %c0_25 = arith.constant 0 : index
    %28 = vector.load %arg1[%c1_23, %c16_24, %c0_25] : memref<2x176x384xbf16, #tpu.memory_space<vmem>>, vector<1x144x384xbf16>
    %29 = vector.shape_cast %28 : vector<1x144x384xbf16> to vector<144x384xbf16>
    %c384_26 = arith.constant 384 : index
    %c0_27 = arith.constant 0 : index
    %30 = vector.load %arg2[%c384_26, %c0_27] : memref<1152x512xbf16, #tpu.memory_space<vmem>>, vector<384x512xbf16>
    %cst_28 = arith.constant dense<0.000000e+00> : vector<144x512xf32>
    %31 = tpu.matmul %29, %30, %cst_28 {dimension_numbers = #tpu.dot_dimension_numbers<[1], [0], [0], [1], [0, 0, 1, 1], [], []>} : vector<144x384xbf16>, vector<384x512xbf16>, vector<144x512xf32> -> vector<144x512xf32>
    %32 = arith.addf %27, %31 : vector<144x512xf32>
    %c1_29 = arith.constant 1 : index
    %c32_30 = arith.constant 32 : index
    %c0_31 = arith.constant 0 : index
    %33 = vector.load %arg1[%c1_29, %c32_30, %c0_31] : memref<2x176x384xbf16, #tpu.memory_space<vmem>>, vector<1x144x384xbf16>
    %34 = vector.shape_cast %33 : vector<1x144x384xbf16> to vector<144x384xbf16>
    %c768_32 = arith.constant 768 : index
    %c0_33 = arith.constant 0 : index
    %35 = vector.load %arg2[%c768_32, %c0_33] : memref<1152x512xbf16, #tpu.memory_space<vmem>>, vector<384x512xbf16>
    %cst_34 = arith.constant dense<0.000000e+00> : vector<144x512xf32>
    %36 = tpu.matmul %34, %35, %cst_34 {dimension_numbers = #tpu.dot_dimension_numbers<[1], [0], [0], [1], [0, 0, 1, 1], [], []>} : vector<144x384xbf16>, vector<384x512xbf16>, vector<144x512xf32> -> vector<144x512xf32>
    %37 = arith.addf %32, %36 : vector<144x512xf32>
    %38 = vector.broadcast %0 : vector<1x512xf32> to vector<144x512xf32>
    %39 = arith.addf %37, %38 : vector<144x512xf32>
    %cst_35 = arith.constant 0.000000e+00 : f32
    %40 = vector.broadcast %cst_35 : f32 to vector<144x512xf32>
    %41 = arith.maximumf %39, %40 : vector<144x512xf32>
    %42 = vector.broadcast %1 : vector<144x1xf32> to vector<144x512xf32>
    %43 = arith.mulf %41, %42 : vector<144x512xf32>
    %cst_36 = arith.constant dense<0.000000e+00> : vector<512xf32>
    %44 = vector.multi_reduction <add>, %43, %cst_36 [0] : vector<144x512xf32> to vector<512xf32>
    %45 = vector.shape_cast %44 : vector<512xf32> to vector<1x512xf32>
    %46 = tpu.concatenate %23, %45 in 0 : vector<1x512xf32>, vector<1x512xf32> -> vector<2x512xf32>
    %47 = vector.shape_cast %46 : vector<2x512xf32> to vector<1x2x512xf32>
    %c0_37 = arith.constant 0 : index
    %c0_38 = arith.constant 0 : index
    %c0_39 = arith.constant 0 : index
    %48 = vector.load %arg5[%c0_37, %c0_38, %c0_39] : memref<1x2x512xf32, #tpu.memory_space<vmem>>, vector<1x2x512xf32>
    tpu.vector_store %arg5[%c0_37, %c0_38, %c0_39], %47 {strides = array<i32>} : memref<1x2x512xf32, #tpu.memory_space<vmem>>, vector<1x2x512xf32>,
    return
  }
  func.func @transform_0(%arg0: i32) -> (i32, i32, i32) {
    %c0_i32 = arith.constant 0 : i32
    %c0_i32_0 = arith.constant 0 : i32
    %c0_i32_1 = arith.constant 0 : i32
    %c0_i32_2 = arith.constant 0 : i32
    return %c0_i32, %c0_i32_0, %c0_i32_1 : i32, i32, i32
  }
  func.func @transform_1(%arg0: i32) -> (i32, i32) {
    %c0_i32 = arith.constant 0 : i32
    %c0_i32_0 = arith.constant 0 : i32
    return %c0_i32, %arg0 : i32, i32
  }
  func.func @transform_2(%arg0: i32) -> (i32, i32) {
    %c0_i32 = arith.constant 0 : i32
    %c0_i32_0 = arith.constant 0 : i32
    return %c0_i32, %arg0 : i32, i32
  }
  func.func @transform_3(%arg0: i32) -> (i32, i32) {
    %c0_i32 = arith.constant 0 : i32
    %c0_i32_0 = arith.constant 0 : i32
    %c0_i32_1 = arith.constant 0 : i32
    return %c0_i32, %c0_i32_0 : i32, i32
  }
  func.func @transform_4(%arg0: i32) -> (i32, i32, i32) {
    %c0_i32 = arith.constant 0 : i32
    %c0_i32_0 = arith.constant 0 : i32
    %c0_i32_1 = arith.constant 0 : i32
    return %arg0, %c0_i32, %c0_i32_0 : i32, i32, i32
  }
}

module attributes {stable_mosaic.version = 11 : i64} {
  func.func @_linear_kernel(%arg0: i32, %arg1: memref<2x2x512xf32, #tpu.memory_space<vmem>>, %arg2: memref<1024x8xbf16, #tpu.memory_space<vmem>>, %arg3: memref<1x8xf32, #tpu.memory_space<vmem>>, %arg4: memref<2x8xf32, #tpu.memory_space<vmem>>) attributes {dimension_semantics = [#tpu.dimension_semantics<arbitrary>], iteration_bounds = array<i64: 1>, scalar_prefetch = 0 : i64, scratch_operands = 0 : i64, tpu.core_type = #tpu.core_type<tc>, window_params = [{pipeline_mode = #tpu.pipeline_mode<synchronous>, transform_indices = @transform_0, window_bounds = array<i64: 2, 2, 512>}, {pipeline_mode = #tpu.pipeline_mode<synchronous>, transform_indices = @transform_1, window_bounds = array<i64: 1024, 8>}, {pipeline_mode = #tpu.pipeline_mode<synchronous>, transform_indices = @transform_2, window_bounds = array<i64: 1, 8>}, {pipeline_mode = #tpu.pipeline_mode<synchronous>, transform_indices = @transform_3, window_bounds = array<i64: 2, 8>}]} {
    %c0 = arith.constant 0 : index
    %c0_0 = arith.constant 0 : index
    %0 = vector.load %arg3[%c0, %c0_0] : memref<1x8xf32, #tpu.memory_space<vmem>>, vector<1x8xf32>
    %1 = vector.shape_cast %0 : vector<1x8xf32> to vector<1x8xf32>
    %2 = vector.broadcast %1 : vector<1x8xf32> to vector<2x8xf32>
    %c0_1 = arith.constant 0 : index
    %c0_2 = arith.constant 0 : index
    %c0_3 = arith.constant 0 : index
    %3 = vector.load %arg1[%c0_1, %c0_2, %c0_3] : memref<2x2x512xf32, #tpu.memory_space<vmem>>, vector<1x2x512xf32>
    %4 = vector.shape_cast %3 : vector<1x2x512xf32> to vector<2x512xf32>
    %5 = arith.truncf %4 : vector<2x512xf32> to vector<2x512xbf16>
    %c0_4 = arith.constant 0 : index
    %c0_5 = arith.constant 0 : index
    %6 = vector.load %arg2[%c0_4, %c0_5] : memref<1024x8xbf16, #tpu.memory_space<vmem>>, vector<512x8xbf16>
    %cst = arith.constant dense<0.000000e+00> : vector<2x8xf32>
    %7 = tpu.matmul %5, %6, %cst {dimension_numbers = #tpu.dot_dimension_numbers<[1], [0], [0], [1], [0, 0, 1, 1], [], []>} : vector<2x512xbf16>, vector<512x8xbf16>, vector<2x8xf32> -> vector<2x8xf32>
    %8 = arith.addf %2, %7 : vector<2x8xf32>
    %c1 = arith.constant 1 : index
    %c0_6 = arith.constant 0 : index
    %c0_7 = arith.constant 0 : index
    %9 = vector.load %arg1[%c1, %c0_6, %c0_7] : memref<2x2x512xf32, #tpu.memory_space<vmem>>, vector<1x2x512xf32>
    %10 = vector.shape_cast %9 : vector<1x2x512xf32> to vector<2x512xf32>
    %11 = arith.truncf %10 : vector<2x512xf32> to vector<2x512xbf16>
    %c512 = arith.constant 512 : index
    %c0_8 = arith.constant 0 : index
    %12 = vector.load %arg2[%c512, %c0_8] : memref<1024x8xbf16, #tpu.memory_space<vmem>>, vector<512x8xbf16>
    %cst_9 = arith.constant dense<0.000000e+00> : vector<2x8xf32>
    %13 = tpu.matmul %11, %12, %cst_9 {dimension_numbers = #tpu.dot_dimension_numbers<[1], [0], [0], [1], [0, 0, 1, 1], [], []>} : vector<2x512xbf16>, vector<512x8xbf16>, vector<2x8xf32> -> vector<2x8xf32>
    %14 = arith.addf %8, %13 : vector<2x8xf32>
    %c0_10 = arith.constant 0 : index
    %c0_11 = arith.constant 0 : index
    %15 = vector.load %arg4[%c0_10, %c0_11] : memref<2x8xf32, #tpu.memory_space<vmem>>, vector<2x8xf32>
    tpu.vector_store %arg4[%c0_10, %c0_11], %14 {strides = array<i32>} : memref<2x8xf32, #tpu.memory_space<vmem>>, vector<2x8xf32>,
    return
  }
  func.func @transform_0(%arg0: i32) -> (i32, i32, i32) {
    %c0_i32 = arith.constant 0 : i32
    %c0_i32_0 = arith.constant 0 : i32
    %c0_i32_1 = arith.constant 0 : i32
    %c0_i32_2 = arith.constant 0 : i32
    return %c0_i32, %c0_i32_0, %c0_i32_1 : i32, i32, i32
  }
  func.func @transform_1(%arg0: i32) -> (i32, i32) {
    %c0_i32 = arith.constant 0 : i32
    %c0_i32_0 = arith.constant 0 : i32
    %c0_i32_1 = arith.constant 0 : i32
    return %c0_i32, %c0_i32_0 : i32, i32
  }
  func.func @transform_2(%arg0: i32) -> (i32, i32) {
    %c0_i32 = arith.constant 0 : i32
    %c0_i32_0 = arith.constant 0 : i32
    %c0_i32_1 = arith.constant 0 : i32
    return %c0_i32, %c0_i32_0 : i32, i32
  }
  func.func @transform_3(%arg0: i32) -> (i32, i32) {
    %c0_i32 = arith.constant 0 : i32
    %c0_i32_0 = arith.constant 0 : i32
    %c0_i32_1 = arith.constant 0 : i32
    return %c0_i32, %c0_i32_0 : i32, i32
  }
}

</mosaic_0001>

<llo_original>
// kernel: condition_network2_forward.3
$region0: #{condition_network2_forward.3}
  #allocation0 [shape = 'u32[]', space=smem, size = 0x4, offset = 0x4, fixed_abs, tag = 'smem constant byte address 0x4 - core index']
  #allocation1 [shape = 'u32[144,128]{1,0:T(1,128)}', space=vmem, size = 0x12000, scoped, tag = 'internal scratch']
  %s0 = inlined_call_operand.vmem [shape: bf16[176,36], index: 0, kind: input, shape index: {}]
  %s1 = inlined_call_operand.hbm [shape: bf16[36,1152], index: 1, kind: input, shape index: {}]
  %s2 = inlined_call_operand.hbm [shape: f32[1,128], index: 2, kind: input, shape index: {}]
  %s3 = inlined_call_operand.vmem [shape: bf16[176,128], index: 3, kind: output, shape index: {}]
  %s4 = sld [smem:[#allocation0]]
  $region30: #{condition_network2_forward.3} parent=0
    _
  %s6 = ssub.s32 1, %s4
  %s7 = scalar_select 0, %s6, %s4
  $region1: #{condition_network2_forward.3} parent=0
    #allocation2 [shape = 'u8[92160]{0}', space=vmem, size = 0x16800, scoped, tag = 'input window, operand 1, single buffered']
    #allocation3 [shape = 's32[1]{0}', space=sflag, size = 0x4, scoped, tag = 'scoped memory for condition_network2_forward.3']
    #allocation4 [shape = 'u8[512]{0}', space=vmem, size = 0x400, scoped, tag = 'input window, operand 2, single buffered']
    #allocation5 [shape = 's32[1]{0}', space=sflag, size = 0x4, scoped, tag = 'scoped memory for condition_network2_forward.3']
    %8 = vsyncpa [#allocation3], 0
    %9 = vsyncpa [#allocation5], 0
    // Predicated region
    $region2: #{condition_network2_forward.3} parent=1 // pred_check
      _
    $region3: #{condition_network2_forward.3} parent=1 // pred_check_branch
      %11 = sbr.rel (0) target = $region5
    $region4: #{condition_network2_forward.3} parent=1 // pred_region
      _
    $region5: #{condition_network2_forward.3} parent=1 // pred_fallthru
      _
    // Predicated region
    $region6: #{condition_network2_forward.3} parent=1 // pred_check
      _
    $region7: #{condition_network2_forward.3} parent=1 // pred_check_branch
      %13 = sbr.rel (0) target = $region9
    $region8: #{condition_network2_forward.3} parent=1 // pred_region
      %s15 = ssub.s32 2880, 2880
      %16 = vsyncadd [#allocation3], %s15
      %s17 = sshll.u32 [#allocation2], 4
      %s18 = int_to_ptr.vmem [resolvable:$true] %s17
      %23 = dma.hbm_to_vmem [thread:$0]  %s1, 2880, %s18, [#allocation3], 576, 576, 36
    $region9: #{condition_network2_forward.3} parent=1 // pred_fallthru
      _
    // Predicated region
    $region10: #{condition_network2_forward.3} parent=1 // pred_check
      _
    $region11: #{condition_network2_forward.3} parent=1 // pred_check_branch
      %25 = sbr.rel (0) target = $region13
    $region12: #{condition_network2_forward.3} parent=1 // pred_region
      %s27 = ssub.s32 16, 16
      %28 = vsyncadd [#allocation5], %s27
      %s30 = sshll.u32 [#allocation4], 4
      %s31 = int_to_ptr.vmem [resolvable:$true] %s30
      %33 = dma.hbm_to_vmem [thread:$0]  %s2, 16, %s31, [#allocation5]
    $region13: #{condition_network2_forward.3} parent=1 // pred_fallthru
      _
    // Predicated region
    $region14: #{condition_network2_forward.3} parent=1 // pred_check
      _
    $region15: #{condition_network2_forward.3} parent=1 // pred_check_branch
      %35 = sbr.rel (0) target = $region17
    $region16: #{condition_network2_forward.3} parent=1 // pred_region
      %36 = dma.done [#allocation3], 2880
    $region17: #{condition_network2_forward.3} parent=1 // pred_fallthru
      _
    // Predicated region
    $region18: #{condition_network2_forward.3} parent=1 // pred_check
      _
    $region19: #{condition_network2_forward.3} parent=1 // pred_check_branch
      %38 = sbr.rel (0) target = $region21
    $region20: #{condition_network2_forward.3} parent=1 // pred_region
      %39 = dma.done [#allocation5], 16
    $region21: #{condition_network2_forward.3} parent=1 // pred_fallthru
      _
    %v41 = vld [vmem:[%s0] sm:$0xf]
    %v42 = vld [vmem:[%s0 + $0x4] sm:$0xf]
    %v43 = vld [vmem:[%s0 + $0x8] sm:$0xf]
    %v44 = vld [vmem:[%s0 + $0xc] sm:$0xf]
    %v45 = vld [vmem:[%s0 + $0x10] sm:$0xf]
    %v46 = vld [vmem:[%s0 + $0x14] sm:$0xf]
    %v47 = vld [vmem:[%s0 + $0x18] sm:$0xf]
    %v48 = vld [vmem:[%s0 + $0x1c] sm:$0xf]
    %v49 = vld [vmem:[%s0 + $0x20] sm:$0xf]
    %v50 = vld [vmem:[%s0 + $0x24] sm:$0xf]
    %v51 = vld [vmem:[%s0 + $0x28] sm:$0xf]
    %v52 = vld [vmem:[%s0 + $0x2c] sm:$0xf]
    %v53 = vld [vmem:[%s0 + $0x30] sm:$0xf]
    %v54 = vld [vmem:[%s0 + $0x34] sm:$0xf]
    %v55 = vld [vmem:[%s0 + $0x38] sm:$0xf]
    %v56 = vld [vmem:[%s0 + $0x3c] sm:$0xf]
    %v57 = vld [vmem:[%s0 + $0x40] sm:$0xf]
    %v58 = vld [vmem:[%s0 + $0x44] sm:$0xf]
    %v59 = vld [vmem:[%s0 + $0x48] sm:$0xf]
    %v60 = vld [vmem:[%s0 + $0x4c] sm:$0xf]
    %v61 = vld [vmem:[%s0 + $0x50] sm:$0xf]
    %v62 = vld [vmem:[%s0 + $0x54] sm:$0xf]
    %v63 = vld [vmem:[#allocation2] sm:$0xff]
    %v64 = vld [vmem:[#allocation2 + $0x8] sm:$0xff]
    %v65 = vld [vmem:[#allocation2 + $0x10] sm:$0xff]
    %v66 = vld [vmem:[#allocation2 + $0x18] sm:$0xff]
    %v67 = vld [vmem:[#allocation2 + $0x20] sm:$0xf]
    %v68 = vld [vmem:[#allocation2 + $0x24] sm:$0xff]
    %v69 = vld [vmem:[#allocation2 + $0x2c] sm:$0xff]
    %v70 = vld [vmem:[#allocation2 + $0x34] sm:$0xff]
    %v71 = vld [vmem:[#allocation2 + $0x3c] sm:$0xff]
    %v72 = vld [vmem:[#allocation2 + $0x44] sm:$0xf]
    %v73 = vld [vmem:[#allocation2 + $0x48] sm:$0xff]
    %v74 = vld [vmem:[#allocation2 + $0x50] sm:$0xff]
    %v75 = vld [vmem:[#allocation2 + $0x58] sm:$0xff]
    %v76 = vld [vmem:[#allocation2 + $0x60] sm:$0xff]
    %v77 = vld [vmem:[#allocation2 + $0x68] sm:$0xf]
    %v78 = vld [vmem:[#allocation2 + $0x6c] sm:$0xff]
    %v79 = vld [vmem:[#allocation2 + $0x74] sm:$0xff]
    %v80 = vld [vmem:[#allocation2 + $0x7c] sm:$0xff]
    %v81 = vld [vmem:[#allocation2 + $0x84] sm:$0xff]
    %v82 = vld [vmem:[#allocation2 + $0x8c] sm:$0xf]
    %v83 = vld [vmem:[#allocation2 + $0x90] sm:$0x33]
    %v84 = vld [vmem:[#allocation2 + $0x98] sm:$0x33]
    %v85 = vld [vmem:[#allocation2 + $0xa0] sm:$0x33]
    %v86 = vld [vmem:[#allocation2 + $0xa8] sm:$0x33]
    %v87 = vld [vmem:[#allocation2 + $0xb0] sm:$0x3]
    %v110 = vunpack.c.l.b16 %v41
    %v111 = vunpack.c.l.b16 %v42
    %v112 = vunpack.c.l.b16 %v43
    %v113 = vunpack.c.l.b16 %v44
    %v114 = vunpack.c.l.b16 %v45
    %v115 = vunpack.c.l.b16 %v46
    %v116 = vunpack.c.l.b16 %v47
    %v117 = vunpack.c.l.b16 %v48
    %v118 = vunpack.c.l.b16 %v49
    %v119 = vunpack.c.l.b16 %v50
    %v120 = vunpack.c.l.b16 %v51
    %v121 = vunpack.c.l.b16 %v52
    %v122 = vunpack.c.l.b16 %v53
    %v123 = vunpack.c.l.b16 %v54
    %v124 = vunpack.c.l.b16 %v55
    %v125 = vunpack.c.l.b16 %v56
    %v126 = vunpack.c.l.b16 %v57
    %v127 = vunpack.c.l.b16 %v58
    %v128 = vunpack.c.l.b16 %v59
    %v129 = vunpack.c.l.b16 %v60
    %v130 = vunpack.c.l.b16 %v61
    %v131 = vunpack.c.l.b16 %v62
    %v132 = vpack.c.b16 %v111, %v110
    %v133 = vpack.c.b16 %v113, %v112
    %v134 = vpack.c.b16 %v115, %v114
    %v135 = vpack.c.b16 %v117, %v116
    %v136 = vpack.c.b16 %v119, %v118
    %v137 = vpack.c.b16 %v121, %v120
    %v138 = vpack.c.b16 %v123, %v122
    %v139 = vpack.c.b16 %v125, %v124
    %v140 = vpack.c.b16 %v127, %v126
    %v141 = vpack.c.b16 %v129, %v128
    %v142 = vpack.c.b16 %v131, %v130
    %v168 = vunpack.c.l.b16 %v63
    %v169 = vunpack.c.h.b16 %v63
    %v170 = vunpack.c.l.b16 %v64
    %v171 = vunpack.c.h.b16 %v64
    %v172 = vunpack.c.l.b16 %v65
    %v173 = vunpack.c.h.b16 %v65
    %v174 = vunpack.c.l.b16 %v66
    %v175 = vunpack.c.h.b16 %v66
    %v176 = vunpack.c.l.b16 %v67
    %v177 = vunpack.c.l.b16 %v68
    %v178 = vunpack.c.h.b16 %v68
    %v179 = vunpack.c.l.b16 %v69
    %v180 = vunpack.c.h.b16 %v69
    %v181 = vunpack.c.l.b16 %v70
    %v182 = vunpack.c.h.b16 %v70
    %v183 = vunpack.c.l.b16 %v71
    %v184 = vunpack.c.h.b16 %v71
    %v185 = vunpack.c.l.b16 %v72
    %v186 = vunpack.c.l.b16 %v73
    %v187 = vunpack.c.h.b16 %v73
    %v188 = vunpack.c.l.b16 %v74
    %v189 = vunpack.c.h.b16 %v74
    %v190 = vunpack.c.l.b16 %v75
    %v191 = vunpack.c.h.b16 %v75
    %v192 = vunpack.c.l.b16 %v76
    %v193 = vunpack.c.h.b16 %v76
    %v194 = vunpack.c.l.b16 %v77
    %v195 = vunpack.c.l.b16 %v78
    %v196 = vunpack.c.h.b16 %v78
    %v197 = vunpack.c.l.b16 %v79
    %v198 = vunpack.c.h.b16 %v79
    %v199 = vunpack.c.l.b16 %v80
    %v200 = vunpack.c.h.b16 %v80
    %v201 = vunpack.c.l.b16 %v81
    %v202 = vunpack.c.h.b16 %v81
    %v203 = vunpack.c.l.b16 %v82
    %v204 = vunpack.c.l.b16 %v83
    %v205 = vunpack.c.h.b16 %v83
    %v206 = vunpack.c.l.b16 %v84
    %v207 = vunpack.c.h.b16 %v84
    %v208 = vunpack.c.l.b16 %v85
    %v209 = vunpack.c.h.b16 %v85
    %v210 = vunpack.c.l.b16 %v86
    %v211 = vunpack.c.h.b16 %v86
    %v212 = vunpack.c.l.b16 %v87
    %v213 = vpack.c.b16 %v177, %v168
    %v214 = vpack.c.b16 %v178, %v169
    %v215 = vpack.c.b16 %v179, %v170
    %v216 = vpack.c.b16 %v180, %v171
    %v217 = vpack.c.b16 %v181, %v172
    %v218 = vpack.c.b16 %v182, %v173
    %v219 = vpack.c.b16 %v183, %v174
    %v220 = vpack.c.b16 %v184, %v175
    %v221 = vpack.c.b16 %v185, %v176
    %v222 = vpack.c.b16 %v195, %v186
    %v223 = vpack.c.b16 %v196, %v187
    %v224 = vpack.c.b16 %v197, %v188
    %v225 = vpack.c.b16 %v198, %v189
    %v226 = vpack.c.b16 %v199, %v190
    %v227 = vpack.c.b16 %v200, %v191
    %v228 = vpack.c.b16 %v201, %v192
    %v229 = vpack.c.b16 %v202, %v193
    %v230 = vpack.c.b16 %v203, %v194
    %v231 = vpack.c.b16 %v204, %v204
    %v232 = vpack.c.b16 %v205, %v205
    %v233 = vpack.c.b16 %v206, %v206
    %v234 = vpack.c.b16 %v207, %v207
    %v235 = vpack.c.b16 %v208, %v208
    %v236 = vpack.c.b16 %v209, %v209
    %v237 = vpack.c.b16 %v210, %v210
    %v238 = vpack.c.b16 %v211, %v211
    %v239 = vpack.c.b16 %v212, %v212
    %vm258 = vcmask 293888
    %v260 = vsel %vm258, %v132, 0
    %v263 = vsel %vm258, %v133, 0
    %v266 = vsel %vm258, %v134, 0
    %v269 = vsel %vm258, %v135, 0
    %v272 = vsel %vm258, %v136, 0
    %v275 = vsel %vm258, %v137, 0
    %v278 = vsel %vm258, %v138, 0
    %v281 = vsel %vm258, %v139, 0
    %v284 = vsel %vm258, %v140, 0
    %v287 = vsel %vm258, %v141, 0
    %v290 = vsel %vm258, %v142, 0
    %vm292 = vcmask 1041408
    %v294 = vsel %vm292, %v231, 0
    %v297 = vsel %vm292, %v232, 0
    %v300 = vsel %vm292, %v233, 0
    %v303 = vsel %vm292, %v234, 0
    %v306 = vsel %vm292, %v235, 0
    %v309 = vsel %vm292, %v236, 0
    %v312 = vsel %vm292, %v237, 0
    %v315 = vsel %vm292, %v238, 0
    %v318 = vsel %vm292, %v239, 0
    %320 = vmatprep.subr.bf16.mxu0 %v214
    %321 = vmatpush1.bf16.msra.mxu0 %v213
    %322 = vmatprep.subr.bf16.mxu0 %v223
    %323 = vmatpush1.bf16.msra.mxu0 %v222
    %324 = vmatprep.subr.bf16.mxu0 %v297
    %325 = vmatpush1.bf16.msra.mxu0 %v294
    %326 = vmatprep.subr.bf16.mxu0 0
    %327 = vmatpush1.bf16.msra.mxu0 0
    %328 = vmatprep.subr.bf16.mxu0 0
    %329 = vmatpush1.bf16.msra.mxu0 0
    %330 = vmatprep.subr.bf16.mxu0 0
    %331 = vmatpush1.bf16.msra.mxu0 0
    %332 = vmatprep.subr.bf16.mxu0 0
    %333 = vmatpush1.bf16.msra.mxu0 0
    %334 = vmatprep.subr.bf16.mxu0 0
    %335 = vmatpush1.bf16.msra.mxu0 0
    %336 = vmatprep.subr.bf16.mxu0 0
    %337 = vmatpush1.bf16.msra.mxu0 0
    %338 = vmatprep.subr.bf16.mxu0 0
    %339 = vmatpush1.bf16.msra.mxu0 0
    %340 = vmatprep.subr.bf16.mxu0 0
    %341 = vmatpush1.bf16.msra.mxu0 0
    %342 = vmatprep.subr.bf16.mxu0 0
    %343 = vmatpush1.bf16.msra.mxu0 0
    %344 = vmatprep.subr.bf16.mxu0 0
    %345 = vmatpush1.bf16.msra.mxu0 0
    %346 = vmatprep.subr.bf16.mxu0 0
    %347 = vmatpush1.bf16.msra.mxu0 0
    %348 = vmatprep.subr.bf16.mxu0 0
    %349 = vmatpush1.bf16.msra.mxu0 0
    %350 = vmatprep.subr.bf16.mxu0 0
    %351 = vmatpush1.bf16.msra.mxu0 0
    %352 = vmatprep.mubr.bf16.mxu0 0
    %353 = vmatmul.mubr.bf16.gmra.mrb[0].mxu0 %v260
    %v354 = vpop.f32.mrb[0].mxu0
    %v355 = vadd.f32 0.0, %v354
    %v356 = vpop.f32.mrb[0].mxu0
    %v357 = vadd.f32 0.0, %v356
    %v358 = vpop.f32.mrb[0].mxu0
    %v359 = vadd.f32 0.0, %v358
    %v360 = vpop.f32.mrb[0].mxu0
    %v361 = vadd.f32 0.0, %v360
    %362 = vmatprep.mubr.bf16.mxu0 0
    %363 = vmatmul.mubr.bf16.gmra.mrb[0].mxu0 %v263
    %v364 = vpop.f32.mrb[0].mxu0
    %v365 = vadd.f32 0.0, %v364
    %v366 = vpop.f32.mrb[0].mxu0
    %v367 = vadd.f32 0.0, %v366
    %v368 = vpop.f32.mrb[0].mxu0
    %v369 = vadd.f32 0.0, %v368
    %v370 = vpop.f32.mrb[0].mxu0
    %v371 = vadd.f32 0.0, %v370
    %372 = vmatprep.mubr.bf16.mxu0 0
    %373 = vmatmul.mubr.bf16.gmra.mrb[0].mxu0 %v266
    %v374 = vpop.f32.mrb[0].mxu0
    %v375 = vadd.f32 0.0, %v374
    %v376 = vpop.f32.mrb[0].mxu0
    %v377 = vadd.f32 0.0, %v376
    %v378 = vpop.f32.mrb[0].mxu0
    %v379 = vadd.f32 0.0, %v378
    %v380 = vpop.f32.mrb[0].mxu0
    %v381 = vadd.f32 0.0, %v380
    %382 = vmatprep.mubr.bf16.mxu0 0
    %383 = vmatmul.mubr.bf16.gmra.mrb[0].mxu0 %v269
    %v384 = vpop.f32.mrb[0].mxu0
    %v385 = vadd.f32 0.0, %v384
    %v386 = vpop.f32.mrb[0].mxu0
    %v387 = vadd.f32 0.0, %v386
    %v388 = vpop.f32.mrb[0].mxu0
    %v389 = vadd.f32 0.0, %v388
    %v390 = vpop.f32.mrb[0].mxu0
    %v391 = vadd.f32 0.0, %v390
    %392 = vmatprep.mubr.bf16.mxu0 0
    %393 = vmatmul.mubr.bf16.gmra.mrb[0].mxu0 %v272
    %v394 = vpop.f32.mrb[0].mxu0
    %v395 = vadd.f32 0.0, %v394
    %v396 = vpop.f32.mrb[0].mxu0
    %v397 = vadd.f32 0.0, %v396
    %v398 = vpop.f32.mrb[0].mxu0
    %v399 = vadd.f32 0.0, %v398
    %v400 = vpop.f32.mrb[0].mxu0
    %v401 = vadd.f32 0.0, %v400
    %402 = vmatprep.mubr.bf16.mxu0 0
    %403 = vmatmul.mubr.bf16.gmra.mrb[0].mxu0 %v275
    %v404 = vpop.f32.mrb[0].mxu0
    %v405 = vadd.f32 0.0, %v404
    %v406 = vpop.f32.mrb[0].mxu0
    %v407 = vadd.f32 0.0, %v406
    %v408 = vpop.f32.mrb[0].mxu0
    %v409 = vadd.f32 0.0, %v408
    %v410 = vpop.f32.mrb[0].mxu0
    %v411 = vadd.f32 0.0, %v410
    %412 = vmatprep.mubr.bf16.mxu0 0
    %413 = vmatmul.mubr.bf16.gmra.mrb[0].mxu0 %v278
    %v414 = vpop.f32.mrb[0].mxu0
    %v415 = vadd.f32 0.0, %v414
    %v416 = vpop.f32.mrb[0].mxu0
    %v417 = vadd.f32 0.0, %v416
    %v418 = vpop.f32.mrb[0].mxu0
    %v419 = vadd.f32 0.0, %v418
    %v420 = vpop.f32.mrb[0].mxu0
    %v421 = vadd.f32 0.0, %v420
    %422 = vmatprep.mubr.bf16.mxu0 0
    %423 = vmatmul.mubr.bf16.gmra.mrb[0].mxu0 %v281
    %v424 = vpop.f32.mrb[0].mxu0
    %v425 = vadd.f32 0.0, %v424
    %v426 = vpop.f32.mrb[0].mxu0
    %v427 = vadd.f32 0.0, %v426
    %v428 = vpop.f32.mrb[0].mxu0
    %v429 = vadd.f32 0.0, %v428
    %v430 = vpop.f32.mrb[0].mxu0
    %v431 = vadd.f32 0.0, %v430
    %432 = vmatprep.mubr.bf16.mxu0 0
    %433 = vmatmul.mubr.bf16.gmra.mrb[0].mxu0 %v284
    %v434 = vpop.f32.mrb[0].mxu0
    %v435 = vadd.f32 0.0, %v434
    %v436 = vpop.f32.mrb[0].mxu0
    %v437 = vadd.f32 0.0, %v436
    %v438 = vpop.f32.mrb[0].mxu0
    %v439 = vadd.f32 0.0, %v438
    %v440 = vpop.f32.mrb[0].mxu0
    %v441 = vadd.f32 0.0, %v440
    %442 = vmatprep.mubr.bf16.mxu0 0
    %443 = vmatmul.mubr.bf16.gmra.mrb[0].mxu0 %v287
    %v444 = vpop.f32.mrb[0].mxu0
    %v445 = vadd.f32 0.0, %v444
    %v446 = vpop.f32.mrb[0].mxu0
    %v447 = vadd.f32 0.0, %v446
    %v448 = vpop.f32.mrb[0].mxu0
    %v449 = vadd.f32 0.0, %v448
    %v450 = vpop.f32.mrb[0].mxu0
    %v451 = vadd.f32 0.0, %v450
    %452 = vmatprep.mubr.bf16.mxu0 0
    %453 = vmatmul.mubr.bf16.gmra.mrb[0].mxu0 %v290
    %v454 = vpop.f32.mrb[0].mxu0
    %v455 = vadd.f32 0.0, %v454
    %v456 = vpop.f32.mrb[0].mxu0
    %v457 = vadd.f32 0.0, %v456
    %v458 = vpop.f32.mrb[0].mxu0
    %v459 = vadd.f32 0.0, %v458
    %v460 = vpop.f32.mrb[0].mxu0
    %v461 = vadd.f32 0.0, %v460
    %462 = vdwg.mxu0
    %463 = vmatprep.subr.bf16.mxu0 %v216
    %464 = vmatpush1.bf16.msra.mxu0 %v215
    %465 = vmatprep.subr.bf16.mxu0 %v225
    %466 = vmatpush1.bf16.msra.mxu0 %v224
    %467 = vmatprep.subr.bf16.mxu0 %v303
    %468 = vmatpush1.bf16.msra.mxu0 %v300
    %469 = vmatprep.subr.bf16.mxu0 0
    %470 = vmatpush1.bf16.msra.mxu0 0
    %471 = vmatprep.subr.bf16.mxu0 0
    %472 = vmatpush1.bf16.msra.mxu0 0
    %473 = vmatprep.subr.bf16.mxu0 0
    %474 = vmatpush1.bf16.msra.mxu0 0
    %475 = vmatprep.subr.bf16.mxu0 0
    %476 = vmatpush1.bf16.msra.mxu0 0
    %477 = vmatprep.subr.bf16.mxu0 0
    %478 = vmatpush1.bf16.msra.mxu0 0
    %479 = vmatprep.subr.bf16.mxu0 0
    %480 = vmatpush1.bf16.msra.mxu0 0
    %481 = vmatprep.subr.bf16.mxu0 0
    %482 = vmatpush1.bf16.msra.mxu0 0
    %483 = vmatprep.subr.bf16.mxu0 0
    %484 = vmatpush1.bf16.msra.mxu0 0
    %485 = vmatprep.subr.bf16.mxu0 0
    %486 = vmatpush1.bf16.msra.mxu0 0
    %487 = vmatprep.subr.bf16.mxu0 0
    %488 = vmatpush1.bf16.msra.mxu0 0
    %489 = vmatprep.subr.bf16.mxu0 0
    %490 = vmatpush1.bf16.msra.mxu0 0
    %491 = vmatprep.subr.bf16.mxu0 0
    %492 = vmatpush1.bf16.msra.mxu0 0
    %493 = vmatprep.subr.bf16.mxu0 0
    %494 = vmatpush1.bf16.msra.mxu0 0
    %495 = vmatprep.mubr.bf16.mxu0 0
    %496 = vmatmul.mubr.bf16.gmra.mrb[0].mxu0 %v260
    %v497 = vpop.f32.mrb[0].mxu0
    %v498 = vadd.f32 0.0, %v497
    %v499 = vpop.f32.mrb[0].mxu0
    %v500 = vadd.f32 0.0, %v499
    %v501 = vpop.f32.mrb[0].mxu0
    %v502 = vadd.f32 0.0, %v501
    %v503 = vpop.f32.mrb[0].mxu0
    %v504 = vadd.f32 0.0, %v503
    %505 = vmatprep.mubr.bf16.mxu0 0
    %506 = vmatmul.mubr.bf16.gmra.mrb[0].mxu0 %v263
    %v507 = vpop.f32.mrb[0].mxu0
    %v508 = vadd.f32 0.0, %v507
    %v509 = vpop.f32.mrb[0].mxu0
    %v510 = vadd.f32 0.0, %v509
    %v511 = vpop.f32.mrb[0].mxu0
    %v512 = vadd.f32 0.0, %v511
    %v513 = vpop.f32.mrb[0].mxu0
    %v514 = vadd.f32 0.0, %v513
    %515 = vmatprep.mubr.bf16.mxu0 0
    %516 = vmatmul.mubr.bf16.gmra.mrb[0].mxu0 %v266
    %v517 = vpop.f32.mrb[0].mxu0
    %v518 = vadd.f32 0.0, %v517
    %v519 = vpop.f32.mrb[0].mxu0
    %v520 = vadd.f32 0.0, %v519
    %v521 = vpop.f32.mrb[0].mxu0
    %v522 = vadd.f32 0.0, %v521
    %v523 = vpop.f32.mrb[0].mxu0
    %v524 = vadd.f32 0.0, %v523
    %525 = vmatprep.mubr.bf16.mxu0 0
    %526 = vmatmul.mubr.bf16.gmra.mrb[0].mxu0 %v269
    %v527 = vpop.f32.mrb[0].mxu0
    %v528 = vadd.f32 0.0, %v527
    %v529 = vpop.f32.mrb[0].mxu0
    %v530 = vadd.f32 0.0, %v529
    %v531 = vpop.f32.mrb[0].mxu0
    %v532 = vadd.f32 0.0, %v531
    %v533 = vpop.f32.mrb[0].mxu0
    %v534 = vadd.f32 0.0, %v533
    %535 = vmatprep.mubr.bf16.mxu0 0
    %536 = vmatmul.mubr.bf16.gmra.mrb[0].mxu0 %v272
    %v537 = vpop.f32.mrb[0].mxu0
    %v538 = vadd.f32 0.0, %v537
    %v539 = vpop.f32.mrb[0].mxu0
    %v540 = vadd.f32 0.0, %v539
    %v541 = vpop.f32.mrb[0].mxu0
    %v542 = vadd.f32 0.0, %v541
    %v543 = vpop.f32.mrb[0].mxu0
    %v544 = vadd.f32 0.0, %v543
    %545 = vmatprep.mubr.bf16.mxu0 0
    %546 = vmatmul.mubr.bf16.gmra.mrb[0].mxu0 %v275
    %v547 = vpop.f32.mrb[0].mxu0
    %v548 = vadd.f32 0.0, %v547
    %v549 = vpop.f32.mrb[0].mxu0
    %v550 = vadd.f32 0.0, %v549
    %v551 = vpop.f32.mrb[0].mxu0
    %v552 = vadd.f32 0.0, %v551
    %v553 = vpop.f32.mrb[0].mxu0
    %v554 = vadd.f32 0.0, %v553
    %555 = vmatprep.mubr.bf16.mxu0 0
    %556 = vmatmul.mubr.bf16.gmra.mrb[0].mxu0 %v278
    %v557 = vpop.f32.mrb[0].mxu0
    %v558 = vadd.f32 0.0, %v557
    %v559 = vpop.f32.mrb[0].mxu0
    %v560 = vadd.f32 0.0, %v559
    %v561 = vpop.f32.mrb[0].mxu0
    %v562 = vadd.f32 0.0, %v561
    %v563 = vpop.f32.mrb[0].mxu0
    %v564 = vadd.f32 0.0, %v563
    %565 = vmatprep.mubr.bf16.mxu0 0
    %566 = vmatmul.mubr.bf16.gmra.mrb[0].mxu0 %v281
    %v567 = vpop.f32.mrb[0].mxu0
    %v568 = vadd.f32 0.0, %v567
    %v569 = vpop.f32.mrb[0].mxu0
    %v570 = vadd.f32 0.0, %v569
    %v571 = vpop.f32.mrb[0].mxu0
    %v572 = vadd.f32 0.0, %v571
    %v573 = vpop.f32.mrb[0].mxu0
    %v574 = vadd.f32 0.0, %v573
    %575 = vmatprep.mubr.bf16.mxu0 0
    %576 = vmatmul.mubr.bf16.gmra.mrb[0].mxu0 %v284
    %v577 = vpop.f32.mrb[0].mxu0
    %v578 = vadd.f32 0.0, %v577
    %v579 = vpop.f32.mrb[0].mxu0
    %v580 = vadd.f32 0.0, %v579
    %v581 = vpop.f32.mrb[0].mxu0
    %v582 = vadd.f32 0.0, %v581
    %v583 = vpop.f32.mrb[0].mxu0
    %v584 = vadd.f32 0.0, %v583
    %585 = vmatprep.mubr.bf16.mxu0 0
    %586 = vmatmul.mubr.bf16.gmra.mrb[0].mxu0 %v287
    %v587 = vpop.f32.mrb[0].mxu0
    %v588 = vadd.f32 0.0, %v587
    %v589 = vpop.f32.mrb[0].mxu0
    %v590 = vadd.f32 0.0, %v589
    %v591 = vpop.f32.mrb[0].mxu0
    %v592 = vadd.f32 0.0, %v591
    %v593 = vpop.f32.mrb[0].mxu0
    %v594 = vadd.f32 0.0, %v593
    %595 = vmatprep.mubr.bf16.mxu0 0
    %596 = vmatmul.mubr.bf16.gmra.mrb[0].mxu0 %v290
    %v597 = vpop.f32.mrb[0].mxu0
    %v598 = vadd.f32 0.0, %v597
    %v599 = vpop.f32.mrb[0].mxu0
    %v600 = vadd.f32 0.0, %v599
    %v601 = vpop.f32.mrb[0].mxu0
    %v602 = vadd.f32 0.0, %v601
    %v603 = vpop.f32.mrb[0].mxu0
    %v604 = vadd.f32 0.0, %v603
    %605 = vdwg.mxu0
    %606 = vmatprep.subr.bf16.mxu0 %v218
    %607 = vmatpush1.bf16.msra.mxu0 %v217
    %608 = vmatprep.subr.bf16.mxu0 %v227
    %609 = vmatpush1.bf16.msra.mxu0 %v226
    %610 = vmatprep.subr.bf16.mxu0 %v309
    %611 = vmatpush1.bf16.msra.mxu0 %v306
    %612 = vmatprep.subr.bf16.mxu0 0
    %613 = vmatpush1.bf16.msra.mxu0 0
    %614 = vmatprep.subr.bf16.mxu0 0
    %615 = vmatpush1.bf16.msra.mxu0 0
    %616 = vmatprep.subr.bf16.mxu0 0
    %617 = vmatpush1.bf16.msra.mxu0 0
    %618 = vmatprep.subr.bf16.mxu0 0
    %619 = vmatpush1.bf16.msra.mxu0 0
    %620 = vmatprep.subr.bf16.mxu0 0
    %621 = vmatpush1.bf16.msra.mxu0 0
    %622 = vmatprep.subr.bf16.mxu0 0
    %623 = vmatpush1.bf16.msra.mxu0 0
    %624 = vmatprep.subr.bf16.mxu0 0
    %625 = vmatpush1.bf16.msra.mxu0 0
    %626 = vmatprep.subr.bf16.mxu0 0
    %627 = vmatpush1.bf16.msra.mxu0 0
    %628 = vmatprep.subr.bf16.mxu0 0
    %629 = vmatpush1.bf16.msra.mxu0 0
    %630 = vmatprep.subr.bf16.mxu0 0
    %631 = vmatpush1.bf16.msra.mxu0 0
    %632 = vmatprep.subr.bf16.mxu0 0
    %633 = vmatpush1.bf16.msra.mxu0 0
    %634 = vmatprep.subr.bf16.mxu0 0
    %635 = vmatpush1.bf16.msra.mxu0 0
    %636 = vmatprep.subr.bf16.mxu0 0
    %637 = vmatpush1.bf16.msra.mxu0 0
    %638 = vmatprep.mubr.bf16.mxu0 0
    %639 = vmatmul.mubr.bf16.gmra.mrb[0].mxu0 %v260
    %v640 = vpop.f32.mrb[0].mxu0
    %v641 = vadd.f32 0.0, %v640
    %v642 = vpop.f32.mrb[0].mxu0
    %v643 = vadd.f32 0.0, %v642
    %v644 = vpop.f32.mrb[0].mxu0
    %v645 = vadd.f32 0.0, %v644
    %v646 = vpop.f32.mrb[0].mxu0
    %v647 = vadd.f32 0.0, %v646
    %648 = vmatprep.mubr.bf16.mxu0 0
    %649 = vmatmul.mubr.bf16.gmra.mrb[0].mxu0 %v263
    %v650 = vpop.f32.mrb[0].mxu0
    %v651 = vadd.f32 0.0, %v650
    %v652 = vpop.f32.mrb[0].mxu0
    %v653 = vadd.f32 0.0, %v652
    %v654 = vpop.f32.mrb[0].mxu0
    %v655 = vadd.f32 0.0, %v654
    %v656 = vpop.f32.mrb[0].mxu0
    %v657 = vadd.f32 0.0, %v656
    %658 = vmatprep.mubr.bf16.mxu0 0
    %659 = vmatmul.mubr.bf16.gmra.mrb[0].mxu0 %v266
    %v660 = vpop.f32.mrb[0].mxu0
    %v661 = vadd.f32 0.0, %v660
    %v662 = vpop.f32.mrb[0].mxu0
    %v663 = vadd.f32 0.0, %v662
    %v664 = vpop.f32.mrb[0].mxu0
    %v665 = vadd.f32 0.0, %v664
    %v666 = vpop.f32.mrb[0].mxu0
    %v667 = vadd.f32 0.0, %v666
    %668 = vmatprep.mubr.bf16.mxu0 0
    %669 = vmatmul.mubr.bf16.gmra.mrb[0].mxu0 %v269
    %v670 = vpop.f32.mrb[0].mxu0
    %v671 = vadd.f32 0.0, %v670
    %v672 = vpop.f32.mrb[0].mxu0
    %v673 = vadd.f32 0.0, %v672
    %v674 = vpop.f32.mrb[0].mxu0
    %v675 = vadd.f32 0.0, %v674
    %v676 = vpop.f32.mrb[0].mxu0
    %v677 = vadd.f32 0.0, %v676
    %678 = vmatprep.mubr.bf16.mxu0 0
    %679 = vmatmul.mubr.bf16.gmra.mrb[0].mxu0 %v272
    %v680 = vpop.f32.mrb[0].mxu0
    %v681 = vadd.f32 0.0, %v680
    %v682 = vpop.f32.mrb[0].mxu0
    %v683 = vadd.f32 0.0, %v682
    %v684 = vpop.f32.mrb[0].mxu0
    %v685 = vadd.f32 0.0, %v684
    %v686 = vpop.f32.mrb[0].mxu0
    %v687 = vadd.f32 0.0, %v686
    %688 = vmatprep.mubr.bf16.mxu0 0
    %689 = vmatmul.mubr.bf16.gmra.mrb[0].mxu0 %v275
    %v690 = vpop.f32.mrb[0].mxu0
    %v691 = vadd.f32 0.0, %v690
    %v692 = vpop.f32.mrb[0].mxu0
    %v693 = vadd.f32 0.0, %v692
    %v694 = vpop.f32.mrb[0].mxu0
    %v695 = vadd.f32 0.0, %v694
    %v696 = vpop.f32.mrb[0].mxu0
    %v697 = vadd.f32 0.0, %v696
    %698 = vmatprep.mubr.bf16.mxu0 0
    %699 = vmatmul.mubr.bf16.gmra.mrb[0].mxu0 %v278
    %v700 = vpop.f32.mrb[0].mxu0
    %v701 = vadd.f32 0.0, %v700
    %v702 = vpop.f32.mrb[0].mxu0
    %v703 = vadd.f32 0.0, %v702
    %v704 = vpop.f32.mrb[0].mxu0
    %v705 = vadd.f32 0.0, %v704
    %v706 = vpop.f32.mrb[0].mxu0
    %v707 = vadd.f32 0.0, %v706
    %708 = vmatprep.mubr.bf16.mxu0 0
    %709 = vmatmul.mubr.bf16.gmra.mrb[0].mxu0 %v281
    %v710 = vpop.f32.mrb[0].mxu0
    %v711 = vadd.f32 0.0, %v710
    %v712 = vpop.f32.mrb[0].mxu0
    %v713 = vadd.f32 0.0, %v712
    %v714 = vpop.f32.mrb[0].mxu0
    %v715 = vadd.f32 0.0, %v714
    %v716 = vpop.f32.mrb[0].mxu0
    %v717 = vadd.f32 0.0, %v716
    %718 = vmatprep.mubr.bf16.mxu0 0
    %719 = vmatmul.mubr.bf16.gmra.mrb[0].mxu0 %v284
    %v720 = vpop.f32.mrb[0].mxu0
    %v721 = vadd.f32 0.0, %v720
    %v722 = vpop.f32.mrb[0].mxu0
    %v723 = vadd.f32 0.0, %v722
    %v724 = vpop.f32.mrb[0].mxu0
    %v725 = vadd.f32 0.0, %v724
    %v726 = vpop.f32.mrb[0].mxu0
    %v727 = vadd.f32 0.0, %v726
    %728 = vmatprep.mubr.bf16.mxu0 0
    %729 = vmatmul.mubr.bf16.gmra.mrb[0].mxu0 %v287
    %v730 = vpop.f32.mrb[0].mxu0
    %v731 = vadd.f32 0.0, %v730
    %v732 = vpop.f32.mrb[0].mxu0
    %v733 = vadd.f32 0.0, %v732
    %v734 = vpop.f32.mrb[0].mxu0
    %v735 = vadd.f32 0.0, %v734
    %v736 = vpop.f32.mrb[0].mxu0
    %v737 = vadd.f32 0.0, %v736
    %738 = vmatprep.mubr.bf16.mxu0 0
    %739 = vmatmul.mubr.bf16.gmra.mrb[0].mxu0 %v290
    %v740 = vpop.f32.mrb[0].mxu0
    %v741 = vadd.f32 0.0, %v740
    %v742 = vpop.f32.mrb[0].mxu0
    %v743 = vadd.f32 0.0, %v742
    %v744 = vpop.f32.mrb[0].mxu0
    %v745 = vadd.f32 0.0, %v744
    %v746 = vpop.f32.mrb[0].mxu0
    %v747 = vadd.f32 0.0, %v746
    %748 = vdwg.mxu0
    %749 = vmatprep.subr.bf16.mxu0 %v220
    %750 = vmatpush1.bf16.msra.mxu0 %v219
    %751 = vmatprep.subr.bf16.mxu0 %v229
    %752 = vmatpush1.bf16.msra.mxu0 %v228
    %753 = vmatprep.subr.bf16.mxu0 %v315
    %754 = vmatpush1.bf16.msra.mxu0 %v312
    %755 = vmatprep.subr.bf16.mxu0 0
    %756 = vmatpush1.bf16.msra.mxu0 0
    %757 = vmatprep.subr.bf16.mxu0 0
    %758 = vmatpush1.bf16.msra.mxu0 0
    %759 = vmatprep.subr.bf16.mxu0 0
    %760 = vmatpush1.bf16.msra.mxu0 0
    %761 = vmatprep.subr.bf16.mxu0 0
    %762 = vmatpush1.bf16.msra.mxu0 0
    %763 = vmatprep.subr.bf16.mxu0 0
    %764 = vmatpush1.bf16.msra.mxu0 0
    %765 = vmatprep.subr.bf16.mxu0 0
    %766 = vmatpush1.bf16.msra.mxu0 0
    %767 = vmatprep.subr.bf16.mxu0 0
    %768 = vmatpush1.bf16.msra.mxu0 0
    %769 = vmatprep.subr.bf16.mxu0 0
    %770 = vmatpush1.bf16.msra.mxu0 0
    %771 = vmatprep.subr.bf16.mxu0 0
    %772 = vmatpush1.bf16.msra.mxu0 0
    %773 = vmatprep.subr.bf16.mxu0 0
    %774 = vmatpush1.bf16.msra.mxu0 0
    %775 = vmatprep.subr.bf16.mxu0 0
    %776 = vmatpush1.bf16.msra.mxu0 0
    %777 = vmatprep.subr.bf16.mxu0 0
    %778 = vmatpush1.bf16.msra.mxu0 0
    %779 = vmatprep.subr.bf16.mxu0 0
    %780 = vmatpush1.bf16.msra.mxu0 0
    %781 = vmatprep.mubr.bf16.mxu0 0
    %782 = vmatmul.mubr.bf16.gmra.mrb[0].mxu0 %v260
    %v783 = vpop.f32.mrb[0].mxu0
    %v784 = vadd.f32 0.0, %v783
    %v785 = vpop.f32.mrb[0].mxu0
    %v786 = vadd.f32 0.0, %v785
    %v787 = vpop.f32.mrb[0].mxu0
    %v788 = vadd.f32 0.0, %v787
    %v789 = vpop.f32.mrb[0].mxu0
    %v790 = vadd.f32 0.0, %v789
    %791 = vmatprep.mubr.bf16.mxu0 0
    %792 = vmatmul.mubr.bf16.gmra.mrb[0].mxu0 %v263
    %v793 = vpop.f32.mrb[0].mxu0
    %v794 = vadd.f32 0.0, %v793
    %v795 = vpop.f32.mrb[0].mxu0
    %v796 = vadd.f32 0.0, %v795
    %v797 = vpop.f32.mrb[0].mxu0
    %v798 = vadd.f32 0.0, %v797
    %v799 = vpop.f32.mrb[0].mxu0
    %v800 = vadd.f32 0.0, %v799
    %801 = vmatprep.mubr.bf16.mxu0 0
    %802 = vmatmul.mubr.bf16.gmra.mrb[0].mxu0 %v266
    %v803 = vpop.f32.mrb[0].mxu0
    %v804 = vadd.f32 0.0, %v803
    %v805 = vpop.f32.mrb[0].mxu0
    %v806 = vadd.f32 0.0, %v805
    %v807 = vpop.f32.mrb[0].mxu0
    %v808 = vadd.f32 0.0, %v807
    %v809 = vpop.f32.mrb[0].mxu0
    %v810 = vadd.f32 0.0, %v809
    %811 = vmatprep.mubr.bf16.mxu0 0
    %812 = vmatmul.mubr.bf16.gmra.mrb[0].mxu0 %v269
    %v813 = vpop.f32.mrb[0].mxu0
    %v814 = vadd.f32 0.0, %v813
    %v815 = vpop.f32.mrb[0].mxu0
    %v816 = vadd.f32 0.0, %v815
    %v817 = vpop.f32.mrb[0].mxu0
    %v818 = vadd.f32 0.0, %v817
    %v819 = vpop.f32.mrb[0].mxu0
    %v820 = vadd.f32 0.0, %v819
    %821 = vmatprep.mubr.bf16.mxu0 0
    %822 = vmatmul.mubr.bf16.gmra.mrb[0].mxu0 %v272
    %v823 = vpop.f32.mrb[0].mxu0
    %v824 = vadd.f32 0.0, %v823
    %v825 = vpop.f32.mrb[0].mxu0
    %v826 = vadd.f32 0.0, %v825
    %v827 = vpop.f32.mrb[0].mxu0
    %v828 = vadd.f32 0.0, %v827
    %v829 = vpop.f32.mrb[0].mxu0
    %v830 = vadd.f32 0.0, %v829
    %831 = vmatprep.mubr.bf16.mxu0 0
    %832 = vmatmul.mubr.bf16.gmra.mrb[0].mxu0 %v275
    %v833 = vpop.f32.mrb[0].mxu0
    %v834 = vadd.f32 0.0, %v833
    %v835 = vpop.f32.mrb[0].mxu0
    %v836 = vadd.f32 0.0, %v835
    %v837 = vpop.f32.mrb[0].mxu0
    %v838 = vadd.f32 0.0, %v837
    %v839 = vpop.f32.mrb[0].mxu0
    %v840 = vadd.f32 0.0, %v839
    %841 = vmatprep.mubr.bf16.mxu0 0
    %842 = vmatmul.mubr.bf16.gmra.mrb[0].mxu0 %v278
    %v843 = vpop.f32.mrb[0].mxu0
    %v844 = vadd.f32 0.0, %v843
    %v845 = vpop.f32.mrb[0].mxu0
    %v846 = vadd.f32 0.0, %v845
    %v847 = vpop.f32.mrb[0].mxu0
    %v848 = vadd.f32 0.0, %v847
    %v849 = vpop.f32.mrb[0].mxu0
    %v850 = vadd.f32 0.0, %v849
    %851 = vmatprep.mubr.bf16.mxu0 0
    %852 = vmatmul.mubr.bf16.gmra.mrb[0].mxu0 %v281
    %v853 = vpop.f32.mrb[0].mxu0
    %v854 = vadd.f32 0.0, %v853
    %v855 = vpop.f32.mrb[0].mxu0
    %v856 = vadd.f32 0.0, %v855
    %v857 = vpop.f32.mrb[0].mxu0
    %v858 = vadd.f32 0.0, %v857
    %v859 = vpop.f32.mrb[0].mxu0
    %v860 = vadd.f32 0.0, %v859
    %861 = vmatprep.mubr.bf16.mxu0 0
    %862 = vmatmul.mubr.bf16.gmra.mrb[0].mxu0 %v284
    %v863 = vpop.f32.mrb[0].mxu0
    %v864 = vadd.f32 0.0, %v863
    %v865 = vpop.f32.mrb[0].mxu0
    %v866 = vadd.f32 0.0, %v865
    %v867 = vpop.f32.mrb[0].mxu0
    %v868 = vadd.f32 0.0, %v867
    %v869 = vpop.f32.mrb[0].mxu0
    %v870 = vadd.f32 0.0, %v869
    %871 = vmatprep.mubr.bf16.mxu0 0
    %872 = vmatmul.mubr.bf16.gmra.mrb[0].mxu0 %v287
    %v873 = vpop.f32.mrb[0].mxu0
    %v874 = vadd.f32 0.0, %v873
    %v875 = vpop.f32.mrb[0].mxu0
    %v876 = vadd.f32 0.0, %v875
    %v877 = vpop.f32.mrb[0].mxu0
    %v878 = vadd.f32 0.0, %v877
    %v879 = vpop.f32.mrb[0].mxu0
    %v880 = vadd.f32 0.0, %v879
    %881 = vmatprep.mubr.bf16.mxu0 0
    %882 = vmatmul.mubr.bf16.gmra.mrb[0].mxu0 %v290
    %v883 = vpop.f32.mrb[0].mxu0
    %v884 = vadd.f32 0.0, %v883
    %v885 = vpop.f32.mrb[0].mxu0
    %v886 = vadd.f32 0.0, %v885
    %v887 = vpop.f32.mrb[0].mxu0
    %v888 = vadd.f32 0.0, %v887
    %v889 = vpop.f32.mrb[0].mxu0
    %v890 = vadd.f32 0.0, %v889
    %891 = vdwg.mxu0
    %892 = vmatprep.subr.bf16.mxu0 0
    %893 = vmatpush1.bf16.msra.mxu0 %v221
    %894 = vmatprep.subr.bf16.mxu0 0
    %895 = vmatpush1.bf16.msra.mxu0 %v230
    %896 = vmatprep.subr.bf16.mxu0 0
    %897 = vmatpush1.bf16.msra.mxu0 %v318
    %898 = vmatprep.subr.bf16.mxu0 0
    %899 = vmatpush1.bf16.msra.mxu0 0
    %900 = vmatprep.subr.bf16.mxu0 0
    %901 = vmatpush1.bf16.msra.mxu0 0
    %902 = vmatprep.subr.bf16.mxu0 0
    %903 = vmatpush1.bf16.msra.mxu0 0
    %904 = vmatprep.subr.bf16.mxu0 0
    %905 = vmatpush1.bf16.msra.mxu0 0
    %906 = vmatprep.subr.bf16.mxu0 0
    %907 = vmatpush1.bf16.msra.mxu0 0
    %908 = vmatprep.subr.bf16.mxu0 0
    %909 = vmatpush1.bf16.msra.mxu0 0
    %910 = vmatprep.subr.bf16.mxu0 0
    %911 = vmatpush1.bf16.msra.mxu0 0
    %912 = vmatprep.subr.bf16.mxu0 0
    %913 = vmatpush1.bf16.msra.mxu0 0
    %914 = vmatprep.subr.bf16.mxu0 0
    %915 = vmatpush1.bf16.msra.mxu0 0
    %916 = vmatprep.subr.bf16.mxu0 0
    %917 = vmatpush1.bf16.msra.mxu0 0
    %918 = vmatprep.subr.bf16.mxu0 0
    %919 = vmatpush1.bf16.msra.mxu0 0
    %920 = vmatprep.subr.bf16.mxu0 0
    %921 = vmatpush1.bf16.msra.mxu0 0
    %922 = vmatprep.subr.bf16.mxu0 0
    %923 = vmatpush1.bf16.msra.mxu0 0
    %924 = vmatprep.mubr.bf16.mxu0 0
    %925 = vmatmul.mubr.bf16.gmra.mrb[0].mxu0 %v260
    %v926 = vpop.f32.mrb[0].mxu0
    %v927 = vadd.f32 0.0, %v926
    %v928 = vpop.f32.mrb[0].mxu0
    %v929 = vpop.f32.mrb[0].mxu0
    %v930 = vadd.f32 0.0, %v929
    %v931 = vpop.f32.mrb[0].mxu0
    %932 = vmatprep.mubr.bf16.mxu0 0
    %933 = vmatmul.mubr.bf16.gmra.mrb[0].mxu0 %v263
    %v934 = vpop.f32.mrb[0].mxu0
    %v935 = vadd.f32 0.0, %v934
    %v936 = vpop.f32.mrb[0].mxu0
    %v937 = vpop.f32.mrb[0].mxu0
    %v938 = vadd.f32 0.0, %v937
    %v939 = vpop.f32.mrb[0].mxu0
    %940 = vmatprep.mubr.bf16.mxu0 0
    %941 = vmatmul.mubr.bf16.gmra.mrb[0].mxu0 %v266
    %v942 = vpop.f32.mrb[0].mxu0
    %v943 = vadd.f32 0.0, %v942
    %v944 = vpop.f32.mrb[0].mxu0
    %v945 = vpop.f32.mrb[0].mxu0
    %v946 = vadd.f32 0.0, %v945
    %v947 = vpop.f32.mrb[0].mxu0
    %948 = vmatprep.mubr.bf16.mxu0 0
    %949 = vmatmul.mubr.bf16.gmra.mrb[0].mxu0 %v269
    %v950 = vpop.f32.mrb[0].mxu0
    %v951 = vadd.f32 0.0, %v950
    %v952 = vpop.f32.mrb[0].mxu0
    %v953 = vpop.f32.mrb[0].mxu0
    %v954 = vadd.f32 0.0, %v953
    %v955 = vpop.f32.mrb[0].mxu0
    %956 = vmatprep.mubr.bf16.mxu0 0
    %957 = vmatmul.mubr.bf16.gmra.mrb[0].mxu0 %v272
    %v958 = vpop.f32.mrb[0].mxu0
    %v959 = vadd.f32 0.0, %v958
    %v960 = vpop.f32.mrb[0].mxu0
    %v961 = vpop.f32.mrb[0].mxu0
    %v962 = vadd.f32 0.0, %v961
    %v963 = vpop.f32.mrb[0].mxu0
    %964 = vmatprep.mubr.bf16.mxu0 0
    %965 = vmatmul.mubr.bf16.gmra.mrb[0].mxu0 %v275
    %v966 = vpop.f32.mrb[0].mxu0
    %v967 = vadd.f32 0.0, %v966
    %v968 = vpop.f32.mrb[0].mxu0
    %v969 = vpop.f32.mrb[0].mxu0
    %v970 = vadd.f32 0.0, %v969
    %v971 = vpop.f32.mrb[0].mxu0
    %972 = vmatprep.mubr.bf16.mxu0 0
    %973 = vmatmul.mubr.bf16.gmra.mrb[0].mxu0 %v278
    %v974 = vpop.f32.mrb[0].mxu0
    %v975 = vadd.f32 0.0, %v974
    %v976 = vpop.f32.mrb[0].mxu0
    %v977 = vpop.f32.mrb[0].mxu0
    %v978 = vadd.f32 0.0, %v977
    %v979 = vpop.f32.mrb[0].mxu0
    %980 = vmatprep.mubr.bf16.mxu0 0
    %981 = vmatmul.mubr.bf16.gmra.mrb[0].mxu0 %v281
    %v982 = vpop.f32.mrb[0].mxu0
    %v983 = vadd.f32 0.0, %v982
    %v984 = vpop.f32.mrb[0].mxu0
    %v985 = vpop.f32.mrb[0].mxu0
    %v986 = vadd.f32 0.0, %v985
    %v987 = vpop.f32.mrb[0].mxu0
    %988 = vmatprep.mubr.bf16.mxu0 0
    %989 = vmatmul.mubr.bf16.gmra.mrb[0].mxu0 %v284
    %v990 = vpop.f32.mrb[0].mxu0
    %v991 = vadd.f32 0.0, %v990
    %v992 = vpop.f32.mrb[0].mxu0
    %v993 = vpop.f32.mrb[0].mxu0
    %v994 = vadd.f32 0.0, %v993
    %v995 = vpop.f32.mrb[0].mxu0
    %996 = vmatprep.mubr.bf16.mxu0 0
    %997 = vmatmul.mubr.bf16.gmra.mrb[0].mxu0 %v287
    %v998 = vpop.f32.mrb[0].mxu0
    %v999 = vadd.f32 0.0, %v998
    %v1000 = vpop.f32.mrb[0].mxu0
    %v1001 = vpop.f32.mrb[0].mxu0
    %v1002 = vadd.f32 0.0, %v1001
    %v1003 = vpop.f32.mrb[0].mxu0
    %1004 = vmatprep.mubr.bf16.mxu0 0
    %1005 = vmatmul.mubr.bf16.gmra.mrb[0].mxu0 %v290
    %v1006 = vpop.f32.mrb[0].mxu0
    %v1007 = vadd.f32 0.0, %v1006
    %v1008 = vpop.f32.mrb[0].mxu0
    %v1009 = vpop.f32.mrb[0].mxu0
    %v1010 = vadd.f32 0.0, %v1009
    %v1011 = vpop.f32.mrb[0].mxu0
    %1012 = vdwg.mxu0
    %v1013 = vmax.f32 %v355, %v357
    %v1014 = vmax.f32 %v359, %v361
    %v1015 = vmax.f32 %v365, %v367
    %v1016 = vmax.f32 %v369, %v371
    %v1017 = vmax.f32 %v375, %v377
    %v1018 = vmax.f32 %v379, %v381
    %v1019 = vmax.f32 %v385, %v387
    %v1020 = vmax.f32 %v389, %v391
    %v1021 = vmax.f32 %v395, %v397
    %v1022 = vmax.f32 %v399, %v401
    %v1023 = vmax.f32 %v405, %v407
    %v1024 = vmax.f32 %v409, %v411
    %v1025 = vmax.f32 %v415, %v417
    %v1026 = vmax.f32 %v419, %v421
    %v1027 = vmax.f32 %v425, %v427
    %v1028 = vmax.f32 %v429, %v431
    %v1029 = vmax.f32 %v435, %v437
    %v1030 = vmax.f32 %v439, %v441
    %v1031 = vmax.f32 %v445, %v447
    %v1032 = vmax.f32 %v449, %v451
    %v1033 = vmax.f32 %v455, %v457
    %v1034 = vmax.f32 %v459, %v461
    %v1035 = vmax.f32 %v1013, %v498
    %v1036 = vmax.f32 %v1014, %v502
    %v1037 = vmax.f32 %v1015, %v508
    %v1038 = vmax.f32 %v1016, %v512
    %v1039 = vmax.f32 %v1017, %v518
    %v1040 = vmax.f32 %v1018, %v522
    %v1041 = vmax.f32 %v1019, %v528
    %v1042 = vmax.f32 %v1020, %v532
    %v1043 = vmax.f32 %v1021, %v538
    %v1044 = vmax.f32 %v1022, %v542
    %v1045 = vmax.f32 %v1023, %v548
    %v1046 = vmax.f32 %v1024, %v552
    %v1047 = vmax.f32 %v1025, %v558
    %v1048 = vmax.f32 %v1026, %v562
    %v1049 = vmax.f32 %v1027, %v568
    %v1050 = vmax.f32 %v1028, %v572
    %v1051 = vmax.f32 %v1029, %v578
    %v1052 = vmax.f32 %v1030, %v582
    %v1053 = vmax.f32 %v1031, %v588
    %v1054 = vmax.f32 %v1032, %v592
    %v1055 = vmax.f32 %v1033, %v598
    %v1056 = vmax.f32 %v1034, %v602
    %v1057 = vmax.f32 %v1035, %v500
    %v1058 = vmax.f32 %v1036, %v504
    %v1059 = vmax.f32 %v1037, %v510
    %v1060 = vmax.f32 %v1038, %v514
    %v1061 = vmax.f32 %v1039, %v520
    %v1062 = vmax.f32 %v1040, %v524
    %v1063 = vmax.f32 %v1041, %v530
    %v1064 = vmax.f32 %v1042, %v534
    %v1065 = vmax.f32 %v1043, %v540
    %v1066 = vmax.f32 %v1044, %v544
    %v1067 = vmax.f32 %v1045, %v550
    %v1068 = vmax.f32 %v1046, %v554
    %v1069 = vmax.f32 %v1047, %v560
    %v1070 = vmax.f32 %v1048, %v564
    %v1071 = vmax.f32 %v1049, %v570
    %v1072 = vmax.f32 %v1050, %v574
    %v1073 = vmax.f32 %v1051, %v580
    %v1074 = vmax.f32 %v1052, %v584
    %v1075 = vmax.f32 %v1053, %v590
    %v1076 = vmax.f32 %v1054, %v594
    %v1077 = vmax.f32 %v1055, %v600
    %v1078 = vmax.f32 %v1056, %v604
    %v1079 = vmax.f32 %v1057, %v641
    %v1080 = vmax.f32 %v1058, %v645
    %v1081 = vmax.f32 %v1059, %v651
    %v1082 = vmax.f32 %v1060, %v655
    %v1083 = vmax.f32 %v1061, %v661
    %v1084 = vmax.f32 %v1062, %v665
    %v1085 = vmax.f32 %v1063, %v671
    %v1086 = vmax.f32 %v1064, %v675
    %v1087 = vmax.f32 %v1065, %v681
    %v1088 = vmax.f32 %v1066, %v685
    %v1089 = vmax.f32 %v1067, %v691
    %v1090 = vmax.f32 %v1068, %v695
    %v1091 = vmax.f32 %v1069, %v701
    %v1092 = vmax.f32 %v1070, %v705
    %v1093 = vmax.f32 %v1071, %v711
    %v1094 = vmax.f32 %v1072, %v715
    %v1095 = vmax.f32 %v1073, %v721
    %v1096 = vmax.f32 %v1074, %v725
    %v1097 = vmax.f32 %v1075, %v731
    %v1098 = vmax.f32 %v1076, %v735
    %v1099 = vmax.f32 %v1077, %v741
    %v1100 = vmax.f32 %v1078, %v745
    %v1101 = vmax.f32 %v1079, %v643
    %v1102 = vmax.f32 %v1080, %v647
    %v1103 = vmax.f32 %v1081, %v653
    %v1104 = vmax.f32 %v1082, %v657
    %v1105 = vmax.f32 %v1083, %v663
    %v1106 = vmax.f32 %v1084, %v667
    %v1107 = vmax.f32 %v1085, %v673
    %v1108 = vmax.f32 %v1086, %v677
    %v1109 = vmax.f32 %v1087, %v683
    %v1110 = vmax.f32 %v1088, %v687
    %v1111 = vmax.f32 %v1089, %v693
    %v1112 = vmax.f32 %v1090, %v697
    %v1113 = vmax.f32 %v1091, %v703
    %v1114 = vmax.f32 %v1092, %v707
    %v1115 = vmax.f32 %v1093, %v713
    %v1116 = vmax.f32 %v1094, %v717
    %v1117 = vmax.f32 %v1095, %v723
    %v1118 = vmax.f32 %v1096, %v727
    %v1119 = vmax.f32 %v1097, %v733
    %v1120 = vmax.f32 %v1098, %v737
    %v1121 = vmax.f32 %v1099, %v743
    %v1122 = vmax.f32 %v1100, %v747
    %v1123 = vmax.f32 %v1101, %v784
    %v1124 = vmax.f32 %v1102, %v788
    %v1125 = vmax.f32 %v1103, %v794
    %v1126 = vmax.f32 %v1104, %v798
    %v1127 = vmax.f32 %v1105, %v804
    %v1128 = vmax.f32 %v1106, %v808
    %v1129 = vmax.f32 %v1107, %v814
    %v1130 = vmax.f32 %v1108, %v818
    %v1131 = vmax.f32 %v1109, %v824
    %v1132 = vmax.f32 %v1110, %v828
    %v1133 = vmax.f32 %v1111, %v834
    %v1134 = vmax.f32 %v1112, %v838
    %v1135 = vmax.f32 %v1113, %v844
    %v1136 = vmax.f32 %v1114, %v848
    %v1137 = vmax.f32 %v1115, %v854
    %v1138 = vmax.f32 %v1116, %v858
    %v1139 = vmax.f32 %v1117, %v864
    %v1140 = vmax.f32 %v1118, %v868
    %v1141 = vmax.f32 %v1119, %v874
    %v1142 = vmax.f32 %v1120, %v878
    %v1143 = vmax.f32 %v1121, %v884
    %v1144 = vmax.f32 %v1122, %v888
    %v1145 = vmax.f32 %v1123, %v786
    %v1146 = vmax.f32 %v1124, %v790
    %v1147 = vmax.f32 %v1125, %v796
    %v1148 = vmax.f32 %v1126, %v800
    %v1149 = vmax.f32 %v1127, %v806
    %v1150 = vmax.f32 %v1128, %v810
    %v1151 = vmax.f32 %v1129, %v816
    %v1152 = vmax.f32 %v1130, %v820
    %v1153 = vmax.f32 %v1131, %v826
    %v1154 = vmax.f32 %v1132, %v830
    %v1155 = vmax.f32 %v1133, %v836
    %v1156 = vmax.f32 %v1134, %v840
    %v1157 = vmax.f32 %v1135, %v846
    %v1158 = vmax.f32 %v1136, %v850
    %v1159 = vmax.f32 %v1137, %v856
    %v1160 = vmax.f32 %v1138, %v860
    %v1161 = vmax.f32 %v1139, %v866
    %v1162 = vmax.f32 %v1140, %v870
    %v1163 = vmax.f32 %v1141, %v876
    %v1164 = vmax.f32 %v1142, %v880
    %v1165 = vmax.f32 %v1143, %v886
    %v1166 = vmax.f32 %v1144, %v890
    %v1167 = vmax.f32 %v1145, %v927
    %v1168 = vmax.f32 %v1146, %v930
    %v1169 = vmax.f32 %v1147, %v935
    %v1170 = vmax.f32 %v1148, %v938
    %v1171 = vmax.f32 %v1149, %v943
    %v1172 = vmax.f32 %v1150, %v946
    %v1173 = vmax.f32 %v1151, %v951
    %v1174 = vmax.f32 %v1152, %v954
    %v1175 = vmax.f32 %v1153, %v959
    %v1176 = vmax.f32 %v1154, %v962
    %v1177 = vmax.f32 %v1155, %v967
    %v1178 = vmax.f32 %v1156, %v970
    %v1179 = vmax.f32 %v1157, %v975
    %v1180 = vmax.f32 %v1158, %v978
    %v1181 = vmax.f32 %v1159, %v983
    %v1182 = vmax.f32 %v1160, %v986
    %v1183 = vmax.f32 %v1161, %v991
    %v1184 = vmax.f32 %v1162, %v994
    %v1185 = vmax.f32 %v1163, %v999
    %v1186 = vmax.f32 %v1164, %v1002
    %v1187 = vmax.f32 %v1165, %v1007
    %v1188 = vmax.f32 %v1166, %v1010
    %v1189 = vld [vmem:[#allocation4] sm:$0x1]
    %v1191 = vlaneseq
    %v1192 = vshrl.u32 %v1191, 7
    %v1193 = vsub.s32 0, %v1192
    %v1194 = vrot.slane %v1189, %v1193
    %v1196 = vadd.f32 %v1167, %v1194
    %v1197 = vadd.f32 %v1168, %v1194
    %v1198 = vadd.f32 %v1169, %v1194
    %v1199 = vadd.f32 %v1170, %v1194
    %v1200 = vadd.f32 %v1171, %v1194
    %v1201 = vadd.f32 %v1172, %v1194
    %v1202 = vadd.f32 %v1173, %v1194
    %v1203 = vadd.f32 %v1174, %v1194
    %v1204 = vadd.f32 %v1175, %v1194
    %v1205 = vadd.f32 %v1176, %v1194
    %v1206 = vadd.f32 %v1177, %v1194
    %v1207 = vadd.f32 %v1178, %v1194
    %v1208 = vadd.f32 %v1179, %v1194
    %v1209 = vadd.f32 %v1180, %v1194
    %v1210 = vadd.f32 %v1181, %v1194
    %v1211 = vadd.f32 %v1182, %v1194
    %v1212 = vadd.f32 %v1183, %v1194
    %v1213 = vadd.f32 %v1184, %v1194
    %v1214 = vadd.f32 %v1185, %v1194
    %v1215 = vadd.f32 %v1186, %v1194
    %v1216 = vadd.f32 %v1187, %v1194
    %v1217 = vadd.f32 %v1188, %v1194
    %v1218 = vmax.f32 %v1196, 0.0
    %v1219 = vmax.f32 %v1197, 0.0
    %v1220 = vmax.f32 %v1198, 0.0
    %v1221 = vmax.f32 %v1199, 0.0
    %v1222 = vmax.f32 %v1200, 0.0
    %v1223 = vmax.f32 %v1201, 0.0
    %v1224 = vmax.f32 %v1202, 0.0
    %v1225 = vmax.f32 %v1203, 0.0
    %v1226 = vmax.f32 %v1204, 0.0
    %v1227 = vmax.f32 %v1205, 0.0
    %v1228 = vmax.f32 %v1206, 0.0
    %v1229 = vmax.f32 %v1207, 0.0
    %v1230 = vmax.f32 %v1208, 0.0
    %v1231 = vmax.f32 %v1209, 0.0
    %v1232 = vmax.f32 %v1210, 0.0
    %v1233 = vmax.f32 %v1211, 0.0
    %v1234 = vmax.f32 %v1212, 0.0
    %v1235 = vmax.f32 %v1213, 0.0
    %v1236 = vmax.f32 %v1214, 0.0
    %v1237 = vmax.f32 %v1215, 0.0
    %v1238 = vmax.f32 %v1216, 0.0
    %v1239 = vmax.f32 %v1217, 0.0
    %v1240 = vpack.c.bf16 %v1219, %v1218
    %v1241 = vpack.c.bf16 %v1221, %v1220
    %v1242 = vpack.c.bf16 %v1223, %v1222
    %v1243 = vpack.c.bf16 %v1225, %v1224
    %v1244 = vpack.c.bf16 %v1227, %v1226
    %v1245 = vpack.c.bf16 %v1229, %v1228
    %v1246 = vpack.c.bf16 %v1231, %v1230
    %v1247 = vpack.c.bf16 %v1233, %v1232
    %v1248 = vpack.c.bf16 %v1235, %v1234
    %v1249 = vpack.c.bf16 %v1237, %v1236
    %v1250 = vpack.c.bf16 %v1239, %v1238
    %v1262 = vunpack.c.l.b16 %v1240
    %v1263 = vunpack.c.h.b16 %v1240
    %v1264 = vunpack.c.l.b16 %v1241
    %v1265 = vunpack.c.h.b16 %v1241
    %v1266 = vunpack.c.l.b16 %v1242
    %v1267 = vunpack.c.h.b16 %v1242
    %v1268 = vunpack.c.l.b16 %v1243
    %v1269 = vunpack.c.h.b16 %v1243
    %v1270 = vunpack.c.l.b16 %v1244
    %v1271 = vunpack.c.h.b16 %v1244
    %v1272 = vunpack.c.l.b16 %v1245
    %v1273 = vunpack.c.h.b16 %v1245
    %v1274 = vunpack.c.l.b16 %v1246
    %v1275 = vunpack.c.h.b16 %v1246
    %v1276 = vunpack.c.l.b16 %v1247
    %v1277 = vunpack.c.h.b16 %v1247
    %v1278 = vunpack.c.l.b16 %v1248
    %v1279 = vunpack.c.h.b16 %v1248
    %v1280 = vunpack.c.l.b16 %v1249
    %v1281 = vunpack.c.h.b16 %v1249
    %v1282 = vunpack.c.l.b16 %v1250
    %v1283 = vunpack.c.h.b16 %v1250
    %v1284 = vpack.c.b16 %v1262, %v1262
    %v1285 = vpack.c.b16 %v1263, %v1263
    %v1286 = vpack.c.b16 %v1264, %v1264
    %v1287 = vpack.c.b16 %v1265, %v1265
    %v1288 = vpack.c.b16 %v1266, %v1266
    %v1289 = vpack.c.b16 %v1267, %v1267
    %v1290 = vpack.c.b16 %v1268, %v1268
    %v1291 = vpack.c.b16 %v1269, %v1269
    %v1292 = vpack.c.b16 %v1270, %v1270
    %v1293 = vpack.c.b16 %v1271, %v1271
    %v1294 = vpack.c.b16 %v1272, %v1272
    %v1295 = vpack.c.b16 %v1273, %v1273
    %v1296 = vpack.c.b16 %v1274, %v1274
    %v1297 = vpack.c.b16 %v1275, %v1275
    %v1298 = vpack.c.b16 %v1276, %v1276
    %v1299 = vpack.c.b16 %v1277, %v1277
    %v1300 = vpack.c.b16 %v1278, %v1278
    %v1301 = vpack.c.b16 %v1279, %v1279
    %v1302 = vpack.c.b16 %v1280, %v1280
    %v1303 = vpack.c.b16 %v1281, %v1281
    %v1304 = vpack.c.b16 %v1282, %v1282
    %v1305 = vpack.c.b16 %v1283, %v1283
    %1328 = vst [vmem:[%s3] sm:$0xf] %v1284
    %1329 = vst [vmem:[%s3 + $0x4] sm:$0xf] %v1285
    %1330 = vst [vmem:[%s3 + $0x8] sm:$0xf] %v1286
    %1331 = vst [vmem:[%s3 + $0xc] sm:$0xf] %v1287
    %1332 = vst [vmem:[%s3 + $0x10] sm:$0xf] %v1288
    %1333 = vst [vmem:[%s3 + $0x14] sm:$0xf] %v1289
    %1334 = vst [vmem:[%s3 + $0x18] sm:$0xf] %v1290
    %1335 = vst [vmem:[%s3 + $0x1c] sm:$0xf] %v1291
    %1336 = vst [vmem:[%s3 + $0x20] sm:$0xf] %v1292
    %1337 = vst [vmem:[%s3 + $0x24] sm:$0xf] %v1293
    %1338 = vst [vmem:[%s3 + $0x28] sm:$0xf] %v1294
    %1339 = vst [vmem:[%s3 + $0x2c] sm:$0xf] %v1295
    %1340 = vst [vmem:[%s3 + $0x30] sm:$0xf] %v1296
    %1341 = vst [vmem:[%s3 + $0x34] sm:$0xf] %v1297
    %1342 = vst [vmem:[%s3 + $0x38] sm:$0xf] %v1298
    %1343 = vst [vmem:[%s3 + $0x3c] sm:$0xf] %v1299
    %1344 = vst [vmem:[%s3 + $0x40] sm:$0xf] %v1300
    %1345 = vst [vmem:[%s3 + $0x44] sm:$0xf] %v1301
    %1346 = vst [vmem:[%s3 + $0x48] sm:$0xf] %v1302
    %1347 = vst [vmem:[%s3 + $0x4c] sm:$0xf] %v1303
    %1348 = vst [vmem:[%s3 + $0x50] sm:$0xf] %v1304
    %1349 = vst [vmem:[%s3 + $0x54] sm:$0xf] %v1305
    // Predicated region
    $region22: #{condition_network2_forward.3} parent=1 // pred_check
      _
    $region23: #{condition_network2_forward.3} parent=1 // pred_check_branch
      %1351 = sbr.rel (0) target = $region25
    $region24: #{condition_network2_forward.3} parent=1 // pred_region
      _
    $region25: #{condition_network2_forward.3} parent=1 // pred_fallthru
      _
    // Predicated region
    $region26: #{condition_network2_forward.3} parent=1 // pred_check
      _
    $region27: #{condition_network2_forward.3} parent=1 // pred_check_branch
      %1353 = sbr.rel (0) target = $region29
    $region28: #{condition_network2_forward.3} parent=1 // pred_region
      _
    $region29: #{condition_network2_forward.3} parent=1 // pred_fallthru
      _
    %1354 = vsyncpa [#allocation3], 1
    %1355 = vsyncpa [#allocation5], 1

// kernel: condition_network2_forward.5
$region0: #{condition_network2_forward.5}
  #allocation0 [shape = 'u32[]', space=smem, size = 0x4, offset = 0x4, fixed_abs, tag = 'smem constant byte address 0x4 - core index']
  #allocation1 [shape = 'u32[144,128]{1,0:T(1,128)}', space=vmem, size = 0x12000, scoped, tag = 'internal scratch']
  %s0 = inlined_call_operand.vmem [shape: f32[2,2,512], index: 0, kind: input, shape index: {}]
  %s1 = inlined_call_operand.vmem [shape: bf16[1024,8], index: 1, kind: input, shape index: {}]
  %s2 = inlined_call_operand.vmem [shape: f32[1,8], index: 2, kind: input, shape index: {}]
  %s3 = inlined_call_operand.hbm [shape: f32[2,8], index: 3, kind: output, shape index: {}]
  %s4 = sld [smem:[#allocation0]]
  $region22: #{condition_network2_forward.5} parent=0
    _
  %s6 = ssub.s32 1, %s4
  %s7 = scalar_select 0, %s6, %s4
  $region1: #{condition_network2_forward.5} parent=0
    #allocation2 [shape = 'u8[1024]{0}', space=vmem, size = 0x400, scoped, tag = 'output window, operand 0, single buffered']
    #allocation3 [shape = 's32[1]{0}', space=sflag, size = 0x4, scoped, tag = 'scoped memory for condition_network2_forward.5']
    %8 = vsyncpa [#allocation3], 0
    // Predicated region
    $region2: #{condition_network2_forward.5} parent=1 // pred_check
      _
    $region3: #{condition_network2_forward.5} parent=1 // pred_check_branch
      %10 = sbr.rel (0) target = $region5
    $region4: #{condition_network2_forward.5} parent=1 // pred_region
      _
    $region5: #{condition_network2_forward.5} parent=1 // pred_fallthru
      _
    // Predicated region
    $region6: #{condition_network2_forward.5} parent=1 // pred_check
      _
    $region7: #{condition_network2_forward.5} parent=1 // pred_check_branch
      %12 = sbr.rel (0) target = $region9
    $region8: #{condition_network2_forward.5} parent=1 // pred_region
      _
    $region9: #{condition_network2_forward.5} parent=1 // pred_fallthru
      _
    // Predicated region
    $region10: #{condition_network2_forward.5} parent=1 // pred_check
      _
    $region11: #{condition_network2_forward.5} parent=1 // pred_check_branch
      %14 = sbr.rel (0) target = $region13
    $region12: #{condition_network2_forward.5} parent=1 // pred_region
      _
    $region13: #{condition_network2_forward.5} parent=1 // pred_fallthru
      _
    %v16 = vld [vmem:[%s2] sm:$0x1]
    %v18 = vlaneseq
    %v19 = vshrl.u32 %v18, 7
    %v20 = vsub.s32 0, %v19
    %v21 = vrot.slane %v16, %v20
    %v23 = vld [vmem:[%s0] sm:$0xff]
    %v25 = vcombine.high %v23, %v23
    %v27 = vunpack.c.l.s4 1983009808
    %v28 = vunpack.c.0.s8 %v27
    %v29 = vlaneseq
    %v30 = vshrl.u32 %v29, 7
    %v31 = vsub.s32 %v28, %v30
    %v32 = vrot.slane %v23, %v31
    %v34 = vunpack.c.l.s4 1983009808
    %v35 = vunpack.c.0.s8 %v34
    %v36 = vlaneseq
    %v37 = vshrl.u32 %v36, 7
    %v38 = vsub.s32 %v35, %v37
    %v39 = vrot.slane %v25, %v38
    %v40 = vcombine.high %v32, %v32
    %v41 = vcombine.high %v39, %v39
    %v46 = vpack.c.bf16 %v32, %v32
    %v47 = vpack.c.bf16 %v40, %v40
    %v48 = vpack.c.bf16 %v39, %v39
    %v49 = vpack.c.bf16 %v41, %v41
    %v50 = vld [vmem:[%s1] sm:$0xf]
    %v51 = vld [vmem:[%s1 + $0x4] sm:$0xf]
    %v52 = vld [vmem:[%s1 + $0x8] sm:$0xf]
    %v53 = vld [vmem:[%s1 + $0xc] sm:$0xf]
    %v54 = vld [vmem:[%s1 + $0x10] sm:$0xf]
    %v55 = vld [vmem:[%s1 + $0x14] sm:$0xf]
    %v56 = vld [vmem:[%s1 + $0x18] sm:$0xf]
    %v57 = vld [vmem:[%s1 + $0x1c] sm:$0xf]
    %v58 = vld [vmem:[%s1 + $0x20] sm:$0xf]
    %v59 = vld [vmem:[%s1 + $0x24] sm:$0xf]
    %v60 = vld [vmem:[%s1 + $0x28] sm:$0xf]
    %v61 = vld [vmem:[%s1 + $0x2c] sm:$0xf]
    %v62 = vld [vmem:[%s1 + $0x30] sm:$0xf]
    %v63 = vld [vmem:[%s1 + $0x34] sm:$0xf]
    %v64 = vld [vmem:[%s1 + $0x38] sm:$0xf]
    %v65 = vld [vmem:[%s1 + $0x3c] sm:$0xf]
    %v66 = vld [vmem:[%s1 + $0x40] sm:$0xf]
    %v67 = vld [vmem:[%s1 + $0x44] sm:$0xf]
    %v68 = vld [vmem:[%s1 + $0x48] sm:$0xf]
    %v69 = vld [vmem:[%s1 + $0x4c] sm:$0xf]
    %v70 = vld [vmem:[%s1 + $0x50] sm:$0xf]
    %v71 = vld [vmem:[%s1 + $0x54] sm:$0xf]
    %v72 = vld [vmem:[%s1 + $0x58] sm:$0xf]
    %v73 = vld [vmem:[%s1 + $0x5c] sm:$0xf]
    %v74 = vld [vmem:[%s1 + $0x60] sm:$0xf]
    %v75 = vld [vmem:[%s1 + $0x64] sm:$0xf]
    %v76 = vld [vmem:[%s1 + $0x68] sm:$0xf]
    %v77 = vld [vmem:[%s1 + $0x6c] sm:$0xf]
    %v78 = vld [vmem:[%s1 + $0x70] sm:$0xf]
    %v79 = vld [vmem:[%s1 + $0x74] sm:$0xf]
    %v80 = vld [vmem:[%s1 + $0x78] sm:$0xf]
    %v81 = vld [vmem:[%s1 + $0x7c] sm:$0xf]
    %v82 = vld [vmem:[%s1 + $0x80] sm:$0xf]
    %v83 = vld [vmem:[%s1 + $0x84] sm:$0xf]
    %v84 = vld [vmem:[%s1 + $0x88] sm:$0xf]
    %v85 = vld [vmem:[%s1 + $0x8c] sm:$0xf]
    %v86 = vld [vmem:[%s1 + $0x90] sm:$0xf]
    %v87 = vld [vmem:[%s1 + $0x94] sm:$0xf]
    %v88 = vld [vmem:[%s1 + $0x98] sm:$0xf]
    %v89 = vld [vmem:[%s1 + $0x9c] sm:$0xf]
    %v90 = vld [vmem:[%s1 + $0xa0] sm:$0xf]
    %v91 = vld [vmem:[%s1 + $0xa4] sm:$0xf]
    %v92 = vld [vmem:[%s1 + $0xa8] sm:$0xf]
    %v93 = vld [vmem:[%s1 + $0xac] sm:$0xf]
    %v94 = vld [vmem:[%s1 + $0xb0] sm:$0xf]
    %v95 = vld [vmem:[%s1 + $0xb4] sm:$0xf]
    %v96 = vld [vmem:[%s1 + $0xb8] sm:$0xf]
    %v97 = vld [vmem:[%s1 + $0xbc] sm:$0xf]
    %v98 = vld [vmem:[%s1 + $0xc0] sm:$0xf]
    %v99 = vld [vmem:[%s1 + $0xc4] sm:$0xf]
    %v100 = vld [vmem:[%s1 + $0xc8] sm:$0xf]
    %v101 = vld [vmem:[%s1 + $0xcc] sm:$0xf]
    %v102 = vld [vmem:[%s1 + $0xd0] sm:$0xf]
    %v103 = vld [vmem:[%s1 + $0xd4] sm:$0xf]
    %v104 = vld [vmem:[%s1 + $0xd8] sm:$0xf]
    %v105 = vld [vmem:[%s1 + $0xdc] sm:$0xf]
    %v106 = vld [vmem:[%s1 + $0xe0] sm:$0xf]
    %v107 = vld [vmem:[%s1 + $0xe4] sm:$0xf]
    %v108 = vld [vmem:[%s1 + $0xe8] sm:$0xf]
    %v109 = vld [vmem:[%s1 + $0xec] sm:$0xf]
    %v110 = vld [vmem:[%s1 + $0xf0] sm:$0xf]
    %v111 = vld [vmem:[%s1 + $0xf4] sm:$0xf]
    %v112 = vld [vmem:[%s1 + $0xf8] sm:$0xf]
    %v113 = vld [vmem:[%s1 + $0xfc] sm:$0xf]
    %v178 = vunpack.c.l.b16 %v50
    %v179 = vunpack.c.l.b16 %v51
    %v180 = vunpack.c.l.b16 %v52
    %v181 = vunpack.c.l.b16 %v53
    %v182 = vunpack.c.l.b16 %v54
    %v183 = vunpack.c.l.b16 %v55
    %v184 = vunpack.c.l.b16 %v56
    %v185 = vunpack.c.l.b16 %v57
    %v186 = vunpack.c.l.b16 %v58
    %v187 = vunpack.c.l.b16 %v59
    %v188 = vunpack.c.l.b16 %v60
    %v189 = vunpack.c.l.b16 %v61
    %v190 = vunpack.c.l.b16 %v62
    %v191 = vunpack.c.l.b16 %v63
    %v192 = vunpack.c.l.b16 %v64
    %v193 = vunpack.c.l.b16 %v65
    %v194 = vunpack.c.l.b16 %v66
    %v195 = vunpack.c.l.b16 %v67
    %v196 = vunpack.c.l.b16 %v68
    %v197 = vunpack.c.l.b16 %v69
    %v198 = vunpack.c.l.b16 %v70
    %v199 = vunpack.c.l.b16 %v71
    %v200 = vunpack.c.l.b16 %v72
    %v201 = vunpack.c.l.b16 %v73
    %v202 = vunpack.c.l.b16 %v74
    %v203 = vunpack.c.l.b16 %v75
    %v204 = vunpack.c.l.b16 %v76
    %v205 = vunpack.c.l.b16 %v77
    %v206 = vunpack.c.l.b16 %v78
    %v207 = vunpack.c.l.b16 %v79
    %v208 = vunpack.c.l.b16 %v80
    %v209 = vunpack.c.l.b16 %v81
    %v210 = vunpack.c.l.b16 %v82
    %v211 = vunpack.c.l.b16 %v83
    %v212 = vunpack.c.l.b16 %v84
    %v213 = vunpack.c.l.b16 %v85
    %v214 = vunpack.c.l.b16 %v86
    %v215 = vunpack.c.l.b16 %v87
    %v216 = vunpack.c.l.b16 %v88
    %v217 = vunpack.c.l.b16 %v89
    %v218 = vunpack.c.l.b16 %v90
    %v219 = vunpack.c.l.b16 %v91
    %v220 = vunpack.c.l.b16 %v92
    %v221 = vunpack.c.l.b16 %v93
    %v222 = vunpack.c.l.b16 %v94
    %v223 = vunpack.c.l.b16 %v95
    %v224 = vunpack.c.l.b16 %v96
    %v225 = vunpack.c.l.b16 %v97
    %v226 = vunpack.c.l.b16 %v98
    %v227 = vunpack.c.l.b16 %v99
    %v228 = vunpack.c.l.b16 %v100
    %v229 = vunpack.c.l.b16 %v101
    %v230 = vunpack.c.l.b16 %v102
    %v231 = vunpack.c.l.b16 %v103
    %v232 = vunpack.c.l.b16 %v104
    %v233 = vunpack.c.l.b16 %v105
    %v234 = vunpack.c.l.b16 %v106
    %v235 = vunpack.c.l.b16 %v107
    %v236 = vunpack.c.l.b16 %v108
    %v237 = vunpack.c.l.b16 %v109
    %v238 = vunpack.c.l.b16 %v110
    %v239 = vunpack.c.l.b16 %v111
    %v240 = vunpack.c.l.b16 %v112
    %v241 = vunpack.c.l.b16 %v113
    %v242 = vpack.c.b16 %v179, %v178
    %v243 = vpack.c.b16 %v181, %v180
    %v244 = vpack.c.b16 %v183, %v182
    %v245 = vpack.c.b16 %v185, %v184
    %v246 = vpack.c.b16 %v187, %v186
    %v247 = vpack.c.b16 %v189, %v188
    %v248 = vpack.c.b16 %v191, %v190
    %v249 = vpack.c.b16 %v193, %v192
    %v250 = vpack.c.b16 %v195, %v194
    %v251 = vpack.c.b16 %v197, %v196
    %v252 = vpack.c.b16 %v199, %v198
    %v253 = vpack.c.b16 %v201, %v200
    %v254 = vpack.c.b16 %v203, %v202
    %v255 = vpack.c.b16 %v205, %v204
    %v256 = vpack.c.b16 %v207, %v206
    %v257 = vpack.c.b16 %v209, %v208
    %v258 = vpack.c.b16 %v211, %v210
    %v259 = vpack.c.b16 %v213, %v212
    %v260 = vpack.c.b16 %v215, %v214
    %v261 = vpack.c.b16 %v217, %v216
    %v262 = vpack.c.b16 %v219, %v218
    %v263 = vpack.c.b16 %v221, %v220
    %v264 = vpack.c.b16 %v223, %v222
    %v265 = vpack.c.b16 %v225, %v224
    %v266 = vpack.c.b16 %v227, %v226
    %v267 = vpack.c.b16 %v229, %v228
    %v268 = vpack.c.b16 %v231, %v230
    %v269 = vpack.c.b16 %v233, %v232
    %v270 = vpack.c.b16 %v235, %v234
    %v271 = vpack.c.b16 %v237, %v236
    %v272 = vpack.c.b16 %v239, %v238
    %v273 = vpack.c.b16 %v241, %v240
    %306 = vmatprep.subr.bf16.mxu0 0
    %307 = vmatpush1.bf16.msra.mxu0 %v242
    %308 = vmatprep.subr.bf16.mxu0 0
    %309 = vmatpush1.bf16.msra.mxu0 %v243
    %310 = vmatprep.subr.bf16.mxu0 0
    %311 = vmatpush1.bf16.msra.mxu0 %v244
    %312 = vmatprep.subr.bf16.mxu0 0
    %313 = vmatpush1.bf16.msra.mxu0 %v245
    %314 = vmatprep.subr.bf16.mxu0 0
    %315 = vmatpush1.bf16.msra.mxu0 %v246
    %316 = vmatprep.subr.bf16.mxu0 0
    %317 = vmatpush1.bf16.msra.mxu0 %v247
    %318 = vmatprep.subr.bf16.mxu0 0
    %319 = vmatpush1.bf16.msra.mxu0 %v248
    %320 = vmatprep.subr.bf16.mxu0 0
    %321 = vmatpush1.bf16.msra.mxu0 %v249
    %322 = vmatprep.subr.bf16.mxu0 0
    %323 = vmatpush1.bf16.msra.mxu0 %v250
    %324 = vmatprep.subr.bf16.mxu0 0
    %325 = vmatpush1.bf16.msra.mxu0 %v251
    %326 = vmatprep.subr.bf16.mxu0 0
    %327 = vmatpush1.bf16.msra.mxu0 %v252
    %328 = vmatprep.subr.bf16.mxu0 0
    %329 = vmatpush1.bf16.msra.mxu0 %v253
    %330 = vmatprep.subr.bf16.mxu0 0
    %331 = vmatpush1.bf16.msra.mxu0 %v254
    %332 = vmatprep.subr.bf16.mxu0 0
    %333 = vmatpush1.bf16.msra.mxu0 %v255
    %334 = vmatprep.subr.bf16.mxu0 0
    %335 = vmatpush1.bf16.msra.mxu0 %v256
    %336 = vmatprep.subr.bf16.mxu0 0
    %337 = vmatpush1.bf16.msra.mxu0 %v257
    %338 = vmatprep.mubr.bf16.mxu0 %v47
    %339 = vmatmul.mubr.bf16.gmra.mrb[0].mxu0 %v46
    %v340 = vpop.f32.mrb[0].mxu0
    %v341 = vadd.f32 0.0, %v340
    %v342 = vpop.f32.mrb[0].mxu0
    %v343 = vpop.f32.mrb[0].mxu0
    %v344 = vpop.f32.mrb[0].mxu0
    %345 = vdwg.mxu0
    %346 = vmatprep.subr.bf16.mxu0 0
    %347 = vmatpush1.bf16.msra.mxu0 %v258
    %348 = vmatprep.subr.bf16.mxu0 0
    %349 = vmatpush1.bf16.msra.mxu0 %v259
    %350 = vmatprep.subr.bf16.mxu0 0
    %351 = vmatpush1.bf16.msra.mxu0 %v260
    %352 = vmatprep.subr.bf16.mxu0 0
    %353 = vmatpush1.bf16.msra.mxu0 %v261
    %354 = vmatprep.subr.bf16.mxu0 0
    %355 = vmatpush1.bf16.msra.mxu0 %v262
    %356 = vmatprep.subr.bf16.mxu0 0
    %357 = vmatpush1.bf16.msra.mxu0 %v263
    %358 = vmatprep.subr.bf16.mxu0 0
    %359 = vmatpush1.bf16.msra.mxu0 %v264
    %360 = vmatprep.subr.bf16.mxu0 0
    %361 = vmatpush1.bf16.msra.mxu0 %v265
    %362 = vmatprep.subr.bf16.mxu0 0
    %363 = vmatpush1.bf16.msra.mxu0 %v266
    %364 = vmatprep.subr.bf16.mxu0 0
    %365 = vmatpush1.bf16.msra.mxu0 %v267
    %366 = vmatprep.subr.bf16.mxu0 0
    %367 = vmatpush1.bf16.msra.mxu0 %v268
    %368 = vmatprep.subr.bf16.mxu0 0
    %369 = vmatpush1.bf16.msra.mxu0 %v269
    %370 = vmatprep.subr.bf16.mxu0 0
    %371 = vmatpush1.bf16.msra.mxu0 %v270
    %372 = vmatprep.subr.bf16.mxu0 0
    %373 = vmatpush1.bf16.msra.mxu0 %v271
    %374 = vmatprep.subr.bf16.mxu0 0
    %375 = vmatpush1.bf16.msra.mxu0 %v272
    %376 = vmatprep.subr.bf16.mxu0 0
    %377 = vmatpush1.bf16.msra.mxu0 %v273
    %378 = vmatprep.mubr.bf16.mxu0 %v49
    %379 = vmatmul.mubr.bf16.gmra.mrb[0].mxu0 %v48
    %v380 = vpop.f32.mrb[0].mxu0
    %v381 = vadd.f32 %v341, %v380
    %v382 = vpop.f32.mrb[0].mxu0
    %v383 = vpop.f32.mrb[0].mxu0
    %v384 = vpop.f32.mrb[0].mxu0
    %385 = vdwg.mxu0
    %v386 = vadd.f32 %v21, %v381
    %s387 = scalar_lea.vmem %s0, 8
    %v388 = vld [vmem:[%s387] sm:$0xff]
    %v390 = vcombine.high %v388, %v388
    %v392 = vunpack.c.l.s4 1983009808
    %v393 = vunpack.c.0.s8 %v392
    %v394 = vlaneseq
    %v395 = vshrl.u32 %v394, 7
    %v396 = vsub.s32 %v393, %v395
    %v397 = vrot.slane %v388, %v396
    %v399 = vunpack.c.l.s4 1983009808
    %v400 = vunpack.c.0.s8 %v399
    %v401 = vlaneseq
    %v402 = vshrl.u32 %v401, 7
    %v403 = vsub.s32 %v400, %v402
    %v404 = vrot.slane %v390, %v403
    %v405 = vcombine.high %v397, %v397
    %v406 = vcombine.high %v404, %v404
    %v411 = vpack.c.bf16 %v397, %v397
    %v412 = vpack.c.bf16 %v405, %v405
    %v413 = vpack.c.bf16 %v404, %v404
    %v414 = vpack.c.bf16 %v406, %v406
    %v415 = vld [vmem:[%s1 + $0x100] sm:$0xf]
    %v416 = vld [vmem:[%s1 + $0x104] sm:$0xf]
    %v417 = vld [vmem:[%s1 + $0x108] sm:$0xf]
    %v418 = vld [vmem:[%s1 + $0x10c] sm:$0xf]
    %v419 = vld [vmem:[%s1 + $0x110] sm:$0xf]
    %v420 = vld [vmem:[%s1 + $0x114] sm:$0xf]
    %v421 = vld [vmem:[%s1 + $0x118] sm:$0xf]
    %v422 = vld [vmem:[%s1 + $0x11c] sm:$0xf]
    %v423 = vld [vmem:[%s1 + $0x120] sm:$0xf]
    %v424 = vld [vmem:[%s1 + $0x124] sm:$0xf]
    %v425 = vld [vmem:[%s1 + $0x128] sm:$0xf]
    %v426 = vld [vmem:[%s1 + $0x12c] sm:$0xf]
    %v427 = vld [vmem:[%s1 + $0x130] sm:$0xf]
    %v428 = vld [vmem:[%s1 + $0x134] sm:$0xf]
    %v429 = vld [vmem:[%s1 + $0x138] sm:$0xf]
    %v430 = vld [vmem:[%s1 + $0x13c] sm:$0xf]
    %v431 = vld [vmem:[%s1 + $0x140] sm:$0xf]
    %v432 = vld [vmem:[%s1 + $0x144] sm:$0xf]
    %v433 = vld [vmem:[%s1 + $0x148] sm:$0xf]
    %v434 = vld [vmem:[%s1 + $0x14c] sm:$0xf]
    %v435 = vld [vmem:[%s1 + $0x150] sm:$0xf]
    %v436 = vld [vmem:[%s1 + $0x154] sm:$0xf]
    %v437 = vld [vmem:[%s1 + $0x158] sm:$0xf]
    %v438 = vld [vmem:[%s1 + $0x15c] sm:$0xf]
    %v439 = vld [vmem:[%s1 + $0x160] sm:$0xf]
    %v440 = vld [vmem:[%s1 + $0x164] sm:$0xf]
    %v441 = vld [vmem:[%s1 + $0x168] sm:$0xf]
    %v442 = vld [vmem:[%s1 + $0x16c] sm:$0xf]
    %v443 = vld [vmem:[%s1 + $0x170] sm:$0xf]
    %v444 = vld [vmem:[%s1 + $0x174] sm:$0xf]
    %v445 = vld [vmem:[%s1 + $0x178] sm:$0xf]
    %v446 = vld [vmem:[%s1 + $0x17c] sm:$0xf]
    %v447 = vld [vmem:[%s1 + $0x180] sm:$0xf]
    %v448 = vld [vmem:[%s1 + $0x184] sm:$0xf]
    %v449 = vld [vmem:[%s1 + $0x188] sm:$0xf]
    %v450 = vld [vmem:[%s1 + $0x18c] sm:$0xf]
    %v451 = vld [vmem:[%s1 + $0x190] sm:$0xf]
    %v452 = vld [vmem:[%s1 + $0x194] sm:$0xf]
    %v453 = vld [vmem:[%s1 + $0x198] sm:$0xf]
    %v454 = vld [vmem:[%s1 + $0x19c] sm:$0xf]
    %v455 = vld [vmem:[%s1 + $0x1a0] sm:$0xf]
    %v456 = vld [vmem:[%s1 + $0x1a4] sm:$0xf]
    %v457 = vld [vmem:[%s1 + $0x1a8] sm:$0xf]
    %v458 = vld [vmem:[%s1 + $0x1ac] sm:$0xf]
    %v459 = vld [vmem:[%s1 + $0x1b0] sm:$0xf]
    %v460 = vld [vmem:[%s1 + $0x1b4] sm:$0xf]
    %v461 = vld [vmem:[%s1 + $0x1b8] sm:$0xf]
    %v462 = vld [vmem:[%s1 + $0x1bc] sm:$0xf]
    %v463 = vld [vmem:[%s1 + $0x1c0] sm:$0xf]
    %v464 = vld [vmem:[%s1 + $0x1c4] sm:$0xf]
    %v465 = vld [vmem:[%s1 + $0x1c8] sm:$0xf]
    %v466 = vld [vmem:[%s1 + $0x1cc] sm:$0xf]
    %v467 = vld [vmem:[%s1 + $0x1d0] sm:$0xf]
    %v468 = vld [vmem:[%s1 + $0x1d4] sm:$0xf]
    %v469 = vld [vmem:[%s1 + $0x1d8] sm:$0xf]
    %v470 = vld [vmem:[%s1 + $0x1dc] sm:$0xf]
    %v471 = vld [vmem:[%s1 + $0x1e0] sm:$0xf]
    %v472 = vld [vmem:[%s1 + $0x1e4] sm:$0xf]
    %v473 = vld [vmem:[%s1 + $0x1e8] sm:$0xf]
    %v474 = vld [vmem:[%s1 + $0x1ec] sm:$0xf]
    %v475 = vld [vmem:[%s1 + $0x1f0] sm:$0xf]
    %v476 = vld [vmem:[%s1 + $0x1f4] sm:$0xf]
    %v477 = vld [vmem:[%s1 + $0x1f8] sm:$0xf]
    %v478 = vld [vmem:[%s1 + $0x1fc] sm:$0xf]
    %v543 = vunpack.c.l.b16 %v415
    %v544 = vunpack.c.l.b16 %v416
    %v545 = vunpack.c.l.b16 %v417
    %v546 = vunpack.c.l.b16 %v418
    %v547 = vunpack.c.l.b16 %v419
    %v548 = vunpack.c.l.b16 %v420
    %v549 = vunpack.c.l.b16 %v421
    %v550 = vunpack.c.l.b16 %v422
    %v551 = vunpack.c.l.b16 %v423
    %v552 = vunpack.c.l.b16 %v424
    %v553 = vunpack.c.l.b16 %v425
    %v554 = vunpack.c.l.b16 %v426
    %v555 = vunpack.c.l.b16 %v427
    %v556 = vunpack.c.l.b16 %v428
    %v557 = vunpack.c.l.b16 %v429
    %v558 = vunpack.c.l.b16 %v430
    %v559 = vunpack.c.l.b16 %v431
    %v560 = vunpack.c.l.b16 %v432
    %v561 = vunpack.c.l.b16 %v433
    %v562 = vunpack.c.l.b16 %v434
    %v563 = vunpack.c.l.b16 %v435
    %v564 = vunpack.c.l.b16 %v436
    %v565 = vunpack.c.l.b16 %v437
    %v566 = vunpack.c.l.b16 %v438
    %v567 = vunpack.c.l.b16 %v439
    %v568 = vunpack.c.l.b16 %v440
    %v569 = vunpack.c.l.b16 %v441
    %v570 = vunpack.c.l.b16 %v442
    %v571 = vunpack.c.l.b16 %v443
    %v572 = vunpack.c.l.b16 %v444
    %v573 = vunpack.c.l.b16 %v445
    %v574 = vunpack.c.l.b16 %v446
    %v575 = vunpack.c.l.b16 %v447
    %v576 = vunpack.c.l.b16 %v448
    %v577 = vunpack.c.l.b16 %v449
    %v578 = vunpack.c.l.b16 %v450
    %v579 = vunpack.c.l.b16 %v451
    %v580 = vunpack.c.l.b16 %v452
    %v581 = vunpack.c.l.b16 %v453
    %v582 = vunpack.c.l.b16 %v454
    %v583 = vunpack.c.l.b16 %v455
    %v584 = vunpack.c.l.b16 %v456
    %v585 = vunpack.c.l.b16 %v457
    %v586 = vunpack.c.l.b16 %v458
    %v587 = vunpack.c.l.b16 %v459
    %v588 = vunpack.c.l.b16 %v460
    %v589 = vunpack.c.l.b16 %v461
    %v590 = vunpack.c.l.b16 %v462
    %v591 = vunpack.c.l.b16 %v463
    %v592 = vunpack.c.l.b16 %v464
    %v593 = vunpack.c.l.b16 %v465
    %v594 = vunpack.c.l.b16 %v466
    %v595 = vunpack.c.l.b16 %v467
    %v596 = vunpack.c.l.b16 %v468
    %v597 = vunpack.c.l.b16 %v469
    %v598 = vunpack.c.l.b16 %v470
    %v599 = vunpack.c.l.b16 %v471
    %v600 = vunpack.c.l.b16 %v472
    %v601 = vunpack.c.l.b16 %v473
    %v602 = vunpack.c.l.b16 %v474
    %v603 = vunpack.c.l.b16 %v475
    %v604 = vunpack.c.l.b16 %v476
    %v605 = vunpack.c.l.b16 %v477
    %v606 = vunpack.c.l.b16 %v478
    %v607 = vpack.c.b16 %v544, %v543
    %v608 = vpack.c.b16 %v546, %v545
    %v609 = vpack.c.b16 %v548, %v547
    %v610 = vpack.c.b16 %v550, %v549
    %v611 = vpack.c.b16 %v552, %v551
    %v612 = vpack.c.b16 %v554, %v553
    %v613 = vpack.c.b16 %v556, %v555
    %v614 = vpack.c.b16 %v558, %v557
    %v615 = vpack.c.b16 %v560, %v559
    %v616 = vpack.c.b16 %v562, %v561
    %v617 = vpack.c.b16 %v564, %v563
    %v618 = vpack.c.b16 %v566, %v565
    %v619 = vpack.c.b16 %v568, %v567
    %v620 = vpack.c.b16 %v570, %v569
    %v621 = vpack.c.b16 %v572, %v571
    %v622 = vpack.c.b16 %v574, %v573
    %v623 = vpack.c.b16 %v576, %v575
    %v624 = vpack.c.b16 %v578, %v577
    %v625 = vpack.c.b16 %v580, %v579
    %v626 = vpack.c.b16 %v582, %v581
    %v627 = vpack.c.b16 %v584, %v583
    %v628 = vpack.c.b16 %v586, %v585
    %v629 = vpack.c.b16 %v588, %v587
    %v630 = vpack.c.b16 %v590, %v589
    %v631 = vpack.c.b16 %v592, %v591
    %v632 = vpack.c.b16 %v594, %v593
    %v633 = vpack.c.b16 %v596, %v595
    %v634 = vpack.c.b16 %v598, %v597
    %v635 = vpack.c.b16 %v600, %v599
    %v636 = vpack.c.b16 %v602, %v601
    %v637 = vpack.c.b16 %v604, %v603
    %v638 = vpack.c.b16 %v606, %v605
    %671 = vmatprep.subr.bf16.mxu0 0
    %672 = vmatpush1.bf16.msra.mxu0 %v607
    %673 = vmatprep.subr.bf16.mxu0 0
    %674 = vmatpush1.bf16.msra.mxu0 %v608
    %675 = vmatprep.subr.bf16.mxu0 0
    %676 = vmatpush1.bf16.msra.mxu0 %v609
    %677 = vmatprep.subr.bf16.mxu0 0
    %678 = vmatpush1.bf16.msra.mxu0 %v610
    %679 = vmatprep.subr.bf16.mxu0 0
    %680 = vmatpush1.bf16.msra.mxu0 %v611
    %681 = vmatprep.subr.bf16.mxu0 0
    %682 = vmatpush1.bf16.msra.mxu0 %v612
    %683 = vmatprep.subr.bf16.mxu0 0
    %684 = vmatpush1.bf16.msra.mxu0 %v613
    %685 = vmatprep.subr.bf16.mxu0 0
    %686 = vmatpush1.bf16.msra.mxu0 %v614
    %687 = vmatprep.subr.bf16.mxu0 0
    %688 = vmatpush1.bf16.msra.mxu0 %v615
    %689 = vmatprep.subr.bf16.mxu0 0
    %690 = vmatpush1.bf16.msra.mxu0 %v616
    %691 = vmatprep.subr.bf16.mxu0 0
    %692 = vmatpush1.bf16.msra.mxu0 %v617
    %693 = vmatprep.subr.bf16.mxu0 0
    %694 = vmatpush1.bf16.msra.mxu0 %v618
    %695 = vmatprep.subr.bf16.mxu0 0
    %696 = vmatpush1.bf16.msra.mxu0 %v619
    %697 = vmatprep.subr.bf16.mxu0 0
    %698 = vmatpush1.bf16.msra.mxu0 %v620
    %699 = vmatprep.subr.bf16.mxu0 0
    %700 = vmatpush1.bf16.msra.mxu0 %v621
    %701 = vmatprep.subr.bf16.mxu0 0
    %702 = vmatpush1.bf16.msra.mxu0 %v622
    %703 = vmatprep.mubr.bf16.mxu0 %v412
    %704 = vmatmul.mubr.bf16.gmra.mrb[0].mxu0 %v411
    %v705 = vpop.f32.mrb[0].mxu0
    %v706 = vadd.f32 0.0, %v705
    %v707 = vpop.f32.mrb[0].mxu0
    %v708 = vpop.f32.mrb[0].mxu0
    %v709 = vpop.f32.mrb[0].mxu0
    %710 = vdwg.mxu0
    %711 = vmatprep.subr.bf16.mxu0 0
    %712 = vmatpush1.bf16.msra.mxu0 %v623
    %713 = vmatprep.subr.bf16.mxu0 0
    %714 = vmatpush1.bf16.msra.mxu0 %v624
    %715 = vmatprep.subr.bf16.mxu0 0
    %716 = vmatpush1.bf16.msra.mxu0 %v625
    %717 = vmatprep.subr.bf16.mxu0 0
    %718 = vmatpush1.bf16.msra.mxu0 %v626
    %719 = vmatprep.subr.bf16.mxu0 0
    %720 = vmatpush1.bf16.msra.mxu0 %v627
    %721 = vmatprep.subr.bf16.mxu0 0
    %722 = vmatpush1.bf16.msra.mxu0 %v628
    %723 = vmatprep.subr.bf16.mxu0 0
    %724 = vmatpush1.bf16.msra.mxu0 %v629
    %725 = vmatprep.subr.bf16.mxu0 0
    %726 = vmatpush1.bf16.msra.mxu0 %v630
    %727 = vmatprep.subr.bf16.mxu0 0
    %728 = vmatpush1.bf16.msra.mxu0 %v631
    %729 = vmatprep.subr.bf16.mxu0 0
    %730 = vmatpush1.bf16.msra.mxu0 %v632
    %731 = vmatprep.subr.bf16.mxu0 0
    %732 = vmatpush1.bf16.msra.mxu0 %v633
    %733 = vmatprep.subr.bf16.mxu0 0
    %734 = vmatpush1.bf16.msra.mxu0 %v634
    %735 = vmatprep.subr.bf16.mxu0 0
    %736 = vmatpush1.bf16.msra.mxu0 %v635
    %737 = vmatprep.subr.bf16.mxu0 0
    %738 = vmatpush1.bf16.msra.mxu0 %v636
    %739 = vmatprep.subr.bf16.mxu0 0
    %740 = vmatpush1.bf16.msra.mxu0 %v637
    %741 = vmatprep.subr.bf16.mxu0 0
    %742 = vmatpush1.bf16.msra.mxu0 %v638
    %743 = vmatprep.mubr.bf16.mxu0 %v414
    %744 = vmatmul.mubr.bf16.gmra.mrb[0].mxu0 %v413
    %v745 = vpop.f32.mrb[0].mxu0
    %v746 = vadd.f32 %v706, %v745
    %v747 = vpop.f32.mrb[0].mxu0
    %v748 = vpop.f32.mrb[0].mxu0
    %v749 = vpop.f32.mrb[0].mxu0
    %750 = vdwg.mxu0
    %v751 = vadd.f32 %v386, %v746
    %vm752 = vcmask 58368
    %753 = vst.msk [vmem:[#allocation2] sm:$0x3] %vm752, %v751
    // Predicated region
    $region14: #{condition_network2_forward.5} parent=1 // pred_check
      _
    $region15: #{condition_network2_forward.5} parent=1 // pred_check_branch
      %755 = sbr.rel (0) target = $region17
    $region16: #{condition_network2_forward.5} parent=1 // pred_region
      %s757 = ssub.s32 32, 32
      %758 = vsyncadd [#allocation3], %s757
      %s760 = sshll.u32 [#allocation2], 4
      %s761 = int_to_ptr.vmem [resolvable:$true] %s760
      %763 = dma.vmem_to_hbm [thread:$0]  %s761, 32, %s3, [#allocation3]
    $region17: #{condition_network2_forward.5} parent=1 // pred_fallthru
      _
    // Predicated region
    $region18: #{condition_network2_forward.5} parent=1 // pred_check
      _
    $region19: #{condition_network2_forward.5} parent=1 // pred_check_branch
      %765 = sbr.rel (0) target = $region21
    $region20: #{condition_network2_forward.5} parent=1 // pred_region
      %766 = dma.done [#allocation3], 32
    $region21: #{condition_network2_forward.5} parent=1 // pred_fallthru
      _
    %767 = vsyncpa [#allocation3], 1

// kernel: condition_network2_forward.4
$region0: #{condition_network2_forward.4}
  #allocation0 [shape = 'u32[]', space=smem, size = 0x4, offset = 0x4, fixed_abs, tag = 'smem constant byte address 0x4 - core index']
  #allocation1 [shape = 'u32[144,128]{1,0:T(1,128)}', space=vmem, size = 0x12000, scoped, tag = 'internal scratch']
  %s0 = inlined_call_operand.vmem [shape: bf16[2,176,384], index: 0, kind: input, shape index: {}]
  %s1 = inlined_call_operand.vmem [shape: bf16[1152,1024], index: 1, kind: input, shape index: {}]
  %s2 = inlined_call_operand.vmem [shape: f32[1,1024], index: 2, kind: input, shape index: {}]
  %s3 = inlined_call_operand.vmem [shape: f32[144,1], index: 3, kind: input, shape index: {}]
  %s4 = inlined_call_operand.vmem [shape: f32[2,2,512], index: 4, kind: output, shape index: {}]
  %s5 = sld [smem:[#allocation0]]
  $region72: #{condition_network2_forward.4} parent=0
    _
  %s7 = ssub.s32 1, %s5
  %s8 = scalar_select 0, %s7, %s5
  $region1: #{condition_network2_forward.4} parent=0
    #allocation2 [shape = 'u8[2359296]{0}', space=vmem, size = 0x240000, scoped, tag = 'input window, operand 1']
    loop: start=0, step=1, limit=4
    $region2: #{condition_network2_forward.4} parent=1 // loop_pre_header
      _
    $region3: #{condition_network2_forward.4} parent=1 // loop_header
      %s10 = sphi 0, %s14
      %p11 = scmp.ge.s32.totalorder %s10, 4
      %s18 = sphi 0, %s18
      %s20 = sphi 0, %s18
      %s21 = sphi 0, %s20
      %s35 = sphi 0, %s21
      %s41 = sphi 0, %s43
      %s44 = sphi 0, %s41
      %s45 = sphi 0, %s44
      %s61 = sphi 0, %s45
      %s67 = sphi 0, %s69
      %s70 = sphi 0, %s67
      %s71 = sphi 0, %s70
      %s87 = sphi 0, %s71
      %s91 = sphi 0, %s91
      %s93 = sphi 0, %s91
      %s94 = sphi 0, %s93
      %s108 = sphi 0, %s94
      %s114 = sphi 0, %s116
      %s117 = sphi 0, %s114
      %s118 = sphi 0, %s117
      %s134 = sphi 0, %s118
    $region4: #{condition_network2_forward.4} parent=1 // loop_header_branch
      %13 = sbr.rel (%p11) target = $region8
    $region5: #{condition_network2_forward.4} parent=1 // loop_body
      %s15 = ssub.s32 %s10, 1
      %s16 = ssub.s32 %s10, 2
      %s17 = sadd.s32 %s10, 1
      %s19 = sadd.s32 %s18, 1
      %p22 = scmp.eq.s32.totalorder %s10, 1
      %p23 = scmp.ne.s32.totalorder %s18, %s20
      %p24 = scmp.eq.s32.totalorder %s10, 0
      %p25 = por %p23, %p24
      %p26 = scmp.ne.s32.totalorder %s18, %s20
      %p27 = scmp.eq.s32.totalorder %s15, 1
      %p28 = por %p26, %p27
      %p29 = scmp.ne.s32.totalorder %s20, %s21
      %p30 = scmp.eq.s32.totalorder %s15, 0
      %p31 = por %p29, %p30
      %p32 = scmp.ne.s32.totalorder %s20, %s21
      %p33 = scmp.eq.s32.totalorder %s16, 1
      %p34 = por %p32, %p33
      %p36 = scmp.ne.s32.totalorder %s21, %s35
      %p37 = scmp.eq.s32.totalorder %s16, 0
      %p38 = por %p36, %p37
      %s39 = ssub.s32 %s10, %s17
      %p40 = scmp.eq.s32.totalorder %s39, 0
      %s42 = sadd.s32 %s41, 1
      %s43 = scalar_select %p40, %s41, %s42
      %p46 = pneg %p40
      %p47 = scmp.eq.s32.totalorder %s10, 1
      %p48 = por %p46, %p47
      %p49 = scmp.ne.s32.totalorder %s41, %s44
      %p50 = scmp.eq.s32.totalorder %s10, 0
      %p51 = por %p49, %p50
      %p52 = scmp.ne.s32.totalorder %s41, %s44
      %p53 = scmp.eq.s32.totalorder %s15, 1
      %p54 = por %p52, %p53
      %p55 = scmp.ne.s32.totalorder %s44, %s45
      %p56 = scmp.eq.s32.totalorder %s15, 0
      %p57 = por %p55, %p56
      %p58 = scmp.ne.s32.totalorder %s44, %s45
      %p59 = scmp.eq.s32.totalorder %s16, 1
      %p60 = por %p58, %p59
      %p62 = scmp.ne.s32.totalorder %s45, %s61
      %p63 = scmp.eq.s32.totalorder %s16, 0
      %p64 = por %p62, %p63
      %s65 = ssub.s32 %s10, %s17
      %p66 = scmp.eq.s32.totalorder %s65, 0
      %s68 = sadd.s32 %s67, 1
      %s69 = scalar_select %p66, %s67, %s68
      %p72 = pneg %p66
      %p73 = scmp.eq.s32.totalorder %s10, 1
      %p74 = por %p72, %p73
      %p75 = scmp.ne.s32.totalorder %s67, %s70
      %p76 = scmp.eq.s32.totalorder %s10, 0
      %p77 = por %p75, %p76
      %p78 = scmp.ne.s32.totalorder %s67, %s70
      %p79 = scmp.eq.s32.totalorder %s15, 1
      %p80 = por %p78, %p79
      %p81 = scmp.ne.s32.totalorder %s70, %s71
      %p82 = scmp.eq.s32.totalorder %s15, 0
      %p83 = por %p81, %p82
      %p84 = scmp.ne.s32.totalorder %s70, %s71
      %p85 = scmp.eq.s32.totalorder %s16, 1
      %p86 = por %p84, %p85
      %p88 = scmp.ne.s32.totalorder %s71, %s87
      %p89 = scmp.eq.s32.totalorder %s16, 0
      %p90 = por %p88, %p89
      %s92 = sadd.s32 %s91, 1
      %p95 = scmp.eq.s32.totalorder %s10, 1
      %p96 = scmp.ne.s32.totalorder %s91, %s93
      %p97 = scmp.eq.s32.totalorder %s10, 0
      %p98 = por %p96, %p97
      %p99 = scmp.ne.s32.totalorder %s91, %s93
      %p100 = scmp.eq.s32.totalorder %s15, 1
      %p101 = por %p99, %p100
      %p102 = scmp.ne.s32.totalorder %s93, %s94
      %p103 = scmp.eq.s32.totalorder %s15, 0
      %p104 = por %p102, %p103
      %p105 = scmp.ne.s32.totalorder %s93, %s94
      %p106 = scmp.eq.s32.totalorder %s16, 1
      %p107 = por %p105, %p106
      %p109 = scmp.ne.s32.totalorder %s94, %s108
      %p110 = scmp.eq.s32.totalorder %s16, 0
      %p111 = por %p109, %p110
      %s112 = ssub.s32 %s10, %s17
      %p113 = scmp.eq.s32.totalorder %s112, 0
      %s115 = sadd.s32 %s114, 1
      %s116 = scalar_select %p113, %s114, %s115
      %p119 = pneg %p113
      %p120 = scmp.eq.s32.totalorder %s10, 1
      %p121 = por %p119, %p120
      %p122 = scmp.ne.s32.totalorder %s114, %s117
      %p123 = scmp.eq.s32.totalorder %s10, 0
      %p124 = por %p122, %p123
      %p125 = scmp.ne.s32.totalorder %s114, %s117
      %p126 = scmp.eq.s32.totalorder %s15, 1
      %p127 = por %p125, %p126
      %p128 = scmp.ne.s32.totalorder %s117, %s118
      %p129 = scmp.eq.s32.totalorder %s15, 0
      %p130 = por %p128, %p129
      %p131 = scmp.ne.s32.totalorder %s117, %s118
      %p132 = scmp.eq.s32.totalorder %s16, 1
      %p133 = por %p131, %p132
      %p135 = scmp.ne.s32.totalorder %s118, %s134
      %p136 = scmp.eq.s32.totalorder %s16, 0
      %p137 = por %p135, %p136
      %p138 = scmp.le.s32.totalorder 1, %s10
      %p139 = scmp.lt.s32.totalorder %s10, 3
      %p140 = pnand %p138, %p139
      %p141 = pneg %p140
      // Predicated region
      $region9: #{condition_network2_forward.4} parent=5 // pred_check
        _
      $region10: #{condition_network2_forward.4} parent=5 // pred_check_branch
        %143 = sbr.rel (%p140) target = $region12
      $region11: #{condition_network2_forward.4} parent=5 // pred_region
        %s144 = ssub.s32 %s10, 1
        // Predicated region
        $region13: #{condition_network2_forward.4} parent=11 // pred_check
          %p145 = pneg %p31
        $region14: #{condition_network2_forward.4} parent=11 // pred_check_branch
          %147 = sbr.rel (%p145) target = $region16
        $region15: #{condition_network2_forward.4} parent=11 // pred_region
          _
        $region16: #{condition_network2_forward.4} parent=11 // pred_fallthru
          _
        // Predicated region
        $region17: #{condition_network2_forward.4} parent=11 // pred_check
          %p148 = pneg %p104
        $region18: #{condition_network2_forward.4} parent=11 // pred_check_branch
          %150 = sbr.rel (%p148) target = $region20
        $region19: #{condition_network2_forward.4} parent=11 // pred_region
          _
        $region20: #{condition_network2_forward.4} parent=11 // pred_fallthru
          _
      $region12: #{condition_network2_forward.4} parent=5 // pred_fallthru
        _
      %p151 = scmp.lt.s32.totalorder %s10, 2
      // Predicated region
      $region21: #{condition_network2_forward.4} parent=5 // pred_check
        %p152 = pneg %p151
      $region22: #{condition_network2_forward.4} parent=5 // pred_check_branch
        %154 = sbr.rel (%p152) target = $region24
      $region23: #{condition_network2_forward.4} parent=5 // pred_region
        // Predicated region
        $region25: #{condition_network2_forward.4} parent=23 // pred_check
          %p155 = pneg %p51
        $region26: #{condition_network2_forward.4} parent=23 // pred_check_branch
          %157 = sbr.rel (%p155) target = $region28
        $region27: #{condition_network2_forward.4} parent=23 // pred_region
          %s158 = sand.u32 %s41, 1
          %s159 = sand.u32 %s41, 1
          %s160 = smul.addr %s159, 2304
          %s161 = scalar_lea.vmem [#allocation2], %s160
          %s162 = smul.u32 4, %s10
          %s163 = smul.addr %s162, 4
          %s164 = scalar_lea.vmem %s1, %s163
          // Predicated region
          $region29: #{condition_network2_forward.4} parent=27 // pred_check
            _
          $region30: #{condition_network2_forward.4} parent=27 // pred_check_branch
            %166 = sbr.rel (0) target = $region32
          $region31: #{condition_network2_forward.4} parent=27 // pred_region
            // Predicated region
            $region33: #{condition_network2_forward.4} parent=31 // pred_check
              _
            $region34: #{condition_network2_forward.4} parent=31 // pred_check_branch
              %168 = sbr.rel (0) target = $region36
            $region35: #{condition_network2_forward.4} parent=31 // pred_region
              loop: start=0, step=1, limit=1
              $region37: #{condition_network2_forward.4} parent=35 // loop_pre_header
                _
              $region38: #{condition_network2_forward.4} parent=35 // loop_header
                %s170 = sphi 0, %s174
                %p171 = scmp.ge.s32.totalorder %s170, 1
                %s175 = sphi %s164, %s164
                %s176 = sphi %s161, %s161
              $region39: #{condition_network2_forward.4} parent=35 // loop_header_branch
                %173 = sbr.rel (%p171) target = $region43
              $region40: #{condition_network2_forward.4} parent=35 // loop_body
                %v177 = vld [vmem:[%s175] sm:$0xff]
                %178 = vst [vmem:[%s176] sm:$0xff] %v177
                %v179 = vld [vmem:[%s175 + $0x8] sm:$0xff]
                %180 = vst [vmem:[%s176 + $0x8] sm:$0xff] %v179
                %v181 = vld [vmem:[%s175 + $0x20] sm:$0xff]
                %182 = vst [vmem:[%s176 + $0x10] sm:$0xff] %v181
                %v183 = vld [vmem:[%s175 + $0x28] sm:$0xff]
                %184 = vst [vmem:[%s176 + $0x18] sm:$0xff] %v183
                %v185 = vld [vmem:[%s175 + $0x40] sm:$0xff]
                %186 = vst [vmem:[%s176 + $0x20] sm:$0xff] %v185
                %v187 = vld [vmem:[%s175 + $0x48] sm:$0xff]
                %188 = vst [vmem:[%s176 + $0x28] sm:$0xff] %v187
                %v189 = vld [vmem:[%s175 + $0x60] sm:$0xff]
                %190 = vst [vmem:[%s176 + $0x30] sm:$0xff] %v189
                %v191 = vld [vmem:[%s175 + $0x68] sm:$0xff]
                %192 = vst [vmem:[%s176 + $0x38] sm:$0xff] %v191
                %v193 = vld [vmem:[%s175 + $0x80] sm:$0xff]
                %194 = vst [vmem:[%s176 + $0x40] sm:$0xff] %v193
                %v195 = vld [vmem:[%s175 + $0x88] sm:$0xff]
                %196 = vst [vmem:[%s176 + $0x48] sm:$0xff] %v195
                %v197 = vld [vmem:[%s175 + $0xa0] sm:$0xff]
                %198 = vst [vmem:[%s176 + $0x50] sm:$0xff] %v197
                %v199 = vld [vmem:[%s175 + $0xa8] sm:$0xff]
                %200 = vst [vmem:[%s176 + $0x58] sm:$0xff] %v199
                %v201 = vld [vmem:[%s175 + $0xc0] sm:$0xff]
                %202 = vst [vmem:[%s176 + $0x60] sm:$0xff] %v201
                %v203 = vld [vmem:[%s175 + $0xc8] sm:$0xff]
                %204 = vst [vmem:[%s176 + $0x68] sm:$0xff] %v203
                %v205 = vld [vmem:[%s175 + $0xe0] sm:$0xff]
                %206 = vst [vmem:[%s176 + $0x70] sm:$0xff] %v205
                %v207 = vld [vmem:[%s175 + $0xe8] sm:$0xff]
                %208 = vst [vmem:[%s176 + $0x78] sm:$0xff] %v207
                %v209 = vld [vmem:[%s175 + $0x100] sm:$0xff]
                %210 = vst [vmem:[%s176 + $0x80] sm:$0xff] %v209
                %v211 = vld [vmem:[%s175 + $0x108] sm:$0xff]
                %212 = vst [vmem:[%s176 + $0x88] sm:$0xff] %v211
                %v213 = vld [vmem:[%s175 + $0x120] sm:$0xff]
                %214 = vst [vmem:[%s176 + $0x90] sm:$0xff] %v213
                %v215 = vld [vmem:[%s175 + $0x128] sm:$0xff]
                %216 = vst [vmem:[%s176 + $0x98] sm:$0xff] %v215
                %v217 = vld [vmem:[%s175 + $0x140] sm:$0xff]
                %218 = vst [vmem:[%s176 + $0xa0] sm:$0xff] %v217
                %v219 = vld [vmem:[%s175 + $0x148] sm:$0xff]
                %220 = vst [vmem:[%s176 + $0xa8] sm:$0xff] %v219
                %v221 = vld [vmem:[%s175 + $0x160] sm:$0xff]
                %222 = vst [vmem:[%s176 + $0xb0] sm:$0xff] %v221
                %v223 = vld [vmem:[%s175 + $0x168] sm:$0xff]
                %224 = vst [vmem:[%s176 + $0xb8] sm:$0xff] %v223
                %v225 = vld [vmem:[%s175 + $0x180] sm:$0xff]
                %226 = vst [vmem:[%s176 + $0xc0] sm:$0xff] %v225
                %v227 = vld [vmem:[%s175 + $0x188] sm:$0xff]
                %228 = vst [vmem:[%s176 + $0xc8] sm:$0xff] %v227
                %v229 = vld [vmem:[%s175 + $0x1a0] sm:$0xff]
                %230 = vst [vmem:[%s176 + $0xd0] sm:$0xff] %v229
                %v231 = vld [vmem:[%s175 + $0x1a8] sm:$0xff]
                %232 = vst [vmem:[%s176 + $0xd8] sm:$0xff] %v231
                %v233 = vld [vmem:[%s175 + $0x1c0] sm:$0xff]
                %234 = vst [vmem:[%s176 + $0xe0] sm:$0xff] %v233
                %v235 = vld [vmem:[%s175 + $0x1c8] sm:$0xff]
                %236 = vst [vmem:[%s176 + $0xe8] sm:$0xff] %v235
                %v237 = vld [vmem:[%s175 + $0x1e0] sm:$0xff]
                %238 = vst [vmem:[%s176 + $0xf0] sm:$0xff] %v237
                %v239 = vld [vmem:[%s175 + $0x1e8] sm:$0xff]
                %240 = vst [vmem:[%s176 + $0xf8] sm:$0xff] %v239
                %v241 = vld [vmem:[%s175 + $0x200] sm:$0xff]
                %242 = vst [vmem:[%s176 + $0x100] sm:$0xff] %v241
                %v243 = vld [vmem:[%s175 + $0x208] sm:$0xff]
                %244 = vst [vmem:[%s176 + $0x108] sm:$0xff] %v243
                %v245 = vld [vmem:[%s175 + $0x220] sm:$0xff]
                %246 = vst [vmem:[%s176 + $0x110] sm:$0xff] %v245
                %v247 = vld [vmem:[%s175 + $0x228] sm:$0xff]
                %248 = vst [vmem:[%s176 + $0x118] sm:$0xff] %v247
                %v249 = vld [vmem:[%s175 + $0x240] sm:$0xff]
                %250 = vst [vmem:[%s176 + $0x120] sm:$0xff] %v249
                %v251 = vld [vmem:[%s175 + $0x248] sm:$0xff]
                %252 = vst [vmem:[%s176 + $0x128] sm:$0xff] %v251
                %v253 = vld [vmem:[%s175 + $0x260] sm:$0xff]
                %254 = vst [vmem:[%s176 + $0x130] sm:$0xff] %v253
                %v255 = vld [vmem:[%s175 + $0x268] sm:$0xff]
                %256 = vst [vmem:[%s176 + $0x138] sm:$0xff] %v255
                %v257 = vld [vmem:[%s175 + $0x280] sm:$0xff]
                %258 = vst [vmem:[%s176 + $0x140] sm:$0xff] %v257
                %v259 = vld [vmem:[%s175 + $0x288] sm:$0xff]
                %260 = vst [vmem:[%s176 + $0x148] sm:$0xff] %v259
                %v261 = vld [vmem:[%s175 + $0x2a0] sm:$0xff]
                %262 = vst [vmem:[%s176 + $0x150] sm:$0xff] %v261
                %v263 = vld [vmem:[%s175 + $0x2a8] sm:$0xff]
                %264 = vst [vmem:[%s176 + $0x158] sm:$0xff] %v263
                %v265 = vld [vmem:[%s175 + $0x2c0] sm:$0xff]
                %266 = vst [vmem:[%s176 + $0x160] sm:$0xff] %v265
                %v267 = vld [vmem:[%s175 + $0x2c8] sm:$0xff]
                %268 = vst [vmem:[%s176 + $0x168] sm:$0xff] %v267
                %v269 = vld [vmem:[%s175 + $0x2e0] sm:$0xff]
                %270 = vst [vmem:[%s176 + $0x170] sm:$0xff] %v269
                %v271 = vld [vmem:[%s175 + $0x2e8] sm:$0xff]
                %272 = vst [vmem:[%s176 + $0x178] sm:$0xff] %v271
                %v273 = vld [vmem:[%s175 + $0x300] sm:$0xff]
                %274 = vst [vmem:[%s176 + $0x180] sm:$0xff] %v273
                %v275 = vld [vmem:[%s175 + $0x308] sm:$0xff]
                %276 = vst [vmem:[%s176 + $0x188] sm:$0xff] %v275
                %v277 = vld [vmem:[%s175 + $0x320] sm:$0xff]
                %278 = vst [vmem:[%s176 + $0x190] sm:$0xff] %v277
                %v279 = vld [vmem:[%s175 + $0x328] sm:$0xff]
                %280 = vst [vmem:[%s176 + $0x198] sm:$0xff] %v279
                %v281 = vld [vmem:[%s175 + $0x340] sm:$0xff]
                %282 = vst [vmem:[%s176 + $0x1a0] sm:$0xff] %v281
                %v283 = vld [vmem:[%s175 + $0x348] sm:$0xff]
                %284 = vst [vmem:[%s176 + $0x1a8] sm:$0xff] %v283
                %v285 = vld [vmem:[%s175 + $0x360] sm:$0xff]
                %286 = vst [vmem:[%s176 + $0x1b0] sm:$0xff] %v285
                %v287 = vld [vmem:[%s175 + $0x368] sm:$0xff]
                %288 = vst [vmem:[%s176 + $0x1b8] sm:$0xff] %v287
                %v289 = vld [vmem:[%s175 + $0x380] sm:$0xff]
                %290 = vst [vmem:[%s176 + $0x1c0] sm:$0xff] %v289
                %v291 = vld [vmem:[%s175 + $0x388] sm:$0xff]
                %292 = vst [vmem:[%s176 + $0x1c8] sm:$0xff] %v291
                %v293 = vld [vmem:[%s175 + $0x3a0] sm:$0xff]
                %294 = vst [vmem:[%s176 + $0x1d0] sm:$0xff] %v293
                %v295 = vld [vmem:[%s175 + $0x3a8] sm:$0xff]
                %296 = vst [vmem:[%s176 + $0x1d8] sm:$0xff] %v295
                %v297 = vld [vmem:[%s175 + $0x3c0] sm:$0xff]
                %298 = vst [vmem:[%s176 + $0x1e0] sm:$0xff] %v297
                %v299 = vld [vmem:[%s175 + $0x3c8] sm:$0xff]
                %300 = vst [vmem:[%s176 + $0x1e8] sm:$0xff] %v299
                %v301 = vld [vmem:[%s175 + $0x3e0] sm:$0xff]
                %302 = vst [vmem:[%s176 + $0x1f0] sm:$0xff] %v301
                %v303 = vld [vmem:[%s175 + $0x3e8] sm:$0xff]
                %304 = vst [vmem:[%s176 + $0x1f8] sm:$0xff] %v303
                %v305 = vld [vmem:[%s175 + $0x400] sm:$0xff]
                %306 = vst [vmem:[%s176 + $0x200] sm:$0xff] %v305
                %v307 = vld [vmem:[%s175 + $0x408] sm:$0xff]
                %308 = vst [vmem:[%s176 + $0x208] sm:$0xff] %v307
                %v309 = vld [vmem:[%s175 + $0x420] sm:$0xff]
                %310 = vst [vmem:[%s176 + $0x210] sm:$0xff] %v309
                %v311 = vld [vmem:[%s175 + $0x428] sm:$0xff]
                %312 = vst [vmem:[%s176 + $0x218] sm:$0xff] %v311
                %v313 = vld [vmem:[%s175 + $0x440] sm:$0xff]
                %314 = vst [vmem:[%s176 + $0x220] sm:$0xff] %v313
                %v315 = vld [vmem:[%s175 + $0x448] sm:$0xff]
                %316 = vst [vmem:[%s176 + $0x228] sm:$0xff] %v315
                %v317 = vld [vmem:[%s175 + $0x460] sm:$0xff]
                %318 = vst [vmem:[%s176 + $0x230] sm:$0xff] %v317
                %v319 = vld [vmem:[%s175 + $0x468] sm:$0xff]
                %320 = vst [vmem:[%s176 + $0x238] sm:$0xff] %v319
                %v321 = vld [vmem:[%s175 + $0x480] sm:$0xff]
                %322 = vst [vmem:[%s176 + $0x240] sm:$0xff] %v321
                %v323 = vld [vmem:[%s175 + $0x488] sm:$0xff]
                %324 = vst [vmem:[%s176 + $0x248] sm:$0xff] %v323
                %v325 = vld [vmem:[%s175 + $0x4a0] sm:$0xff]
                %326 = vst [vmem:[%s176 + $0x250] sm:$0xff] %v325
                %v327 = vld [vmem:[%s175 + $0x4a8] sm:$0xff]
                %328 = vst [vmem:[%s176 + $0x258] sm:$0xff] %v327
                %v329 = vld [vmem:[%s175 + $0x4c0] sm:$0xff]
                %330 = vst [vmem:[%s176 + $0x260] sm:$0xff] %v329
                %v331 = vld [vmem:[%s175 + $0x4c8] sm:$0xff]
                %332 = vst [vmem:[%s176 + $0x268] sm:$0xff] %v331
                %v333 = vld [vmem:[%s175 + $0x4e0] sm:$0xff]
                %334 = vst [vmem:[%s176 + $0x270] sm:$0xff] %v333
                %v335 = vld [vmem:[%s175 + $0x4e8] sm:$0xff]
                %336 = vst [vmem:[%s176 + $0x278] sm:$0xff] %v335
                %v337 = vld [vmem:[%s175 + $0x500] sm:$0xff]
                %338 = vst [vmem:[%s176 + $0x280] sm:$0xff] %v337
                %v339 = vld [vmem:[%s175 + $0x508] sm:$0xff]
                %340 = vst [vmem:[%s176 + $0x288] sm:$0xff] %v339
                %v341 = vld [vmem:[%s175 + $0x520] sm:$0xff]
                %342 = vst [vmem:[%s176 + $0x290] sm:$0xff] %v341
                %v343 = vld [vmem:[%s175 + $0x528] sm:$0xff]
                %344 = vst [vmem:[%s176 + $0x298] sm:$0xff] %v343
                %v345 = vld [vmem:[%s175 + $0x540] sm:$0xff]
                %346 = vst [vmem:[%s176 + $0x2a0] sm:$0xff] %v345
                %v347 = vld [vmem:[%s175 + $0x548] sm:$0xff]
                %348 = vst [vmem:[%s176 + $0x2a8] sm:$0xff] %v347
                %v349 = vld [vmem:[%s175 + $0x560] sm:$0xff]
                %350 = vst [vmem:[%s176 + $0x2b0] sm:$0xff] %v349
                %v351 = vld [vmem:[%s175 + $0x568] sm:$0xff]
                %352 = vst [vmem:[%s176 + $0x2b8] sm:$0xff] %v351
                %v353 = vld [vmem:[%s175 + $0x580] sm:$0xff]
                %354 = vst [vmem:[%s176 + $0x2c0] sm:$0xff] %v353
                %v355 = vld [vmem:[%s175 + $0x588] sm:$0xff]
                %356 = vst [vmem:[%s176 + $0x2c8] sm:$0xff] %v355
                %v357 = vld [vmem:[%s175 + $0x5a0] sm:$0xff]
                %358 = vst [vmem:[%s176 + $0x2d0] sm:$0xff] %v357
                %v359 = vld [vmem:[%s175 + $0x5a8] sm:$0xff]
                %360 = vst [vmem:[%s176 + $0x2d8] sm:$0xff] %v359
                %v361 = vld [vmem:[%s175 + $0x5c0] sm:$0xff]
                %362 = vst [vmem:[%s176 + $0x2e0] sm:$0xff] %v361
                %v363 = vld [vmem:[%s175 + $0x5c8] sm:$0xff]
                %364 = vst [vmem:[%s176 + $0x2e8] sm:$0xff] %v363
                %v365 = vld [vmem:[%s175 + $0x5e0] sm:$0xff]
                %366 = vst [vmem:[%s176 + $0x2f0] sm:$0xff] %v365
                %v367 = vld [vmem:[%s175 + $0x5e8] sm:$0xff]
                %368 = vst [vmem:[%s176 + $0x2f8] sm:$0xff] %v367
                %v369 = vld [vmem:[%s175 + $0x600] sm:$0xff]
                %370 = vst [vmem:[%s176 + $0x300] sm:$0xff] %v369
                %v371 = vld [vmem:[%s175 + $0x608] sm:$0xff]
                %372 = vst [vmem:[%s176 + $0x308] sm:$0xff] %v371
                %v373 = vld [vmem:[%s175 + $0x620] sm:$0xff]
                %374 = vst [vmem:[%s176 + $0x310] sm:$0xff] %v373
                %v375 = vld [vmem:[%s175 + $0x628] sm:$0xff]
                %376 = vst [vmem:[%s176 + $0x318] sm:$0xff] %v375
                %v377 = vld [vmem:[%s175 + $0x640] sm:$0xff]
                %378 = vst [vmem:[%s176 + $0x320] sm:$0xff] %v377
                %v379 = vld [vmem:[%s175 + $0x648] sm:$0xff]
                %380 = vst [vmem:[%s176 + $0x328] sm:$0xff] %v379
                %v381 = vld [vmem:[%s175 + $0x660] sm:$0xff]
                %382 = vst [vmem:[%s176 + $0x330] sm:$0xff] %v381
                %v383 = vld [vmem:[%s175 + $0x668] sm:$0xff]
                %384 = vst [vmem:[%s176 + $0x338] sm:$0xff] %v383
                %v385 = vld [vmem:[%s175 + $0x680] sm:$0xff]
                %386 = vst [vmem:[%s176 + $0x340] sm:$0xff] %v385
                %v387 = vld [vmem:[%s175 + $0x688] sm:$0xff]
                %388 = vst [vmem:[%s176 + $0x348] sm:$0xff] %v387
                %v389 = vld [vmem:[%s175 + $0x6a0] sm:$0xff]
                %390 = vst [vmem:[%s176 + $0x350] sm:$0xff] %v389
                %v391 = vld [vmem:[%s175 + $0x6a8] sm:$0xff]
                %392 = vst [vmem:[%s176 + $0x358] sm:$0xff] %v391
                %v393 = vld [vmem:[%s175 + $0x6c0] sm:$0xff]
                %394 = vst [vmem:[%s176 + $0x360] sm:$0xff] %v393
                %v395 = vld [vmem:[%s175 + $0x6c8] sm:$0xff]
                %396 = vst [vmem:[%s176 + $0x368] sm:$0xff] %v395
                %v397 = vld [vmem:[%s175 + $0x6e0] sm:$0xff]
                %398 = vst [vmem:[%s176 + $0x370] sm:$0xff] %v397
                %v399 = vld [vmem:[%s175 + $0x6e8] sm:$0xff]
                %400 = vst [vmem:[%s176 + $0x378] sm:$0xff] %v399
                %v401 = vld [vmem:[%s175 + $0x700] sm:$0xff]
                %402 = vst [vmem:[%s176 + $0x380] sm:$0xff] %v401
                %v403 = vld [vmem:[%s175 + $0x708] sm:$0xff]
                %404 = vst [vmem:[%s176 + $0x388] sm:$0xff] %v403
                %v405 = vld [vmem:[%s175 + $0x720] sm:$0xff]
                %406 = vst [vmem:[%s176 + $0x390] sm:$0xff] %v405
                %v407 = vld [vmem:[%s175 + $0x728] sm:$0xff]
                %408 = vst [vmem:[%s176 + $0x398] sm:$0xff] %v407
                %v409 = vld [vmem:[%s175 + $0x740] sm:$0xff]
                %410 = vst [vmem:[%s176 + $0x3a0] sm:$0xff] %v409
                %v411 = vld [vmem:[%s175 + $0x748] sm:$0xff]
                %412 = vst [vmem:[%s176 + $0x3a8] sm:$0xff] %v411
                %v413 = vld [vmem:[%s175 + $0x760] sm:$0xff]
                %414 = vst [vmem:[%s176 + $0x3b0] sm:$0xff] %v413
                %v415 = vld [vmem:[%s175 + $0x768] sm:$0xff]
                %416 = vst [vmem:[%s176 + $0x3b8] sm:$0xff] %v415
                %v417 = vld [vmem:[%s175 + $0x780] sm:$0xff]
                %418 = vst [vmem:[%s176 + $0x3c0] sm:$0xff] %v417
                %v419 = vld [vmem:[%s175 + $0x788] sm:$0xff]
                %420 = vst [vmem:[%s176 + $0x3c8] sm:$0xff] %v419
                %v421 = vld [vmem:[%s175 + $0x7a0] sm:$0xff]
                %422 = vst [vmem:[%s176 + $0x3d0] sm:$0xff] %v421
                %v423 = vld [vmem:[%s175 + $0x7a8] sm:$0xff]
                %424 = vst [vmem:[%s176 + $0x3d8] sm:$0xff] %v423
                %v425 = vld [vmem:[%s175 + $0x7c0] sm:$0xff]
                %426 = vst [vmem:[%s176 + $0x3e0] sm:$0xff] %v425
                %v427 = vld [vmem:[%s175 + $0x7c8] sm:$0xff]
                %428 = vst [vmem:[%s176 + $0x3e8] sm:$0xff] %v427
                %v429 = vld [vmem:[%s175 + $0x7e0] sm:$0xff]
                %430 = vst [vmem:[%s176 + $0x3f0] sm:$0xff] %v429
                %v431 = vld [vmem:[%s175 + $0x7e8] sm:$0xff]
                %432 = vst [vmem:[%s176 + $0x3f8] sm:$0xff] %v431
                %v433 = vld [vmem:[%s175 + $0x800] sm:$0xff]
                %434 = vst [vmem:[%s176 + $0x400] sm:$0xff] %v433
                %v435 = vld [vmem:[%s175 + $0x808] sm:$0xff]
                %436 = vst [vmem:[%s176 + $0x408] sm:$0xff] %v435
                %v437 = vld [vmem:[%s175 + $0x820] sm:$0xff]
                %438 = vst [vmem:[%s176 + $0x410] sm:$0xff] %v437
                %v439 = vld [vmem:[%s175 + $0x828] sm:$0xff]
                %440 = vst [vmem:[%s176 + $0x418] sm:$0xff] %v439
                %v441 = vld [vmem:[%s175 + $0x840] sm:$0xff]
                %442 = vst [vmem:[%s176 + $0x420] sm:$0xff] %v441
                %v443 = vld [vmem:[%s175 + $0x848] sm:$0xff]
                %444 = vst [vmem:[%s176 + $0x428] sm:$0xff] %v443
                %v445 = vld [vmem:[%s175 + $0x860] sm:$0xff]
                %446 = vst [vmem:[%s176 + $0x430] sm:$0xff] %v445
                %v447 = vld [vmem:[%s175 + $0x868] sm:$0xff]
                %448 = vst [vmem:[%s176 + $0x438] sm:$0xff] %v447
                %v449 = vld [vmem:[%s175 + $0x880] sm:$0xff]
                %450 = vst [vmem:[%s176 + $0x440] sm:$0xff] %v449
                %v451 = vld [vmem:[%s175 + $0x888] sm:$0xff]
                %452 = vst [vmem:[%s176 + $0x448] sm:$0xff] %v451
                %v453 = vld [vmem:[%s175 + $0x8a0] sm:$0xff]
                %454 = vst [vmem:[%s176 + $0x450] sm:$0xff] %v453
                %v455 = vld [vmem:[%s175 + $0x8a8] sm:$0xff]
                %456 = vst [vmem:[%s176 + $0x458] sm:$0xff] %v455
                %v457 = vld [vmem:[%s175 + $0x8c0] sm:$0xff]
                %458 = vst [vmem:[%s176 + $0x460] sm:$0xff] %v457
                %v459 = vld [vmem:[%s175 + $0x8c8] sm:$0xff]
                %460 = vst [vmem:[%s176 + $0x468] sm:$0xff] %v459
                %v461 = vld [vmem:[%s175 + $0x8e0] sm:$0xff]
                %462 = vst [vmem:[%s176 + $0x470] sm:$0xff] %v461
                %v463 = vld [vmem:[%s175 + $0x8e8] sm:$0xff]
                %464 = vst [vmem:[%s176 + $0x478] sm:$0xff] %v463
                %v465 = vld [vmem:[%s175 + $0x900] sm:$0xff]
                %466 = vst [vmem:[%s176 + $0x480] sm:$0xff] %v465
                %v467 = vld [vmem:[%s175 + $0x908] sm:$0xff]
                %468 = vst [vmem:[%s176 + $0x488] sm:$0xff] %v467
                %v469 = vld [vmem:[%s175 + $0x920] sm:$0xff]
                %470 = vst [vmem:[%s176 + $0x490] sm:$0xff] %v469
                %v471 = vld [vmem:[%s175 + $0x928] sm:$0xff]
                %472 = vst [vmem:[%s176 + $0x498] sm:$0xff] %v471
                %v473 = vld [vmem:[%s175 + $0x940] sm:$0xff]
                %474 = vst [vmem:[%s176 + $0x4a0] sm:$0xff] %v473
                %v475 = vld [vmem:[%s175 + $0x948] sm:$0xff]
                %476 = vst [vmem:[%s176 + $0x4a8] sm:$0xff] %v475
                %v477 = vld [vmem:[%s175 + $0x960] sm:$0xff]
                %478 = vst [vmem:[%s176 + $0x4b0] sm:$0xff] %v477
                %v479 = vld [vmem:[%s175 + $0x968] sm:$0xff]
                %480 = vst [vmem:[%s176 + $0x4b8] sm:$0xff] %v479
                %v481 = vld [vmem:[%s175 + $0x980] sm:$0xff]
                %482 = vst [vmem:[%s176 + $0x4c0] sm:$0xff] %v481
                %v483 = vld [vmem:[%s175 + $0x988] sm:$0xff]
                %484 = vst [vmem:[%s176 + $0x4c8] sm:$0xff] %v483
                %v485 = vld [vmem:[%s175 + $0x9a0] sm:$0xff]
                %486 = vst [vmem:[%s176 + $0x4d0] sm:$0xff] %v485
                %v487 = vld [vmem:[%s175 + $0x9a8] sm:$0xff]
                %488 = vst [vmem:[%s176 + $0x4d8] sm:$0xff] %v487
                %v489 = vld [vmem:[%s175 + $0x9c0] sm:$0xff]
                %490 = vst [vmem:[%s176 + $0x4e0] sm:$0xff] %v489
                %v491 = vld [vmem:[%s175 + $0x9c8] sm:$0xff]
                %492 = vst [vmem:[%s176 + $0x4e8] sm:$0xff] %v491
                %v493 = vld [vmem:[%s175 + $0x9e0] sm:$0xff]
                %494 = vst [vmem:[%s176 + $0x4f0] sm:$0xff] %v493
                %v495 = vld [vmem:[%s175 + $0x9e8] sm:$0xff]
                %496 = vst [vmem:[%s176 + $0x4f8] sm:$0xff] %v495
                %v497 = vld [vmem:[%s175 + $0xa00] sm:$0xff]
                %498 = vst [vmem:[%s176 + $0x500] sm:$0xff] %v497
                %v499 = vld [vmem:[%s175 + $0xa08] sm:$0xff]
                %500 = vst [vmem:[%s176 + $0x508] sm:$0xff] %v499
                %v501 = vld [vmem:[%s175 + $0xa20] sm:$0xff]
                %502 = vst [vmem:[%s176 + $0x510] sm:$0xff] %v501
                %v503 = vld [vmem:[%s175 + $0xa28] sm:$0xff]
                %504 = vst [vmem:[%s176 + $0x518] sm:$0xff] %v503
                %v505 = vld [vmem:[%s175 + $0xa40] sm:$0xff]
                %506 = vst [vmem:[%s176 + $0x520] sm:$0xff] %v505
                %v507 = vld [vmem:[%s175 + $0xa48] sm:$0xff]
                %508 = vst [vmem:[%s176 + $0x528] sm:$0xff] %v507
                %v509 = vld [vmem:[%s175 + $0xa60] sm:$0xff]
                %510 = vst [vmem:[%s176 + $0x530] sm:$0xff] %v509
                %v511 = vld [vmem:[%s175 + $0xa68] sm:$0xff]
                %512 = vst [vmem:[%s176 + $0x538] sm:$0xff] %v511
                %v513 = vld [vmem:[%s175 + $0xa80] sm:$0xff]
                %514 = vst [vmem:[%s176 + $0x540] sm:$0xff] %v513
                %v515 = vld [vmem:[%s175 + $0xa88] sm:$0xff]
                %516 = vst [vmem:[%s176 + $0x548] sm:$0xff] %v515
                %v517 = vld [vmem:[%s175 + $0xaa0] sm:$0xff]
                %518 = vst [vmem:[%s176 + $0x550] sm:$0xff] %v517
                %v519 = vld [vmem:[%s175 + $0xaa8] sm:$0xff]
                %520 = vst [vmem:[%s176 + $0x558] sm:$0xff] %v519
                %v521 = vld [vmem:[%s175 + $0xac0] sm:$0xff]
                %522 = vst [vmem:[%s176 + $0x560] sm:$0xff] %v521
                %v523 = vld [vmem:[%s175 + $0xac8] sm:$0xff]
                %524 = vst [vmem:[%s176 + $0x568] sm:$0xff] %v523
                %v525 = vld [vmem:[%s175 + $0xae0] sm:$0xff]
                %526 = vst [vmem:[%s176 + $0x570] sm:$0xff] %v525
                %v527 = vld [vmem:[%s175 + $0xae8] sm:$0xff]
                %528 = vst [vmem:[%s176 + $0x578] sm:$0xff] %v527
                %v529 = vld [vmem:[%s175 + $0xb00] sm:$0xff]
                %530 = vst [vmem:[%s176 + $0x580] sm:$0xff] %v529
                %v531 = vld [vmem:[%s175 + $0xb08] sm:$0xff]
                %532 = vst [vmem:[%s176 + $0x588] sm:$0xff] %v531
                %v533 = vld [vmem:[%s175 + $0xb20] sm:$0xff]
                %534 = vst [vmem:[%s176 + $0x590] sm:$0xff] %v533
                %v535 = vld [vmem:[%s175 + $0xb28] sm:$0xff]
                %536 = vst [vmem:[%s176 + $0x598] sm:$0xff] %v535
                %v537 = vld [vmem:[%s175 + $0xb40] sm:$0xff]
                %538 = vst [vmem:[%s176 + $0x5a0] sm:$0xff] %v537
                %v539 = vld [vmem:[%s175 + $0xb48] sm:$0xff]
                %540 = vst [vmem:[%s176 + $0x5a8] sm:$0xff] %v539
                %v541 = vld [vmem:[%s175 + $0xb60] sm:$0xff]
                %542 = vst [vmem:[%s176 + $0x5b0] sm:$0xff] %v541
                %v543 = vld [vmem:[%s175 + $0xb68] sm:$0xff]
                %544 = vst [vmem:[%s176 + $0x5b8] sm:$0xff] %v543
                %v545 = vld [vmem:[%s175 + $0xb80] sm:$0xff]
                %546 = vst [vmem:[%s176 + $0x5c0] sm:$0xff] %v545
                %v547 = vld [vmem:[%s175 + $0xb88] sm:$0xff]
                %548 = vst [vmem:[%s176 + $0x5c8] sm:$0xff] %v547
                %v549 = vld [vmem:[%s175 + $0xba0] sm:$0xff]
                %550 = vst [vmem:[%s176 + $0x5d0] sm:$0xff] %v549
                %v551 = vld [vmem:[%s175 + $0xba8] sm:$0xff]
                %552 = vst [vmem:[%s176 + $0x5d8] sm:$0xff] %v551
                %v553 = vld [vmem:[%s175 + $0xbc0] sm:$0xff]
                %554 = vst [vmem:[%s176 + $0x5e0] sm:$0xff] %v553
                %v555 = vld [vmem:[%s175 + $0xbc8] sm:$0xff]
                %556 = vst [vmem:[%s176 + $0x5e8] sm:$0xff] %v555
                %v557 = vld [vmem:[%s175 + $0xbe0] sm:$0xff]
                %558 = vst [vmem:[%s176 + $0x5f0] sm:$0xff] %v557
                %v559 = vld [vmem:[%s175 + $0xbe8] sm:$0xff]
                %560 = vst [vmem:[%s176 + $0x5f8] sm:$0xff] %v559
                %v561 = vld [vmem:[%s175 + $0xc00] sm:$0xff]
                %562 = vst [vmem:[%s176 + $0x600] sm:$0xff] %v561
                %v563 = vld [vmem:[%s175 + $0xc08] sm:$0xff]
                %564 = vst [vmem:[%s176 + $0x608] sm:$0xff] %v563
                %v565 = vld [vmem:[%s175 + $0xc20] sm:$0xff]
                %566 = vst [vmem:[%s176 + $0x610] sm:$0xff] %v565
                %v567 = vld [vmem:[%s175 + $0xc28] sm:$0xff]
                %568 = vst [vmem:[%s176 + $0x618] sm:$0xff] %v567
                %v569 = vld [vmem:[%s175 + $0xc40] sm:$0xff]
                %570 = vst [vmem:[%s176 + $0x620] sm:$0xff] %v569
                %v571 = vld [vmem:[%s175 + $0xc48] sm:$0xff]
                %572 = vst [vmem:[%s176 + $0x628] sm:$0xff] %v571
                %v573 = vld [vmem:[%s175 + $0xc60] sm:$0xff]
                %574 = vst [vmem:[%s176 + $0x630] sm:$0xff] %v573
                %v575 = vld [vmem:[%s175 + $0xc68] sm:$0xff]
                %576 = vst [vmem:[%s176 + $0x638] sm:$0xff] %v575
                %v577 = vld [vmem:[%s175 + $0xc80] sm:$0xff]
                %578 = vst [vmem:[%s176 + $0x640] sm:$0xff] %v577
                %v579 = vld [vmem:[%s175 + $0xc88] sm:$0xff]
                %580 = vst [vmem:[%s176 + $0x648] sm:$0xff] %v579
                %v581 = vld [vmem:[%s175 + $0xca0] sm:$0xff]
                %582 = vst [vmem:[%s176 + $0x650] sm:$0xff] %v581
                %v583 = vld [vmem:[%s175 + $0xca8] sm:$0xff]
                %584 = vst [vmem:[%s176 + $0x658] sm:$0xff] %v583
                %v585 = vld [vmem:[%s175 + $0xcc0] sm:$0xff]
                %586 = vst [vmem:[%s176 + $0x660] sm:$0xff] %v585
                %v587 = vld [vmem:[%s175 + $0xcc8] sm:$0xff]
                %588 = vst [vmem:[%s176 + $0x668] sm:$0xff] %v587
                %v589 = vld [vmem:[%s175 + $0xce0] sm:$0xff]
                %590 = vst [vmem:[%s176 + $0x670] sm:$0xff] %v589
                %v591 = vld [vmem:[%s175 + $0xce8] sm:$0xff]
                %592 = vst [vmem:[%s176 + $0x678] sm:$0xff] %v591
                %v593 = vld [vmem:[%s175 + $0xd00] sm:$0xff]
                %594 = vst [vmem:[%s176 + $0x680] sm:$0xff] %v593
                %v595 = vld [vmem:[%s175 + $0xd08] sm:$0xff]
                %596 = vst [vmem:[%s176 + $0x688] sm:$0xff] %v595
                %v597 = vld [vmem:[%s175 + $0xd20] sm:$0xff]
                %598 = vst [vmem:[%s176 + $0x690] sm:$0xff] %v597
                %v599 = vld [vmem:[%s175 + $0xd28] sm:$0xff]
                %600 = vst [vmem:[%s176 + $0x698] sm:$0xff] %v599
                %v601 = vld [vmem:[%s175 + $0xd40] sm:$0xff]
                %602 = vst [vmem:[%s176 + $0x6a0] sm:$0xff] %v601
                %v603 = vld [vmem:[%s175 + $0xd48] sm:$0xff]
                %604 = vst [vmem:[%s176 + $0x6a8] sm:$0xff] %v603
                %v605 = vld [vmem:[%s175 + $0xd60] sm:$0xff]
                %606 = vst [vmem:[%s176 + $0x6b0] sm:$0xff] %v605
                %v607 = vld [vmem:[%s175 + $0xd68] sm:$0xff]
                %608 = vst [vmem:[%s176 + $0x6b8] sm:$0xff] %v607
                %v609 = vld [vmem:[%s175 + $0xd80] sm:$0xff]
                %610 = vst [vmem:[%s176 + $0x6c0] sm:$0xff] %v609
                %v611 = vld [vmem:[%s175 + $0xd88] sm:$0xff]
                %612 = vst [vmem:[%s176 + $0x6c8] sm:$0xff] %v611
                %v613 = vld [vmem:[%s175 + $0xda0] sm:$0xff]
                %614 = vst [vmem:[%s176 + $0x6d0] sm:$0xff] %v613
                %v615 = vld [vmem:[%s175 + $0xda8] sm:$0xff]
                %616 = vst [vmem:[%s176 + $0x6d8] sm:$0xff] %v615
                %v617 = vld [vmem:[%s175 + $0xdc0] sm:$0xff]
                %618 = vst [vmem:[%s176 + $0x6e0] sm:$0xff] %v617
                %v619 = vld [vmem:[%s175 + $0xdc8] sm:$0xff]
                %620 = vst [vmem:[%s176 + $0x6e8] sm:$0xff] %v619
                %v621 = vld [vmem:[%s175 + $0xde0] sm:$0xff]
                %622 = vst [vmem:[%s176 + $0x6f0] sm:$0xff] %v621
                %v623 = vld [vmem:[%s175 + $0xde8] sm:$0xff]
                %624 = vst [vmem:[%s176 + $0x6f8] sm:$0xff] %v623
                %v625 = vld [vmem:[%s175 + $0xe00] sm:$0xff]
                %626 = vst [vmem:[%s176 + $0x700] sm:$0xff] %v625
                %v627 = vld [vmem:[%s175 + $0xe08] sm:$0xff]
                %628 = vst [vmem:[%s176 + $0x708] sm:$0xff] %v627
                %v629 = vld [vmem:[%s175 + $0xe20] sm:$0xff]
                %630 = vst [vmem:[%s176 + $0x710] sm:$0xff] %v629
                %v631 = vld [vmem:[%s175 + $0xe28] sm:$0xff]
                %632 = vst [vmem:[%s176 + $0x718] sm:$0xff] %v631
                %v633 = vld [vmem:[%s175 + $0xe40] sm:$0xff]
                %634 = vst [vmem:[%s176 + $0x720] sm:$0xff] %v633
                %v635 = vld [vmem:[%s175 + $0xe48] sm:$0xff]
                %636 = vst [vmem:[%s176 + $0x728] sm:$0xff] %v635
                %v637 = vld [vmem:[%s175 + $0xe60] sm:$0xff]
                %638 = vst [vmem:[%s176 + $0x730] sm:$0xff] %v637
                %v639 = vld [vmem:[%s175 + $0xe68] sm:$0xff]
                %640 = vst [vmem:[%s176 + $0x738] sm:$0xff] %v639
                %v641 = vld [vmem:[%s175 + $0xe80] sm:$0xff]
                %642 = vst [vmem:[%s176 + $0x740] sm:$0xff] %v641
                %v643 = vld [vmem:[%s175 + $0xe88] sm:$0xff]
                %644 = vst [vmem:[%s176 + $0x748] sm:$0xff] %v643
                %v645 = vld [vmem:[%s175 + $0xea0] sm:$0xff]
                %646 = vst [vmem:[%s176 + $0x750] sm:$0xff] %v645
                %v647 = vld [vmem:[%s175 + $0xea8] sm:$0xff]
                %648 = vst [vmem:[%s176 + $0x758] sm:$0xff] %v647
                %v649 = vld [vmem:[%s175 + $0xec0] sm:$0xff]
                %650 = vst [vmem:[%s176 + $0x760] sm:$0xff] %v649
                %v651 = vld [vmem:[%s175 + $0xec8] sm:$0xff]
                %652 = vst [vmem:[%s176 + $0x768] sm:$0xff] %v651
                %v653 = vld [vmem:[%s175 + $0xee0] sm:$0xff]
                %654 = vst [vmem:[%s176 + $0x770] sm:$0xff] %v653
                %v655 = vld [vmem:[%s175 + $0xee8] sm:$0xff]
                %656 = vst [vmem:[%s176 + $0x778] sm:$0xff] %v655
                %v657 = vld [vmem:[%s175 + $0xf00] sm:$0xff]
                %658 = vst [vmem:[%s176 + $0x780] sm:$0xff] %v657
                %v659 = vld [vmem:[%s175 + $0xf08] sm:$0xff]
                %660 = vst [vmem:[%s176 + $0x788] sm:$0xff] %v659
                %v661 = vld [vmem:[%s175 + $0xf20] sm:$0xff]
                %662 = vst [vmem:[%s176 + $0x790] sm:$0xff] %v661
                %v663 = vld [vmem:[%s175 + $0xf28] sm:$0xff]
                %664 = vst [vmem:[%s176 + $0x798] sm:$0xff] %v663
                %v665 = vld [vmem:[%s175 + $0xf40] sm:$0xff]
                %666 = vst [vmem:[%s176 + $0x7a0] sm:$0xff] %v665
                %v667 = vld [vmem:[%s175 + $0xf48] sm:$0xff]
                %668 = vst [vmem:[%s176 + $0x7a8] sm:$0xff] %v667
                %v669 = vld [vmem:[%s175 + $0xf60] sm:$0xff]
                %670 = vst [vmem:[%s176 + $0x7b0] sm:$0xff] %v669
                %v671 = vld [vmem:[%s175 + $0xf68] sm:$0xff]
                %672 = vst [vmem:[%s176 + $0x7b8] sm:$0xff] %v671
                %v673 = vld [vmem:[%s175 + $0xf80] sm:$0xff]
                %674 = vst [vmem:[%s176 + $0x7c0] sm:$0xff] %v673
                %v675 = vld [vmem:[%s175 + $0xf88] sm:$0xff]
                %676 = vst [vmem:[%s176 + $0x7c8] sm:$0xff] %v675
                %v677 = vld [vmem:[%s175 + $0xfa0] sm:$0xff]
                %678 = vst [vmem:[%s176 + $0x7d0] sm:$0xff] %v677
                %v679 = vld [vmem:[%s175 + $0xfa8] sm:$0xff]
                %680 = vst [vmem:[%s176 + $0x7d8] sm:$0xff] %v679
                %v681 = vld [vmem:[%s175 + $0xfc0] sm:$0xff]
                %682 = vst [vmem:[%s176 + $0x7e0] sm:$0xff] %v681
                %v683 = vld [vmem:[%s175 + $0xfc8] sm:$0xff]
                %684 = vst [vmem:[%s176 + $0x7e8] sm:$0xff] %v683
                %v685 = vld [vmem:[%s175 + $0xfe0] sm:$0xff]
                %686 = vst [vmem:[%s176 + $0x7f0] sm:$0xff] %v685
                %v687 = vld [vmem:[%s175 + $0xfe8] sm:$0xff]
                %688 = vst [vmem:[%s176 + $0x7f8] sm:$0xff] %v687
                %v689 = vld [vmem:[%s175 + $0x1000] sm:$0xff]
                %690 = vst [vmem:[%s176 + $0x800] sm:$0xff] %v689
                %v691 = vld [vmem:[%s175 + $0x1008] sm:$0xff]
                %692 = vst [vmem:[%s176 + $0x808] sm:$0xff] %v691
                %v693 = vld [vmem:[%s175 + $0x1020] sm:$0xff]
                %694 = vst [vmem:[%s176 + $0x810] sm:$0xff] %v693
                %v695 = vld [vmem:[%s175 + $0x1028] sm:$0xff]
                %696 = vst [vmem:[%s176 + $0x818] sm:$0xff] %v695
                %v697 = vld [vmem:[%s175 + $0x1040] sm:$0xff]
                %698 = vst [vmem:[%s176 + $0x820] sm:$0xff] %v697
                %v699 = vld [vmem:[%s175 + $0x1048] sm:$0xff]
                %700 = vst [vmem:[%s176 + $0x828] sm:$0xff] %v699
                %v701 = vld [vmem:[%s175 + $0x1060] sm:$0xff]
                %702 = vst [vmem:[%s176 + $0x830] sm:$0xff] %v701
                %v703 = vld [vmem:[%s175 + $0x1068] sm:$0xff]
                %704 = vst [vmem:[%s176 + $0x838] sm:$0xff] %v703
                %v705 = vld [vmem:[%s175 + $0x1080] sm:$0xff]
                %706 = vst [vmem:[%s176 + $0x840] sm:$0xff] %v705
                %v707 = vld [vmem:[%s175 + $0x1088] sm:$0xff]
                %708 = vst [vmem:[%s176 + $0x848] sm:$0xff] %v707
                %v709 = vld [vmem:[%s175 + $0x10a0] sm:$0xff]
                %710 = vst [vmem:[%s176 + $0x850] sm:$0xff] %v709
                %v711 = vld [vmem:[%s175 + $0x10a8] sm:$0xff]
                %712 = vst [vmem:[%s176 + $0x858] sm:$0xff] %v711
                %v713 = vld [vmem:[%s175 + $0x10c0] sm:$0xff]
                %714 = vst [vmem:[%s176 + $0x860] sm:$0xff] %v713
                %v715 = vld [vmem:[%s175 + $0x10c8] sm:$0xff]
                %716 = vst [vmem:[%s176 + $0x868] sm:$0xff] %v715
                %v717 = vld [vmem:[%s175 + $0x10e0] sm:$0xff]
                %718 = vst [vmem:[%s176 + $0x870] sm:$0xff] %v717
                %v719 = vld [vmem:[%s175 + $0x10e8] sm:$0xff]
                %720 = vst [vmem:[%s176 + $0x878] sm:$0xff] %v719
                %v721 = vld [vmem:[%s175 + $0x1100] sm:$0xff]
                %722 = vst [vmem:[%s176 + $0x880] sm:$0xff] %v721
                %v723 = vld [vmem:[%s175 + $0x1108] sm:$0xff]
                %724 = vst [vmem:[%s176 + $0x888] sm:$0xff] %v723
                %v725 = vld [vmem:[%s175 + $0x1120] sm:$0xff]
                %726 = vst [vmem:[%s176 + $0x890] sm:$0xff] %v725
                %v727 = vld [vmem:[%s175 + $0x1128] sm:$0xff]
                %728 = vst [vmem:[%s176 + $0x898] sm:$0xff] %v727
                %v729 = vld [vmem:[%s175 + $0x1140] sm:$0xff]
                %730 = vst [vmem:[%s176 + $0x8a0] sm:$0xff] %v729
                %v731 = vld [vmem:[%s175 + $0x1148] sm:$0xff]
                %732 = vst [vmem:[%s176 + $0x8a8] sm:$0xff] %v731
                %v733 = vld [vmem:[%s175 + $0x1160] sm:$0xff]
                %734 = vst [vmem:[%s176 + $0x8b0] sm:$0xff] %v733
                %v735 = vld [vmem:[%s175 + $0x1168] sm:$0xff]
                %736 = vst [vmem:[%s176 + $0x8b8] sm:$0xff] %v735
                %v737 = vld [vmem:[%s175 + $0x1180] sm:$0xff]
                %738 = vst [vmem:[%s176 + $0x8c0] sm:$0xff] %v737
                %v739 = vld [vmem:[%s175 + $0x1188] sm:$0xff]
                %740 = vst [vmem:[%s176 + $0x8c8] sm:$0xff] %v739
                %v741 = vld [vmem:[%s175 + $0x11a0] sm:$0xff]
                %742 = vst [vmem:[%s176 + $0x8d0] sm:$0xff] %v741
                %v743 = vld [vmem:[%s175 + $0x11a8] sm:$0xff]
                %744 = vst [vmem:[%s176 + $0x8d8] sm:$0xff] %v743
                %v745 = vld [vmem:[%s175 + $0x11c0] sm:$0xff]
                %746 = vst [vmem:[%s176 + $0x8e0] sm:$0xff] %v745
                %v747 = vld [vmem:[%s175 + $0x11c8] sm:$0xff]
                %748 = vst [vmem:[%s176 + $0x8e8] sm:$0xff] %v747
                %v749 = vld [vmem:[%s175 + $0x11e0] sm:$0xff]
                %750 = vst [vmem:[%s176 + $0x8f0] sm:$0xff] %v749
                %v751 = vld [vmem:[%s175 + $0x11e8] sm:$0xff]
                %752 = vst [vmem:[%s176 + $0x8f8] sm:$0xff] %v751
              $region41: #{condition_network2_forward.4} parent=35 // loop_footer
                %s174 = sadd.s32 1, %s170
              $region42: #{condition_network2_forward.4} parent=35 // loop_footer_branch
                %169 = sbr.rel target = $region38
              $region43: #{condition_network2_forward.4} parent=35 // loop_exit
                _
            $region36: #{condition_network2_forward.4} parent=31 // pred_fallthru
              _
            // Predicated region
            $region44: #{condition_network2_forward.4} parent=31 // pred_check
              _
            $region45: #{condition_network2_forward.4} parent=31 // pred_check_branch
              %754 = sbr.rel target = $region47
            $region46: #{condition_network2_forward.4} parent=31 // pred_region
              _
            $region47: #{condition_network2_forward.4} parent=31 // pred_fallthru
              _
          $region32: #{condition_network2_forward.4} parent=27 // pred_fallthru
            _
          %755 = vnop
        $region28: #{condition_network2_forward.4} parent=23 // pred_fallthru
          _
        // Predicated region
        $region48: #{condition_network2_forward.4} parent=23 // pred_check
          %p756 = pneg %p77
        $region49: #{condition_network2_forward.4} parent=23 // pred_check_branch
          %758 = sbr.rel (%p756) target = $region51
        $region50: #{condition_network2_forward.4} parent=23 // pred_region
          %s759 = smul.u32 4, %s10
          %p760 = scmp.lt.s32.totalorder %s759, 7
          %s761 = scalar_select %p760, %s759, 7
          %s762 = scalar_lea.vmem %s2, %s761
          %s763 = smul.u32 4, %s10
        $region51: #{condition_network2_forward.4} parent=23 // pred_fallthru
          _
      $region24: #{condition_network2_forward.4} parent=5 // pred_fallthru
        _
      %p764 = scmp.le.s32.totalorder 1, %s10
      %p765 = scmp.lt.s32.totalorder %s10, 3
      %p766 = pnand %p764, %p765
      %p767 = pneg %p766
      // Predicated region
      $region52: #{condition_network2_forward.4} parent=5 // pred_check
        _
      $region53: #{condition_network2_forward.4} parent=5 // pred_check_branch
        %769 = sbr.rel (%p766) target = $region55
      $region54: #{condition_network2_forward.4} parent=5 // pred_region
        %s770 = ssub.s32 %s10, 1
        %s771 = sand.u32 %s44, 1
        %s772 = sand.u32 %s44, 1
        %s773 = smul.addr %s772, 2304
        %s774 = scalar_lea.vmem [#allocation2], %s773
        // Predicated region
        $region56: #{condition_network2_forward.4} parent=54 // pred_check
          %p775 = pneg %p57
        $region57: #{condition_network2_forward.4} parent=54 // pred_check_branch
          %777 = sbr.rel (%p775) target = $region59
        $region58: #{condition_network2_forward.4} parent=54 // pred_region
          _
        $region59: #{condition_network2_forward.4} parent=54 // pred_fallthru
          _
        %p778 = pneg %p31
        %p779 = pneg %p28
        %s780 = sand.u32 %s44, 1
        %s781 = sand.u32 %s44, 1
        %s782 = smul.addr %s781, 2304
        %s783 = scalar_lea.vmem [#allocation2], %s782
        %p784 = pneg %p57
        %p785 = pneg %p54
        %s786 = smul.u32 4, %s15
        %p787 = scmp.lt.s32.totalorder %s786, 7
        %s788 = scalar_select %p787, %s786, 7
        %s789 = scalar_lea.vmem %s2, %s788
        %p790 = pneg %p83
        %p791 = pneg %p80
        %p792 = pneg %p104
        %p793 = pneg %p101
        %p794 = pneg %p130
        %p795 = pneg %p127
        %p796 = scmp.lt.s32.totalorder %s15, 1
        %s797 = scalar_select %p796, %s15, 1
        %s798 = smul.addr %s797, 4
        %s799 = smul.addr %s798, 2
        %s800 = scalar_lea.vmem %s4, %s799
        %s801 = smul.u32 4, %s15
        %s802 = smul.u32 4, %s15
        %p803 = scmp.lt.s32.totalorder %s802, 7
        %s804 = scalar_select %p803, %s802, 7
        %s805 = scalar_lea.vmem %s2, %s804
        %s806 = smul.u32 4, %s15
        %p807 = scmp.lt.s32.totalorder %s15, 1
        %s808 = scalar_select %p807, %s15, 1
        %s809 = smul.addr %s808, 4
        %s810 = smul.addr %s809, 2
        %s811 = scalar_lea.vmem %s4, %s810
        %v813 = vld [vmem:[%s805] sm:$0xf]
        %v814 = vld [vmem:[%s3] sm:$0xff]
        %v815 = vld [vmem:[%s3 + $0x8] sm:$0xff]
        %v816 = vld [vmem:[%s3 + $0x10] sm:$0xff]
        %v817 = vld [vmem:[%s3 + $0x18] sm:$0xff]
        %v818 = vld [vmem:[%s3 + $0x20] sm:$0xff]
        %v819 = vld [vmem:[%s3 + $0x28] sm:$0xff]
        %v820 = vld [vmem:[%s3 + $0x30] sm:$0xff]
        %v821 = vld [vmem:[%s3 + $0x38] sm:$0xff]
        %v822 = vld [vmem:[%s3 + $0x40] sm:$0xff]
        %v823 = vld [vmem:[%s3 + $0x48] sm:$0xff]
        %v824 = vld [vmem:[%s3 + $0x50] sm:$0xff]
        %v825 = vld [vmem:[%s3 + $0x58] sm:$0xff]
        %v826 = vld [vmem:[%s3 + $0x60] sm:$0xff]
        %v827 = vld [vmem:[%s3 + $0x68] sm:$0xff]
        %v828 = vld [vmem:[%s3 + $0x70] sm:$0xff]
        %v829 = vld [vmem:[%s3 + $0x78] sm:$0xff]
        %v830 = vld [vmem:[%s3 + $0x80] sm:$0xff]
        %v831 = vld [vmem:[%s3 + $0x88] sm:$0xff]
        %v832 = vld [vmem:[%s0] sm:$0xff]
        %v833 = vld [vmem:[%s0 + $0x8] sm:$0xf]
        %v834 = vld [vmem:[%s0 + $0xc] sm:$0xff]
        %v835 = vld [vmem:[%s0 + $0x14] sm:$0xf]
        %v836 = vld [vmem:[%s0 + $0x18] sm:$0xff]
        %v837 = vld [vmem:[%s0 + $0x20] sm:$0xf]
        %v838 = vld [vmem:[%s0 + $0x24] sm:$0xff]
        %v839 = vld [vmem:[%s0 + $0x2c] sm:$0xf]
        %v840 = vld [vmem:[%s0 + $0x30] sm:$0xff]
        %v841 = vld [vmem:[%s0 + $0x38] sm:$0xf]
        %v842 = vld [vmem:[%s0 + $0x3c] sm:$0xff]
        %v843 = vld [vmem:[%s0 + $0x44] sm:$0xf]
        %v844 = vld [vmem:[%s0 + $0x48] sm:$0xff]
        %v845 = vld [vmem:[%s0 + $0x50] sm:$0xf]
        %v846 = vld [vmem:[%s0 + $0x54] sm:$0xff]
        %v847 = vld [vmem:[%s0 + $0x5c] sm:$0xf]
        %v848 = vld [vmem:[%s0 + $0x60] sm:$0xff]
        %v849 = vld [vmem:[%s0 + $0x68] sm:$0xf]
        %v850 = vld [vmem:[%s0 + $0x6c] sm:$0xff]
        %v851 = vld [vmem:[%s0 + $0x74] sm:$0xf]
        %v852 = vld [vmem:[%s0 + $0x78] sm:$0xff]
        %v853 = vld [vmem:[%s0 + $0x80] sm:$0xf]
        %v854 = vld [vmem:[%s0 + $0x84] sm:$0xff]
        %v855 = vld [vmem:[%s0 + $0x8c] sm:$0xf]
        %v856 = vld [vmem:[%s0 + $0x90] sm:$0xff]
        %v857 = vld [vmem:[%s0 + $0x98] sm:$0xf]
        %v858 = vld [vmem:[%s0 + $0x9c] sm:$0xff]
        %v859 = vld [vmem:[%s0 + $0xa4] sm:$0xf]
        %v860 = vld [vmem:[%s0 + $0xa8] sm:$0xff]
        %v861 = vld [vmem:[%s0 + $0xb0] sm:$0xf]
        %v862 = vld [vmem:[%s0 + $0xb4] sm:$0xff]
        %v863 = vld [vmem:[%s0 + $0xbc] sm:$0xf]
        %v864 = vld [vmem:[%s0 + $0xc0] sm:$0xff]
        %v865 = vld [vmem:[%s0 + $0xc8] sm:$0xf]
        %v866 = vld [vmem:[%s0 + $0xcc] sm:$0xff]
        %v867 = vld [vmem:[%s0 + $0xd4] sm:$0xf]
        %v868 = vld [vmem:[%s774] sm:$0xff]
        %v869 = vld [vmem:[%s774 + $0x8] sm:$0xff]
        %v870 = vld [vmem:[%s774 + $0x10] sm:$0xff]
        %v871 = vld [vmem:[%s774 + $0x18] sm:$0xff]
        %v872 = vld [vmem:[%s774 + $0x20] sm:$0xff]
        %v873 = vld [vmem:[%s774 + $0x28] sm:$0xff]
        %v874 = vld [vmem:[%s774 + $0x30] sm:$0xff]
        %v875 = vld [vmem:[%s774 + $0x38] sm:$0xff]
        %v876 = vld [vmem:[%s774 + $0x40] sm:$0xff]
        %v877 = vld [vmem:[%s774 + $0x48] sm:$0xff]
        %v878 = vld [vmem:[%s774 + $0x50] sm:$0xff]
        %v879 = vld [vmem:[%s774 + $0x58] sm:$0xff]
        %v880 = vld [vmem:[%s774 + $0x60] sm:$0xff]
        %v881 = vld [vmem:[%s774 + $0x68] sm:$0xff]
        %v882 = vld [vmem:[%s774 + $0x70] sm:$0xff]
        %v883 = vld [vmem:[%s774 + $0x78] sm:$0xff]
        %v884 = vld [vmem:[%s774 + $0x80] sm:$0xff]
        %v885 = vld [vmem:[%s774 + $0x88] sm:$0xff]
        %v886 = vld [vmem:[%s774 + $0x90] sm:$0xff]
        %v887 = vld [vmem:[%s774 + $0x98] sm:$0xff]
        %v888 = vld [vmem:[%s774 + $0xa0] sm:$0xff]
        %v889 = vld [vmem:[%s774 + $0xa8] sm:$0xff]
        %v890 = vld [vmem:[%s774 + $0xb0] sm:$0xff]
        %v891 = vld [vmem:[%s774 + $0xb8] sm:$0xff]
        %v892 = vld [vmem:[%s774 + $0xc0] sm:$0xff]
        %v893 = vld [vmem:[%s774 + $0xc8] sm:$0xff]
        %v894 = vld [vmem:[%s774 + $0xd0] sm:$0xff]
        %v895 = vld [vmem:[%s774 + $0xd8] sm:$0xff]
        %v896 = vld [vmem:[%s774 + $0xe0] sm:$0xff]
        %v897 = vld [vmem:[%s774 + $0xe8] sm:$0xff]
        %v898 = vld [vmem:[%s774 + $0xf0] sm:$0xff]
        %v899 = vld [vmem:[%s774 + $0xf8] sm:$0xff]
        %v900 = vld [vmem:[%s774 + $0x100] sm:$0xff]
        %v901 = vld [vmem:[%s774 + $0x108] sm:$0xff]
        %v902 = vld [vmem:[%s774 + $0x110] sm:$0xff]
        %v903 = vld [vmem:[%s774 + $0x118] sm:$0xff]
        %v904 = vld [vmem:[%s774 + $0x120] sm:$0xff]
        %v905 = vld [vmem:[%s774 + $0x128] sm:$0xff]
        %v906 = vld [vmem:[%s774 + $0x130] sm:$0xff]
        %v907 = vld [vmem:[%s774 + $0x138] sm:$0xff]
        %v908 = vld [vmem:[%s774 + $0x140] sm:$0xff]
        %v909 = vld [vmem:[%s774 + $0x148] sm:$0xff]
        %v910 = vld [vmem:[%s774 + $0x150] sm:$0xff]
        %v911 = vld [vmem:[%s774 + $0x158] sm:$0xff]
        %v912 = vld [vmem:[%s774 + $0x160] sm:$0xff]
        %v913 = vld [vmem:[%s774 + $0x168] sm:$0xff]
        %v914 = vld [vmem:[%s774 + $0x170] sm:$0xff]
        %v915 = vld [vmem:[%s774 + $0x178] sm:$0xff]
        %v916 = vld [vmem:[%s774 + $0x180] sm:$0xff]
        %v917 = vld [vmem:[%s774 + $0x188] sm:$0xff]
        %v918 = vld [vmem:[%s774 + $0x190] sm:$0xff]
        %v919 = vld [vmem:[%s774 + $0x198] sm:$0xff]
        %v920 = vld [vmem:[%s774 + $0x1a0] sm:$0xff]
        %v921 = vld [vmem:[%s774 + $0x1a8] sm:$0xff]
        %v922 = vld [vmem:[%s774 + $0x1b0] sm:$0xff]
        %v923 = vld [vmem:[%s774 + $0x1b8] sm:$0xff]
        %v924 = vld [vmem:[%s774 + $0x1c0] sm:$0xff]
        %v925 = vld [vmem:[%s774 + $0x1c8] sm:$0xff]
        %v926 = vld [vmem:[%s774 + $0x1d0] sm:$0xff]
        %v927 = vld [vmem:[%s774 + $0x1d8] sm:$0xff]
        %v928 = vld [vmem:[%s774 + $0x1e0] sm:$0xff]
        %v929 = vld [vmem:[%s774 + $0x1e8] sm:$0xff]
        %v930 = vld [vmem:[%s774 + $0x1f0] sm:$0xff]
        %v931 = vld [vmem:[%s774 + $0x1f8] sm:$0xff]
        %v932 = vld [vmem:[%s774 + $0x200] sm:$0xff]
        %v933 = vld [vmem:[%s774 + $0x208] sm:$0xff]
        %v934 = vld [vmem:[%s774 + $0x210] sm:$0xff]
        %v935 = vld [vmem:[%s774 + $0x218] sm:$0xff]
        %v936 = vld [vmem:[%s774 + $0x220] sm:$0xff]
        %v937 = vld [vmem:[%s774 + $0x228] sm:$0xff]
        %v938 = vld [vmem:[%s774 + $0x230] sm:$0xff]
        %v939 = vld [vmem:[%s774 + $0x238] sm:$0xff]
        %v940 = vld [vmem:[%s774 + $0x240] sm:$0xff]
        %v941 = vld [vmem:[%s774 + $0x248] sm:$0xff]
        %v942 = vld [vmem:[%s774 + $0x250] sm:$0xff]
        %v943 = vld [vmem:[%s774 + $0x258] sm:$0xff]
        %v944 = vld [vmem:[%s774 + $0x260] sm:$0xff]
        %v945 = vld [vmem:[%s774 + $0x268] sm:$0xff]
        %v946 = vld [vmem:[%s774 + $0x270] sm:$0xff]
        %v947 = vld [vmem:[%s774 + $0x278] sm:$0xff]
        %v948 = vld [vmem:[%s774 + $0x280] sm:$0xff]
        %v949 = vld [vmem:[%s774 + $0x288] sm:$0xff]
        %v950 = vld [vmem:[%s774 + $0x290] sm:$0xff]
        %v951 = vld [vmem:[%s774 + $0x298] sm:$0xff]
        %v952 = vld [vmem:[%s774 + $0x2a0] sm:$0xff]
        %v953 = vld [vmem:[%s774 + $0x2a8] sm:$0xff]
        %v954 = vld [vmem:[%s774 + $0x2b0] sm:$0xff]
        %v955 = vld [vmem:[%s774 + $0x2b8] sm:$0xff]
        %v956 = vld [vmem:[%s774 + $0x2c0] sm:$0xff]
        %v957 = vld [vmem:[%s774 + $0x2c8] sm:$0xff]
        %v958 = vld [vmem:[%s774 + $0x2d0] sm:$0xff]
        %v959 = vld [vmem:[%s774 + $0x2d8] sm:$0xff]
        %v960 = vld [vmem:[%s774 + $0x2e0] sm:$0xff]
        %v961 = vld [vmem:[%s774 + $0x2e8] sm:$0xff]
        %v962 = vld [vmem:[%s774 + $0x2f0] sm:$0xff]
        %v963 = vld [vmem:[%s774 + $0x2f8] sm:$0xff]
        %v964 = vld [vmem:[%s0 + $0xd8] sm:$0xff]
        %v965 = vld [vmem:[%s0 + $0xe0] sm:$0xf]
        %v966 = vld [vmem:[%s0 + $0xe4] sm:$0xff]
        %v967 = vld [vmem:[%s0 + $0xec] sm:$0xf]
        %v968 = vld [vmem:[%s774 + $0x300] sm:$0xff]
        %v969 = vld [vmem:[%s774 + $0x308] sm:$0xff]
        %v970 = vld [vmem:[%s774 + $0x310] sm:$0xff]
        %v971 = vld [vmem:[%s774 + $0x318] sm:$0xff]
        %v972 = vld [vmem:[%s774 + $0x320] sm:$0xff]
        %v973 = vld [vmem:[%s774 + $0x328] sm:$0xff]
        %v974 = vld [vmem:[%s774 + $0x330] sm:$0xff]
        %v975 = vld [vmem:[%s774 + $0x338] sm:$0xff]
        %v976 = vld [vmem:[%s774 + $0x340] sm:$0xff]
        %v977 = vld [vmem:[%s774 + $0x348] sm:$0xff]
        %v978 = vld [vmem:[%s774 + $0x350] sm:$0xff]
        %v979 = vld [vmem:[%s774 + $0x358] sm:$0xff]
        %v980 = vld [vmem:[%s774 + $0x360] sm:$0xff]
        %v981 = vld [vmem:[%s774 + $0x368] sm:$0xff]
        %v982 = vld [vmem:[%s774 + $0x370] sm:$0xff]
        %v983 = vld [vmem:[%s774 + $0x378] sm:$0xff]
        %v984 = vld [vmem:[%s774 + $0x380] sm:$0xff]
        %v985 = vld [vmem:[%s774 + $0x388] sm:$0xff]
        %v986 = vld [vmem:[%s774 + $0x390] sm:$0xff]
        %v987 = vld [vmem:[%s774 + $0x398] sm:$0xff]
        %v988 = vld [vmem:[%s774 + $0x3a0] sm:$0xff]
        %v989 = vld [vmem:[%s774 + $0x3a8] sm:$0xff]
        %v990 = vld [vmem:[%s774 + $0x3b0] sm:$0xff]
        %v991 = vld [vmem:[%s774 + $0x3b8] sm:$0xff]
        %v992 = vld [vmem:[%s774 + $0x3c0] sm:$0xff]
        %v993 = vld [vmem:[%s774 + $0x3c8] sm:$0xff]
        %v994 = vld [vmem:[%s774 + $0x3d0] sm:$0xff]
        %v995 = vld [vmem:[%s774 + $0x3d8] sm:$0xff]
        %v996 = vld [vmem:[%s774 + $0x3e0] sm:$0xff]
        %v997 = vld [vmem:[%s774 + $0x3e8] sm:$0xff]
        %v998 = vld [vmem:[%s774 + $0x3f0] sm:$0xff]
        %v999 = vld [vmem:[%s774 + $0x3f8] sm:$0xff]
        %v1000 = vld [vmem:[%s774 + $0x400] sm:$0xff]
        %v1001 = vld [vmem:[%s774 + $0x408] sm:$0xff]
        %v1002 = vld [vmem:[%s774 + $0x410] sm:$0xff]
        %v1003 = vld [vmem:[%s774 + $0x418] sm:$0xff]
        %v1004 = vld [vmem:[%s774 + $0x420] sm:$0xff]
        %v1005 = vld [vmem:[%s774 + $0x428] sm:$0xff]
        %v1006 = vld [vmem:[%s774 + $0x430] sm:$0xff]
        %v1007 = vld [vmem:[%s774 + $0x438] sm:$0xff]
        %v1008 = vld [vmem:[%s774 + $0x440] sm:$0xff]
        %v1009 = vld [vmem:[%s774 + $0x448] sm:$0xff]
        %v1010 = vld [vmem:[%s774 + $0x450] sm:$0xff]
        %v1011 = vld [vmem:[%s774 + $0x458] sm:$0xff]
        %v1012 = vld [vmem:[%s774 + $0x460] sm:$0xff]
        %v1013 = vld [vmem:[%s774 + $0x468] sm:$0xff]
        %v1014 = vld [vmem:[%s774 + $0x470] sm:$0xff]
        %v1015 = vld [vmem:[%s774 + $0x478] sm:$0xff]
        %v1016 = vld [vmem:[%s774 + $0x480] sm:$0xff]
        %v1017 = vld [vmem:[%s774 + $0x488] sm:$0xff]
        %v1018 = vld [vmem:[%s774 + $0x490] sm:$0xff]
        %v1019 = vld [vmem:[%s774 + $0x498] sm:$0xff]
        %v1020 = vld [vmem:[%s774 + $0x4a0] sm:$0xff]
        %v1021 = vld [vmem:[%s774 + $0x4a8] sm:$0xff]
        %v1022 = vld [vmem:[%s774 + $0x4b0] sm:$0xff]
        %v1023 = vld [vmem:[%s774 + $0x4b8] sm:$0xff]
        %v1024 = vld [vmem:[%s774 + $0x4c0] sm:$0xff]
        %v1025 = vld [vmem:[%s774 + $0x4c8] sm:$0xff]
        %v1026 = vld [vmem:[%s774 + $0x4d0] sm:$0xff]
        %v1027 = vld [vmem:[%s774 + $0x4d8] sm:$0xff]
        %v1028 = vld [vmem:[%s774 + $0x4e0] sm:$0xff]
        %v1029 = vld [vmem:[%s774 + $0x4e8] sm:$0xff]
        %v1030 = vld [vmem:[%s774 + $0x4f0] sm:$0xff]
        %v1031 = vld [vmem:[%s774 + $0x4f8] sm:$0xff]
        %v1032 = vld [vmem:[%s774 + $0x500] sm:$0xff]
        %v1033 = vld [vmem:[%s774 + $0x508] sm:$0xff]
        %v1034 = vld [vmem:[%s774 + $0x510] sm:$0xff]
        %v1035 = vld [vmem:[%s774 + $0x518] sm:$0xff]
        %v1036 = vld [vmem:[%s774 + $0x520] sm:$0xff]
        %v1037 = vld [vmem:[%s774 + $0x528] sm:$0xff]
        %v1038 = vld [vmem:[%s774 + $0x530] sm:$0xff]
        %v1039 = vld [vmem:[%s774 + $0x538] sm:$0xff]
        %v1040 = vld [vmem:[%s774 + $0x540] sm:$0xff]
        %v1041 = vld [vmem:[%s774 + $0x548] sm:$0xff]
        %v1042 = vld [vmem:[%s774 + $0x550] sm:$0xff]
        %v1043 = vld [vmem:[%s774 + $0x558] sm:$0xff]
        %v1044 = vld [vmem:[%s774 + $0x560] sm:$0xff]
        %v1045 = vld [vmem:[%s774 + $0x568] sm:$0xff]
        %v1046 = vld [vmem:[%s774 + $0x570] sm:$0xff]
        %v1047 = vld [vmem:[%s774 + $0x578] sm:$0xff]
        %v1048 = vld [vmem:[%s774 + $0x580] sm:$0xff]
        %v1049 = vld [vmem:[%s774 + $0x588] sm:$0xff]
        %v1050 = vld [vmem:[%s774 + $0x590] sm:$0xff]
        %v1051 = vld [vmem:[%s774 + $0x598] sm:$0xff]
        %v1052 = vld [vmem:[%s774 + $0x5a0] sm:$0xff]
        %v1053 = vld [vmem:[%s774 + $0x5a8] sm:$0xff]
        %v1054 = vld [vmem:[%s774 + $0x5b0] sm:$0xff]
        %v1055 = vld [vmem:[%s774 + $0x5b8] sm:$0xff]
        %v1056 = vld [vmem:[%s774 + $0x5c0] sm:$0xff]
        %v1057 = vld [vmem:[%s774 + $0x5c8] sm:$0xff]
        %v1058 = vld [vmem:[%s774 + $0x5d0] sm:$0xff]
        %v1059 = vld [vmem:[%s774 + $0x5d8] sm:$0xff]
        %v1060 = vld [vmem:[%s774 + $0x5e0] sm:$0xff]
        %v1061 = vld [vmem:[%s774 + $0x5e8] sm:$0xff]
        %v1062 = vld [vmem:[%s774 + $0x5f0] sm:$0xff]
        %v1063 = vld [vmem:[%s774 + $0x5f8] sm:$0xff]
        %v1100 = vunpack.c.l.b16 %v836
        %v1101 = vunpack.c.h.b16 %v836
        %v1102 = vunpack.c.l.b16 %v837
        %v1103 = vunpack.c.l.b16 %v838
        %v1104 = vunpack.c.h.b16 %v838
        %v1105 = vunpack.c.l.b16 %v839
        %v1106 = vunpack.c.l.b16 %v840
        %v1107 = vunpack.c.h.b16 %v840
        %v1108 = vunpack.c.l.b16 %v841
        %v1109 = vunpack.c.l.b16 %v842
        %v1110 = vunpack.c.h.b16 %v842
        %v1111 = vunpack.c.l.b16 %v843
        %v1112 = vunpack.c.l.b16 %v844
        %v1113 = vunpack.c.h.b16 %v844
        %v1114 = vunpack.c.l.b16 %v845
        %v1115 = vunpack.c.l.b16 %v846
        %v1116 = vunpack.c.h.b16 %v846
        %v1117 = vunpack.c.l.b16 %v847
        %v1118 = vunpack.c.l.b16 %v848
        %v1119 = vunpack.c.h.b16 %v848
        %v1120 = vunpack.c.l.b16 %v849
        %v1121 = vunpack.c.l.b16 %v850
        %v1122 = vunpack.c.h.b16 %v850
        %v1123 = vunpack.c.l.b16 %v851
        %v1124 = vunpack.c.l.b16 %v852
        %v1125 = vunpack.c.h.b16 %v852
        %v1126 = vunpack.c.l.b16 %v853
        %v1127 = vunpack.c.l.b16 %v854
        %v1128 = vunpack.c.h.b16 %v854
        %v1129 = vunpack.c.l.b16 %v855
        %v1130 = vunpack.c.l.b16 %v856
        %v1131 = vunpack.c.h.b16 %v856
        %v1132 = vunpack.c.l.b16 %v857
        %v1133 = vunpack.c.l.b16 %v858
        %v1134 = vunpack.c.h.b16 %v858
        %v1135 = vunpack.c.l.b16 %v859
        %v1136 = vunpack.c.l.b16 %v860
        %v1137 = vunpack.c.h.b16 %v860
        %v1138 = vunpack.c.l.b16 %v861
        %v1139 = vunpack.c.l.b16 %v862
        %v1140 = vunpack.c.h.b16 %v862
        %v1141 = vunpack.c.l.b16 %v863
        %v1142 = vunpack.c.l.b16 %v864
        %v1143 = vunpack.c.h.b16 %v864
        %v1144 = vunpack.c.l.b16 %v865
        %v1145 = vunpack.c.l.b16 %v866
        %v1146 = vunpack.c.h.b16 %v866
        %v1147 = vunpack.c.l.b16 %v867
        %v1148 = vunpack.c.l.b16 %v964
        %v1149 = vunpack.c.h.b16 %v964
        %v1150 = vunpack.c.l.b16 %v965
        %v1151 = vunpack.c.l.b16 %v966
        %v1152 = vunpack.c.h.b16 %v966
        %v1153 = vunpack.c.l.b16 %v967
        %v1154 = vpack.c.b16 %v1103, %v1100
        %v1155 = vpack.c.b16 %v1104, %v1101
        %v1156 = vpack.c.b16 %v1105, %v1102
        %v1157 = vpack.c.b16 %v1109, %v1106
        %v1158 = vpack.c.b16 %v1110, %v1107
        %v1159 = vpack.c.b16 %v1111, %v1108
        %v1160 = vpack.c.b16 %v1115, %v1112
        %v1161 = vpack.c.b16 %v1116, %v1113
        %v1162 = vpack.c.b16 %v1117, %v1114
        %v1163 = vpack.c.b16 %v1121, %v1118
        %v1164 = vpack.c.b16 %v1122, %v1119
        %v1165 = vpack.c.b16 %v1123, %v1120
        %v1166 = vpack.c.b16 %v1127, %v1124
        %v1167 = vpack.c.b16 %v1128, %v1125
        %v1168 = vpack.c.b16 %v1129, %v1126
        %v1169 = vpack.c.b16 %v1133, %v1130
        %v1170 = vpack.c.b16 %v1134, %v1131
        %v1171 = vpack.c.b16 %v1135, %v1132
        %v1172 = vpack.c.b16 %v1139, %v1136
        %v1173 = vpack.c.b16 %v1140, %v1137
        %v1174 = vpack.c.b16 %v1141, %v1138
        %v1175 = vpack.c.b16 %v1145, %v1142
        %v1176 = vpack.c.b16 %v1146, %v1143
        %v1177 = vpack.c.b16 %v1147, %v1144
        %v1178 = vpack.c.b16 %v1151, %v1148
        %v1179 = vpack.c.b16 %v1152, %v1149
        %v1180 = vpack.c.b16 %v1153, %v1150
        %v1304 = vunpack.c.l.b16 %v968
        %v1305 = vunpack.c.h.b16 %v968
        %v1306 = vunpack.c.l.b16 %v969
        %v1307 = vunpack.c.h.b16 %v969
        %v1308 = vunpack.c.l.b16 %v970
        %v1309 = vunpack.c.h.b16 %v970
        %v1310 = vunpack.c.l.b16 %v971
        %v1311 = vunpack.c.h.b16 %v971
        %v1312 = vunpack.c.l.b16 %v972
        %v1313 = vunpack.c.h.b16 %v972
        %v1314 = vunpack.c.l.b16 %v973
        %v1315 = vunpack.c.h.b16 %v973
        %v1316 = vunpack.c.l.b16 %v974
        %v1317 = vunpack.c.h.b16 %v974
        %v1318 = vunpack.c.l.b16 %v975
        %v1319 = vunpack.c.h.b16 %v975
        %v1320 = vunpack.c.l.b16 %v976
        %v1321 = vunpack.c.h.b16 %v976
        %v1322 = vunpack.c.l.b16 %v977
        %v1323 = vunpack.c.h.b16 %v977
        %v1324 = vunpack.c.l.b16 %v978
        %v1325 = vunpack.c.h.b16 %v978
        %v1326 = vunpack.c.l.b16 %v979
        %v1327 = vunpack.c.h.b16 %v979
        %v1328 = vunpack.c.l.b16 %v980
        %v1329 = vunpack.c.h.b16 %v980
        %v1330 = vunpack.c.l.b16 %v981
        %v1331 = vunpack.c.h.b16 %v981
        %v1332 = vunpack.c.l.b16 %v982
        %v1333 = vunpack.c.h.b16 %v982
        %v1334 = vunpack.c.l.b16 %v983
        %v1335 = vunpack.c.h.b16 %v983
        %v1336 = vunpack.c.l.b16 %v984
        %v1337 = vunpack.c.h.b16 %v984
        %v1338 = vunpack.c.l.b16 %v985
        %v1339 = vunpack.c.h.b16 %v985
        %v1340 = vunpack.c.l.b16 %v986
        %v1341 = vunpack.c.h.b16 %v986
        %v1342 = vunpack.c.l.b16 %v987
        %v1343 = vunpack.c.h.b16 %v987
        %v1344 = vunpack.c.l.b16 %v988
        %v1345 = vunpack.c.h.b16 %v988
        %v1346 = vunpack.c.l.b16 %v989
        %v1347 = vunpack.c.h.b16 %v989
        %v1348 = vunpack.c.l.b16 %v990
        %v1349 = vunpack.c.h.b16 %v990
        %v1350 = vunpack.c.l.b16 %v991
        %v1351 = vunpack.c.h.b16 %v991
        %v1352 = vunpack.c.l.b16 %v992
        %v1353 = vunpack.c.h.b16 %v992
        %v1354 = vunpack.c.l.b16 %v993
        %v1355 = vunpack.c.h.b16 %v993
        %v1356 = vunpack.c.l.b16 %v994
        %v1357 = vunpack.c.h.b16 %v994
        %v1358 = vunpack.c.l.b16 %v995
        %v1359 = vunpack.c.h.b16 %v995
        %v1360 = vunpack.c.l.b16 %v996
        %v1361 = vunpack.c.h.b16 %v996
        %v1362 = vunpack.c.l.b16 %v997
        %v1363 = vunpack.c.h.b16 %v997
        %v1364 = vunpack.c.l.b16 %v998
        %v1365 = vunpack.c.h.b16 %v998
        %v1366 = vunpack.c.l.b16 %v999
        %v1367 = vunpack.c.h.b16 %v999
        %v1368 = vunpack.c.l.b16 %v1000
        %v1369 = vunpack.c.h.b16 %v1000
        %v1370 = vunpack.c.l.b16 %v1001
        %v1371 = vunpack.c.h.b16 %v1001
        %v1372 = vunpack.c.l.b16 %v1002
        %v1373 = vunpack.c.h.b16 %v1002
        %v1374 = vunpack.c.l.b16 %v1003
        %v1375 = vunpack.c.h.b16 %v1003
        %v1376 = vunpack.c.l.b16 %v1004
        %v1377 = vunpack.c.h.b16 %v1004
        %v1378 = vunpack.c.l.b16 %v1005
        %v1379 = vunpack.c.h.b16 %v1005
        %v1380 = vunpack.c.l.b16 %v1006
        %v1381 = vunpack.c.h.b16 %v1006
        %v1382 = vunpack.c.l.b16 %v1007
        %v1383 = vunpack.c.h.b16 %v1007
        %v1384 = vunpack.c.l.b16 %v1008
        %v1385 = vunpack.c.h.b16 %v1008
        %v1386 = vunpack.c.l.b16 %v1009
        %v1387 = vunpack.c.h.b16 %v1009
        %v1388 = vunpack.c.l.b16 %v1010
        %v1389 = vunpack.c.h.b16 %v1010
        %v1390 = vunpack.c.l.b16 %v1011
        %v1391 = vunpack.c.h.b16 %v1011
        %v1392 = vunpack.c.l.b16 %v1012
        %v1393 = vunpack.c.h.b16 %v1012
        %v1394 = vunpack.c.l.b16 %v1013
        %v1395 = vunpack.c.h.b16 %v1013
        %v1396 = vunpack.c.l.b16 %v1014
        %v1397 = vunpack.c.h.b16 %v1014
        %v1398 = vunpack.c.l.b16 %v1015
        %v1399 = vunpack.c.h.b16 %v1015
        %v1400 = vunpack.c.l.b16 %v1016
        %v1401 = vunpack.c.h.b16 %v1016
        %v1402 = vunpack.c.l.b16 %v1017
        %v1403 = vunpack.c.h.b16 %v1017
        %v1404 = vunpack.c.l.b16 %v1018
        %v1405 = vunpack.c.h.b16 %v1018
        %v1406 = vunpack.c.l.b16 %v1019
        %v1407 = vunpack.c.h.b16 %v1019
        %v1408 = vunpack.c.l.b16 %v1020
        %v1409 = vunpack.c.h.b16 %v1020
        %v1410 = vunpack.c.l.b16 %v1021
        %v1411 = vunpack.c.h.b16 %v1021
        %v1412 = vunpack.c.l.b16 %v1022
        %v1413 = vunpack.c.h.b16 %v1022
        %v1414 = vunpack.c.l.b16 %v1023
        %v1415 = vunpack.c.h.b16 %v1023
        %v1416 = vunpack.c.l.b16 %v1024
        %v1417 = vunpack.c.h.b16 %v1024
        %v1418 = vunpack.c.l.b16 %v1025
        %v1419 = vunpack.c.h.b16 %v1025
        %v1420 = vunpack.c.l.b16 %v1026
        %v1421 = vunpack.c.h.b16 %v1026
        %v1422 = vunpack.c.l.b16 %v1027
        %v1423 = vunpack.c.h.b16 %v1027
        %v1424 = vunpack.c.l.b16 %v1028
        %v1425 = vunpack.c.h.b16 %v1028
        %v1426 = vunpack.c.l.b16 %v1029
        %v1427 = vunpack.c.h.b16 %v1029
        %v1428 = vunpack.c.l.b16 %v1030
        %v1429 = vunpack.c.h.b16 %v1030
        %v1430 = vunpack.c.l.b16 %v1031
        %v1431 = vunpack.c.h.b16 %v1031
        %v1432 = vunpack.c.l.b16 %v1032
        %v1433 = vunpack.c.h.b16 %v1032
        %v1434 = vunpack.c.l.b16 %v1033
        %v1435 = vunpack.c.h.b16 %v1033
        %v1436 = vunpack.c.l.b16 %v1034
        %v1437 = vunpack.c.h.b16 %v1034
        %v1438 = vunpack.c.l.b16 %v1035
        %v1439 = vunpack.c.h.b16 %v1035
        %v1440 = vunpack.c.l.b16 %v1036
        %v1441 = vunpack.c.h.b16 %v1036
        %v1442 = vunpack.c.l.b16 %v1037
        %v1443 = vunpack.c.h.b16 %v1037
        %v1444 = vunpack.c.l.b16 %v1038
        %v1445 = vunpack.c.h.b16 %v1038
        %v1446 = vunpack.c.l.b16 %v1039
        %v1447 = vunpack.c.h.b16 %v1039
        %v1448 = vunpack.c.l.b16 %v1040
        %v1449 = vunpack.c.h.b16 %v1040
        %v1450 = vunpack.c.l.b16 %v1041
        %v1451 = vunpack.c.h.b16 %v1041
        %v1452 = vunpack.c.l.b16 %v1042
        %v1453 = vunpack.c.h.b16 %v1042
        %v1454 = vunpack.c.l.b16 %v1043
        %v1455 = vunpack.c.h.b16 %v1043
        %v1456 = vunpack.c.l.b16 %v1044
        %v1457 = vunpack.c.h.b16 %v1044
        %v1458 = vunpack.c.l.b16 %v1045
        %v1459 = vunpack.c.h.b16 %v1045
        %v1460 = vunpack.c.l.b16 %v1046
        %v1461 = vunpack.c.h.b16 %v1046
        %v1462 = vunpack.c.l.b16 %v1047
        %v1463 = vunpack.c.h.b16 %v1047
        %v1464 = vunpack.c.l.b16 %v1048
        %v1465 = vunpack.c.h.b16 %v1048
        %v1466 = vunpack.c.l.b16 %v1049
        %v1467 = vunpack.c.h.b16 %v1049
        %v1468 = vunpack.c.l.b16 %v1050
        %v1469 = vunpack.c.h.b16 %v1050
        %v1470 = vunpack.c.l.b16 %v1051
        %v1471 = vunpack.c.h.b16 %v1051
        %v1472 = vunpack.c.l.b16 %v1052
        %v1473 = vunpack.c.h.b16 %v1052
        %v1474 = vunpack.c.l.b16 %v1053
        %v1475 = vunpack.c.h.b16 %v1053
        %v1476 = vunpack.c.l.b16 %v1054
        %v1477 = vunpack.c.h.b16 %v1054
        %v1478 = vunpack.c.l.b16 %v1055
        %v1479 = vunpack.c.h.b16 %v1055
        %v1480 = vunpack.c.l.b16 %v1056
        %v1481 = vunpack.c.h.b16 %v1056
        %v1482 = vunpack.c.l.b16 %v1057
        %v1483 = vunpack.c.h.b16 %v1057
        %v1484 = vunpack.c.l.b16 %v1058
        %v1485 = vunpack.c.h.b16 %v1058
        %v1486 = vunpack.c.l.b16 %v1059
        %v1487 = vunpack.c.h.b16 %v1059
        %v1488 = vunpack.c.l.b16 %v1060
        %v1489 = vunpack.c.h.b16 %v1060
        %v1490 = vunpack.c.l.b16 %v1061
        %v1491 = vunpack.c.h.b16 %v1061
        %v1492 = vunpack.c.l.b16 %v1062
        %v1493 = vunpack.c.h.b16 %v1062
        %v1494 = vunpack.c.l.b16 %v1063
        %v1495 = vunpack.c.h.b16 %v1063
        %v1496 = vpack.c.b16 %v1308, %v1304
        %v1497 = vpack.c.b16 %v1309, %v1305
        %v1498 = vpack.c.b16 %v1310, %v1306
        %v1499 = vpack.c.b16 %v1311, %v1307
        %v1500 = vpack.c.b16 %v1316, %v1312
        %v1501 = vpack.c.b16 %v1317, %v1313
        %v1502 = vpack.c.b16 %v1318, %v1314
        %v1503 = vpack.c.b16 %v1319, %v1315
        %v1504 = vpack.c.b16 %v1324, %v1320
        %v1505 = vpack.c.b16 %v1325, %v1321
        %v1506 = vpack.c.b16 %v1326, %v1322
        %v1507 = vpack.c.b16 %v1327, %v1323
        %v1508 = vpack.c.b16 %v1332, %v1328
        %v1509 = vpack.c.b16 %v1333, %v1329
        %v1510 = vpack.c.b16 %v1334, %v1330
        %v1511 = vpack.c.b16 %v1335, %v1331
        %v1512 = vpack.c.b16 %v1340, %v1336
        %v1513 = vpack.c.b16 %v1341, %v1337
        %v1514 = vpack.c.b16 %v1342, %v1338
        %v1515 = vpack.c.b16 %v1343, %v1339
        %v1516 = vpack.c.b16 %v1348, %v1344
        %v1517 = vpack.c.b16 %v1349, %v1345
        %v1518 = vpack.c.b16 %v1350, %v1346
        %v1519 = vpack.c.b16 %v1351, %v1347
        %v1520 = vpack.c.b16 %v1356, %v1352
        %v1521 = vpack.c.b16 %v1357, %v1353
        %v1522 = vpack.c.b16 %v1358, %v1354
        %v1523 = vpack.c.b16 %v1359, %v1355
        %v1524 = vpack.c.b16 %v1364, %v1360
        %v1525 = vpack.c.b16 %v1365, %v1361
        %v1526 = vpack.c.b16 %v1366, %v1362
        %v1527 = vpack.c.b16 %v1367, %v1363
        %v1528 = vpack.c.b16 %v1372, %v1368
        %v1529 = vpack.c.b16 %v1373, %v1369
        %v1530 = vpack.c.b16 %v1374, %v1370
        %v1531 = vpack.c.b16 %v1375, %v1371
        %v1532 = vpack.c.b16 %v1380, %v1376
        %v1533 = vpack.c.b16 %v1381, %v1377
        %v1534 = vpack.c.b16 %v1382, %v1378
        %v1535 = vpack.c.b16 %v1383, %v1379
        %v1536 = vpack.c.b16 %v1388, %v1384
        %v1537 = vpack.c.b16 %v1389, %v1385
        %v1538 = vpack.c.b16 %v1390, %v1386
        %v1539 = vpack.c.b16 %v1391, %v1387
        %v1540 = vpack.c.b16 %v1396, %v1392
        %v1541 = vpack.c.b16 %v1397, %v1393
        %v1542 = vpack.c.b16 %v1398, %v1394
        %v1543 = vpack.c.b16 %v1399, %v1395
        %v1544 = vpack.c.b16 %v1404, %v1400
        %v1545 = vpack.c.b16 %v1405, %v1401
        %v1546 = vpack.c.b16 %v1406, %v1402
        %v1547 = vpack.c.b16 %v1407, %v1403
        %v1548 = vpack.c.b16 %v1412, %v1408
        %v1549 = vpack.c.b16 %v1413, %v1409
        %v1550 = vpack.c.b16 %v1414, %v1410
        %v1551 = vpack.c.b16 %v1415, %v1411
        %v1552 = vpack.c.b16 %v1420, %v1416
        %v1553 = vpack.c.b16 %v1421, %v1417
        %v1554 = vpack.c.b16 %v1422, %v1418
        %v1555 = vpack.c.b16 %v1423, %v1419
        %v1556 = vpack.c.b16 %v1428, %v1424
        %v1557 = vpack.c.b16 %v1429, %v1425
        %v1558 = vpack.c.b16 %v1430, %v1426
        %v1559 = vpack.c.b16 %v1431, %v1427
        %v1560 = vpack.c.b16 %v1436, %v1432
        %v1561 = vpack.c.b16 %v1437, %v1433
        %v1562 = vpack.c.b16 %v1438, %v1434
        %v1563 = vpack.c.b16 %v1439, %v1435
        %v1564 = vpack.c.b16 %v1444, %v1440
        %v1565 = vpack.c.b16 %v1445, %v1441
        %v1566 = vpack.c.b16 %v1446, %v1442
        %v1567 = vpack.c.b16 %v1447, %v1443
        %v1568 = vpack.c.b16 %v1452, %v1448
        %v1569 = vpack.c.b16 %v1453, %v1449
        %v1570 = vpack.c.b16 %v1454, %v1450
        %v1571 = vpack.c.b16 %v1455, %v1451
        %v1572 = vpack.c.b16 %v1460, %v1456
        %v1573 = vpack.c.b16 %v1461, %v1457
        %v1574 = vpack.c.b16 %v1462, %v1458
        %v1575 = vpack.c.b16 %v1463, %v1459
        %v1576 = vpack.c.b16 %v1468, %v1464
        %v1577 = vpack.c.b16 %v1469, %v1465
        %v1578 = vpack.c.b16 %v1470, %v1466
        %v1579 = vpack.c.b16 %v1471, %v1467
        %v1580 = vpack.c.b16 %v1476, %v1472
        %v1581 = vpack.c.b16 %v1477, %v1473
        %v1582 = vpack.c.b16 %v1478, %v1474
        %v1583 = vpack.c.b16 %v1479, %v1475
        %v1584 = vpack.c.b16 %v1484, %v1480
        %v1585 = vpack.c.b16 %v1485, %v1481
        %v1586 = vpack.c.b16 %v1486, %v1482
        %v1587 = vpack.c.b16 %v1487, %v1483
        %v1588 = vpack.c.b16 %v1492, %v1488
        %v1589 = vpack.c.b16 %v1493, %v1489
        %v1590 = vpack.c.b16 %v1494, %v1490
        %v1591 = vpack.c.b16 %v1495, %v1491
        %1688 = vmatprep.subr.bf16.mxu0 %v1497
        %1689 = vmatpush1.bf16.msra.mxu0 %v1496
        %1690 = vmatprep.subr.bf16.mxu0 %v1501
        %1691 = vmatpush1.bf16.msra.mxu0 %v1500
        %1692 = vmatprep.subr.bf16.mxu0 %v1505
        %1693 = vmatpush1.bf16.msra.mxu0 %v1504
        %1694 = vmatprep.subr.bf16.mxu0 %v1509
        %1695 = vmatpush1.bf16.msra.mxu0 %v1508
        %1696 = vmatprep.subr.bf16.mxu0 %v1513
        %1697 = vmatpush1.bf16.msra.mxu0 %v1512
        %1698 = vmatprep.subr.bf16.mxu0 %v1517
        %1699 = vmatpush1.bf16.msra.mxu0 %v1516
        %1700 = vmatprep.subr.bf16.mxu0 %v1521
        %1701 = vmatpush1.bf16.msra.mxu0 %v1520
        %1702 = vmatprep.subr.bf16.mxu0 %v1525
        %1703 = vmatpush1.bf16.msra.mxu0 %v1524
        %1704 = vmatprep.subr.bf16.mxu0 %v1529
        %1705 = vmatpush1.bf16.msra.mxu0 %v1528
        %1706 = vmatprep.subr.bf16.mxu0 %v1533
        %1707 = vmatpush1.bf16.msra.mxu0 %v1532
        %1708 = vmatprep.subr.bf16.mxu0 %v1537
        %1709 = vmatpush1.bf16.msra.mxu0 %v1536
        %1710 = vmatprep.subr.bf16.mxu0 %v1541
        %1711 = vmatpush1.bf16.msra.mxu0 %v1540
        %1712 = vmatprep.subr.bf16.mxu0 %v1545
        %1713 = vmatpush1.bf16.msra.mxu0 %v1544
        %1714 = vmatprep.subr.bf16.mxu0 %v1549
        %1715 = vmatpush1.bf16.msra.mxu0 %v1548
        %1716 = vmatprep.subr.bf16.mxu0 %v1553
        %1717 = vmatpush1.bf16.msra.mxu0 %v1552
        %1718 = vmatprep.subr.bf16.mxu0 %v1557
        %1719 = vmatpush1.bf16.msra.mxu0 %v1556
        %1720 = vmatprep.mubr.bf16.mxu0 %v1155
        %1721 = vmatmul.mubr.bf16.gmra.mrb[0].mxu0 %v1154
        %v1722 = vpop.f32.mrb[0].mxu0
        %v1723 = vadd.f32 0.0, %v1722
        %v1724 = vpop.f32.mrb[0].mxu0
        %v1725 = vadd.f32 0.0, %v1724
        %v1726 = vpop.f32.mrb[0].mxu0
        %v1727 = vadd.f32 0.0, %v1726
        %v1728 = vpop.f32.mrb[0].mxu0
        %v1729 = vadd.f32 0.0, %v1728
        %1730 = vmatprep.mubr.bf16.mxu0 %v1158
        %1731 = vmatmul.mubr.bf16.gmra.mrb[0].mxu0 %v1157
        %v1732 = vpop.f32.mrb[0].mxu0
        %v1733 = vadd.f32 0.0, %v1732
        %v1734 = vpop.f32.mrb[0].mxu0
        %v1735 = vadd.f32 0.0, %v1734
        %v1736 = vpop.f32.mrb[0].mxu0
        %v1737 = vadd.f32 0.0, %v1736
        %v1738 = vpop.f32.mrb[0].mxu0
        %v1739 = vadd.f32 0.0, %v1738
        %1740 = vmatprep.mubr.bf16.mxu0 %v1161
        %1741 = vmatmul.mubr.bf16.gmra.mrb[0].mxu0 %v1160
        %v1742 = vpop.f32.mrb[0].mxu0
        %v1743 = vadd.f32 0.0, %v1742
        %v1744 = vpop.f32.mrb[0].mxu0
        %v1745 = vadd.f32 0.0, %v1744
        %v1746 = vpop.f32.mrb[0].mxu0
        %v1747 = vadd.f32 0.0, %v1746
        %v1748 = vpop.f32.mrb[0].mxu0
        %v1749 = vadd.f32 0.0, %v1748
        %1750 = vmatprep.mubr.bf16.mxu0 %v1164
        %1751 = vmatmul.mubr.bf16.gmra.mrb[0].mxu0 %v1163
        %v1752 = vpop.f32.mrb[0].mxu0
        %v1753 = vadd.f32 0.0, %v1752
        %v1754 = vpop.f32.mrb[0].mxu0
        %v1755 = vadd.f32 0.0, %v1754
        %v1756 = vpop.f32.mrb[0].mxu0
        %v1757 = vadd.f32 0.0, %v1756
        %v1758 = vpop.f32.mrb[0].mxu0
        %v1759 = vadd.f32 0.0, %v1758
        %1760 = vmatprep.mubr.bf16.mxu0 %v1167
        %1761 = vmatmul.mubr.bf16.gmra.mrb[0].mxu0 %v1166
        %v1762 = vpop.f32.mrb[0].mxu0
        %v1763 = vadd.f32 0.0, %v1762
        %v1764 = vpop.f32.mrb[0].mxu0
        %v1765 = vadd.f32 0.0, %v1764
        %v1766 = vpop.f32.mrb[0].mxu0
        %v1767 = vadd.f32 0.0, %v1766
        %v1768 = vpop.f32.mrb[0].mxu0
        %v1769 = vadd.f32 0.0, %v1768
        %1770 = vmatprep.mubr.bf16.mxu0 %v1170
        %1771 = vmatmul.mubr.bf16.gmra.mrb[0].mxu0 %v1169
        %v1772 = vpop.f32.mrb[0].mxu0
        %v1773 = vadd.f32 0.0, %v1772
        %v1774 = vpop.f32.mrb[0].mxu0
        %v1775 = vadd.f32 0.0, %v1774
        %v1776 = vpop.f32.mrb[0].mxu0
        %v1777 = vadd.f32 0.0, %v1776
        %v1778 = vpop.f32.mrb[0].mxu0
        %v1779 = vadd.f32 0.0, %v1778
        %1780 = vmatprep.mubr.bf16.mxu0 %v1173
        %1781 = vmatmul.mubr.bf16.gmra.mrb[0].mxu0 %v1172
        %v1782 = vpop.f32.mrb[0].mxu0
        %v1783 = vadd.f32 0.0, %v1782
        %v1784 = vpop.f32.mrb[0].mxu0
        %v1785 = vadd.f32 0.0, %v1784
        %v1786 = vpop.f32.mrb[0].mxu0
        %v1787 = vadd.f32 0.0, %v1786
        %v1788 = vpop.f32.mrb[0].mxu0
        %v1789 = vadd.f32 0.0, %v1788
        %1790 = vmatprep.mubr.bf16.mxu0 %v1176
        %1791 = vmatmul.mubr.bf16.gmra.mrb[0].mxu0 %v1175
        %v1792 = vpop.f32.mrb[0].mxu0
        %v1793 = vadd.f32 0.0, %v1792
        %v1794 = vpop.f32.mrb[0].mxu0
        %v1795 = vadd.f32 0.0, %v1794
        %v1796 = vpop.f32.mrb[0].mxu0
        %v1797 = vadd.f32 0.0, %v1796
        %v1798 = vpop.f32.mrb[0].mxu0
        %v1799 = vadd.f32 0.0, %v1798
        %1800 = vmatprep.mubr.bf16.mxu0 %v1179
        %1801 = vmatmul.mubr.bf16.gmra.mrb[0].mxu0 %v1178
        %v1802 = vpop.f32.mrb[0].mxu0
        %v1803 = vadd.f32 0.0, %v1802
        %v1804 = vpop.f32.mrb[0].mxu0
        %v1805 = vadd.f32 0.0, %v1804
        %v1806 = vpop.f32.mrb[0].mxu0
        %v1807 = vadd.f32 0.0, %v1806
        %v1808 = vpop.f32.mrb[0].mxu0
        %v1809 = vadd.f32 0.0, %v1808
        %1810 = vdwg.mxu0
        %1811 = vmatprep.subr.bf16.mxu0 %v1561
        %1812 = vmatpush1.bf16.msra.mxu0 %v1560
        %1813 = vmatprep.subr.bf16.mxu0 %v1565
        %1814 = vmatpush1.bf16.msra.mxu0 %v1564
        %1815 = vmatprep.subr.bf16.mxu0 %v1569
        %1816 = vmatpush1.bf16.msra.mxu0 %v1568
        %1817 = vmatprep.subr.bf16.mxu0 %v1573
        %1818 = vmatpush1.bf16.msra.mxu0 %v1572
        %1819 = vmatprep.subr.bf16.mxu0 %v1577
        %1820 = vmatpush1.bf16.msra.mxu0 %v1576
        %1821 = vmatprep.subr.bf16.mxu0 %v1581
        %1822 = vmatpush1.bf16.msra.mxu0 %v1580
        %1823 = vmatprep.subr.bf16.mxu0 %v1585
        %1824 = vmatpush1.bf16.msra.mxu0 %v1584
        %1825 = vmatprep.subr.bf16.mxu0 %v1589
        %1826 = vmatpush1.bf16.msra.mxu0 %v1588
        %1827 = vmatprep.subr.bf16.mxu0 0
        %1828 = vmatpush1.bf16.msra.mxu0 0
        %1829 = vmatprep.subr.bf16.mxu0 0
        %1830 = vmatpush1.bf16.msra.mxu0 0
        %1831 = vmatprep.subr.bf16.mxu0 0
        %1832 = vmatpush1.bf16.msra.mxu0 0
        %1833 = vmatprep.subr.bf16.mxu0 0
        %1834 = vmatpush1.bf16.msra.mxu0 0
        %1835 = vmatprep.subr.bf16.mxu0 0
        %1836 = vmatpush1.bf16.msra.mxu0 0
        %1837 = vmatprep.subr.bf16.mxu0 0
        %1838 = vmatpush1.bf16.msra.mxu0 0
        %1839 = vmatprep.subr.bf16.mxu0 0
        %1840 = vmatpush1.bf16.msra.mxu0 0
        %1841 = vmatprep.subr.bf16.mxu0 0
        %1842 = vmatpush1.bf16.msra.mxu0 0
        %1843 = vmatprep.mubr.bf16.mxu0 0
        %1844 = vmatmul.mubr.bf16.gmra.mrb[0].mxu0 %v1156
        %v1845 = vpop.f32.mrb[0].mxu0
        %v1846 = vadd.f32 %v1723, %v1845
        %v1847 = vpop.f32.mrb[0].mxu0
        %v1848 = vadd.f32 %v1725, %v1847
        %v1849 = vpop.f32.mrb[0].mxu0
        %v1850 = vadd.f32 %v1727, %v1849
        %v1851 = vpop.f32.mrb[0].mxu0
        %v1852 = vadd.f32 %v1729, %v1851
        %1853 = vmatprep.mubr.bf16.mxu0 0
        %1854 = vmatmul.mubr.bf16.gmra.mrb[0].mxu0 %v1159
        %v1855 = vpop.f32.mrb[0].mxu0
        %v1856 = vadd.f32 %v1733, %v1855
        %v1857 = vpop.f32.mrb[0].mxu0
        %v1858 = vadd.f32 %v1735, %v1857
        %v1859 = vpop.f32.mrb[0].mxu0
        %v1860 = vadd.f32 %v1737, %v1859
        %v1861 = vpop.f32.mrb[0].mxu0
        %v1862 = vadd.f32 %v1739, %v1861
        %1863 = vmatprep.mubr.bf16.mxu0 0
        %1864 = vmatmul.mubr.bf16.gmra.mrb[0].mxu0 %v1162
        %v1865 = vpop.f32.mrb[0].mxu0
        %v1866 = vadd.f32 %v1743, %v1865
        %v1867 = vpop.f32.mrb[0].mxu0
        %v1868 = vadd.f32 %v1745, %v1867
        %v1869 = vpop.f32.mrb[0].mxu0
        %v1870 = vadd.f32 %v1747, %v1869
        %v1871 = vpop.f32.mrb[0].mxu0
        %v1872 = vadd.f32 %v1749, %v1871
        %1873 = vmatprep.mubr.bf16.mxu0 0
        %1874 = vmatmul.mubr.bf16.gmra.mrb[0].mxu0 %v1165
        %v1875 = vpop.f32.mrb[0].mxu0
        %v1876 = vadd.f32 %v1753, %v1875
        %v1877 = vpop.f32.mrb[0].mxu0
        %v1878 = vadd.f32 %v1755, %v1877
        %v1879 = vpop.f32.mrb[0].mxu0
        %v1880 = vadd.f32 %v1757, %v1879
        %v1881 = vpop.f32.mrb[0].mxu0
        %v1882 = vadd.f32 %v1759, %v1881
        %1883 = vmatprep.mubr.bf16.mxu0 0
        %1884 = vmatmul.mubr.bf16.gmra.mrb[0].mxu0 %v1168
        %v1885 = vpop.f32.mrb[0].mxu0
        %v1886 = vadd.f32 %v1763, %v1885
        %v1887 = vpop.f32.mrb[0].mxu0
        %v1888 = vadd.f32 %v1765, %v1887
        %v1889 = vpop.f32.mrb[0].mxu0
        %v1890 = vadd.f32 %v1767, %v1889
        %v1891 = vpop.f32.mrb[0].mxu0
        %v1892 = vadd.f32 %v1769, %v1891
        %1893 = vmatprep.mubr.bf16.mxu0 0
        %1894 = vmatmul.mubr.bf16.gmra.mrb[0].mxu0 %v1171
        %v1895 = vpop.f32.mrb[0].mxu0
        %v1896 = vadd.f32 %v1773, %v1895
        %v1897 = vpop.f32.mrb[0].mxu0
        %v1898 = vadd.f32 %v1775, %v1897
        %v1899 = vpop.f32.mrb[0].mxu0
        %v1900 = vadd.f32 %v1777, %v1899
        %v1901 = vpop.f32.mrb[0].mxu0
        %v1902 = vadd.f32 %v1779, %v1901
        %1903 = vmatprep.mubr.bf16.mxu0 0
        %1904 = vmatmul.mubr.bf16.gmra.mrb[0].mxu0 %v1174
        %v1905 = vpop.f32.mrb[0].mxu0
        %v1906 = vadd.f32 %v1783, %v1905
        %v1907 = vpop.f32.mrb[0].mxu0
        %v1908 = vadd.f32 %v1785, %v1907
        %v1909 = vpop.f32.mrb[0].mxu0
        %v1910 = vadd.f32 %v1787, %v1909
        %v1911 = vpop.f32.mrb[0].mxu0
        %v1912 = vadd.f32 %v1789, %v1911
        %1913 = vmatprep.mubr.bf16.mxu0 0
        %1914 = vmatmul.mubr.bf16.gmra.mrb[0].mxu0 %v1177
        %v1915 = vpop.f32.mrb[0].mxu0
        %v1916 = vadd.f32 %v1793, %v1915
        %v1917 = vpop.f32.mrb[0].mxu0
        %v1918 = vadd.f32 %v1795, %v1917
        %v1919 = vpop.f32.mrb[0].mxu0
        %v1920 = vadd.f32 %v1797, %v1919
        %v1921 = vpop.f32.mrb[0].mxu0
        %v1922 = vadd.f32 %v1799, %v1921
        %1923 = vmatprep.mubr.bf16.mxu0 0
        %1924 = vmatmul.mubr.bf16.gmra.mrb[0].mxu0 %v1180
        %v1925 = vpop.f32.mrb[0].mxu0
        %v1926 = vadd.f32 %v1803, %v1925
        %v1927 = vpop.f32.mrb[0].mxu0
        %v1928 = vadd.f32 %v1805, %v1927
        %v1929 = vpop.f32.mrb[0].mxu0
        %v1930 = vadd.f32 %v1807, %v1929
        %v1931 = vpop.f32.mrb[0].mxu0
        %v1932 = vadd.f32 %v1809, %v1931
        %1933 = vdwg.mxu0
        %1934 = vmatprep.subr.bf16.mxu0 %v1499
        %1935 = vmatpush1.bf16.msra.mxu0 %v1498
        %1936 = vmatprep.subr.bf16.mxu0 %v1503
        %1937 = vmatpush1.bf16.msra.mxu0 %v1502
        %1938 = vmatprep.subr.bf16.mxu0 %v1507
        %1939 = vmatpush1.bf16.msra.mxu0 %v1506
        %1940 = vmatprep.subr.bf16.mxu0 %v1511
        %1941 = vmatpush1.bf16.msra.mxu0 %v1510
        %1942 = vmatprep.subr.bf16.mxu0 %v1515
        %1943 = vmatpush1.bf16.msra.mxu0 %v1514
        %1944 = vmatprep.subr.bf16.mxu0 %v1519
        %1945 = vmatpush1.bf16.msra.mxu0 %v1518
        %1946 = vmatprep.subr.bf16.mxu0 %v1523
        %1947 = vmatpush1.bf16.msra.mxu0 %v1522
        %1948 = vmatprep.subr.bf16.mxu0 %v1527
        %1949 = vmatpush1.bf16.msra.mxu0 %v1526
        %1950 = vmatprep.subr.bf16.mxu0 %v1531
        %1951 = vmatpush1.bf16.msra.mxu0 %v1530
        %1952 = vmatprep.subr.bf16.mxu0 %v1535
        %1953 = vmatpush1.bf16.msra.mxu0 %v1534
        %1954 = vmatprep.subr.bf16.mxu0 %v1539
        %1955 = vmatpush1.bf16.msra.mxu0 %v1538
        %1956 = vmatprep.subr.bf16.mxu0 %v1543
        %1957 = vmatpush1.bf16.msra.mxu0 %v1542
        %1958 = vmatprep.subr.bf16.mxu0 %v1547
        %1959 = vmatpush1.bf16.msra.mxu0 %v1546
        %1960 = vmatprep.subr.bf16.mxu0 %v1551
        %1961 = vmatpush1.bf16.msra.mxu0 %v1550
        %1962 = vmatprep.subr.bf16.mxu0 %v1555
        %1963 = vmatpush1.bf16.msra.mxu0 %v1554
        %1964 = vmatprep.subr.bf16.mxu0 %v1559
        %1965 = vmatpush1.bf16.msra.mxu0 %v1558
        %1966 = vmatprep.mubr.bf16.mxu0 %v1155
        %1967 = vmatmul.mubr.bf16.gmra.mrb[0].mxu0 %v1154
        %v1968 = vpop.f32.mrb[0].mxu0
        %v1969 = vadd.f32 0.0, %v1968
        %v1970 = vpop.f32.mrb[0].mxu0
        %v1971 = vadd.f32 0.0, %v1970
        %v1972 = vpop.f32.mrb[0].mxu0
        %v1973 = vadd.f32 0.0, %v1972
        %v1974 = vpop.f32.mrb[0].mxu0
        %v1975 = vadd.f32 0.0, %v1974
        %1976 = vmatprep.mubr.bf16.mxu0 %v1158
        %1977 = vmatmul.mubr.bf16.gmra.mrb[0].mxu0 %v1157
        %v1978 = vpop.f32.mrb[0].mxu0
        %v1979 = vadd.f32 0.0, %v1978
        %v1980 = vpop.f32.mrb[0].mxu0
        %v1981 = vadd.f32 0.0, %v1980
        %v1982 = vpop.f32.mrb[0].mxu0
        %v1983 = vadd.f32 0.0, %v1982
        %v1984 = vpop.f32.mrb[0].mxu0
        %v1985 = vadd.f32 0.0, %v1984
        %1986 = vmatprep.mubr.bf16.mxu0 %v1161
        %1987 = vmatmul.mubr.bf16.gmra.mrb[0].mxu0 %v1160
        %v1988 = vpop.f32.mrb[0].mxu0
        %v1989 = vadd.f32 0.0, %v1988
        %v1990 = vpop.f32.mrb[0].mxu0
        %v1991 = vadd.f32 0.0, %v1990
        %v1992 = vpop.f32.mrb[0].mxu0
        %v1993 = vadd.f32 0.0, %v1992
        %v1994 = vpop.f32.mrb[0].mxu0
        %v1995 = vadd.f32 0.0, %v1994
        %1996 = vmatprep.mubr.bf16.mxu0 %v1164
        %1997 = vmatmul.mubr.bf16.gmra.mrb[0].mxu0 %v1163
        %v1998 = vpop.f32.mrb[0].mxu0
        %v1999 = vadd.f32 0.0, %v1998
        %v2000 = vpop.f32.mrb[0].mxu0
        %v2001 = vadd.f32 0.0, %v2000
        %v2002 = vpop.f32.mrb[0].mxu0
        %v2003 = vadd.f32 0.0, %v2002
        %v2004 = vpop.f32.mrb[0].mxu0
        %v2005 = vadd.f32 0.0, %v2004
        %2006 = vmatprep.mubr.bf16.mxu0 %v1167
        %2007 = vmatmul.mubr.bf16.gmra.mrb[0].mxu0 %v1166
        %v2008 = vpop.f32.mrb[0].mxu0
        %v2009 = vadd.f32 0.0, %v2008
        %v2010 = vpop.f32.mrb[0].mxu0
        %v2011 = vadd.f32 0.0, %v2010
        %v2012 = vpop.f32.mrb[0].mxu0
        %v2013 = vadd.f32 0.0, %v2012
        %v2014 = vpop.f32.mrb[0].mxu0
        %v2015 = vadd.f32 0.0, %v2014
        %2016 = vmatprep.mubr.bf16.mxu0 %v1170
        %2017 = vmatmul.mubr.bf16.gmra.mrb[0].mxu0 %v1169
        %v2018 = vpop.f32.mrb[0].mxu0
        %v2019 = vadd.f32 0.0, %v2018
        %v2020 = vpop.f32.mrb[0].mxu0
        %v2021 = vadd.f32 0.0, %v2020
        %v2022 = vpop.f32.mrb[0].mxu0
        %v2023 = vadd.f32 0.0, %v2022
        %v2024 = vpop.f32.mrb[0].mxu0
        %v2025 = vadd.f32 0.0, %v2024
        %2026 = vmatprep.mubr.bf16.mxu0 %v1173
        %2027 = vmatmul.mubr.bf16.gmra.mrb[0].mxu0 %v1172
        %v2028 = vpop.f32.mrb[0].mxu0
        %v2029 = vadd.f32 0.0, %v2028
        %v2030 = vpop.f32.mrb[0].mxu0
        %v2031 = vadd.f32 0.0, %v2030
        %v2032 = vpop.f32.mrb[0].mxu0
        %v2033 = vadd.f32 0.0, %v2032
        %v2034 = vpop.f32.mrb[0].mxu0
        %v2035 = vadd.f32 0.0, %v2034
        %2036 = vmatprep.mubr.bf16.mxu0 %v1176
        %2037 = vmatmul.mubr.bf16.gmra.mrb[0].mxu0 %v1175
        %v2038 = vpop.f32.mrb[0].mxu0
        %v2039 = vadd.f32 0.0, %v2038
        %v2040 = vpop.f32.mrb[0].mxu0
        %v2041 = vadd.f32 0.0, %v2040
        %v2042 = vpop.f32.mrb[0].mxu0
        %v2043 = vadd.f32 0.0, %v2042
        %v2044 = vpop.f32.mrb[0].mxu0
        %v2045 = vadd.f32 0.0, %v2044
        %2046 = vmatprep.mubr.bf16.mxu0 %v1179
        %2047 = vmatmul.mubr.bf16.gmra.mrb[0].mxu0 %v1178
        %v2048 = vpop.f32.mrb[0].mxu0
        %v2049 = vadd.f32 0.0, %v2048
        %v2050 = vpop.f32.mrb[0].mxu0
        %v2051 = vadd.f32 0.0, %v2050
        %v2052 = vpop.f32.mrb[0].mxu0
        %v2053 = vadd.f32 0.0, %v2052
        %v2054 = vpop.f32.mrb[0].mxu0
        %v2055 = vadd.f32 0.0, %v2054
        %2056 = vdwg.mxu0
        %2057 = vmatprep.subr.bf16.mxu0 %v1563
        %2058 = vmatpush1.bf16.msra.mxu0 %v1562
        %2059 = vmatprep.subr.bf16.mxu0 %v1567
        %2060 = vmatpush1.bf16.msra.mxu0 %v1566
        %2061 = vmatprep.subr.bf16.mxu0 %v1571
        %2062 = vmatpush1.bf16.msra.mxu0 %v1570
        %2063 = vmatprep.subr.bf16.mxu0 %v1575
        %2064 = vmatpush1.bf16.msra.mxu0 %v1574
        %2065 = vmatprep.subr.bf16.mxu0 %v1579
        %2066 = vmatpush1.bf16.msra.mxu0 %v1578
        %2067 = vmatprep.subr.bf16.mxu0 %v1583
        %2068 = vmatpush1.bf16.msra.mxu0 %v1582
        %2069 = vmatprep.subr.bf16.mxu0 %v1587
        %2070 = vmatpush1.bf16.msra.mxu0 %v1586
        %2071 = vmatprep.subr.bf16.mxu0 %v1591
        %2072 = vmatpush1.bf16.msra.mxu0 %v1590
        %2073 = vmatprep.subr.bf16.mxu0 0
        %2074 = vmatpush1.bf16.msra.mxu0 0
        %2075 = vmatprep.subr.bf16.mxu0 0
        %2076 = vmatpush1.bf16.msra.mxu0 0
        %2077 = vmatprep.subr.bf16.mxu0 0
        %2078 = vmatpush1.bf16.msra.mxu0 0
        %2079 = vmatprep.subr.bf16.mxu0 0
        %2080 = vmatpush1.bf16.msra.mxu0 0
        %2081 = vmatprep.subr.bf16.mxu0 0
        %2082 = vmatpush1.bf16.msra.mxu0 0
        %2083 = vmatprep.subr.bf16.mxu0 0
        %2084 = vmatpush1.bf16.msra.mxu0 0
        %2085 = vmatprep.subr.bf16.mxu0 0
        %2086 = vmatpush1.bf16.msra.mxu0 0
        %2087 = vmatprep.subr.bf16.mxu0 0
        %2088 = vmatpush1.bf16.msra.mxu0 0
        %2089 = vmatprep.mubr.bf16.mxu0 0
        %2090 = vmatmul.mubr.bf16.gmra.mrb[0].mxu0 %v1156
        %v2091 = vpop.f32.mrb[0].mxu0
        %v2092 = vadd.f32 %v1969, %v2091
        %v2093 = vpop.f32.mrb[0].mxu0
        %v2094 = vadd.f32 %v1971, %v2093
        %v2095 = vpop.f32.mrb[0].mxu0
        %v2096 = vadd.f32 %v1973, %v2095
        %v2097 = vpop.f32.mrb[0].mxu0
        %v2098 = vadd.f32 %v1975, %v2097
        %2099 = vmatprep.mubr.bf16.mxu0 0
        %2100 = vmatmul.mubr.bf16.gmra.mrb[0].mxu0 %v1159
        %v2101 = vpop.f32.mrb[0].mxu0
        %v2102 = vadd.f32 %v1979, %v2101
        %v2103 = vpop.f32.mrb[0].mxu0
        %v2104 = vadd.f32 %v1981, %v2103
        %v2105 = vpop.f32.mrb[0].mxu0
        %v2106 = vadd.f32 %v1983, %v2105
        %v2107 = vpop.f32.mrb[0].mxu0
        %v2108 = vadd.f32 %v1985, %v2107
        %2109 = vmatprep.mubr.bf16.mxu0 0
        %2110 = vmatmul.mubr.bf16.gmra.mrb[0].mxu0 %v1162
        %v2111 = vpop.f32.mrb[0].mxu0
        %v2112 = vadd.f32 %v1989, %v2111
        %v2113 = vpop.f32.mrb[0].mxu0
        %v2114 = vadd.f32 %v1991, %v2113
        %v2115 = vpop.f32.mrb[0].mxu0
        %v2116 = vadd.f32 %v1993, %v2115
        %v2117 = vpop.f32.mrb[0].mxu0
        %v2118 = vadd.f32 %v1995, %v2117
        %2119 = vmatprep.mubr.bf16.mxu0 0
        %2120 = vmatmul.mubr.bf16.gmra.mrb[0].mxu0 %v1165
        %v2121 = vpop.f32.mrb[0].mxu0
        %v2122 = vadd.f32 %v1999, %v2121
        %v2123 = vpop.f32.mrb[0].mxu0
        %v2124 = vadd.f32 %v2001, %v2123
        %v2125 = vpop.f32.mrb[0].mxu0
        %v2126 = vadd.f32 %v2003, %v2125
        %v2127 = vpop.f32.mrb[0].mxu0
        %v2128 = vadd.f32 %v2005, %v2127
        %2129 = vmatprep.mubr.bf16.mxu0 0
        %2130 = vmatmul.mubr.bf16.gmra.mrb[0].mxu0 %v1168
        %v2131 = vpop.f32.mrb[0].mxu0
        %v2132 = vadd.f32 %v2009, %v2131
        %v2133 = vpop.f32.mrb[0].mxu0
        %v2134 = vadd.f32 %v2011, %v2133
        %v2135 = vpop.f32.mrb[0].mxu0
        %v2136 = vadd.f32 %v2013, %v2135
        %v2137 = vpop.f32.mrb[0].mxu0
        %v2138 = vadd.f32 %v2015, %v2137
        %2139 = vmatprep.mubr.bf16.mxu0 0
        %2140 = vmatmul.mubr.bf16.gmra.mrb[0].mxu0 %v1171
        %v2141 = vpop.f32.mrb[0].mxu0
        %v2142 = vadd.f32 %v2019, %v2141
        %v2143 = vpop.f32.mrb[0].mxu0
        %v2144 = vadd.f32 %v2021, %v2143
        %v2145 = vpop.f32.mrb[0].mxu0
        %v2146 = vadd.f32 %v2023, %v2145
        %v2147 = vpop.f32.mrb[0].mxu0
        %v2148 = vadd.f32 %v2025, %v2147
        %2149 = vmatprep.mubr.bf16.mxu0 0
        %2150 = vmatmul.mubr.bf16.gmra.mrb[0].mxu0 %v1174
        %v2151 = vpop.f32.mrb[0].mxu0
        %v2152 = vadd.f32 %v2029, %v2151
        %v2153 = vpop.f32.mrb[0].mxu0
        %v2154 = vadd.f32 %v2031, %v2153
        %v2155 = vpop.f32.mrb[0].mxu0
        %v2156 = vadd.f32 %v2033, %v2155
        %v2157 = vpop.f32.mrb[0].mxu0
        %v2158 = vadd.f32 %v2035, %v2157
        %2159 = vmatprep.mubr.bf16.mxu0 0
        %2160 = vmatmul.mubr.bf16.gmra.mrb[0].mxu0 %v1177
        %v2161 = vpop.f32.mrb[0].mxu0
        %v2162 = vadd.f32 %v2039, %v2161
        %v2163 = vpop.f32.mrb[0].mxu0
        %v2164 = vadd.f32 %v2041, %v2163
        %v2165 = vpop.f32.mrb[0].mxu0
        %v2166 = vadd.f32 %v2043, %v2165
        %v2167 = vpop.f32.mrb[0].mxu0
        %v2168 = vadd.f32 %v2045, %v2167
        %2169 = vmatprep.mubr.bf16.mxu0 0
        %2170 = vmatmul.mubr.bf16.gmra.mrb[0].mxu0 %v1180
        %v2171 = vpop.f32.mrb[0].mxu0
        %v2172 = vadd.f32 %v2049, %v2171
        %v2173 = vpop.f32.mrb[0].mxu0
        %v2174 = vadd.f32 %v2051, %v2173
        %v2175 = vpop.f32.mrb[0].mxu0
        %v2176 = vadd.f32 %v2053, %v2175
        %v2177 = vpop.f32.mrb[0].mxu0
        %v2178 = vadd.f32 %v2055, %v2177
        %2179 = vdwg.mxu0
        %v2184 = vunpack.c.l.b16 %v832
        %v2185 = vunpack.c.h.b16 %v832
        %v2186 = vunpack.c.l.b16 %v833
        %v2187 = vunpack.c.l.b16 %v834
        %v2188 = vunpack.c.h.b16 %v834
        %v2189 = vunpack.c.l.b16 %v835
        %v2190 = vpack.c.b16 %v2187, %v2184
        %v2191 = vpack.c.b16 %v2188, %v2185
        %v2192 = vpack.c.b16 %v2189, %v2186
        %v2292 = vunpack.c.l.b16 %v868
        %v2293 = vunpack.c.h.b16 %v868
        %v2294 = vunpack.c.l.b16 %v869
        %v2295 = vunpack.c.h.b16 %v869
        %v2296 = vunpack.c.l.b16 %v870
        %v2297 = vunpack.c.h.b16 %v870
        %v2298 = vunpack.c.l.b16 %v871
        %v2299 = vunpack.c.h.b16 %v871
        %v2300 = vunpack.c.l.b16 %v872
        %v2301 = vunpack.c.h.b16 %v872
        %v2302 = vunpack.c.l.b16 %v873
        %v2303 = vunpack.c.h.b16 %v873
        %v2304 = vunpack.c.l.b16 %v874
        %v2305 = vunpack.c.h.b16 %v874
        %v2306 = vunpack.c.l.b16 %v875
        %v2307 = vunpack.c.h.b16 %v875
        %v2308 = vunpack.c.l.b16 %v876
        %v2309 = vunpack.c.h.b16 %v876
        %v2310 = vunpack.c.l.b16 %v877
        %v2311 = vunpack.c.h.b16 %v877
        %v2312 = vunpack.c.l.b16 %v878
        %v2313 = vunpack.c.h.b16 %v878
        %v2314 = vunpack.c.l.b16 %v879
        %v2315 = vunpack.c.h.b16 %v879
        %v2316 = vunpack.c.l.b16 %v880
        %v2317 = vunpack.c.h.b16 %v880
        %v2318 = vunpack.c.l.b16 %v881
        %v2319 = vunpack.c.h.b16 %v881
        %v2320 = vunpack.c.l.b16 %v882
        %v2321 = vunpack.c.h.b16 %v882
        %v2322 = vunpack.c.l.b16 %v883
        %v2323 = vunpack.c.h.b16 %v883
        %v2324 = vunpack.c.l.b16 %v884
        %v2325 = vunpack.c.h.b16 %v884
        %v2326 = vunpack.c.l.b16 %v885
        %v2327 = vunpack.c.h.b16 %v885
        %v2328 = vunpack.c.l.b16 %v886
        %v2329 = vunpack.c.h.b16 %v886
        %v2330 = vunpack.c.l.b16 %v887
        %v2331 = vunpack.c.h.b16 %v887
        %v2332 = vunpack.c.l.b16 %v888
        %v2333 = vunpack.c.h.b16 %v888
        %v2334 = vunpack.c.l.b16 %v889
        %v2335 = vunpack.c.h.b16 %v889
        %v2336 = vunpack.c.l.b16 %v890
        %v2337 = vunpack.c.h.b16 %v890
        %v2338 = vunpack.c.l.b16 %v891
        %v2339 = vunpack.c.h.b16 %v891
        %v2340 = vunpack.c.l.b16 %v892
        %v2341 = vunpack.c.h.b16 %v892
        %v2342 = vunpack.c.l.b16 %v893
        %v2343 = vunpack.c.h.b16 %v893
        %v2344 = vunpack.c.l.b16 %v894
        %v2345 = vunpack.c.h.b16 %v894
        %v2346 = vunpack.c.l.b16 %v895
        %v2347 = vunpack.c.h.b16 %v895
        %v2348 = vunpack.c.l.b16 %v896
        %v2349 = vunpack.c.h.b16 %v896
        %v2350 = vunpack.c.l.b16 %v897
        %v2351 = vunpack.c.h.b16 %v897
        %v2352 = vunpack.c.l.b16 %v898
        %v2353 = vunpack.c.h.b16 %v898
        %v2354 = vunpack.c.l.b16 %v899
        %v2355 = vunpack.c.h.b16 %v899
        %v2356 = vunpack.c.l.b16 %v900
        %v2357 = vunpack.c.h.b16 %v900
        %v2358 = vunpack.c.l.b16 %v901
        %v2359 = vunpack.c.h.b16 %v901
        %v2360 = vunpack.c.l.b16 %v902
        %v2361 = vunpack.c.h.b16 %v902
        %v2362 = vunpack.c.l.b16 %v903
        %v2363 = vunpack.c.h.b16 %v903
        %v2364 = vunpack.c.l.b16 %v904
        %v2365 = vunpack.c.h.b16 %v904
        %v2366 = vunpack.c.l.b16 %v905
        %v2367 = vunpack.c.h.b16 %v905
        %v2368 = vunpack.c.l.b16 %v906
        %v2369 = vunpack.c.h.b16 %v906
        %v2370 = vunpack.c.l.b16 %v907
        %v2371 = vunpack.c.h.b16 %v907
        %v2372 = vunpack.c.l.b16 %v908
        %v2373 = vunpack.c.h.b16 %v908
        %v2374 = vunpack.c.l.b16 %v909
        %v2375 = vunpack.c.h.b16 %v909
        %v2376 = vunpack.c.l.b16 %v910
        %v2377 = vunpack.c.h.b16 %v910
        %v2378 = vunpack.c.l.b16 %v911
        %v2379 = vunpack.c.h.b16 %v911
        %v2380 = vunpack.c.l.b16 %v912
        %v2381 = vunpack.c.h.b16 %v912
        %v2382 = vunpack.c.l.b16 %v913
        %v2383 = vunpack.c.h.b16 %v913
        %v2384 = vunpack.c.l.b16 %v914
        %v2385 = vunpack.c.h.b16 %v914
        %v2386 = vunpack.c.l.b16 %v915
        %v2387 = vunpack.c.h.b16 %v915
        %v2388 = vunpack.c.l.b16 %v916
        %v2389 = vunpack.c.h.b16 %v916
        %v2390 = vunpack.c.l.b16 %v917
        %v2391 = vunpack.c.h.b16 %v917
        %v2392 = vunpack.c.l.b16 %v918
        %v2393 = vunpack.c.h.b16 %v918
        %v2394 = vunpack.c.l.b16 %v919
        %v2395 = vunpack.c.h.b16 %v919
        %v2396 = vunpack.c.l.b16 %v920
        %v2397 = vunpack.c.h.b16 %v920
        %v2398 = vunpack.c.l.b16 %v921
        %v2399 = vunpack.c.h.b16 %v921
        %v2400 = vunpack.c.l.b16 %v922
        %v2401 = vunpack.c.h.b16 %v922
        %v2402 = vunpack.c.l.b16 %v923
        %v2403 = vunpack.c.h.b16 %v923
        %v2404 = vunpack.c.l.b16 %v924
        %v2405 = vunpack.c.h.b16 %v924
        %v2406 = vunpack.c.l.b16 %v925
        %v2407 = vunpack.c.h.b16 %v925
        %v2408 = vunpack.c.l.b16 %v926
        %v2409 = vunpack.c.h.b16 %v926
        %v2410 = vunpack.c.l.b16 %v927
        %v2411 = vunpack.c.h.b16 %v927
        %v2412 = vunpack.c.l.b16 %v928
        %v2413 = vunpack.c.h.b16 %v928
        %v2414 = vunpack.c.l.b16 %v929
        %v2415 = vunpack.c.h.b16 %v929
        %v2416 = vunpack.c.l.b16 %v930
        %v2417 = vunpack.c.h.b16 %v930
        %v2418 = vunpack.c.l.b16 %v931
        %v2419 = vunpack.c.h.b16 %v931
        %v2420 = vunpack.c.l.b16 %v932
        %v2421 = vunpack.c.h.b16 %v932
        %v2422 = vunpack.c.l.b16 %v933
        %v2423 = vunpack.c.h.b16 %v933
        %v2424 = vunpack.c.l.b16 %v934
        %v2425 = vunpack.c.h.b16 %v934
        %v2426 = vunpack.c.l.b16 %v935
        %v2427 = vunpack.c.h.b16 %v935
        %v2428 = vunpack.c.l.b16 %v936
        %v2429 = vunpack.c.h.b16 %v936
        %v2430 = vunpack.c.l.b16 %v937
        %v2431 = vunpack.c.h.b16 %v937
        %v2432 = vunpack.c.l.b16 %v938
        %v2433 = vunpack.c.h.b16 %v938
        %v2434 = vunpack.c.l.b16 %v939
        %v2435 = vunpack.c.h.b16 %v939
        %v2436 = vunpack.c.l.b16 %v940
        %v2437 = vunpack.c.h.b16 %v940
        %v2438 = vunpack.c.l.b16 %v941
        %v2439 = vunpack.c.h.b16 %v941
        %v2440 = vunpack.c.l.b16 %v942
        %v2441 = vunpack.c.h.b16 %v942
        %v2442 = vunpack.c.l.b16 %v943
        %v2443 = vunpack.c.h.b16 %v943
        %v2444 = vunpack.c.l.b16 %v944
        %v2445 = vunpack.c.h.b16 %v944
        %v2446 = vunpack.c.l.b16 %v945
        %v2447 = vunpack.c.h.b16 %v945
        %v2448 = vunpack.c.l.b16 %v946
        %v2449 = vunpack.c.h.b16 %v946
        %v2450 = vunpack.c.l.b16 %v947
        %v2451 = vunpack.c.h.b16 %v947
        %v2452 = vunpack.c.l.b16 %v948
        %v2453 = vunpack.c.h.b16 %v948
        %v2454 = vunpack.c.l.b16 %v949
        %v2455 = vunpack.c.h.b16 %v949
        %v2456 = vunpack.c.l.b16 %v950
        %v2457 = vunpack.c.h.b16 %v950
        %v2458 = vunpack.c.l.b16 %v951
        %v2459 = vunpack.c.h.b16 %v951
        %v2460 = vunpack.c.l.b16 %v952
        %v2461 = vunpack.c.h.b16 %v952
        %v2462 = vunpack.c.l.b16 %v953
        %v2463 = vunpack.c.h.b16 %v953
        %v2464 = vunpack.c.l.b16 %v954
        %v2465 = vunpack.c.h.b16 %v954
        %v2466 = vunpack.c.l.b16 %v955
        %v2467 = vunpack.c.h.b16 %v955
        %v2468 = vunpack.c.l.b16 %v956
        %v2469 = vunpack.c.h.b16 %v956
        %v2470 = vunpack.c.l.b16 %v957
        %v2471 = vunpack.c.h.b16 %v957
        %v2472 = vunpack.c.l.b16 %v958
        %v2473 = vunpack.c.h.b16 %v958
        %v2474 = vunpack.c.l.b16 %v959
        %v2475 = vunpack.c.h.b16 %v959
        %v2476 = vunpack.c.l.b16 %v960
        %v2477 = vunpack.c.h.b16 %v960
        %v2478 = vunpack.c.l.b16 %v961
        %v2479 = vunpack.c.h.b16 %v961
        %v2480 = vunpack.c.l.b16 %v962
        %v2481 = vunpack.c.h.b16 %v962
        %v2482 = vunpack.c.l.b16 %v963
        %v2483 = vunpack.c.h.b16 %v963
        %v2484 = vpack.c.b16 %v2296, %v2292
        %v2485 = vpack.c.b16 %v2297, %v2293
        %v2486 = vpack.c.b16 %v2298, %v2294
        %v2487 = vpack.c.b16 %v2299, %v2295
        %v2488 = vpack.c.b16 %v2304, %v2300
        %v2489 = vpack.c.b16 %v2305, %v2301
        %v2490 = vpack.c.b16 %v2306, %v2302
        %v2491 = vpack.c.b16 %v2307, %v2303
        %v2492 = vpack.c.b16 %v2312, %v2308
        %v2493 = vpack.c.b16 %v2313, %v2309
        %v2494 = vpack.c.b16 %v2314, %v2310
        %v2495 = vpack.c.b16 %v2315, %v2311
        %v2496 = vpack.c.b16 %v2320, %v2316
        %v2497 = vpack.c.b16 %v2321, %v2317
        %v2498 = vpack.c.b16 %v2322, %v2318
        %v2499 = vpack.c.b16 %v2323, %v2319
        %v2500 = vpack.c.b16 %v2328, %v2324
        %v2501 = vpack.c.b16 %v2329, %v2325
        %v2502 = vpack.c.b16 %v2330, %v2326
        %v2503 = vpack.c.b16 %v2331, %v2327
        %v2504 = vpack.c.b16 %v2336, %v2332
        %v2505 = vpack.c.b16 %v2337, %v2333
        %v2506 = vpack.c.b16 %v2338, %v2334
        %v2507 = vpack.c.b16 %v2339, %v2335
        %v2508 = vpack.c.b16 %v2344, %v2340
        %v2509 = vpack.c.b16 %v2345, %v2341
        %v2510 = vpack.c.b16 %v2346, %v2342
        %v2511 = vpack.c.b16 %v2347, %v2343
        %v2512 = vpack.c.b16 %v2352, %v2348
        %v2513 = vpack.c.b16 %v2353, %v2349
        %v2514 = vpack.c.b16 %v2354, %v2350
        %v2515 = vpack.c.b16 %v2355, %v2351
        %v2516 = vpack.c.b16 %v2360, %v2356
        %v2517 = vpack.c.b16 %v2361, %v2357
        %v2518 = vpack.c.b16 %v2362, %v2358
        %v2519 = vpack.c.b16 %v2363, %v2359
        %v2520 = vpack.c.b16 %v2368, %v2364
        %v2521 = vpack.c.b16 %v2369, %v2365
        %v2522 = vpack.c.b16 %v2370, %v2366
        %v2523 = vpack.c.b16 %v2371, %v2367
        %v2524 = vpack.c.b16 %v2376, %v2372
        %v2525 = vpack.c.b16 %v2377, %v2373
        %v2526 = vpack.c.b16 %v2378, %v2374
        %v2527 = vpack.c.b16 %v2379, %v2375
        %v2528 = vpack.c.b16 %v2384, %v2380
        %v2529 = vpack.c.b16 %v2385, %v2381
        %v2530 = vpack.c.b16 %v2386, %v2382
        %v2531 = vpack.c.b16 %v2387, %v2383
        %v2532 = vpack.c.b16 %v2392, %v2388
        %v2533 = vpack.c.b16 %v2393, %v2389
        %v2534 = vpack.c.b16 %v2394, %v2390
        %v2535 = vpack.c.b16 %v2395, %v2391
        %v2536 = vpack.c.b16 %v2400, %v2396
        %v2537 = vpack.c.b16 %v2401, %v2397
        %v2538 = vpack.c.b16 %v2402, %v2398
        %v2539 = vpack.c.b16 %v2403, %v2399
        %v2540 = vpack.c.b16 %v2408, %v2404
        %v2541 = vpack.c.b16 %v2409, %v2405
        %v2542 = vpack.c.b16 %v2410, %v2406
        %v2543 = vpack.c.b16 %v2411, %v2407
        %v2544 = vpack.c.b16 %v2416, %v2412
        %v2545 = vpack.c.b16 %v2417, %v2413
        %v2546 = vpack.c.b16 %v2418, %v2414
        %v2547 = vpack.c.b16 %v2419, %v2415
        %v2548 = vpack.c.b16 %v2424, %v2420
        %v2549 = vpack.c.b16 %v2425, %v2421
        %v2550 = vpack.c.b16 %v2426, %v2422
        %v2551 = vpack.c.b16 %v2427, %v2423
        %v2552 = vpack.c.b16 %v2432, %v2428
        %v2553 = vpack.c.b16 %v2433, %v2429
        %v2554 = vpack.c.b16 %v2434, %v2430
        %v2555 = vpack.c.b16 %v2435, %v2431
        %v2556 = vpack.c.b16 %v2440, %v2436
        %v2557 = vpack.c.b16 %v2441, %v2437
        %v2558 = vpack.c.b16 %v2442, %v2438
        %v2559 = vpack.c.b16 %v2443, %v2439
        %v2560 = vpack.c.b16 %v2448, %v2444
        %v2561 = vpack.c.b16 %v2449, %v2445
        %v2562 = vpack.c.b16 %v2450, %v2446
        %v2563 = vpack.c.b16 %v2451, %v2447
        %v2564 = vpack.c.b16 %v2456, %v2452
        %v2565 = vpack.c.b16 %v2457, %v2453
        %v2566 = vpack.c.b16 %v2458, %v2454
        %v2567 = vpack.c.b16 %v2459, %v2455
        %v2568 = vpack.c.b16 %v2464, %v2460
        %v2569 = vpack.c.b16 %v2465, %v2461
        %v2570 = vpack.c.b16 %v2466, %v2462
        %v2571 = vpack.c.b16 %v2467, %v2463
        %v2572 = vpack.c.b16 %v2472, %v2468
        %v2573 = vpack.c.b16 %v2473, %v2469
        %v2574 = vpack.c.b16 %v2474, %v2470
        %v2575 = vpack.c.b16 %v2475, %v2471
        %v2576 = vpack.c.b16 %v2480, %v2476
        %v2577 = vpack.c.b16 %v2481, %v2477
        %v2578 = vpack.c.b16 %v2482, %v2478
        %v2579 = vpack.c.b16 %v2483, %v2479
        %2676 = vmatprep.subr.bf16.mxu0 %v2485
        %2677 = vmatpush1.bf16.msra.mxu0 %v2484
        %2678 = vmatprep.subr.bf16.mxu0 %v2489
        %2679 = vmatpush1.bf16.msra.mxu0 %v2488
        %2680 = vmatprep.subr.bf16.mxu0 %v2493
        %2681 = vmatpush1.bf16.msra.mxu0 %v2492
        %2682 = vmatprep.subr.bf16.mxu0 %v2497
        %2683 = vmatpush1.bf16.msra.mxu0 %v2496
        %2684 = vmatprep.subr.bf16.mxu0 %v2501
        %2685 = vmatpush1.bf16.msra.mxu0 %v2500
        %2686 = vmatprep.subr.bf16.mxu0 %v2505
        %2687 = vmatpush1.bf16.msra.mxu0 %v2504
        %2688 = vmatprep.subr.bf16.mxu0 %v2509
        %2689 = vmatpush1.bf16.msra.mxu0 %v2508
        %2690 = vmatprep.subr.bf16.mxu0 %v2513
        %2691 = vmatpush1.bf16.msra.mxu0 %v2512
        %2692 = vmatprep.subr.bf16.mxu0 %v2517
        %2693 = vmatpush1.bf16.msra.mxu0 %v2516
        %2694 = vmatprep.subr.bf16.mxu0 %v2521
        %2695 = vmatpush1.bf16.msra.mxu0 %v2520
        %2696 = vmatprep.subr.bf16.mxu0 %v2525
        %2697 = vmatpush1.bf16.msra.mxu0 %v2524
        %2698 = vmatprep.subr.bf16.mxu0 %v2529
        %2699 = vmatpush1.bf16.msra.mxu0 %v2528
        %2700 = vmatprep.subr.bf16.mxu0 %v2533
        %2701 = vmatpush1.bf16.msra.mxu0 %v2532
        %2702 = vmatprep.subr.bf16.mxu0 %v2537
        %2703 = vmatpush1.bf16.msra.mxu0 %v2536
        %2704 = vmatprep.subr.bf16.mxu0 %v2541
        %2705 = vmatpush1.bf16.msra.mxu0 %v2540
        %2706 = vmatprep.subr.bf16.mxu0 %v2545
        %2707 = vmatpush1.bf16.msra.mxu0 %v2544
        %2708 = vmatprep.mubr.bf16.mxu0 %v2191
        %2709 = vmatmul.mubr.bf16.gmra.mrb[0].mxu0 %v2190
        %v2710 = vpop.f32.mrb[0].mxu0
        %v2711 = vadd.f32 %v1846, %v2710
        %v2712 = vpop.f32.mrb[0].mxu0
        %v2713 = vadd.f32 %v1848, %v2712
        %v2714 = vpop.f32.mrb[0].mxu0
        %v2715 = vadd.f32 %v1850, %v2714
        %v2716 = vpop.f32.mrb[0].mxu0
        %v2717 = vadd.f32 %v1852, %v2716
        %2718 = vmatprep.mubr.bf16.mxu0 %v1155
        %2719 = vmatmul.mubr.bf16.gmra.mrb[0].mxu0 %v1154
        %v2720 = vpop.f32.mrb[0].mxu0
        %v2721 = vadd.f32 %v1856, %v2720
        %v2722 = vpop.f32.mrb[0].mxu0
        %v2723 = vadd.f32 %v1858, %v2722
        %v2724 = vpop.f32.mrb[0].mxu0
        %v2725 = vadd.f32 %v1860, %v2724
        %v2726 = vpop.f32.mrb[0].mxu0
        %v2727 = vadd.f32 %v1862, %v2726
        %2728 = vmatprep.mubr.bf16.mxu0 %v1158
        %2729 = vmatmul.mubr.bf16.gmra.mrb[0].mxu0 %v1157
        %v2730 = vpop.f32.mrb[0].mxu0
        %v2731 = vadd.f32 %v1866, %v2730
        %v2732 = vpop.f32.mrb[0].mxu0
        %v2733 = vadd.f32 %v1868, %v2732
        %v2734 = vpop.f32.mrb[0].mxu0
        %v2735 = vadd.f32 %v1870, %v2734
        %v2736 = vpop.f32.mrb[0].mxu0
        %v2737 = vadd.f32 %v1872, %v2736
        %2738 = vmatprep.mubr.bf16.mxu0 %v1161
        %2739 = vmatmul.mubr.bf16.gmra.mrb[0].mxu0 %v1160
        %v2740 = vpop.f32.mrb[0].mxu0
        %v2741 = vadd.f32 %v1876, %v2740
        %v2742 = vpop.f32.mrb[0].mxu0
        %v2743 = vadd.f32 %v1878, %v2742
        %v2744 = vpop.f32.mrb[0].mxu0
        %v2745 = vadd.f32 %v1880, %v2744
        %v2746 = vpop.f32.mrb[0].mxu0
        %v2747 = vadd.f32 %v1882, %v2746
        %2748 = vmatprep.mubr.bf16.mxu0 %v1164
        %2749 = vmatmul.mubr.bf16.gmra.mrb[0].mxu0 %v1163
        %v2750 = vpop.f32.mrb[0].mxu0
        %v2751 = vadd.f32 %v1886, %v2750
        %v2752 = vpop.f32.mrb[0].mxu0
        %v2753 = vadd.f32 %v1888, %v2752
        %v2754 = vpop.f32.mrb[0].mxu0
        %v2755 = vadd.f32 %v1890, %v2754
        %v2756 = vpop.f32.mrb[0].mxu0
        %v2757 = vadd.f32 %v1892, %v2756
        %2758 = vmatprep.mubr.bf16.mxu0 %v1167
        %2759 = vmatmul.mubr.bf16.gmra.mrb[0].mxu0 %v1166
        %v2760 = vpop.f32.mrb[0].mxu0
        %v2761 = vadd.f32 %v1896, %v2760
        %v2762 = vpop.f32.mrb[0].mxu0
        %v2763 = vadd.f32 %v1898, %v2762
        %v2764 = vpop.f32.mrb[0].mxu0
        %v2765 = vadd.f32 %v1900, %v2764
        %v2766 = vpop.f32.mrb[0].mxu0
        %v2767 = vadd.f32 %v1902, %v2766
        %2768 = vmatprep.mubr.bf16.mxu0 %v1170
        %2769 = vmatmul.mubr.bf16.gmra.mrb[0].mxu0 %v1169
        %v2770 = vpop.f32.mrb[0].mxu0
        %v2771 = vadd.f32 %v1906, %v2770
        %v2772 = vpop.f32.mrb[0].mxu0
        %v2773 = vadd.f32 %v1908, %v2772
        %v2774 = vpop.f32.mrb[0].mxu0
        %v2775 = vadd.f32 %v1910, %v2774
        %v2776 = vpop.f32.mrb[0].mxu0
        %v2777 = vadd.f32 %v1912, %v2776
        %2778 = vmatprep.mubr.bf16.mxu0 %v1173
        %2779 = vmatmul.mubr.bf16.gmra.mrb[0].mxu0 %v1172
        %v2780 = vpop.f32.mrb[0].mxu0
        %v2781 = vadd.f32 %v1916, %v2780
        %v2782 = vpop.f32.mrb[0].mxu0
        %v2783 = vadd.f32 %v1918, %v2782
        %v2784 = vpop.f32.mrb[0].mxu0
        %v2785 = vadd.f32 %v1920, %v2784
        %v2786 = vpop.f32.mrb[0].mxu0
        %v2787 = vadd.f32 %v1922, %v2786
        %2788 = vmatprep.mubr.bf16.mxu0 %v1176
        %2789 = vmatmul.mubr.bf16.gmra.mrb[0].mxu0 %v1175
        %v2790 = vpop.f32.mrb[0].mxu0
        %v2791 = vadd.f32 %v1926, %v2790
        %v2792 = vpop.f32.mrb[0].mxu0
        %v2793 = vadd.f32 %v1928, %v2792
        %v2794 = vpop.f32.mrb[0].mxu0
        %v2795 = vadd.f32 %v1930, %v2794
        %v2796 = vpop.f32.mrb[0].mxu0
        %v2797 = vadd.f32 %v1932, %v2796
        %2798 = vdwg.mxu0
        %2799 = vmatprep.subr.bf16.mxu0 %v2549
        %2800 = vmatpush1.bf16.msra.mxu0 %v2548
        %2801 = vmatprep.subr.bf16.mxu0 %v2553
        %2802 = vmatpush1.bf16.msra.mxu0 %v2552
        %2803 = vmatprep.subr.bf16.mxu0 %v2557
        %2804 = vmatpush1.bf16.msra.mxu0 %v2556
        %2805 = vmatprep.subr.bf16.mxu0 %v2561
        %2806 = vmatpush1.bf16.msra.mxu0 %v2560
        %2807 = vmatprep.subr.bf16.mxu0 %v2565
        %2808 = vmatpush1.bf16.msra.mxu0 %v2564
        %2809 = vmatprep.subr.bf16.mxu0 %v2569
        %2810 = vmatpush1.bf16.msra.mxu0 %v2568
        %2811 = vmatprep.subr.bf16.mxu0 %v2573
        %2812 = vmatpush1.bf16.msra.mxu0 %v2572
        %2813 = vmatprep.subr.bf16.mxu0 %v2577
        %2814 = vmatpush1.bf16.msra.mxu0 %v2576
        %2815 = vmatprep.subr.bf16.mxu0 0
        %2816 = vmatpush1.bf16.msra.mxu0 0
        %2817 = vmatprep.subr.bf16.mxu0 0
        %2818 = vmatpush1.bf16.msra.mxu0 0
        %2819 = vmatprep.subr.bf16.mxu0 0
        %2820 = vmatpush1.bf16.msra.mxu0 0
        %2821 = vmatprep.subr.bf16.mxu0 0
        %2822 = vmatpush1.bf16.msra.mxu0 0
        %2823 = vmatprep.subr.bf16.mxu0 0
        %2824 = vmatpush1.bf16.msra.mxu0 0
        %2825 = vmatprep.subr.bf16.mxu0 0
        %2826 = vmatpush1.bf16.msra.mxu0 0
        %2827 = vmatprep.subr.bf16.mxu0 0
        %2828 = vmatpush1.bf16.msra.mxu0 0
        %2829 = vmatprep.subr.bf16.mxu0 0
        %2830 = vmatpush1.bf16.msra.mxu0 0
        %2831 = vmatprep.mubr.bf16.mxu0 0
        %2832 = vmatmul.mubr.bf16.gmra.mrb[0].mxu0 %v2192
        %v2833 = vpop.f32.mrb[0].mxu0
        %v2834 = vadd.f32 %v2711, %v2833
        %v2835 = vpop.f32.mrb[0].mxu0
        %v2836 = vadd.f32 %v2713, %v2835
        %v2837 = vpop.f32.mrb[0].mxu0
        %v2838 = vadd.f32 %v2715, %v2837
        %v2839 = vpop.f32.mrb[0].mxu0
        %v2840 = vadd.f32 %v2717, %v2839
        %2841 = vmatprep.mubr.bf16.mxu0 0
        %2842 = vmatmul.mubr.bf16.gmra.mrb[0].mxu0 %v1156
        %v2843 = vpop.f32.mrb[0].mxu0
        %v2844 = vadd.f32 %v2721, %v2843
        %v2845 = vpop.f32.mrb[0].mxu0
        %v2846 = vadd.f32 %v2723, %v2845
        %v2847 = vpop.f32.mrb[0].mxu0
        %v2848 = vadd.f32 %v2725, %v2847
        %v2849 = vpop.f32.mrb[0].mxu0
        %v2850 = vadd.f32 %v2727, %v2849
        %2851 = vmatprep.mubr.bf16.mxu0 0
        %2852 = vmatmul.mubr.bf16.gmra.mrb[0].mxu0 %v1159
        %v2853 = vpop.f32.mrb[0].mxu0
        %v2854 = vadd.f32 %v2731, %v2853
        %v2855 = vpop.f32.mrb[0].mxu0
        %v2856 = vadd.f32 %v2733, %v2855
        %v2857 = vpop.f32.mrb[0].mxu0
        %v2858 = vadd.f32 %v2735, %v2857
        %v2859 = vpop.f32.mrb[0].mxu0
        %v2860 = vadd.f32 %v2737, %v2859
        %2861 = vmatprep.mubr.bf16.mxu0 0
        %2862 = vmatmul.mubr.bf16.gmra.mrb[0].mxu0 %v1162
        %v2863 = vpop.f32.mrb[0].mxu0
        %v2864 = vadd.f32 %v2741, %v2863
        %v2865 = vpop.f32.mrb[0].mxu0
        %v2866 = vadd.f32 %v2743, %v2865
        %v2867 = vpop.f32.mrb[0].mxu0
        %v2868 = vadd.f32 %v2745, %v2867
        %v2869 = vpop.f32.mrb[0].mxu0
        %v2870 = vadd.f32 %v2747, %v2869
        %2871 = vmatprep.mubr.bf16.mxu0 0
        %2872 = vmatmul.mubr.bf16.gmra.mrb[0].mxu0 %v1165
        %v2873 = vpop.f32.mrb[0].mxu0
        %v2874 = vadd.f32 %v2751, %v2873
        %v2875 = vpop.f32.mrb[0].mxu0
        %v2876 = vadd.f32 %v2753, %v2875
        %v2877 = vpop.f32.mrb[0].mxu0
        %v2878 = vadd.f32 %v2755, %v2877
        %v2879 = vpop.f32.mrb[0].mxu0
        %v2880 = vadd.f32 %v2757, %v2879
        %2881 = vmatprep.mubr.bf16.mxu0 0
        %2882 = vmatmul.mubr.bf16.gmra.mrb[0].mxu0 %v1168
        %v2883 = vpop.f32.mrb[0].mxu0
        %v2884 = vadd.f32 %v2761, %v2883
        %v2885 = vpop.f32.mrb[0].mxu0
        %v2886 = vadd.f32 %v2763, %v2885
        %v2887 = vpop.f32.mrb[0].mxu0
        %v2888 = vadd.f32 %v2765, %v2887
        %v2889 = vpop.f32.mrb[0].mxu0
        %v2890 = vadd.f32 %v2767, %v2889
        %2891 = vmatprep.mubr.bf16.mxu0 0
        %2892 = vmatmul.mubr.bf16.gmra.mrb[0].mxu0 %v1171
        %v2893 = vpop.f32.mrb[0].mxu0
        %v2894 = vadd.f32 %v2771, %v2893
        %v2895 = vpop.f32.mrb[0].mxu0
        %v2896 = vadd.f32 %v2773, %v2895
        %v2897 = vpop.f32.mrb[0].mxu0
        %v2898 = vadd.f32 %v2775, %v2897
        %v2899 = vpop.f32.mrb[0].mxu0
        %v2900 = vadd.f32 %v2777, %v2899
        %2901 = vmatprep.mubr.bf16.mxu0 0
        %2902 = vmatmul.mubr.bf16.gmra.mrb[0].mxu0 %v1174
        %v2903 = vpop.f32.mrb[0].mxu0
        %v2904 = vadd.f32 %v2781, %v2903
        %v2905 = vpop.f32.mrb[0].mxu0
        %v2906 = vadd.f32 %v2783, %v2905
        %v2907 = vpop.f32.mrb[0].mxu0
        %v2908 = vadd.f32 %v2785, %v2907
        %v2909 = vpop.f32.mrb[0].mxu0
        %v2910 = vadd.f32 %v2787, %v2909
        %2911 = vmatprep.mubr.bf16.mxu0 0
        %2912 = vmatmul.mubr.bf16.gmra.mrb[0].mxu0 %v1177
        %v2913 = vpop.f32.mrb[0].mxu0
        %v2914 = vadd.f32 %v2791, %v2913
        %v2915 = vpop.f32.mrb[0].mxu0
        %v2916 = vadd.f32 %v2793, %v2915
        %v2917 = vpop.f32.mrb[0].mxu0
        %v2918 = vadd.f32 %v2795, %v2917
        %v2919 = vpop.f32.mrb[0].mxu0
        %v2920 = vadd.f32 %v2797, %v2919
        %2921 = vdwg.mxu0
        %2922 = vmatprep.subr.bf16.mxu0 %v2487
        %2923 = vmatpush1.bf16.msra.mxu0 %v2486
        %2924 = vmatprep.subr.bf16.mxu0 %v2491
        %2925 = vmatpush1.bf16.msra.mxu0 %v2490
        %2926 = vmatprep.subr.bf16.mxu0 %v2495
        %2927 = vmatpush1.bf16.msra.mxu0 %v2494
        %2928 = vmatprep.subr.bf16.mxu0 %v2499
        %2929 = vmatpush1.bf16.msra.mxu0 %v2498
        %2930 = vmatprep.subr.bf16.mxu0 %v2503
        %2931 = vmatpush1.bf16.msra.mxu0 %v2502
        %2932 = vmatprep.subr.bf16.mxu0 %v2507
        %2933 = vmatpush1.bf16.msra.mxu0 %v2506
        %2934 = vmatprep.subr.bf16.mxu0 %v2511
        %2935 = vmatpush1.bf16.msra.mxu0 %v2510
        %2936 = vmatprep.subr.bf16.mxu0 %v2515
        %2937 = vmatpush1.bf16.msra.mxu0 %v2514
        %2938 = vmatprep.subr.bf16.mxu0 %v2519
        %2939 = vmatpush1.bf16.msra.mxu0 %v2518
        %2940 = vmatprep.subr.bf16.mxu0 %v2523
        %2941 = vmatpush1.bf16.msra.mxu0 %v2522
        %2942 = vmatprep.subr.bf16.mxu0 %v2527
        %2943 = vmatpush1.bf16.msra.mxu0 %v2526
        %2944 = vmatprep.subr.bf16.mxu0 %v2531
        %2945 = vmatpush1.bf16.msra.mxu0 %v2530
        %2946 = vmatprep.subr.bf16.mxu0 %v2535
        %2947 = vmatpush1.bf16.msra.mxu0 %v2534
        %2948 = vmatprep.subr.bf16.mxu0 %v2539
        %2949 = vmatpush1.bf16.msra.mxu0 %v2538
        %2950 = vmatprep.subr.bf16.mxu0 %v2543
        %2951 = vmatpush1.bf16.msra.mxu0 %v2542
        %2952 = vmatprep.subr.bf16.mxu0 %v2547
        %2953 = vmatpush1.bf16.msra.mxu0 %v2546
        %2954 = vmatprep.mubr.bf16.mxu0 %v2191
        %2955 = vmatmul.mubr.bf16.gmra.mrb[0].mxu0 %v2190
        %v2956 = vpop.f32.mrb[0].mxu0
        %v2957 = vadd.f32 %v2092, %v2956
        %v2958 = vpop.f32.mrb[0].mxu0
        %v2959 = vadd.f32 %v2094, %v2958
        %v2960 = vpop.f32.mrb[0].mxu0
        %v2961 = vadd.f32 %v2096, %v2960
        %v2962 = vpop.f32.mrb[0].mxu0
        %v2963 = vadd.f32 %v2098, %v2962
        %2964 = vmatprep.mubr.bf16.mxu0 %v1155
        %2965 = vmatmul.mubr.bf16.gmra.mrb[0].mxu0 %v1154
        %v2966 = vpop.f32.mrb[0].mxu0
        %v2967 = vadd.f32 %v2102, %v2966
        %v2968 = vpop.f32.mrb[0].mxu0
        %v2969 = vadd.f32 %v2104, %v2968
        %v2970 = vpop.f32.mrb[0].mxu0
        %v2971 = vadd.f32 %v2106, %v2970
        %v2972 = vpop.f32.mrb[0].mxu0
        %v2973 = vadd.f32 %v2108, %v2972
        %2974 = vmatprep.mubr.bf16.mxu0 %v1158
        %2975 = vmatmul.mubr.bf16.gmra.mrb[0].mxu0 %v1157
        %v2976 = vpop.f32.mrb[0].mxu0
        %v2977 = vadd.f32 %v2112, %v2976
        %v2978 = vpop.f32.mrb[0].mxu0
        %v2979 = vadd.f32 %v2114, %v2978
        %v2980 = vpop.f32.mrb[0].mxu0
        %v2981 = vadd.f32 %v2116, %v2980
        %v2982 = vpop.f32.mrb[0].mxu0
        %v2983 = vadd.f32 %v2118, %v2982
        %2984 = vmatprep.mubr.bf16.mxu0 %v1161
        %2985 = vmatmul.mubr.bf16.gmra.mrb[0].mxu0 %v1160
        %v2986 = vpop.f32.mrb[0].mxu0
        %v2987 = vadd.f32 %v2122, %v2986
        %v2988 = vpop.f32.mrb[0].mxu0
        %v2989 = vadd.f32 %v2124, %v2988
        %v2990 = vpop.f32.mrb[0].mxu0
        %v2991 = vadd.f32 %v2126, %v2990
        %v2992 = vpop.f32.mrb[0].mxu0
        %v2993 = vadd.f32 %v2128, %v2992
        %2994 = vmatprep.mubr.bf16.mxu0 %v1164
        %2995 = vmatmul.mubr.bf16.gmra.mrb[0].mxu0 %v1163
        %v2996 = vpop.f32.mrb[0].mxu0
        %v2997 = vadd.f32 %v2132, %v2996
        %v2998 = vpop.f32.mrb[0].mxu0
        %v2999 = vadd.f32 %v2134, %v2998
        %v3000 = vpop.f32.mrb[0].mxu0
        %v3001 = vadd.f32 %v2136, %v3000
        %v3002 = vpop.f32.mrb[0].mxu0
        %v3003 = vadd.f32 %v2138, %v3002
        %3004 = vmatprep.mubr.bf16.mxu0 %v1167
        %3005 = vmatmul.mubr.bf16.gmra.mrb[0].mxu0 %v1166
        %v3006 = vpop.f32.mrb[0].mxu0
        %v3007 = vadd.f32 %v2142, %v3006
        %v3008 = vpop.f32.mrb[0].mxu0
        %v3009 = vadd.f32 %v2144, %v3008
        %v3010 = vpop.f32.mrb[0].mxu0
        %v3011 = vadd.f32 %v2146, %v3010
        %v3012 = vpop.f32.mrb[0].mxu0
        %v3013 = vadd.f32 %v2148, %v3012
        %3014 = vmatprep.mubr.bf16.mxu0 %v1170
        %3015 = vmatmul.mubr.bf16.gmra.mrb[0].mxu0 %v1169
        %v3016 = vpop.f32.mrb[0].mxu0
        %v3017 = vadd.f32 %v2152, %v3016
        %v3018 = vpop.f32.mrb[0].mxu0
        %v3019 = vadd.f32 %v2154, %v3018
        %v3020 = vpop.f32.mrb[0].mxu0
        %v3021 = vadd.f32 %v2156, %v3020
        %v3022 = vpop.f32.mrb[0].mxu0
        %v3023 = vadd.f32 %v2158, %v3022
        %3024 = vmatprep.mubr.bf16.mxu0 %v1173
        %3025 = vmatmul.mubr.bf16.gmra.mrb[0].mxu0 %v1172
        %v3026 = vpop.f32.mrb[0].mxu0
        %v3027 = vadd.f32 %v2162, %v3026
        %v3028 = vpop.f32.mrb[0].mxu0
        %v3029 = vadd.f32 %v2164, %v3028
        %v3030 = vpop.f32.mrb[0].mxu0
        %v3031 = vadd.f32 %v2166, %v3030
        %v3032 = vpop.f32.mrb[0].mxu0
        %v3033 = vadd.f32 %v2168, %v3032
        %3034 = vmatprep.mubr.bf16.mxu0 %v1176
        %3035 = vmatmul.mubr.bf16.gmra.mrb[0].mxu0 %v1175
        %v3036 = vpop.f32.mrb[0].mxu0
        %v3037 = vadd.f32 %v2172, %v3036
        %v3038 = vpop.f32.mrb[0].mxu0
        %v3039 = vadd.f32 %v2174, %v3038
        %v3040 = vpop.f32.mrb[0].mxu0
        %v3041 = vadd.f32 %v2176, %v3040
        %v3042 = vpop.f32.mrb[0].mxu0
        %v3043 = vadd.f32 %v2178, %v3042
        %3044 = vdwg.mxu0
        %3045 = vmatprep.subr.bf16.mxu0 %v2551
        %3046 = vmatpush1.bf16.msra.mxu0 %v2550
        %3047 = vmatprep.subr.bf16.mxu0 %v2555
        %3048 = vmatpush1.bf16.msra.mxu0 %v2554
        %3049 = vmatprep.subr.bf16.mxu0 %v2559
        %3050 = vmatpush1.bf16.msra.mxu0 %v2558
        %3051 = vmatprep.subr.bf16.mxu0 %v2563
        %3052 = vmatpush1.bf16.msra.mxu0 %v2562
        %3053 = vmatprep.subr.bf16.mxu0 %v2567
        %3054 = vmatpush1.bf16.msra.mxu0 %v2566
        %3055 = vmatprep.subr.bf16.mxu0 %v2571
        %3056 = vmatpush1.bf16.msra.mxu0 %v2570
        %3057 = vmatprep.subr.bf16.mxu0 %v2575
        %3058 = vmatpush1.bf16.msra.mxu0 %v2574
        %3059 = vmatprep.subr.bf16.mxu0 %v2579
        %3060 = vmatpush1.bf16.msra.mxu0 %v2578
        %3061 = vmatprep.subr.bf16.mxu0 0
        %3062 = vmatpush1.bf16.msra.mxu0 0
        %3063 = vmatprep.subr.bf16.mxu0 0
        %3064 = vmatpush1.bf16.msra.mxu0 0
        %3065 = vmatprep.subr.bf16.mxu0 0
        %3066 = vmatpush1.bf16.msra.mxu0 0
        %3067 = vmatprep.subr.bf16.mxu0 0
        %3068 = vmatpush1.bf16.msra.mxu0 0
        %3069 = vmatprep.subr.bf16.mxu0 0
        %3070 = vmatpush1.bf16.msra.mxu0 0
        %3071 = vmatprep.subr.bf16.mxu0 0
        %3072 = vmatpush1.bf16.msra.mxu0 0
        %3073 = vmatprep.subr.bf16.mxu0 0
        %3074 = vmatpush1.bf16.msra.mxu0 0
        %3075 = vmatprep.subr.bf16.mxu0 0
        %3076 = vmatpush1.bf16.msra.mxu0 0
        %3077 = vmatprep.mubr.bf16.mxu0 0
        %3078 = vmatmul.mubr.bf16.gmra.mrb[0].mxu0 %v2192
        %v3079 = vpop.f32.mrb[0].mxu0
        %v3080 = vadd.f32 %v2957, %v3079
        %v3081 = vpop.f32.mrb[0].mxu0
        %v3082 = vadd.f32 %v2959, %v3081
        %v3083 = vpop.f32.mrb[0].mxu0
        %v3084 = vadd.f32 %v2961, %v3083
        %v3085 = vpop.f32.mrb[0].mxu0
        %v3086 = vadd.f32 %v2963, %v3085
        %3087 = vmatprep.mubr.bf16.mxu0 0
        %3088 = vmatmul.mubr.bf16.gmra.mrb[0].mxu0 %v1156
        %v3089 = vpop.f32.mrb[0].mxu0
        %v3090 = vadd.f32 %v2967, %v3089
        %v3091 = vpop.f32.mrb[0].mxu0
        %v3092 = vadd.f32 %v2969, %v3091
        %v3093 = vpop.f32.mrb[0].mxu0
        %v3094 = vadd.f32 %v2971, %v3093
        %v3095 = vpop.f32.mrb[0].mxu0
        %v3096 = vadd.f32 %v2973, %v3095
        %3097 = vmatprep.mubr.bf16.mxu0 0
        %3098 = vmatmul.mubr.bf16.gmra.mrb[0].mxu0 %v1159
        %v3099 = vpop.f32.mrb[0].mxu0
        %v3100 = vadd.f32 %v2977, %v3099
        %v3101 = vpop.f32.mrb[0].mxu0
        %v3102 = vadd.f32 %v2979, %v3101
        %v3103 = vpop.f32.mrb[0].mxu0
        %v3104 = vadd.f32 %v2981, %v3103
        %v3105 = vpop.f32.mrb[0].mxu0
        %v3106 = vadd.f32 %v2983, %v3105
        %3107 = vmatprep.mubr.bf16.mxu0 0
        %3108 = vmatmul.mubr.bf16.gmra.mrb[0].mxu0 %v1162
        %v3109 = vpop.f32.mrb[0].mxu0
        %v3110 = vadd.f32 %v2987, %v3109
        %v3111 = vpop.f32.mrb[0].mxu0
        %v3112 = vadd.f32 %v2989, %v3111
        %v3113 = vpop.f32.mrb[0].mxu0
        %v3114 = vadd.f32 %v2991, %v3113
        %v3115 = vpop.f32.mrb[0].mxu0
        %v3116 = vadd.f32 %v2993, %v3115
        %3117 = vmatprep.mubr.bf16.mxu0 0
        %3118 = vmatmul.mubr.bf16.gmra.mrb[0].mxu0 %v1165
        %v3119 = vpop.f32.mrb[0].mxu0
        %v3120 = vadd.f32 %v2997, %v3119
        %v3121 = vpop.f32.mrb[0].mxu0
        %v3122 = vadd.f32 %v2999, %v3121
        %v3123 = vpop.f32.mrb[0].mxu0
        %v3124 = vadd.f32 %v3001, %v3123
        %v3125 = vpop.f32.mrb[0].mxu0
        %v3126 = vadd.f32 %v3003, %v3125
        %3127 = vmatprep.mubr.bf16.mxu0 0
        %3128 = vmatmul.mubr.bf16.gmra.mrb[0].mxu0 %v1168
        %v3129 = vpop.f32.mrb[0].mxu0
        %v3130 = vadd.f32 %v3007, %v3129
        %v3131 = vpop.f32.mrb[0].mxu0
        %v3132 = vadd.f32 %v3009, %v3131
        %v3133 = vpop.f32.mrb[0].mxu0
        %v3134 = vadd.f32 %v3011, %v3133
        %v3135 = vpop.f32.mrb[0].mxu0
        %v3136 = vadd.f32 %v3013, %v3135
        %3137 = vmatprep.mubr.bf16.mxu0 0
        %3138 = vmatmul.mubr.bf16.gmra.mrb[0].mxu0 %v1171
        %v3139 = vpop.f32.mrb[0].mxu0
        %v3140 = vadd.f32 %v3017, %v3139
        %v3141 = vpop.f32.mrb[0].mxu0
        %v3142 = vadd.f32 %v3019, %v3141
        %v3143 = vpop.f32.mrb[0].mxu0
        %v3144 = vadd.f32 %v3021, %v3143
        %v3145 = vpop.f32.mrb[0].mxu0
        %v3146 = vadd.f32 %v3023, %v3145
        %3147 = vmatprep.mubr.bf16.mxu0 0
        %3148 = vmatmul.mubr.bf16.gmra.mrb[0].mxu0 %v1174
        %v3149 = vpop.f32.mrb[0].mxu0
        %v3150 = vadd.f32 %v3027, %v3149
        %v3151 = vpop.f32.mrb[0].mxu0
        %v3152 = vadd.f32 %v3029, %v3151
        %v3153 = vpop.f32.mrb[0].mxu0
        %v3154 = vadd.f32 %v3031, %v3153
        %v3155 = vpop.f32.mrb[0].mxu0
        %v3156 = vadd.f32 %v3033, %v3155
        %3157 = vmatprep.mubr.bf16.mxu0 0
        %3158 = vmatmul.mubr.bf16.gmra.mrb[0].mxu0 %v1177
        %v3159 = vpop.f32.mrb[0].mxu0
        %v3160 = vadd.f32 %v3037, %v3159
        %v3161 = vpop.f32.mrb[0].mxu0
        %v3162 = vadd.f32 %v3039, %v3161
        %v3163 = vpop.f32.mrb[0].mxu0
        %v3164 = vadd.f32 %v3041, %v3163
        %v3165 = vpop.f32.mrb[0].mxu0
        %v3166 = vadd.f32 %v3043, %v3165
        %3167 = vdwg.mxu0
        %v3168 = vld [vmem:[%s0 + $0x30] sm:$0xff]
        %v3169 = vld [vmem:[%s0 + $0x38] sm:$0xf]
        %v3170 = vld [vmem:[%s0 + $0x3c] sm:$0xff]
        %v3171 = vld [vmem:[%s0 + $0x44] sm:$0xf]
        %v3172 = vld [vmem:[%s0 + $0x48] sm:$0xff]
        %v3173 = vld [vmem:[%s0 + $0x50] sm:$0xf]
        %v3174 = vld [vmem:[%s0 + $0x54] sm:$0xff]
        %v3175 = vld [vmem:[%s0 + $0x5c] sm:$0xf]
        %v3176 = vld [vmem:[%s0 + $0x60] sm:$0xff]
        %v3177 = vld [vmem:[%s0 + $0x68] sm:$0xf]
        %v3178 = vld [vmem:[%s0 + $0x6c] sm:$0xff]
        %v3179 = vld [vmem:[%s0 + $0x74] sm:$0xf]
        %v3180 = vld [vmem:[%s0 + $0x78] sm:$0xff]
        %v3181 = vld [vmem:[%s0 + $0x80] sm:$0xf]
        %v3182 = vld [vmem:[%s0 + $0x84] sm:$0xff]
        %v3183 = vld [vmem:[%s0 + $0x8c] sm:$0xf]
        %v3184 = vld [vmem:[%s0 + $0x90] sm:$0xff]
        %v3185 = vld [vmem:[%s0 + $0x98] sm:$0xf]
        %v3186 = vld [vmem:[%s0 + $0x9c] sm:$0xff]
        %v3187 = vld [vmem:[%s0 + $0xa4] sm:$0xf]
        %v3188 = vld [vmem:[%s0 + $0xa8] sm:$0xff]
        %v3189 = vld [vmem:[%s0 + $0xb0] sm:$0xf]
        %v3190 = vld [vmem:[%s0 + $0xb4] sm:$0xff]
        %v3191 = vld [vmem:[%s0 + $0xbc] sm:$0xf]
        %v3192 = vld [vmem:[%s0 + $0xc0] sm:$0xff]
        %v3193 = vld [vmem:[%s0 + $0xc8] sm:$0xf]
        %v3194 = vld [vmem:[%s0 + $0xcc] sm:$0xff]
        %v3195 = vld [vmem:[%s0 + $0xd4] sm:$0xf]
        %v3196 = vld [vmem:[%s0 + $0xd8] sm:$0xff]
        %v3197 = vld [vmem:[%s0 + $0xe0] sm:$0xf]
        %v3198 = vld [vmem:[%s0 + $0xe4] sm:$0xff]
        %v3199 = vld [vmem:[%s0 + $0xec] sm:$0xf]
        %v3200 = vld [vmem:[%s0 + $0xf0] sm:$0xff]
        %v3201 = vld [vmem:[%s0 + $0xf8] sm:$0xf]
        %v3202 = vld [vmem:[%s0 + $0xfc] sm:$0xff]
        %v3203 = vld [vmem:[%s0 + $0x104] sm:$0xf]
        %v3204 = vld [vmem:[%s774 + $0x600] sm:$0xff]
        %v3205 = vld [vmem:[%s774 + $0x608] sm:$0xff]
        %v3206 = vld [vmem:[%s774 + $0x610] sm:$0xff]
        %v3207 = vld [vmem:[%s774 + $0x618] sm:$0xff]
        %v3208 = vld [vmem:[%s774 + $0x620] sm:$0xff]
        %v3209 = vld [vmem:[%s774 + $0x628] sm:$0xff]
        %v3210 = vld [vmem:[%s774 + $0x630] sm:$0xff]
        %v3211 = vld [vmem:[%s774 + $0x638] sm:$0xff]
        %v3212 = vld [vmem:[%s774 + $0x640] sm:$0xff]
        %v3213 = vld [vmem:[%s774 + $0x648] sm:$0xff]
        %v3214 = vld [vmem:[%s774 + $0x650] sm:$0xff]
        %v3215 = vld [vmem:[%s774 + $0x658] sm:$0xff]
        %v3216 = vld [vmem:[%s774 + $0x660] sm:$0xff]
        %v3217 = vld [vmem:[%s774 + $0x668] sm:$0xff]
        %v3218 = vld [vmem:[%s774 + $0x670] sm:$0xff]
        %v3219 = vld [vmem:[%s774 + $0x678] sm:$0xff]
        %v3220 = vld [vmem:[%s774 + $0x680] sm:$0xff]
        %v3221 = vld [vmem:[%s774 + $0x688] sm:$0xff]
        %v3222 = vld [vmem:[%s774 + $0x690] sm:$0xff]
        %v3223 = vld [vmem:[%s774 + $0x698] sm:$0xff]
        %v3224 = vld [vmem:[%s774 + $0x6a0] sm:$0xff]
        %v3225 = vld [vmem:[%s774 + $0x6a8] sm:$0xff]
        %v3226 = vld [vmem:[%s774 + $0x6b0] sm:$0xff]
        %v3227 = vld [vmem:[%s774 + $0x6b8] sm:$0xff]
        %v3228 = vld [vmem:[%s774 + $0x6c0] sm:$0xff]
        %v3229 = vld [vmem:[%s774 + $0x6c8] sm:$0xff]
        %v3230 = vld [vmem:[%s774 + $0x6d0] sm:$0xff]
        %v3231 = vld [vmem:[%s774 + $0x6d8] sm:$0xff]
        %v3232 = vld [vmem:[%s774 + $0x6e0] sm:$0xff]
        %v3233 = vld [vmem:[%s774 + $0x6e8] sm:$0xff]
        %v3234 = vld [vmem:[%s774 + $0x6f0] sm:$0xff]
        %v3235 = vld [vmem:[%s774 + $0x6f8] sm:$0xff]
        %v3236 = vld [vmem:[%s774 + $0x700] sm:$0xff]
        %v3237 = vld [vmem:[%s774 + $0x708] sm:$0xff]
        %v3238 = vld [vmem:[%s774 + $0x710] sm:$0xff]
        %v3239 = vld [vmem:[%s774 + $0x718] sm:$0xff]
        %v3240 = vld [vmem:[%s774 + $0x720] sm:$0xff]
        %v3241 = vld [vmem:[%s774 + $0x728] sm:$0xff]
        %v3242 = vld [vmem:[%s774 + $0x730] sm:$0xff]
        %v3243 = vld [vmem:[%s774 + $0x738] sm:$0xff]
        %v3244 = vld [vmem:[%s774 + $0x740] sm:$0xff]
        %v3245 = vld [vmem:[%s774 + $0x748] sm:$0xff]
        %v3246 = vld [vmem:[%s774 + $0x750] sm:$0xff]
        %v3247 = vld [vmem:[%s774 + $0x758] sm:$0xff]
        %v3248 = vld [vmem:[%s774 + $0x760] sm:$0xff]
        %v3249 = vld [vmem:[%s774 + $0x768] sm:$0xff]
        %v3250 = vld [vmem:[%s774 + $0x770] sm:$0xff]
        %v3251 = vld [vmem:[%s774 + $0x778] sm:$0xff]
        %v3252 = vld [vmem:[%s774 + $0x780] sm:$0xff]
        %v3253 = vld [vmem:[%s774 + $0x788] sm:$0xff]
        %v3254 = vld [vmem:[%s774 + $0x790] sm:$0xff]
        %v3255 = vld [vmem:[%s774 + $0x798] sm:$0xff]
        %v3256 = vld [vmem:[%s774 + $0x7a0] sm:$0xff]
        %v3257 = vld [vmem:[%s774 + $0x7a8] sm:$0xff]
        %v3258 = vld [vmem:[%s774 + $0x7b0] sm:$0xff]
        %v3259 = vld [vmem:[%s774 + $0x7b8] sm:$0xff]
        %v3260 = vld [vmem:[%s774 + $0x7c0] sm:$0xff]
        %v3261 = vld [vmem:[%s774 + $0x7c8] sm:$0xff]
        %v3262 = vld [vmem:[%s774 + $0x7d0] sm:$0xff]
        %v3263 = vld [vmem:[%s774 + $0x7d8] sm:$0xff]
        %v3264 = vld [vmem:[%s774 + $0x7e0] sm:$0xff]
        %v3265 = vld [vmem:[%s774 + $0x7e8] sm:$0xff]
        %v3266 = vld [vmem:[%s774 + $0x7f0] sm:$0xff]
        %v3267 = vld [vmem:[%s774 + $0x7f8] sm:$0xff]
        %v3268 = vld [vmem:[%s774 + $0x800] sm:$0xff]
        %v3269 = vld [vmem:[%s774 + $0x808] sm:$0xff]
        %v3270 = vld [vmem:[%s774 + $0x810] sm:$0xff]
        %v3271 = vld [vmem:[%s774 + $0x818] sm:$0xff]
        %v3272 = vld [vmem:[%s774 + $0x820] sm:$0xff]
        %v3273 = vld [vmem:[%s774 + $0x828] sm:$0xff]
        %v3274 = vld [vmem:[%s774 + $0x830] sm:$0xff]
        %v3275 = vld [vmem:[%s774 + $0x838] sm:$0xff]
        %v3276 = vld [vmem:[%s774 + $0x840] sm:$0xff]
        %v3277 = vld [vmem:[%s774 + $0x848] sm:$0xff]
        %v3278 = vld [vmem:[%s774 + $0x850] sm:$0xff]
        %v3279 = vld [vmem:[%s774 + $0x858] sm:$0xff]
        %v3280 = vld [vmem:[%s774 + $0x860] sm:$0xff]
        %v3281 = vld [vmem:[%s774 + $0x868] sm:$0xff]
        %v3282 = vld [vmem:[%s774 + $0x870] sm:$0xff]
        %v3283 = vld [vmem:[%s774 + $0x878] sm:$0xff]
        %v3284 = vld [vmem:[%s774 + $0x880] sm:$0xff]
        %v3285 = vld [vmem:[%s774 + $0x888] sm:$0xff]
        %v3286 = vld [vmem:[%s774 + $0x890] sm:$0xff]
        %v3287 = vld [vmem:[%s774 + $0x898] sm:$0xff]
        %v3288 = vld [vmem:[%s774 + $0x8a0] sm:$0xff]
        %v3289 = vld [vmem:[%s774 + $0x8a8] sm:$0xff]
        %v3290 = vld [vmem:[%s774 + $0x8b0] sm:$0xff]
        %v3291 = vld [vmem:[%s774 + $0x8b8] sm:$0xff]
        %v3292 = vld [vmem:[%s774 + $0x8c0] sm:$0xff]
        %v3293 = vld [vmem:[%s774 + $0x8c8] sm:$0xff]
        %v3294 = vld [vmem:[%s774 + $0x8d0] sm:$0xff]
        %v3295 = vld [vmem:[%s774 + $0x8d8] sm:$0xff]
        %v3296 = vld [vmem:[%s774 + $0x8e0] sm:$0xff]
        %v3297 = vld [vmem:[%s774 + $0x8e8] sm:$0xff]
        %v3298 = vld [vmem:[%s774 + $0x8f0] sm:$0xff]
        %v3299 = vld [vmem:[%s774 + $0x8f8] sm:$0xff]
        %v3336 = vunpack.c.l.b16 %v3168
        %v3337 = vunpack.c.h.b16 %v3168
        %v3338 = vunpack.c.l.b16 %v3169
        %v3339 = vunpack.c.l.b16 %v3170
        %v3340 = vunpack.c.h.b16 %v3170
        %v3341 = vunpack.c.l.b16 %v3171
        %v3342 = vunpack.c.l.b16 %v3172
        %v3343 = vunpack.c.h.b16 %v3172
        %v3344 = vunpack.c.l.b16 %v3173
        %v3345 = vunpack.c.l.b16 %v3174
        %v3346 = vunpack.c.h.b16 %v3174
        %v3347 = vunpack.c.l.b16 %v3175
        %v3348 = vunpack.c.l.b16 %v3176
        %v3349 = vunpack.c.h.b16 %v3176
        %v3350 = vunpack.c.l.b16 %v3177
        %v3351 = vunpack.c.l.b16 %v3178
        %v3352 = vunpack.c.h.b16 %v3178
        %v3353 = vunpack.c.l.b16 %v3179
        %v3354 = vunpack.c.l.b16 %v3180
        %v3355 = vunpack.c.h.b16 %v3180
        %v3356 = vunpack.c.l.b16 %v3181
        %v3357 = vunpack.c.l.b16 %v3182
        %v3358 = vunpack.c.h.b16 %v3182
        %v3359 = vunpack.c.l.b16 %v3183
        %v3360 = vunpack.c.l.b16 %v3184
        %v3361 = vunpack.c.h.b16 %v3184
        %v3362 = vunpack.c.l.b16 %v3185
        %v3363 = vunpack.c.l.b16 %v3186
        %v3364 = vunpack.c.h.b16 %v3186
        %v3365 = vunpack.c.l.b16 %v3187
        %v3366 = vunpack.c.l.b16 %v3188
        %v3367 = vunpack.c.h.b16 %v3188
        %v3368 = vunpack.c.l.b16 %v3189
        %v3369 = vunpack.c.l.b16 %v3190
        %v3370 = vunpack.c.h.b16 %v3190
        %v3371 = vunpack.c.l.b16 %v3191
        %v3372 = vunpack.c.l.b16 %v3192
        %v3373 = vunpack.c.h.b16 %v3192
        %v3374 = vunpack.c.l.b16 %v3193
        %v3375 = vunpack.c.l.b16 %v3194
        %v3376 = vunpack.c.h.b16 %v3194
        %v3377 = vunpack.c.l.b16 %v3195
        %v3378 = vunpack.c.l.b16 %v3196
        %v3379 = vunpack.c.h.b16 %v3196
        %v3380 = vunpack.c.l.b16 %v3197
        %v3381 = vunpack.c.l.b16 %v3198
        %v3382 = vunpack.c.h.b16 %v3198
        %v3383 = vunpack.c.l.b16 %v3199
        %v3384 = vunpack.c.l.b16 %v3200
        %v3385 = vunpack.c.h.b16 %v3200
        %v3386 = vunpack.c.l.b16 %v3201
        %v3387 = vunpack.c.l.b16 %v3202
        %v3388 = vunpack.c.h.b16 %v3202
        %v3389 = vunpack.c.l.b16 %v3203
        %v3390 = vpack.c.b16 %v3339, %v3336
        %v3391 = vpack.c.b16 %v3340, %v3337
        %v3392 = vpack.c.b16 %v3341, %v3338
        %v3393 = vpack.c.b16 %v3345, %v3342
        %v3394 = vpack.c.b16 %v3346, %v3343
        %v3395 = vpack.c.b16 %v3347, %v3344
        %v3396 = vpack.c.b16 %v3351, %v3348
        %v3397 = vpack.c.b16 %v3352, %v3349
        %v3398 = vpack.c.b16 %v3353, %v3350
        %v3399 = vpack.c.b16 %v3357, %v3354
        %v3400 = vpack.c.b16 %v3358, %v3355
        %v3401 = vpack.c.b16 %v3359, %v3356
        %v3402 = vpack.c.b16 %v3363, %v3360
        %v3403 = vpack.c.b16 %v3364, %v3361
        %v3404 = vpack.c.b16 %v3365, %v3362
        %v3405 = vpack.c.b16 %v3369, %v3366
        %v3406 = vpack.c.b16 %v3370, %v3367
        %v3407 = vpack.c.b16 %v3371, %v3368
        %v3408 = vpack.c.b16 %v3375, %v3372
        %v3409 = vpack.c.b16 %v3376, %v3373
        %v3410 = vpack.c.b16 %v3377, %v3374
        %v3411 = vpack.c.b16 %v3381, %v3378
        %v3412 = vpack.c.b16 %v3382, %v3379
        %v3413 = vpack.c.b16 %v3383, %v3380
        %v3414 = vpack.c.b16 %v3387, %v3384
        %v3415 = vpack.c.b16 %v3388, %v3385
        %v3416 = vpack.c.b16 %v3389, %v3386
        %v3540 = vunpack.c.l.b16 %v3204
        %v3541 = vunpack.c.h.b16 %v3204
        %v3542 = vunpack.c.l.b16 %v3205
        %v3543 = vunpack.c.h.b16 %v3205
        %v3544 = vunpack.c.l.b16 %v3206
        %v3545 = vunpack.c.h.b16 %v3206
        %v3546 = vunpack.c.l.b16 %v3207
        %v3547 = vunpack.c.h.b16 %v3207
        %v3548 = vunpack.c.l.b16 %v3208
        %v3549 = vunpack.c.h.b16 %v3208
        %v3550 = vunpack.c.l.b16 %v3209
        %v3551 = vunpack.c.h.b16 %v3209
        %v3552 = vunpack.c.l.b16 %v3210
        %v3553 = vunpack.c.h.b16 %v3210
        %v3554 = vunpack.c.l.b16 %v3211
        %v3555 = vunpack.c.h.b16 %v3211
        %v3556 = vunpack.c.l.b16 %v3212
        %v3557 = vunpack.c.h.b16 %v3212
        %v3558 = vunpack.c.l.b16 %v3213
        %v3559 = vunpack.c.h.b16 %v3213
        %v3560 = vunpack.c.l.b16 %v3214
        %v3561 = vunpack.c.h.b16 %v3214
        %v3562 = vunpack.c.l.b16 %v3215
        %v3563 = vunpack.c.h.b16 %v3215
        %v3564 = vunpack.c.l.b16 %v3216
        %v3565 = vunpack.c.h.b16 %v3216
        %v3566 = vunpack.c.l.b16 %v3217
        %v3567 = vunpack.c.h.b16 %v3217
        %v3568 = vunpack.c.l.b16 %v3218
        %v3569 = vunpack.c.h.b16 %v3218
        %v3570 = vunpack.c.l.b16 %v3219
        %v3571 = vunpack.c.h.b16 %v3219
        %v3572 = vunpack.c.l.b16 %v3220
        %v3573 = vunpack.c.h.b16 %v3220
        %v3574 = vunpack.c.l.b16 %v3221
        %v3575 = vunpack.c.h.b16 %v3221
        %v3576 = vunpack.c.l.b16 %v3222
        %v3577 = vunpack.c.h.b16 %v3222
        %v3578 = vunpack.c.l.b16 %v3223
        %v3579 = vunpack.c.h.b16 %v3223
        %v3580 = vunpack.c.l.b16 %v3224
        %v3581 = vunpack.c.h.b16 %v3224
        %v3582 = vunpack.c.l.b16 %v3225
        %v3583 = vunpack.c.h.b16 %v3225
        %v3584 = vunpack.c.l.b16 %v3226
        %v3585 = vunpack.c.h.b16 %v3226
        %v3586 = vunpack.c.l.b16 %v3227
        %v3587 = vunpack.c.h.b16 %v3227
        %v3588 = vunpack.c.l.b16 %v3228
        %v3589 = vunpack.c.h.b16 %v3228
        %v3590 = vunpack.c.l.b16 %v3229
        %v3591 = vunpack.c.h.b16 %v3229
        %v3592 = vunpack.c.l.b16 %v3230
        %v3593 = vunpack.c.h.b16 %v3230
        %v3594 = vunpack.c.l.b16 %v3231
        %v3595 = vunpack.c.h.b16 %v3231
        %v3596 = vunpack.c.l.b16 %v3232
        %v3597 = vunpack.c.h.b16 %v3232
        %v3598 = vunpack.c.l.b16 %v3233
        %v3599 = vunpack.c.h.b16 %v3233
        %v3600 = vunpack.c.l.b16 %v3234
        %v3601 = vunpack.c.h.b16 %v3234
        %v3602 = vunpack.c.l.b16 %v3235
        %v3603 = vunpack.c.h.b16 %v3235
        %v3604 = vunpack.c.l.b16 %v3236
        %v3605 = vunpack.c.h.b16 %v3236
        %v3606 = vunpack.c.l.b16 %v3237
        %v3607 = vunpack.c.h.b16 %v3237
        %v3608 = vunpack.c.l.b16 %v3238
        %v3609 = vunpack.c.h.b16 %v3238
        %v3610 = vunpack.c.l.b16 %v3239
        %v3611 = vunpack.c.h.b16 %v3239
        %v3612 = vunpack.c.l.b16 %v3240
        %v3613 = vunpack.c.h.b16 %v3240
        %v3614 = vunpack.c.l.b16 %v3241
        %v3615 = vunpack.c.h.b16 %v3241
        %v3616 = vunpack.c.l.b16 %v3242
        %v3617 = vunpack.c.h.b16 %v3242
        %v3618 = vunpack.c.l.b16 %v3243
        %v3619 = vunpack.c.h.b16 %v3243
        %v3620 = vunpack.c.l.b16 %v3244
        %v3621 = vunpack.c.h.b16 %v3244
        %v3622 = vunpack.c.l.b16 %v3245
        %v3623 = vunpack.c.h.b16 %v3245
        %v3624 = vunpack.c.l.b16 %v3246
        %v3625 = vunpack.c.h.b16 %v3246
        %v3626 = vunpack.c.l.b16 %v3247
        %v3627 = vunpack.c.h.b16 %v3247
        %v3628 = vunpack.c.l.b16 %v3248
        %v3629 = vunpack.c.h.b16 %v3248
        %v3630 = vunpack.c.l.b16 %v3249
        %v3631 = vunpack.c.h.b16 %v3249
        %v3632 = vunpack.c.l.b16 %v3250
        %v3633 = vunpack.c.h.b16 %v3250
        %v3634 = vunpack.c.l.b16 %v3251
        %v3635 = vunpack.c.h.b16 %v3251
        %v3636 = vunpack.c.l.b16 %v3252
        %v3637 = vunpack.c.h.b16 %v3252
        %v3638 = vunpack.c.l.b16 %v3253
        %v3639 = vunpack.c.h.b16 %v3253
        %v3640 = vunpack.c.l.b16 %v3254
        %v3641 = vunpack.c.h.b16 %v3254
        %v3642 = vunpack.c.l.b16 %v3255
        %v3643 = vunpack.c.h.b16 %v3255
        %v3644 = vunpack.c.l.b16 %v3256
        %v3645 = vunpack.c.h.b16 %v3256
        %v3646 = vunpack.c.l.b16 %v3257
        %v3647 = vunpack.c.h.b16 %v3257
        %v3648 = vunpack.c.l.b16 %v3258
        %v3649 = vunpack.c.h.b16 %v3258
        %v3650 = vunpack.c.l.b16 %v3259
        %v3651 = vunpack.c.h.b16 %v3259
        %v3652 = vunpack.c.l.b16 %v3260
        %v3653 = vunpack.c.h.b16 %v3260
        %v3654 = vunpack.c.l.b16 %v3261
        %v3655 = vunpack.c.h.b16 %v3261
        %v3656 = vunpack.c.l.b16 %v3262
        %v3657 = vunpack.c.h.b16 %v3262
        %v3658 = vunpack.c.l.b16 %v3263
        %v3659 = vunpack.c.h.b16 %v3263
        %v3660 = vunpack.c.l.b16 %v3264
        %v3661 = vunpack.c.h.b16 %v3264
        %v3662 = vunpack.c.l.b16 %v3265
        %v3663 = vunpack.c.h.b16 %v3265
        %v3664 = vunpack.c.l.b16 %v3266
        %v3665 = vunpack.c.h.b16 %v3266
        %v3666 = vunpack.c.l.b16 %v3267
        %v3667 = vunpack.c.h.b16 %v3267
        %v3668 = vunpack.c.l.b16 %v3268
        %v3669 = vunpack.c.h.b16 %v3268
        %v3670 = vunpack.c.l.b16 %v3269
        %v3671 = vunpack.c.h.b16 %v3269
        %v3672 = vunpack.c.l.b16 %v3270
        %v3673 = vunpack.c.h.b16 %v3270
        %v3674 = vunpack.c.l.b16 %v3271
        %v3675 = vunpack.c.h.b16 %v3271
        %v3676 = vunpack.c.l.b16 %v3272
        %v3677 = vunpack.c.h.b16 %v3272
        %v3678 = vunpack.c.l.b16 %v3273
        %v3679 = vunpack.c.h.b16 %v3273
        %v3680 = vunpack.c.l.b16 %v3274
        %v3681 = vunpack.c.h.b16 %v3274
        %v3682 = vunpack.c.l.b16 %v3275
        %v3683 = vunpack.c.h.b16 %v3275
        %v3684 = vunpack.c.l.b16 %v3276
        %v3685 = vunpack.c.h.b16 %v3276
        %v3686 = vunpack.c.l.b16 %v3277
        %v3687 = vunpack.c.h.b16 %v3277
        %v3688 = vunpack.c.l.b16 %v3278
        %v3689 = vunpack.c.h.b16 %v3278
        %v3690 = vunpack.c.l.b16 %v3279
        %v3691 = vunpack.c.h.b16 %v3279
        %v3692 = vunpack.c.l.b16 %v3280
        %v3693 = vunpack.c.h.b16 %v3280
        %v3694 = vunpack.c.l.b16 %v3281
        %v3695 = vunpack.c.h.b16 %v3281
        %v3696 = vunpack.c.l.b16 %v3282
        %v3697 = vunpack.c.h.b16 %v3282
        %v3698 = vunpack.c.l.b16 %v3283
        %v3699 = vunpack.c.h.b16 %v3283
        %v3700 = vunpack.c.l.b16 %v3284
        %v3701 = vunpack.c.h.b16 %v3284
        %v3702 = vunpack.c.l.b16 %v3285
        %v3703 = vunpack.c.h.b16 %v3285
        %v3704 = vunpack.c.l.b16 %v3286
        %v3705 = vunpack.c.h.b16 %v3286
        %v3706 = vunpack.c.l.b16 %v3287
        %v3707 = vunpack.c.h.b16 %v3287
        %v3708 = vunpack.c.l.b16 %v3288
        %v3709 = vunpack.c.h.b16 %v3288
        %v3710 = vunpack.c.l.b16 %v3289
        %v3711 = vunpack.c.h.b16 %v3289
        %v3712 = vunpack.c.l.b16 %v3290
        %v3713 = vunpack.c.h.b16 %v3290
        %v3714 = vunpack.c.l.b16 %v3291
        %v3715 = vunpack.c.h.b16 %v3291
        %v3716 = vunpack.c.l.b16 %v3292
        %v3717 = vunpack.c.h.b16 %v3292
        %v3718 = vunpack.c.l.b16 %v3293
        %v3719 = vunpack.c.h.b16 %v3293
        %v3720 = vunpack.c.l.b16 %v3294
        %v3721 = vunpack.c.h.b16 %v3294
        %v3722 = vunpack.c.l.b16 %v3295
        %v3723 = vunpack.c.h.b16 %v3295
        %v3724 = vunpack.c.l.b16 %v3296
        %v3725 = vunpack.c.h.b16 %v3296
        %v3726 = vunpack.c.l.b16 %v3297
        %v3727 = vunpack.c.h.b16 %v3297
        %v3728 = vunpack.c.l.b16 %v3298
        %v3729 = vunpack.c.h.b16 %v3298
        %v3730 = vunpack.c.l.b16 %v3299
        %v3731 = vunpack.c.h.b16 %v3299
        %v3732 = vpack.c.b16 %v3544, %v3540
        %v3733 = vpack.c.b16 %v3545, %v3541
        %v3734 = vpack.c.b16 %v3546, %v3542
        %v3735 = vpack.c.b16 %v3547, %v3543
        %v3736 = vpack.c.b16 %v3552, %v3548
        %v3737 = vpack.c.b16 %v3553, %v3549
        %v3738 = vpack.c.b16 %v3554, %v3550
        %v3739 = vpack.c.b16 %v3555, %v3551
        %v3740 = vpack.c.b16 %v3560, %v3556
        %v3741 = vpack.c.b16 %v3561, %v3557
        %v3742 = vpack.c.b16 %v3562, %v3558
        %v3743 = vpack.c.b16 %v3563, %v3559
        %v3744 = vpack.c.b16 %v3568, %v3564
        %v3745 = vpack.c.b16 %v3569, %v3565
        %v3746 = vpack.c.b16 %v3570, %v3566
        %v3747 = vpack.c.b16 %v3571, %v3567
        %v3748 = vpack.c.b16 %v3576, %v3572
        %v3749 = vpack.c.b16 %v3577, %v3573
        %v3750 = vpack.c.b16 %v3578, %v3574
        %v3751 = vpack.c.b16 %v3579, %v3575
        %v3752 = vpack.c.b16 %v3584, %v3580
        %v3753 = vpack.c.b16 %v3585, %v3581
        %v3754 = vpack.c.b16 %v3586, %v3582
        %v3755 = vpack.c.b16 %v3587, %v3583
        %v3756 = vpack.c.b16 %v3592, %v3588
        %v3757 = vpack.c.b16 %v3593, %v3589
        %v3758 = vpack.c.b16 %v3594, %v3590
        %v3759 = vpack.c.b16 %v3595, %v3591
        %v3760 = vpack.c.b16 %v3600, %v3596
        %v3761 = vpack.c.b16 %v3601, %v3597
        %v3762 = vpack.c.b16 %v3602, %v3598
        %v3763 = vpack.c.b16 %v3603, %v3599
        %v3764 = vpack.c.b16 %v3608, %v3604
        %v3765 = vpack.c.b16 %v3609, %v3605
        %v3766 = vpack.c.b16 %v3610, %v3606
        %v3767 = vpack.c.b16 %v3611, %v3607
        %v3768 = vpack.c.b16 %v3616, %v3612
        %v3769 = vpack.c.b16 %v3617, %v3613
        %v3770 = vpack.c.b16 %v3618, %v3614
        %v3771 = vpack.c.b16 %v3619, %v3615
        %v3772 = vpack.c.b16 %v3624, %v3620
        %v3773 = vpack.c.b16 %v3625, %v3621
        %v3774 = vpack.c.b16 %v3626, %v3622
        %v3775 = vpack.c.b16 %v3627, %v3623
        %v3776 = vpack.c.b16 %v3632, %v3628
        %v3777 = vpack.c.b16 %v3633, %v3629
        %v3778 = vpack.c.b16 %v3634, %v3630
        %v3779 = vpack.c.b16 %v3635, %v3631
        %v3780 = vpack.c.b16 %v3640, %v3636
        %v3781 = vpack.c.b16 %v3641, %v3637
        %v3782 = vpack.c.b16 %v3642, %v3638
        %v3783 = vpack.c.b16 %v3643, %v3639
        %v3784 = vpack.c.b16 %v3648, %v3644
        %v3785 = vpack.c.b16 %v3649, %v3645
        %v3786 = vpack.c.b16 %v3650, %v3646
        %v3787 = vpack.c.b16 %v3651, %v3647
        %v3788 = vpack.c.b16 %v3656, %v3652
        %v3789 = vpack.c.b16 %v3657, %v3653
        %v3790 = vpack.c.b16 %v3658, %v3654
        %v3791 = vpack.c.b16 %v3659, %v3655
        %v3792 = vpack.c.b16 %v3664, %v3660
        %v3793 = vpack.c.b16 %v3665, %v3661
        %v3794 = vpack.c.b16 %v3666, %v3662
        %v3795 = vpack.c.b16 %v3667, %v3663
        %v3796 = vpack.c.b16 %v3672, %v3668
        %v3797 = vpack.c.b16 %v3673, %v3669
        %v3798 = vpack.c.b16 %v3674, %v3670
        %v3799 = vpack.c.b16 %v3675, %v3671
        %v3800 = vpack.c.b16 %v3680, %v3676
        %v3801 = vpack.c.b16 %v3681, %v3677
        %v3802 = vpack.c.b16 %v3682, %v3678
        %v3803 = vpack.c.b16 %v3683, %v3679
        %v3804 = vpack.c.b16 %v3688, %v3684
        %v3805 = vpack.c.b16 %v3689, %v3685
        %v3806 = vpack.c.b16 %v3690, %v3686
        %v3807 = vpack.c.b16 %v3691, %v3687
        %v3808 = vpack.c.b16 %v3696, %v3692
        %v3809 = vpack.c.b16 %v3697, %v3693
        %v3810 = vpack.c.b16 %v3698, %v3694
        %v3811 = vpack.c.b16 %v3699, %v3695
        %v3812 = vpack.c.b16 %v3704, %v3700
        %v3813 = vpack.c.b16 %v3705, %v3701
        %v3814 = vpack.c.b16 %v3706, %v3702
        %v3815 = vpack.c.b16 %v3707, %v3703
        %v3816 = vpack.c.b16 %v3712, %v3708
        %v3817 = vpack.c.b16 %v3713, %v3709
        %v3818 = vpack.c.b16 %v3714, %v3710
        %v3819 = vpack.c.b16 %v3715, %v3711
        %v3820 = vpack.c.b16 %v3720, %v3716
        %v3821 = vpack.c.b16 %v3721, %v3717
        %v3822 = vpack.c.b16 %v3722, %v3718
        %v3823 = vpack.c.b16 %v3723, %v3719
        %v3824 = vpack.c.b16 %v3728, %v3724
        %v3825 = vpack.c.b16 %v3729, %v3725
        %v3826 = vpack.c.b16 %v3730, %v3726
        %v3827 = vpack.c.b16 %v3731, %v3727
        %3924 = vmatprep.subr.bf16.mxu0 %v3733
        %3925 = vmatpush1.bf16.msra.mxu0 %v3732
        %3926 = vmatprep.subr.bf16.mxu0 %v3737
        %3927 = vmatpush1.bf16.msra.mxu0 %v3736
        %3928 = vmatprep.subr.bf16.mxu0 %v3741
        %3929 = vmatpush1.bf16.msra.mxu0 %v3740
        %3930 = vmatprep.subr.bf16.mxu0 %v3745
        %3931 = vmatpush1.bf16.msra.mxu0 %v3744
        %3932 = vmatprep.subr.bf16.mxu0 %v3749
        %3933 = vmatpush1.bf16.msra.mxu0 %v3748
        %3934 = vmatprep.subr.bf16.mxu0 %v3753
        %3935 = vmatpush1.bf16.msra.mxu0 %v3752
        %3936 = vmatprep.subr.bf16.mxu0 %v3757
        %3937 = vmatpush1.bf16.msra.mxu0 %v3756
        %3938 = vmatprep.subr.bf16.mxu0 %v3761
        %3939 = vmatpush1.bf16.msra.mxu0 %v3760
        %3940 = vmatprep.subr.bf16.mxu0 %v3765
        %3941 = vmatpush1.bf16.msra.mxu0 %v3764
        %3942 = vmatprep.subr.bf16.mxu0 %v3769
        %3943 = vmatpush1.bf16.msra.mxu0 %v3768
        %3944 = vmatprep.subr.bf16.mxu0 %v3773
        %3945 = vmatpush1.bf16.msra.mxu0 %v3772
        %3946 = vmatprep.subr.bf16.mxu0 %v3777
        %3947 = vmatpush1.bf16.msra.mxu0 %v3776
        %3948 = vmatprep.subr.bf16.mxu0 %v3781
        %3949 = vmatpush1.bf16.msra.mxu0 %v3780
        %3950 = vmatprep.subr.bf16.mxu0 %v3785
        %3951 = vmatpush1.bf16.msra.mxu0 %v3784
        %3952 = vmatprep.subr.bf16.mxu0 %v3789
        %3953 = vmatpush1.bf16.msra.mxu0 %v3788
        %3954 = vmatprep.subr.bf16.mxu0 %v3793
        %3955 = vmatpush1.bf16.msra.mxu0 %v3792
        %3956 = vmatprep.mubr.bf16.mxu0 %v3391
        %3957 = vmatmul.mubr.bf16.gmra.mrb[0].mxu0 %v3390
        %v3958 = vpop.f32.mrb[0].mxu0
        %v3959 = vadd.f32 0.0, %v3958
        %v3960 = vpop.f32.mrb[0].mxu0
        %v3961 = vadd.f32 0.0, %v3960
        %v3962 = vpop.f32.mrb[0].mxu0
        %v3963 = vadd.f32 0.0, %v3962
        %v3964 = vpop.f32.mrb[0].mxu0
        %v3965 = vadd.f32 0.0, %v3964
        %3966 = vmatprep.mubr.bf16.mxu0 %v3394
        %3967 = vmatmul.mubr.bf16.gmra.mrb[0].mxu0 %v3393
        %v3968 = vpop.f32.mrb[0].mxu0
        %v3969 = vadd.f32 0.0, %v3968
        %v3970 = vpop.f32.mrb[0].mxu0
        %v3971 = vadd.f32 0.0, %v3970
        %v3972 = vpop.f32.mrb[0].mxu0
        %v3973 = vadd.f32 0.0, %v3972
        %v3974 = vpop.f32.mrb[0].mxu0
        %v3975 = vadd.f32 0.0, %v3974
        %3976 = vmatprep.mubr.bf16.mxu0 %v3397
        %3977 = vmatmul.mubr.bf16.gmra.mrb[0].mxu0 %v3396
        %v3978 = vpop.f32.mrb[0].mxu0
        %v3979 = vadd.f32 0.0, %v3978
        %v3980 = vpop.f32.mrb[0].mxu0
        %v3981 = vadd.f32 0.0, %v3980
        %v3982 = vpop.f32.mrb[0].mxu0
        %v3983 = vadd.f32 0.0, %v3982
        %v3984 = vpop.f32.mrb[0].mxu0
        %v3985 = vadd.f32 0.0, %v3984
        %3986 = vmatprep.mubr.bf16.mxu0 %v3400
        %3987 = vmatmul.mubr.bf16.gmra.mrb[0].mxu0 %v3399
        %v3988 = vpop.f32.mrb[0].mxu0
        %v3989 = vadd.f32 0.0, %v3988
        %v3990 = vpop.f32.mrb[0].mxu0
        %v3991 = vadd.f32 0.0, %v3990
        %v3992 = vpop.f32.mrb[0].mxu0
        %v3993 = vadd.f32 0.0, %v3992
        %v3994 = vpop.f32.mrb[0].mxu0
        %v3995 = vadd.f32 0.0, %v3994
        %3996 = vmatprep.mubr.bf16.mxu0 %v3403
        %3997 = vmatmul.mubr.bf16.gmra.mrb[0].mxu0 %v3402
        %v3998 = vpop.f32.mrb[0].mxu0
        %v3999 = vadd.f32 0.0, %v3998
        %v4000 = vpop.f32.mrb[0].mxu0
        %v4001 = vadd.f32 0.0, %v4000
        %v4002 = vpop.f32.mrb[0].mxu0
        %v4003 = vadd.f32 0.0, %v4002
        %v4004 = vpop.f32.mrb[0].mxu0
        %v4005 = vadd.f32 0.0, %v4004
        %4006 = vmatprep.mubr.bf16.mxu0 %v3406
        %4007 = vmatmul.mubr.bf16.gmra.mrb[0].mxu0 %v3405
        %v4008 = vpop.f32.mrb[0].mxu0
        %v4009 = vadd.f32 0.0, %v4008
        %v4010 = vpop.f32.mrb[0].mxu0
        %v4011 = vadd.f32 0.0, %v4010
        %v4012 = vpop.f32.mrb[0].mxu0
        %v4013 = vadd.f32 0.0, %v4012
        %v4014 = vpop.f32.mrb[0].mxu0
        %v4015 = vadd.f32 0.0, %v4014
        %4016 = vmatprep.mubr.bf16.mxu0 %v3409
        %4017 = vmatmul.mubr.bf16.gmra.mrb[0].mxu0 %v3408
        %v4018 = vpop.f32.mrb[0].mxu0
        %v4019 = vadd.f32 0.0, %v4018
        %v4020 = vpop.f32.mrb[0].mxu0
        %v4021 = vadd.f32 0.0, %v4020
        %v4022 = vpop.f32.mrb[0].mxu0
        %v4023 = vadd.f32 0.0, %v4022
        %v4024 = vpop.f32.mrb[0].mxu0
        %v4025 = vadd.f32 0.0, %v4024
        %4026 = vmatprep.mubr.bf16.mxu0 %v3412
        %4027 = vmatmul.mubr.bf16.gmra.mrb[0].mxu0 %v3411
        %v4028 = vpop.f32.mrb[0].mxu0
        %v4029 = vadd.f32 0.0, %v4028
        %v4030 = vpop.f32.mrb[0].mxu0
        %v4031 = vadd.f32 0.0, %v4030
        %v4032 = vpop.f32.mrb[0].mxu0
        %v4033 = vadd.f32 0.0, %v4032
        %v4034 = vpop.f32.mrb[0].mxu0
        %v4035 = vadd.f32 0.0, %v4034
        %4036 = vmatprep.mubr.bf16.mxu0 %v3415
        %4037 = vmatmul.mubr.bf16.gmra.mrb[0].mxu0 %v3414
        %v4038 = vpop.f32.mrb[0].mxu0
        %v4039 = vadd.f32 0.0, %v4038
        %v4040 = vpop.f32.mrb[0].mxu0
        %v4041 = vadd.f32 0.0, %v4040
        %v4042 = vpop.f32.mrb[0].mxu0
        %v4043 = vadd.f32 0.0, %v4042
        %v4044 = vpop.f32.mrb[0].mxu0
        %v4045 = vadd.f32 0.0, %v4044
        %4046 = vdwg.mxu0
        %4047 = vmatprep.subr.bf16.mxu0 %v3797
        %4048 = vmatpush1.bf16.msra.mxu0 %v3796
        %4049 = vmatprep.subr.bf16.mxu0 %v3801
        %4050 = vmatpush1.bf16.msra.mxu0 %v3800
        %4051 = vmatprep.subr.bf16.mxu0 %v3805
        %4052 = vmatpush1.bf16.msra.mxu0 %v3804
        %4053 = vmatprep.subr.bf16.mxu0 %v3809
        %4054 = vmatpush1.bf16.msra.mxu0 %v3808
        %4055 = vmatprep.subr.bf16.mxu0 %v3813
        %4056 = vmatpush1.bf16.msra.mxu0 %v3812
        %4057 = vmatprep.subr.bf16.mxu0 %v3817
        %4058 = vmatpush1.bf16.msra.mxu0 %v3816
        %4059 = vmatprep.subr.bf16.mxu0 %v3821
        %4060 = vmatpush1.bf16.msra.mxu0 %v3820
        %4061 = vmatprep.subr.bf16.mxu0 %v3825
        %4062 = vmatpush1.bf16.msra.mxu0 %v3824
        %4063 = vmatprep.subr.bf16.mxu0 0
        %4064 = vmatpush1.bf16.msra.mxu0 0
        %4065 = vmatprep.subr.bf16.mxu0 0
        %4066 = vmatpush1.bf16.msra.mxu0 0
        %4067 = vmatprep.subr.bf16.mxu0 0
        %4068 = vmatpush1.bf16.msra.mxu0 0
        %4069 = vmatprep.subr.bf16.mxu0 0
        %4070 = vmatpush1.bf16.msra.mxu0 0
        %4071 = vmatprep.subr.bf16.mxu0 0
        %4072 = vmatpush1.bf16.msra.mxu0 0
        %4073 = vmatprep.subr.bf16.mxu0 0
        %4074 = vmatpush1.bf16.msra.mxu0 0
        %4075 = vmatprep.subr.bf16.mxu0 0
        %4076 = vmatpush1.bf16.msra.mxu0 0
        %4077 = vmatprep.subr.bf16.mxu0 0
        %4078 = vmatpush1.bf16.msra.mxu0 0
        %4079 = vmatprep.mubr.bf16.mxu0 0
        %4080 = vmatmul.mubr.bf16.gmra.mrb[0].mxu0 %v3392
        %v4081 = vpop.f32.mrb[0].mxu0
        %v4082 = vadd.f32 %v3959, %v4081
        %v4083 = vpop.f32.mrb[0].mxu0
        %v4084 = vadd.f32 %v3961, %v4083
        %v4085 = vpop.f32.mrb[0].mxu0
        %v4086 = vadd.f32 %v3963, %v4085
        %v4087 = vpop.f32.mrb[0].mxu0
        %v4088 = vadd.f32 %v3965, %v4087
        %4089 = vmatprep.mubr.bf16.mxu0 0
        %4090 = vmatmul.mubr.bf16.gmra.mrb[0].mxu0 %v3395
        %v4091 = vpop.f32.mrb[0].mxu0
        %v4092 = vadd.f32 %v3969, %v4091
        %v4093 = vpop.f32.mrb[0].mxu0
        %v4094 = vadd.f32 %v3971, %v4093
        %v4095 = vpop.f32.mrb[0].mxu0
        %v4096 = vadd.f32 %v3973, %v4095
        %v4097 = vpop.f32.mrb[0].mxu0
        %v4098 = vadd.f32 %v3975, %v4097
        %4099 = vmatprep.mubr.bf16.mxu0 0
        %4100 = vmatmul.mubr.bf16.gmra.mrb[0].mxu0 %v3398
        %v4101 = vpop.f32.mrb[0].mxu0
        %v4102 = vadd.f32 %v3979, %v4101
        %v4103 = vpop.f32.mrb[0].mxu0
        %v4104 = vadd.f32 %v3981, %v4103
        %v4105 = vpop.f32.mrb[0].mxu0
        %v4106 = vadd.f32 %v3983, %v4105
        %v4107 = vpop.f32.mrb[0].mxu0
        %v4108 = vadd.f32 %v3985, %v4107
        %4109 = vmatprep.mubr.bf16.mxu0 0
        %4110 = vmatmul.mubr.bf16.gmra.mrb[0].mxu0 %v3401
        %v4111 = vpop.f32.mrb[0].mxu0
        %v4112 = vadd.f32 %v3989, %v4111
        %v4113 = vpop.f32.mrb[0].mxu0
        %v4114 = vadd.f32 %v3991, %v4113
        %v4115 = vpop.f32.mrb[0].mxu0
        %v4116 = vadd.f32 %v3993, %v4115
        %v4117 = vpop.f32.mrb[0].mxu0
        %v4118 = vadd.f32 %v3995, %v4117
        %4119 = vmatprep.mubr.bf16.mxu0 0
        %4120 = vmatmul.mubr.bf16.gmra.mrb[0].mxu0 %v3404
        %v4121 = vpop.f32.mrb[0].mxu0
        %v4122 = vadd.f32 %v3999, %v4121
        %v4123 = vpop.f32.mrb[0].mxu0
        %v4124 = vadd.f32 %v4001, %v4123
        %v4125 = vpop.f32.mrb[0].mxu0
        %v4126 = vadd.f32 %v4003, %v4125
        %v4127 = vpop.f32.mrb[0].mxu0
        %v4128 = vadd.f32 %v4005, %v4127
        %4129 = vmatprep.mubr.bf16.mxu0 0
        %4130 = vmatmul.mubr.bf16.gmra.mrb[0].mxu0 %v3407
        %v4131 = vpop.f32.mrb[0].mxu0
        %v4132 = vadd.f32 %v4009, %v4131
        %v4133 = vpop.f32.mrb[0].mxu0
        %v4134 = vadd.f32 %v4011, %v4133
        %v4135 = vpop.f32.mrb[0].mxu0
        %v4136 = vadd.f32 %v4013, %v4135
        %v4137 = vpop.f32.mrb[0].mxu0
        %v4138 = vadd.f32 %v4015, %v4137
        %4139 = vmatprep.mubr.bf16.mxu0 0
        %4140 = vmatmul.mubr.bf16.gmra.mrb[0].mxu0 %v3410
        %v4141 = vpop.f32.mrb[0].mxu0
        %v4142 = vadd.f32 %v4019, %v4141
        %v4143 = vpop.f32.mrb[0].mxu0
        %v4144 = vadd.f32 %v4021, %v4143
        %v4145 = vpop.f32.mrb[0].mxu0
        %v4146 = vadd.f32 %v4023, %v4145
        %v4147 = vpop.f32.mrb[0].mxu0
        %v4148 = vadd.f32 %v4025, %v4147
        %4149 = vmatprep.mubr.bf16.mxu0 0
        %4150 = vmatmul.mubr.bf16.gmra.mrb[0].mxu0 %v3413
        %v4151 = vpop.f32.mrb[0].mxu0
        %v4152 = vadd.f32 %v4029, %v4151
        %v4153 = vpop.f32.mrb[0].mxu0
        %v4154 = vadd.f32 %v4031, %v4153
        %v4155 = vpop.f32.mrb[0].mxu0
        %v4156 = vadd.f32 %v4033, %v4155
        %v4157 = vpop.f32.mrb[0].mxu0
        %v4158 = vadd.f32 %v4035, %v4157
        %4159 = vmatprep.mubr.bf16.mxu0 0
        %4160 = vmatmul.mubr.bf16.gmra.mrb[0].mxu0 %v3416
        %v4161 = vpop.f32.mrb[0].mxu0
        %v4162 = vadd.f32 %v4039, %v4161
        %v4163 = vpop.f32.mrb[0].mxu0
        %v4164 = vadd.f32 %v4041, %v4163
        %v4165 = vpop.f32.mrb[0].mxu0
        %v4166 = vadd.f32 %v4043, %v4165
        %v4167 = vpop.f32.mrb[0].mxu0
        %v4168 = vadd.f32 %v4045, %v4167
        %4169 = vdwg.mxu0
        %4170 = vmatprep.subr.bf16.mxu0 %v3735
        %4171 = vmatpush1.bf16.msra.mxu0 %v3734
        %4172 = vmatprep.subr.bf16.mxu0 %v3739
        %4173 = vmatpush1.bf16.msra.mxu0 %v3738
        %4174 = vmatprep.subr.bf16.mxu0 %v3743
        %4175 = vmatpush1.bf16.msra.mxu0 %v3742
        %4176 = vmatprep.subr.bf16.mxu0 %v3747
        %4177 = vmatpush1.bf16.msra.mxu0 %v3746
        %4178 = vmatprep.subr.bf16.mxu0 %v3751
        %4179 = vmatpush1.bf16.msra.mxu0 %v3750
        %4180 = vmatprep.subr.bf16.mxu0 %v3755
        %4181 = vmatpush1.bf16.msra.mxu0 %v3754
        %4182 = vmatprep.subr.bf16.mxu0 %v3759
        %4183 = vmatpush1.bf16.msra.mxu0 %v3758
        %4184 = vmatprep.subr.bf16.mxu0 %v3763
        %4185 = vmatpush1.bf16.msra.mxu0 %v3762
        %4186 = vmatprep.subr.bf16.mxu0 %v3767
        %4187 = vmatpush1.bf16.msra.mxu0 %v3766
        %4188 = vmatprep.subr.bf16.mxu0 %v3771
        %4189 = vmatpush1.bf16.msra.mxu0 %v3770
        %4190 = vmatprep.subr.bf16.mxu0 %v3775
        %4191 = vmatpush1.bf16.msra.mxu0 %v3774
        %4192 = vmatprep.subr.bf16.mxu0 %v3779
        %4193 = vmatpush1.bf16.msra.mxu0 %v3778
        %4194 = vmatprep.subr.bf16.mxu0 %v3783
        %4195 = vmatpush1.bf16.msra.mxu0 %v3782
        %4196 = vmatprep.subr.bf16.mxu0 %v3787
        %4197 = vmatpush1.bf16.msra.mxu0 %v3786
        %4198 = vmatprep.subr.bf16.mxu0 %v3791
        %4199 = vmatpush1.bf16.msra.mxu0 %v3790
        %4200 = vmatprep.subr.bf16.mxu0 %v3795
        %4201 = vmatpush1.bf16.msra.mxu0 %v3794
        %4202 = vmatprep.mubr.bf16.mxu0 %v3391
        %4203 = vmatmul.mubr.bf16.gmra.mrb[0].mxu0 %v3390
        %v4204 = vpop.f32.mrb[0].mxu0
        %v4205 = vadd.f32 0.0, %v4204
        %v4206 = vpop.f32.mrb[0].mxu0
        %v4207 = vadd.f32 0.0, %v4206
        %v4208 = vpop.f32.mrb[0].mxu0
        %v4209 = vadd.f32 0.0, %v4208
        %v4210 = vpop.f32.mrb[0].mxu0
        %v4211 = vadd.f32 0.0, %v4210
        %4212 = vmatprep.mubr.bf16.mxu0 %v3394
        %4213 = vmatmul.mubr.bf16.gmra.mrb[0].mxu0 %v3393
        %v4214 = vpop.f32.mrb[0].mxu0
        %v4215 = vadd.f32 0.0, %v4214
        %v4216 = vpop.f32.mrb[0].mxu0
        %v4217 = vadd.f32 0.0, %v4216
        %v4218 = vpop.f32.mrb[0].mxu0
        %v4219 = vadd.f32 0.0, %v4218
        %v4220 = vpop.f32.mrb[0].mxu0
        %v4221 = vadd.f32 0.0, %v4220
        %4222 = vmatprep.mubr.bf16.mxu0 %v3397
        %4223 = vmatmul.mubr.bf16.gmra.mrb[0].mxu0 %v3396
        %v4224 = vpop.f32.mrb[0].mxu0
        %v4225 = vadd.f32 0.0, %v4224
        %v4226 = vpop.f32.mrb[0].mxu0
        %v4227 = vadd.f32 0.0, %v4226
        %v4228 = vpop.f32.mrb[0].mxu0
        %v4229 = vadd.f32 0.0, %v4228
        %v4230 = vpop.f32.mrb[0].mxu0
        %v4231 = vadd.f32 0.0, %v4230
        %4232 = vmatprep.mubr.bf16.mxu0 %v3400
        %4233 = vmatmul.mubr.bf16.gmra.mrb[0].mxu0 %v3399
        %v4234 = vpop.f32.mrb[0].mxu0
        %v4235 = vadd.f32 0.0, %v4234
        %v4236 = vpop.f32.mrb[0].mxu0
        %v4237 = vadd.f32 0.0, %v4236
        %v4238 = vpop.f32.mrb[0].mxu0
        %v4239 = vadd.f32 0.0, %v4238
        %v4240 = vpop.f32.mrb[0].mxu0
        %v4241 = vadd.f32 0.0, %v4240
        %4242 = vmatprep.mubr.bf16.mxu0 %v3403
        %4243 = vmatmul.mubr.bf16.gmra.mrb[0].mxu0 %v3402
        %v4244 = vpop.f32.mrb[0].mxu0
        %v4245 = vadd.f32 0.0, %v4244
        %v4246 = vpop.f32.mrb[0].mxu0
        %v4247 = vadd.f32 0.0, %v4246
        %v4248 = vpop.f32.mrb[0].mxu0
        %v4249 = vadd.f32 0.0, %v4248
        %v4250 = vpop.f32.mrb[0].mxu0
        %v4251 = vadd.f32 0.0, %v4250
        %4252 = vmatprep.mubr.bf16.mxu0 %v3406
        %4253 = vmatmul.mubr.bf16.gmra.mrb[0].mxu0 %v3405
        %v4254 = vpop.f32.mrb[0].mxu0
        %v4255 = vadd.f32 0.0, %v4254
        %v4256 = vpop.f32.mrb[0].mxu0
        %v4257 = vadd.f32 0.0, %v4256
        %v4258 = vpop.f32.mrb[0].mxu0
        %v4259 = vadd.f32 0.0, %v4258
        %v4260 = vpop.f32.mrb[0].mxu0
        %v4261 = vadd.f32 0.0, %v4260
        %4262 = vmatprep.mubr.bf16.mxu0 %v3409
        %4263 = vmatmul.mubr.bf16.gmra.mrb[0].mxu0 %v3408
        %v4264 = vpop.f32.mrb[0].mxu0
        %v4265 = vadd.f32 0.0, %v4264
        %v4266 = vpop.f32.mrb[0].mxu0
        %v4267 = vadd.f32 0.0, %v4266
        %v4268 = vpop.f32.mrb[0].mxu0
        %v4269 = vadd.f32 0.0, %v4268
        %v4270 = vpop.f32.mrb[0].mxu0
        %v4271 = vadd.f32 0.0, %v4270
        %4272 = vmatprep.mubr.bf16.mxu0 %v3412
        %4273 = vmatmul.mubr.bf16.gmra.mrb[0].mxu0 %v3411
        %v4274 = vpop.f32.mrb[0].mxu0
        %v4275 = vadd.f32 0.0, %v4274
        %v4276 = vpop.f32.mrb[0].mxu0
        %v4277 = vadd.f32 0.0, %v4276
        %v4278 = vpop.f32.mrb[0].mxu0
        %v4279 = vadd.f32 0.0, %v4278
        %v4280 = vpop.f32.mrb[0].mxu0
        %v4281 = vadd.f32 0.0, %v4280
        %4282 = vmatprep.mubr.bf16.mxu0 %v3415
        %4283 = vmatmul.mubr.bf16.gmra.mrb[0].mxu0 %v3414
        %v4284 = vpop.f32.mrb[0].mxu0
        %v4285 = vadd.f32 0.0, %v4284
        %v4286 = vpop.f32.mrb[0].mxu0
        %v4287 = vadd.f32 0.0, %v4286
        %v4288 = vpop.f32.mrb[0].mxu0
        %v4289 = vadd.f32 0.0, %v4288
        %v4290 = vpop.f32.mrb[0].mxu0
        %v4291 = vadd.f32 0.0, %v4290
        %4292 = vdwg.mxu0
        %4293 = vmatprep.subr.bf16.mxu0 %v3799
        %4294 = vmatpush1.bf16.msra.mxu0 %v3798
        %4295 = vmatprep.subr.bf16.mxu0 %v3803
        %4296 = vmatpush1.bf16.msra.mxu0 %v3802
        %4297 = vmatprep.subr.bf16.mxu0 %v3807
        %4298 = vmatpush1.bf16.msra.mxu0 %v3806
        %4299 = vmatprep.subr.bf16.mxu0 %v3811
        %4300 = vmatpush1.bf16.msra.mxu0 %v3810
        %4301 = vmatprep.subr.bf16.mxu0 %v3815
        %4302 = vmatpush1.bf16.msra.mxu0 %v3814
        %4303 = vmatprep.subr.bf16.mxu0 %v3819
        %4304 = vmatpush1.bf16.msra.mxu0 %v3818
        %4305 = vmatprep.subr.bf16.mxu0 %v3823
        %4306 = vmatpush1.bf16.msra.mxu0 %v3822
        %4307 = vmatprep.subr.bf16.mxu0 %v3827
        %4308 = vmatpush1.bf16.msra.mxu0 %v3826
        %4309 = vmatprep.subr.bf16.mxu0 0
        %4310 = vmatpush1.bf16.msra.mxu0 0
        %4311 = vmatprep.subr.bf16.mxu0 0
        %4312 = vmatpush1.bf16.msra.mxu0 0
        %4313 = vmatprep.subr.bf16.mxu0 0
        %4314 = vmatpush1.bf16.msra.mxu0 0
        %4315 = vmatprep.subr.bf16.mxu0 0
        %4316 = vmatpush1.bf16.msra.mxu0 0
        %4317 = vmatprep.subr.bf16.mxu0 0
        %4318 = vmatpush1.bf16.msra.mxu0 0
        %4319 = vmatprep.subr.bf16.mxu0 0
        %4320 = vmatpush1.bf16.msra.mxu0 0
        %4321 = vmatprep.subr.bf16.mxu0 0
        %4322 = vmatpush1.bf16.msra.mxu0 0
        %4323 = vmatprep.subr.bf16.mxu0 0
        %4324 = vmatpush1.bf16.msra.mxu0 0
        %4325 = vmatprep.mubr.bf16.mxu0 0
        %4326 = vmatmul.mubr.bf16.gmra.mrb[0].mxu0 %v3392
        %v4327 = vpop.f32.mrb[0].mxu0
        %v4328 = vadd.f32 %v4205, %v4327
        %v4329 = vpop.f32.mrb[0].mxu0
        %v4330 = vadd.f32 %v4207, %v4329
        %v4331 = vpop.f32.mrb[0].mxu0
        %v4332 = vadd.f32 %v4209, %v4331
        %v4333 = vpop.f32.mrb[0].mxu0
        %v4334 = vadd.f32 %v4211, %v4333
        %4335 = vmatprep.mubr.bf16.mxu0 0
        %4336 = vmatmul.mubr.bf16.gmra.mrb[0].mxu0 %v3395
        %v4337 = vpop.f32.mrb[0].mxu0
        %v4338 = vadd.f32 %v4215, %v4337
        %v4339 = vpop.f32.mrb[0].mxu0
        %v4340 = vadd.f32 %v4217, %v4339
        %v4341 = vpop.f32.mrb[0].mxu0
        %v4342 = vadd.f32 %v4219, %v4341
        %v4343 = vpop.f32.mrb[0].mxu0
        %v4344 = vadd.f32 %v4221, %v4343
        %4345 = vmatprep.mubr.bf16.mxu0 0
        %4346 = vmatmul.mubr.bf16.gmra.mrb[0].mxu0 %v3398
        %v4347 = vpop.f32.mrb[0].mxu0
        %v4348 = vadd.f32 %v4225, %v4347
        %v4349 = vpop.f32.mrb[0].mxu0
        %v4350 = vadd.f32 %v4227, %v4349
        %v4351 = vpop.f32.mrb[0].mxu0
        %v4352 = vadd.f32 %v4229, %v4351
        %v4353 = vpop.f32.mrb[0].mxu0
        %v4354 = vadd.f32 %v4231, %v4353
        %4355 = vmatprep.mubr.bf16.mxu0 0
        %4356 = vmatmul.mubr.bf16.gmra.mrb[0].mxu0 %v3401
        %v4357 = vpop.f32.mrb[0].mxu0
        %v4358 = vadd.f32 %v4235, %v4357
        %v4359 = vpop.f32.mrb[0].mxu0
        %v4360 = vadd.f32 %v4237, %v4359
        %v4361 = vpop.f32.mrb[0].mxu0
        %v4362 = vadd.f32 %v4239, %v4361
        %v4363 = vpop.f32.mrb[0].mxu0
        %v4364 = vadd.f32 %v4241, %v4363
        %4365 = vmatprep.mubr.bf16.mxu0 0
        %4366 = vmatmul.mubr.bf16.gmra.mrb[0].mxu0 %v3404
        %v4367 = vpop.f32.mrb[0].mxu0
        %v4368 = vadd.f32 %v4245, %v4367
        %v4369 = vpop.f32.mrb[0].mxu0
        %v4370 = vadd.f32 %v4247, %v4369
        %v4371 = vpop.f32.mrb[0].mxu0
        %v4372 = vadd.f32 %v4249, %v4371
        %v4373 = vpop.f32.mrb[0].mxu0
        %v4374 = vadd.f32 %v4251, %v4373
        %4375 = vmatprep.mubr.bf16.mxu0 0
        %4376 = vmatmul.mubr.bf16.gmra.mrb[0].mxu0 %v3407
        %v4377 = vpop.f32.mrb[0].mxu0
        %v4378 = vadd.f32 %v4255, %v4377
        %v4379 = vpop.f32.mrb[0].mxu0
        %v4380 = vadd.f32 %v4257, %v4379
        %v4381 = vpop.f32.mrb[0].mxu0
        %v4382 = vadd.f32 %v4259, %v4381
        %v4383 = vpop.f32.mrb[0].mxu0
        %v4384 = vadd.f32 %v4261, %v4383
        %4385 = vmatprep.mubr.bf16.mxu0 0
        %4386 = vmatmul.mubr.bf16.gmra.mrb[0].mxu0 %v3410
        %v4387 = vpop.f32.mrb[0].mxu0
        %v4388 = vadd.f32 %v4265, %v4387
        %v4389 = vpop.f32.mrb[0].mxu0
        %v4390 = vadd.f32 %v4267, %v4389
        %v4391 = vpop.f32.mrb[0].mxu0
        %v4392 = vadd.f32 %v4269, %v4391
        %v4393 = vpop.f32.mrb[0].mxu0
        %v4394 = vadd.f32 %v4271, %v4393
        %4395 = vmatprep.mubr.bf16.mxu0 0
        %4396 = vmatmul.mubr.bf16.gmra.mrb[0].mxu0 %v3413
        %v4397 = vpop.f32.mrb[0].mxu0
        %v4398 = vadd.f32 %v4275, %v4397
        %v4399 = vpop.f32.mrb[0].mxu0
        %v4400 = vadd.f32 %v4277, %v4399
        %v4401 = vpop.f32.mrb[0].mxu0
        %v4402 = vadd.f32 %v4279, %v4401
        %v4403 = vpop.f32.mrb[0].mxu0
        %v4404 = vadd.f32 %v4281, %v4403
        %4405 = vmatprep.mubr.bf16.mxu0 0
        %4406 = vmatmul.mubr.bf16.gmra.mrb[0].mxu0 %v3416
        %v4407 = vpop.f32.mrb[0].mxu0
        %v4408 = vadd.f32 %v4285, %v4407
        %v4409 = vpop.f32.mrb[0].mxu0
        %v4410 = vadd.f32 %v4287, %v4409
        %v4411 = vpop.f32.mrb[0].mxu0
        %v4412 = vadd.f32 %v4289, %v4411
        %v4413 = vpop.f32.mrb[0].mxu0
        %v4414 = vadd.f32 %v4291, %v4413
        %4415 = vdwg.mxu0
        %v4416 = vadd.f32 %v2834, %v4082
        %v4417 = vadd.f32 %v2836, %v4084
        %v4418 = vadd.f32 %v3080, %v4328
        %v4419 = vadd.f32 %v3082, %v4330
        %v4420 = vadd.f32 %v2838, %v4086
        %v4421 = vadd.f32 %v2840, %v4088
        %v4422 = vadd.f32 %v3084, %v4332
        %v4423 = vadd.f32 %v3086, %v4334
        %v4424 = vadd.f32 %v2844, %v4092
        %v4425 = vadd.f32 %v2846, %v4094
        %v4426 = vadd.f32 %v3090, %v4338
        %v4427 = vadd.f32 %v3092, %v4340
        %v4428 = vadd.f32 %v2848, %v4096
        %v4429 = vadd.f32 %v2850, %v4098
        %v4430 = vadd.f32 %v3094, %v4342
        %v4431 = vadd.f32 %v3096, %v4344
        %v4432 = vadd.f32 %v2854, %v4102
        %v4433 = vadd.f32 %v2856, %v4104
        %v4434 = vadd.f32 %v3100, %v4348
        %v4435 = vadd.f32 %v3102, %v4350
        %v4436 = vadd.f32 %v2858, %v4106
        %v4437 = vadd.f32 %v2860, %v4108
        %v4438 = vadd.f32 %v3104, %v4352
        %v4439 = vadd.f32 %v3106, %v4354
        %v4440 = vadd.f32 %v2864, %v4112
        %v4441 = vadd.f32 %v2866, %v4114
        %v4442 = vadd.f32 %v3110, %v4358
        %v4443 = vadd.f32 %v3112, %v4360
        %v4444 = vadd.f32 %v2868, %v4116
        %v4445 = vadd.f32 %v2870, %v4118
        %v4446 = vadd.f32 %v3114, %v4362
        %v4447 = vadd.f32 %v3116, %v4364
        %v4448 = vadd.f32 %v2874, %v4122
        %v4449 = vadd.f32 %v2876, %v4124
        %v4450 = vadd.f32 %v3120, %v4368
        %v4451 = vadd.f32 %v3122, %v4370
        %v4452 = vadd.f32 %v2878, %v4126
        %v4453 = vadd.f32 %v2880, %v4128
        %v4454 = vadd.f32 %v3124, %v4372
        %v4455 = vadd.f32 %v3126, %v4374
        %v4456 = vadd.f32 %v2884, %v4132
        %v4457 = vadd.f32 %v2886, %v4134
        %v4458 = vadd.f32 %v3130, %v4378
        %v4459 = vadd.f32 %v3132, %v4380
        %v4460 = vadd.f32 %v2888, %v4136
        %v4461 = vadd.f32 %v2890, %v4138
        %v4462 = vadd.f32 %v3134, %v4382
        %v4463 = vadd.f32 %v3136, %v4384
        %v4464 = vadd.f32 %v2894, %v4142
        %v4465 = vadd.f32 %v2896, %v4144
        %v4466 = vadd.f32 %v3140, %v4388
        %v4467 = vadd.f32 %v3142, %v4390
        %v4468 = vadd.f32 %v2898, %v4146
        %v4469 = vadd.f32 %v2900, %v4148
        %v4470 = vadd.f32 %v3144, %v4392
        %v4471 = vadd.f32 %v3146, %v4394
        %v4472 = vadd.f32 %v2904, %v4152
        %v4473 = vadd.f32 %v2906, %v4154
        %v4474 = vadd.f32 %v3150, %v4398
        %v4475 = vadd.f32 %v3152, %v4400
        %v4476 = vadd.f32 %v2908, %v4156
        %v4477 = vadd.f32 %v2910, %v4158
        %v4478 = vadd.f32 %v3154, %v4402
        %v4479 = vadd.f32 %v3156, %v4404
        %v4480 = vadd.f32 %v2914, %v4162
        %v4481 = vadd.f32 %v2916, %v4164
        %v4482 = vadd.f32 %v3160, %v4408
        %v4483 = vadd.f32 %v3162, %v4410
        %v4484 = vadd.f32 %v2918, %v4166
        %v4485 = vadd.f32 %v2920, %v4168
        %v4486 = vadd.f32 %v3164, %v4412
        %v4487 = vadd.f32 %v3166, %v4414
        %v4489 = vlaneseq
        %v4490 = vshrl.u32 %v4489, 7
        %v4491 = vsub.s32 0, %v4490
        %v4492 = vrot.slane %v813, %v4491
        %v4493 = vlaneseq
        %v4494 = vshrl.u32 %v4493, 7
        %v4495 = vsub.s32 1, %v4494
        %v4496 = vrot.slane %v813, %v4495
        %v4497 = vlaneseq
        %v4498 = vshrl.u32 %v4497, 7
        %v4499 = vsub.s32 2, %v4498
        %v4500 = vrot.slane %v813, %v4499
        %v4501 = vlaneseq
        %v4502 = vshrl.u32 %v4501, 7
        %v4503 = vsub.s32 3, %v4502
        %v4504 = vrot.slane %v813, %v4503
        %v4509 = vadd.f32 %v4416, %v4492
        %v4510 = vadd.f32 %v4417, %v4496
        %v4511 = vadd.f32 %v4418, %v4500
        %v4512 = vadd.f32 %v4419, %v4504
        %v4513 = vadd.f32 %v4420, %v4492
        %v4514 = vadd.f32 %v4421, %v4496
        %v4515 = vadd.f32 %v4422, %v4500
        %v4516 = vadd.f32 %v4423, %v4504
        %v4517 = vadd.f32 %v4424, %v4492
        %v4518 = vadd.f32 %v4425, %v4496
        %v4519 = vadd.f32 %v4426, %v4500
        %v4520 = vadd.f32 %v4427, %v4504
        %v4521 = vadd.f32 %v4428, %v4492
        %v4522 = vadd.f32 %v4429, %v4496
        %v4523 = vadd.f32 %v4430, %v4500
        %v4524 = vadd.f32 %v4431, %v4504
        %v4525 = vadd.f32 %v4432, %v4492
        %v4526 = vadd.f32 %v4433, %v4496
        %v4527 = vadd.f32 %v4434, %v4500
        %v4528 = vadd.f32 %v4435, %v4504
        %v4529 = vadd.f32 %v4436, %v4492
        %v4530 = vadd.f32 %v4437, %v4496
        %v4531 = vadd.f32 %v4438, %v4500
        %v4532 = vadd.f32 %v4439, %v4504
        %v4533 = vadd.f32 %v4440, %v4492
        %v4534 = vadd.f32 %v4441, %v4496
        %v4535 = vadd.f32 %v4442, %v4500
        %v4536 = vadd.f32 %v4443, %v4504
        %v4537 = vadd.f32 %v4444, %v4492
        %v4538 = vadd.f32 %v4445, %v4496
        %v4539 = vadd.f32 %v4446, %v4500
        %v4540 = vadd.f32 %v4447, %v4504
        %v4541 = vadd.f32 %v4448, %v4492
        %v4542 = vadd.f32 %v4449, %v4496
        %v4543 = vadd.f32 %v4450, %v4500
        %v4544 = vadd.f32 %v4451, %v4504
        %v4545 = vadd.f32 %v4452, %v4492
        %v4546 = vadd.f32 %v4453, %v4496
        %v4547 = vadd.f32 %v4454, %v4500
        %v4548 = vadd.f32 %v4455, %v4504
        %v4549 = vadd.f32 %v4456, %v4492
        %v4550 = vadd.f32 %v4457, %v4496
        %v4551 = vadd.f32 %v4458, %v4500
        %v4552 = vadd.f32 %v4459, %v4504
        %v4553 = vadd.f32 %v4460, %v4492
        %v4554 = vadd.f32 %v4461, %v4496
        %v4555 = vadd.f32 %v4462, %v4500
        %v4556 = vadd.f32 %v4463, %v4504
        %v4557 = vadd.f32 %v4464, %v4492
        %v4558 = vadd.f32 %v4465, %v4496
        %v4559 = vadd.f32 %v4466, %v4500
        %v4560 = vadd.f32 %v4467, %v4504
        %v4561 = vadd.f32 %v4468, %v4492
        %v4562 = vadd.f32 %v4469, %v4496
        %v4563 = vadd.f32 %v4470, %v4500
        %v4564 = vadd.f32 %v4471, %v4504
        %v4565 = vadd.f32 %v4472, %v4492
        %v4566 = vadd.f32 %v4473, %v4496
        %v4567 = vadd.f32 %v4474, %v4500
        %v4568 = vadd.f32 %v4475, %v4504
        %v4569 = vadd.f32 %v4476, %v4492
        %v4570 = vadd.f32 %v4477, %v4496
        %v4571 = vadd.f32 %v4478, %v4500
        %v4572 = vadd.f32 %v4479, %v4504
        %v4573 = vadd.f32 %v4480, %v4492
        %v4574 = vadd.f32 %v4481, %v4496
        %v4575 = vadd.f32 %v4482, %v4500
        %v4576 = vadd.f32 %v4483, %v4504
        %v4577 = vadd.f32 %v4484, %v4492
        %v4578 = vadd.f32 %v4485, %v4496
        %v4579 = vadd.f32 %v4486, %v4500
        %v4580 = vadd.f32 %v4487, %v4504
        %v4581 = vmax.f32 %v4509, 0.0
        %v4582 = vmax.f32 %v4510, 0.0
        %v4583 = vmax.f32 %v4511, 0.0
        %v4584 = vmax.f32 %v4512, 0.0
        %v4585 = vmax.f32 %v4513, 0.0
        %v4586 = vmax.f32 %v4514, 0.0
        %v4587 = vmax.f32 %v4515, 0.0
        %v4588 = vmax.f32 %v4516, 0.0
        %v4589 = vmax.f32 %v4517, 0.0
        %v4590 = vmax.f32 %v4518, 0.0
        %v4591 = vmax.f32 %v4519, 0.0
        %v4592 = vmax.f32 %v4520, 0.0
        %v4593 = vmax.f32 %v4521, 0.0
        %v4594 = vmax.f32 %v4522, 0.0
        %v4595 = vmax.f32 %v4523, 0.0
        %v4596 = vmax.f32 %v4524, 0.0
        %v4597 = vmax.f32 %v4525, 0.0
        %v4598 = vmax.f32 %v4526, 0.0
        %v4599 = vmax.f32 %v4527, 0.0
        %v4600 = vmax.f32 %v4528, 0.0
        %v4601 = vmax.f32 %v4529, 0.0
        %v4602 = vmax.f32 %v4530, 0.0
        %v4603 = vmax.f32 %v4531, 0.0
        %v4604 = vmax.f32 %v4532, 0.0
        %v4605 = vmax.f32 %v4533, 0.0
        %v4606 = vmax.f32 %v4534, 0.0
        %v4607 = vmax.f32 %v4535, 0.0
        %v4608 = vmax.f32 %v4536, 0.0
        %v4609 = vmax.f32 %v4537, 0.0
        %v4610 = vmax.f32 %v4538, 0.0
        %v4611 = vmax.f32 %v4539, 0.0
        %v4612 = vmax.f32 %v4540, 0.0
        %v4613 = vmax.f32 %v4541, 0.0
        %v4614 = vmax.f32 %v4542, 0.0
        %v4615 = vmax.f32 %v4543, 0.0
        %v4616 = vmax.f32 %v4544, 0.0
        %v4617 = vmax.f32 %v4545, 0.0
        %v4618 = vmax.f32 %v4546, 0.0
        %v4619 = vmax.f32 %v4547, 0.0
        %v4620 = vmax.f32 %v4548, 0.0
        %v4621 = vmax.f32 %v4549, 0.0
        %v4622 = vmax.f32 %v4550, 0.0
        %v4623 = vmax.f32 %v4551, 0.0
        %v4624 = vmax.f32 %v4552, 0.0
        %v4625 = vmax.f32 %v4553, 0.0
        %v4626 = vmax.f32 %v4554, 0.0
        %v4627 = vmax.f32 %v4555, 0.0
        %v4628 = vmax.f32 %v4556, 0.0
        %v4629 = vmax.f32 %v4557, 0.0
        %v4630 = vmax.f32 %v4558, 0.0
        %v4631 = vmax.f32 %v4559, 0.0
        %v4632 = vmax.f32 %v4560, 0.0
        %v4633 = vmax.f32 %v4561, 0.0
        %v4634 = vmax.f32 %v4562, 0.0
        %v4635 = vmax.f32 %v4563, 0.0
        %v4636 = vmax.f32 %v4564, 0.0
        %v4637 = vmax.f32 %v4565, 0.0
        %v4638 = vmax.f32 %v4566, 0.0
        %v4639 = vmax.f32 %v4567, 0.0
        %v4640 = vmax.f32 %v4568, 0.0
        %v4641 = vmax.f32 %v4569, 0.0
        %v4642 = vmax.f32 %v4570, 0.0
        %v4643 = vmax.f32 %v4571, 0.0
        %v4644 = vmax.f32 %v4572, 0.0
        %v4645 = vmax.f32 %v4573, 0.0
        %v4646 = vmax.f32 %v4574, 0.0
        %v4647 = vmax.f32 %v4575, 0.0
        %v4648 = vmax.f32 %v4576, 0.0
        %v4649 = vmax.f32 %v4577, 0.0
        %v4650 = vmax.f32 %v4578, 0.0
        %v4651 = vmax.f32 %v4579, 0.0
        %v4652 = vmax.f32 %v4580, 0.0
        %4654 = vset.pattern.permute.xlu0 0
        %4655 = vperm.xlu0 %4654, %v814
        %v4656 = vpop.permute.xlu0 %4655
        %4659 = vset.pattern.permute.xlu0 0
        %4660 = vperm.xlu0 %4659, %v815
        %v4661 = vpop.permute.xlu0 %4660
        %4664 = vset.pattern.permute.xlu0 0
        %4665 = vperm.xlu0 %4664, %v816
        %v4666 = vpop.permute.xlu0 %4665
        %4669 = vset.pattern.permute.xlu0 0
        %4670 = vperm.xlu0 %4669, %v817
        %v4671 = vpop.permute.xlu0 %4670
        %4674 = vset.pattern.permute.xlu0 0
        %4675 = vperm.xlu0 %4674, %v818
        %v4676 = vpop.permute.xlu0 %4675
        %4679 = vset.pattern.permute.xlu0 0
        %4680 = vperm.xlu0 %4679, %v819
        %v4681 = vpop.permute.xlu0 %4680
        %4684 = vset.pattern.permute.xlu0 0
        %4685 = vperm.xlu0 %4684, %v820
        %v4686 = vpop.permute.xlu0 %4685
        %4689 = vset.pattern.permute.xlu0 0
        %4690 = vperm.xlu0 %4689, %v821
        %v4691 = vpop.permute.xlu0 %4690
        %4694 = vset.pattern.permute.xlu0 0
        %4695 = vperm.xlu0 %4694, %v822
        %v4696 = vpop.permute.xlu0 %4695
        %4699 = vset.pattern.permute.xlu0 0
        %4700 = vperm.xlu0 %4699, %v823
        %v4701 = vpop.permute.xlu0 %4700
        %4704 = vset.pattern.permute.xlu0 0
        %4705 = vperm.xlu0 %4704, %v824
        %v4706 = vpop.permute.xlu0 %4705
        %4709 = vset.pattern.permute.xlu0 0
        %4710 = vperm.xlu0 %4709, %v825
        %v4711 = vpop.permute.xlu0 %4710
        %4714 = vset.pattern.permute.xlu0 0
        %4715 = vperm.xlu0 %4714, %v826
        %v4716 = vpop.permute.xlu0 %4715
        %4719 = vset.pattern.permute.xlu0 0
        %4720 = vperm.xlu0 %4719, %v827
        %v4721 = vpop.permute.xlu0 %4720
        %4724 = vset.pattern.permute.xlu0 0
        %4725 = vperm.xlu0 %4724, %v828
        %v4726 = vpop.permute.xlu0 %4725
        %4729 = vset.pattern.permute.xlu0 0
        %4730 = vperm.xlu0 %4729, %v829
        %v4731 = vpop.permute.xlu0 %4730
        %4734 = vset.pattern.permute.xlu0 0
        %4735 = vperm.xlu0 %4734, %v830
        %v4736 = vpop.permute.xlu0 %4735
        %4739 = vset.pattern.permute.xlu0 0
        %4740 = vperm.xlu0 %4739, %v831
        %v4741 = vpop.permute.xlu0 %4740
        %v4743 = vmul.f32 %v4581, %v4656
        %v4744 = vmul.f32 %v4582, %v4656
        %v4745 = vmul.f32 %v4583, %v4656
        %v4746 = vmul.f32 %v4584, %v4656
        %v4747 = vmul.f32 %v4585, %v4661
        %v4748 = vmul.f32 %v4586, %v4661
        %v4749 = vmul.f32 %v4587, %v4661
        %v4750 = vmul.f32 %v4588, %v4661
        %v4751 = vmul.f32 %v4589, %v4666
        %v4752 = vmul.f32 %v4590, %v4666
        %v4753 = vmul.f32 %v4591, %v4666
        %v4754 = vmul.f32 %v4592, %v4666
        %v4755 = vmul.f32 %v4593, %v4671
        %v4756 = vmul.f32 %v4594, %v4671
        %v4757 = vmul.f32 %v4595, %v4671
        %v4758 = vmul.f32 %v4596, %v4671
        %v4759 = vmul.f32 %v4597, %v4676
        %v4760 = vmul.f32 %v4598, %v4676
        %v4761 = vmul.f32 %v4599, %v4676
        %v4762 = vmul.f32 %v4600, %v4676
        %v4763 = vmul.f32 %v4601, %v4681
        %v4764 = vmul.f32 %v4602, %v4681
        %v4765 = vmul.f32 %v4603, %v4681
        %v4766 = vmul.f32 %v4604, %v4681
        %v4767 = vmul.f32 %v4605, %v4686
        %v4768 = vmul.f32 %v4606, %v4686
        %v4769 = vmul.f32 %v4607, %v4686
        %v4770 = vmul.f32 %v4608, %v4686
        %v4771 = vmul.f32 %v4609, %v4691
        %v4772 = vmul.f32 %v4610, %v4691
        %v4773 = vmul.f32 %v4611, %v4691
        %v4774 = vmul.f32 %v4612, %v4691
        %v4775 = vmul.f32 %v4613, %v4696
        %v4776 = vmul.f32 %v4614, %v4696
        %v4777 = vmul.f32 %v4615, %v4696
        %v4778 = vmul.f32 %v4616, %v4696
        %v4779 = vmul.f32 %v4617, %v4701
        %v4780 = vmul.f32 %v4618, %v4701
        %v4781 = vmul.f32 %v4619, %v4701
        %v4782 = vmul.f32 %v4620, %v4701
        %v4783 = vmul.f32 %v4621, %v4706
        %v4784 = vmul.f32 %v4622, %v4706
        %v4785 = vmul.f32 %v4623, %v4706
        %v4786 = vmul.f32 %v4624, %v4706
        %v4787 = vmul.f32 %v4625, %v4711
        %v4788 = vmul.f32 %v4626, %v4711
        %v4789 = vmul.f32 %v4627, %v4711
        %v4790 = vmul.f32 %v4628, %v4711
        %v4791 = vmul.f32 %v4629, %v4716
        %v4792 = vmul.f32 %v4630, %v4716
        %v4793 = vmul.f32 %v4631, %v4716
        %v4794 = vmul.f32 %v4632, %v4716
        %v4795 = vmul.f32 %v4633, %v4721
        %v4796 = vmul.f32 %v4634, %v4721
        %v4797 = vmul.f32 %v4635, %v4721
        %v4798 = vmul.f32 %v4636, %v4721
        %v4799 = vmul.f32 %v4637, %v4726
        %v4800 = vmul.f32 %v4638, %v4726
        %v4801 = vmul.f32 %v4639, %v4726
        %v4802 = vmul.f32 %v4640, %v4726
        %v4803 = vmul.f32 %v4641, %v4731
        %v4804 = vmul.f32 %v4642, %v4731
        %v4805 = vmul.f32 %v4643, %v4731
        %v4806 = vmul.f32 %v4644, %v4731
        %v4807 = vmul.f32 %v4645, %v4736
        %v4808 = vmul.f32 %v4646, %v4736
        %v4809 = vmul.f32 %v4647, %v4736
        %v4810 = vmul.f32 %v4648, %v4736
        %v4811 = vmul.f32 %v4649, %v4741
        %v4812 = vmul.f32 %v4650, %v4741
        %v4813 = vmul.f32 %v4651, %v4741
        %v4814 = vmul.f32 %v4652, %v4741
        %v4815 = vadd.f32 %v4743, %v4747
        %v4816 = vadd.f32 %v4815, %v4751
        %v4817 = vadd.f32 %v4816, %v4755
        %v4818 = vadd.f32 %v4817, %v4759
        %v4819 = vadd.f32 %v4818, %v4763
        %v4820 = vadd.f32 %v4819, %v4767
        %v4821 = vadd.f32 %v4820, %v4771
        %v4822 = vadd.f32 %v4821, %v4775
        %v4823 = vadd.f32 %v4822, %v4779
        %v4824 = vadd.f32 %v4823, %v4783
        %v4825 = vadd.f32 %v4824, %v4787
        %v4826 = vadd.f32 %v4825, %v4791
        %v4827 = vadd.f32 %v4826, %v4795
        %v4828 = vadd.f32 %v4827, %v4799
        %v4829 = vadd.f32 %v4828, %v4803
        %v4830 = vadd.f32 %v4829, %v4807
        %v4831 = vadd.f32 %v4830, %v4811
        %v4832 = vrot.slane %v4831, 4
        %v4833 = vadd.f32 %v4831, %v4832
        %v4834 = vrot.slane %v4833, 2
        %v4835 = vadd.f32 %v4833, %v4834
        %v4836 = vrot.slane %v4835, 1
        %v4837 = vadd.f32 %v4835, %v4836
        %v4838 = vadd.f32 %v4744, %v4748
        %v4839 = vadd.f32 %v4838, %v4752
        %v4840 = vadd.f32 %v4839, %v4756
        %v4841 = vadd.f32 %v4840, %v4760
        %v4842 = vadd.f32 %v4841, %v4764
        %v4843 = vadd.f32 %v4842, %v4768
        %v4844 = vadd.f32 %v4843, %v4772
        %v4845 = vadd.f32 %v4844, %v4776
        %v4846 = vadd.f32 %v4845, %v4780
        %v4847 = vadd.f32 %v4846, %v4784
        %v4848 = vadd.f32 %v4847, %v4788
        %v4849 = vadd.f32 %v4848, %v4792
        %v4850 = vadd.f32 %v4849, %v4796
        %v4851 = vadd.f32 %v4850, %v4800
        %v4852 = vadd.f32 %v4851, %v4804
        %v4853 = vadd.f32 %v4852, %v4808
        %v4854 = vadd.f32 %v4853, %v4812
        %v4855 = vrot.slane %v4854, 4
        %v4856 = vadd.f32 %v4854, %v4855
        %v4857 = vrot.slane %v4856, 2
        %v4858 = vadd.f32 %v4856, %v4857
        %v4859 = vrot.slane %v4858, 1
        %v4860 = vadd.f32 %v4858, %v4859
        %v4861 = vadd.f32 %v4745, %v4749
        %v4862 = vadd.f32 %v4861, %v4753
        %v4863 = vadd.f32 %v4862, %v4757
        %v4864 = vadd.f32 %v4863, %v4761
        %v4865 = vadd.f32 %v4864, %v4765
        %v4866 = vadd.f32 %v4865, %v4769
        %v4867 = vadd.f32 %v4866, %v4773
        %v4868 = vadd.f32 %v4867, %v4777
        %v4869 = vadd.f32 %v4868, %v4781
        %v4870 = vadd.f32 %v4869, %v4785
        %v4871 = vadd.f32 %v4870, %v4789
        %v4872 = vadd.f32 %v4871, %v4793
        %v4873 = vadd.f32 %v4872, %v4797
        %v4874 = vadd.f32 %v4873, %v4801
        %v4875 = vadd.f32 %v4874, %v4805
        %v4876 = vadd.f32 %v4875, %v4809
        %v4877 = vadd.f32 %v4876, %v4813
        %v4878 = vrot.slane %v4877, 4
        %v4879 = vadd.f32 %v4877, %v4878
        %v4880 = vrot.slane %v4879, 2
        %v4881 = vadd.f32 %v4879, %v4880
        %v4882 = vrot.slane %v4881, 1
        %v4883 = vadd.f32 %v4881, %v4882
        %v4884 = vadd.f32 %v4746, %v4750
        %v4885 = vadd.f32 %v4884, %v4754
        %v4886 = vadd.f32 %v4885, %v4758
        %v4887 = vadd.f32 %v4886, %v4762
        %v4888 = vadd.f32 %v4887, %v4766
        %v4889 = vadd.f32 %v4888, %v4770
        %v4890 = vadd.f32 %v4889, %v4774
        %v4891 = vadd.f32 %v4890, %v4778
        %v4892 = vadd.f32 %v4891, %v4782
        %v4893 = vadd.f32 %v4892, %v4786
        %v4894 = vadd.f32 %v4893, %v4790
        %v4895 = vadd.f32 %v4894, %v4794
        %v4896 = vadd.f32 %v4895, %v4798
        %v4897 = vadd.f32 %v4896, %v4802
        %v4898 = vadd.f32 %v4897, %v4806
        %v4899 = vadd.f32 %v4898, %v4810
        %v4900 = vadd.f32 %v4899, %v4814
        %v4901 = vrot.slane %v4900, 4
        %v4902 = vadd.f32 %v4900, %v4901
        %v4903 = vrot.slane %v4902, 2
        %v4904 = vadd.f32 %v4902, %v4903
        %v4905 = vrot.slane %v4904, 1
        %v4906 = vadd.f32 %v4904, %v4905
        %s4907 = scalar_lea.vmem %s0, 264
        %v4908 = vld [vmem:[%s4907] sm:$0xff]
        %v4909 = vld [vmem:[%s4907 + $0x8] sm:$0xf]
        %v4910 = vld [vmem:[%s4907 + $0xc] sm:$0xff]
        %v4911 = vld [vmem:[%s4907 + $0x14] sm:$0xf]
        %v4912 = vld [vmem:[%s4907 + $0x18] sm:$0xff]
        %v4913 = vld [vmem:[%s4907 + $0x20] sm:$0xf]
        %v4914 = vld [vmem:[%s4907 + $0x24] sm:$0xff]
        %v4915 = vld [vmem:[%s4907 + $0x2c] sm:$0xf]
        %v4916 = vld [vmem:[%s4907 + $0x30] sm:$0xff]
        %v4917 = vld [vmem:[%s4907 + $0x38] sm:$0xf]
        %v4918 = vld [vmem:[%s4907 + $0x3c] sm:$0xff]
        %v4919 = vld [vmem:[%s4907 + $0x44] sm:$0xf]
        %v4920 = vld [vmem:[%s4907 + $0x48] sm:$0xff]
        %v4921 = vld [vmem:[%s4907 + $0x50] sm:$0xf]
        %v4922 = vld [vmem:[%s4907 + $0x54] sm:$0xff]
        %v4923 = vld [vmem:[%s4907 + $0x5c] sm:$0xf]
        %v4924 = vld [vmem:[%s4907 + $0x60] sm:$0xff]
        %v4925 = vld [vmem:[%s4907 + $0x68] sm:$0xf]
        %v4926 = vld [vmem:[%s4907 + $0x6c] sm:$0xff]
        %v4927 = vld [vmem:[%s4907 + $0x74] sm:$0xf]
        %v4928 = vld [vmem:[%s4907 + $0x78] sm:$0xff]
        %v4929 = vld [vmem:[%s4907 + $0x80] sm:$0xf]
        %v4930 = vld [vmem:[%s4907 + $0x84] sm:$0xff]
        %v4931 = vld [vmem:[%s4907 + $0x8c] sm:$0xf]
        %v4932 = vld [vmem:[%s4907 + $0x90] sm:$0xff]
        %v4933 = vld [vmem:[%s4907 + $0x98] sm:$0xf]
        %v4934 = vld [vmem:[%s4907 + $0x9c] sm:$0xff]
        %v4935 = vld [vmem:[%s4907 + $0xa4] sm:$0xf]
        %v4936 = vld [vmem:[%s4907 + $0xa8] sm:$0xff]
        %v4937 = vld [vmem:[%s4907 + $0xb0] sm:$0xf]
        %v4938 = vld [vmem:[%s4907 + $0xb4] sm:$0xff]
        %v4939 = vld [vmem:[%s4907 + $0xbc] sm:$0xf]
        %v4940 = vld [vmem:[%s4907 + $0xc0] sm:$0xff]
        %v4941 = vld [vmem:[%s4907 + $0xc8] sm:$0xf]
        %v4942 = vld [vmem:[%s4907 + $0xcc] sm:$0xff]
        %v4943 = vld [vmem:[%s4907 + $0xd4] sm:$0xf]
        %v4944 = vld [vmem:[%s4907 + $0xd8] sm:$0xff]
        %v4945 = vld [vmem:[%s4907 + $0xe0] sm:$0xf]
        %v4946 = vld [vmem:[%s4907 + $0xe4] sm:$0xff]
        %v4947 = vld [vmem:[%s4907 + $0xec] sm:$0xf]
        %v4984 = vunpack.c.l.b16 %v4912
        %v4985 = vunpack.c.h.b16 %v4912
        %v4986 = vunpack.c.l.b16 %v4913
        %v4987 = vunpack.c.l.b16 %v4914
        %v4988 = vunpack.c.h.b16 %v4914
        %v4989 = vunpack.c.l.b16 %v4915
        %v4990 = vunpack.c.l.b16 %v4916
        %v4991 = vunpack.c.h.b16 %v4916
        %v4992 = vunpack.c.l.b16 %v4917
        %v4993 = vunpack.c.l.b16 %v4918
        %v4994 = vunpack.c.h.b16 %v4918
        %v4995 = vunpack.c.l.b16 %v4919
        %v4996 = vunpack.c.l.b16 %v4920
        %v4997 = vunpack.c.h.b16 %v4920
        %v4998 = vunpack.c.l.b16 %v4921
        %v4999 = vunpack.c.l.b16 %v4922
        %v5000 = vunpack.c.h.b16 %v4922
        %v5001 = vunpack.c.l.b16 %v4923
        %v5002 = vunpack.c.l.b16 %v4924
        %v5003 = vunpack.c.h.b16 %v4924
        %v5004 = vunpack.c.l.b16 %v4925
        %v5005 = vunpack.c.l.b16 %v4926
        %v5006 = vunpack.c.h.b16 %v4926
        %v5007 = vunpack.c.l.b16 %v4927
        %v5008 = vunpack.c.l.b16 %v4928
        %v5009 = vunpack.c.h.b16 %v4928
        %v5010 = vunpack.c.l.b16 %v4929
        %v5011 = vunpack.c.l.b16 %v4930
        %v5012 = vunpack.c.h.b16 %v4930
        %v5013 = vunpack.c.l.b16 %v4931
        %v5014 = vunpack.c.l.b16 %v4932
        %v5015 = vunpack.c.h.b16 %v4932
        %v5016 = vunpack.c.l.b16 %v4933
        %v5017 = vunpack.c.l.b16 %v4934
        %v5018 = vunpack.c.h.b16 %v4934
        %v5019 = vunpack.c.l.b16 %v4935
        %v5020 = vunpack.c.l.b16 %v4936
        %v5021 = vunpack.c.h.b16 %v4936
        %v5022 = vunpack.c.l.b16 %v4937
        %v5023 = vunpack.c.l.b16 %v4938
        %v5024 = vunpack.c.h.b16 %v4938
        %v5025 = vunpack.c.l.b16 %v4939
        %v5026 = vunpack.c.l.b16 %v4940
        %v5027 = vunpack.c.h.b16 %v4940
        %v5028 = vunpack.c.l.b16 %v4941
        %v5029 = vunpack.c.l.b16 %v4942
        %v5030 = vunpack.c.h.b16 %v4942
        %v5031 = vunpack.c.l.b16 %v4943
        %v5032 = vunpack.c.l.b16 %v4944
        %v5033 = vunpack.c.h.b16 %v4944
        %v5034 = vunpack.c.l.b16 %v4945
        %v5035 = vunpack.c.l.b16 %v4946
        %v5036 = vunpack.c.h.b16 %v4946
        %v5037 = vunpack.c.l.b16 %v4947
        %v5038 = vpack.c.b16 %v4987, %v4984
        %v5039 = vpack.c.b16 %v4988, %v4985
        %v5040 = vpack.c.b16 %v4989, %v4986
        %v5041 = vpack.c.b16 %v4993, %v4990
        %v5042 = vpack.c.b16 %v4994, %v4991
        %v5043 = vpack.c.b16 %v4995, %v4992
        %v5044 = vpack.c.b16 %v4999, %v4996
        %v5045 = vpack.c.b16 %v5000, %v4997
        %v5046 = vpack.c.b16 %v5001, %v4998
        %v5047 = vpack.c.b16 %v5005, %v5002
        %v5048 = vpack.c.b16 %v5006, %v5003
        %v5049 = vpack.c.b16 %v5007, %v5004
        %v5050 = vpack.c.b16 %v5011, %v5008
        %v5051 = vpack.c.b16 %v5012, %v5009
        %v5052 = vpack.c.b16 %v5013, %v5010
        %v5053 = vpack.c.b16 %v5017, %v5014
        %v5054 = vpack.c.b16 %v5018, %v5015
        %v5055 = vpack.c.b16 %v5019, %v5016
        %v5056 = vpack.c.b16 %v5023, %v5020
        %v5057 = vpack.c.b16 %v5024, %v5021
        %v5058 = vpack.c.b16 %v5025, %v5022
        %v5059 = vpack.c.b16 %v5029, %v5026
        %v5060 = vpack.c.b16 %v5030, %v5027
        %v5061 = vpack.c.b16 %v5031, %v5028
        %v5062 = vpack.c.b16 %v5035, %v5032
        %v5063 = vpack.c.b16 %v5036, %v5033
        %v5064 = vpack.c.b16 %v5037, %v5034
        %5092 = vmatprep.subr.bf16.mxu0 %v1497
        %5093 = vmatpush1.bf16.msra.mxu0 %v1496
        %5094 = vmatprep.subr.bf16.mxu0 %v1501
        %5095 = vmatpush1.bf16.msra.mxu0 %v1500
        %5096 = vmatprep.subr.bf16.mxu0 %v1505
        %5097 = vmatpush1.bf16.msra.mxu0 %v1504
        %5098 = vmatprep.subr.bf16.mxu0 %v1509
        %5099 = vmatpush1.bf16.msra.mxu0 %v1508
        %5100 = vmatprep.subr.bf16.mxu0 %v1513
        %5101 = vmatpush1.bf16.msra.mxu0 %v1512
        %5102 = vmatprep.subr.bf16.mxu0 %v1517
        %5103 = vmatpush1.bf16.msra.mxu0 %v1516
        %5104 = vmatprep.subr.bf16.mxu0 %v1521
        %5105 = vmatpush1.bf16.msra.mxu0 %v1520
        %5106 = vmatprep.subr.bf16.mxu0 %v1525
        %5107 = vmatpush1.bf16.msra.mxu0 %v1524
        %5108 = vmatprep.subr.bf16.mxu0 %v1529
        %5109 = vmatpush1.bf16.msra.mxu0 %v1528
        %5110 = vmatprep.subr.bf16.mxu0 %v1533
        %5111 = vmatpush1.bf16.msra.mxu0 %v1532
        %5112 = vmatprep.subr.bf16.mxu0 %v1537
        %5113 = vmatpush1.bf16.msra.mxu0 %v1536
        %5114 = vmatprep.subr.bf16.mxu0 %v1541
        %5115 = vmatpush1.bf16.msra.mxu0 %v1540
        %5116 = vmatprep.subr.bf16.mxu0 %v1545
        %5117 = vmatpush1.bf16.msra.mxu0 %v1544
        %5118 = vmatprep.subr.bf16.mxu0 %v1549
        %5119 = vmatpush1.bf16.msra.mxu0 %v1548
        %5120 = vmatprep.subr.bf16.mxu0 %v1553
        %5121 = vmatpush1.bf16.msra.mxu0 %v1552
        %5122 = vmatprep.subr.bf16.mxu0 %v1557
        %5123 = vmatpush1.bf16.msra.mxu0 %v1556
        %5124 = vmatprep.mubr.bf16.mxu0 %v5039
        %5125 = vmatmul.mubr.bf16.gmra.mrb[0].mxu0 %v5038
        %v5126 = vpop.f32.mrb[0].mxu0
        %v5127 = vadd.f32 0.0, %v5126
        %v5128 = vpop.f32.mrb[0].mxu0
        %v5129 = vadd.f32 0.0, %v5128
        %v5130 = vpop.f32.mrb[0].mxu0
        %v5131 = vadd.f32 0.0, %v5130
        %v5132 = vpop.f32.mrb[0].mxu0
        %v5133 = vadd.f32 0.0, %v5132
        %5134 = vmatprep.mubr.bf16.mxu0 %v5042
        %5135 = vmatmul.mubr.bf16.gmra.mrb[0].mxu0 %v5041
        %v5136 = vpop.f32.mrb[0].mxu0
        %v5137 = vadd.f32 0.0, %v5136
        %v5138 = vpop.f32.mrb[0].mxu0
        %v5139 = vadd.f32 0.0, %v5138
        %v5140 = vpop.f32.mrb[0].mxu0
        %v5141 = vadd.f32 0.0, %v5140
        %v5142 = vpop.f32.mrb[0].mxu0
        %v5143 = vadd.f32 0.0, %v5142
        %5144 = vmatprep.mubr.bf16.mxu0 %v5045
        %5145 = vmatmul.mubr.bf16.gmra.mrb[0].mxu0 %v5044
        %v5146 = vpop.f32.mrb[0].mxu0
        %v5147 = vadd.f32 0.0, %v5146
        %v5148 = vpop.f32.mrb[0].mxu0
        %v5149 = vadd.f32 0.0, %v5148
        %v5150 = vpop.f32.mrb[0].mxu0
        %v5151 = vadd.f32 0.0, %v5150
        %v5152 = vpop.f32.mrb[0].mxu0
        %v5153 = vadd.f32 0.0, %v5152
        %5154 = vmatprep.mubr.bf16.mxu0 %v5048
        %5155 = vmatmul.mubr.bf16.gmra.mrb[0].mxu0 %v5047
        %v5156 = vpop.f32.mrb[0].mxu0
        %v5157 = vadd.f32 0.0, %v5156
        %v5158 = vpop.f32.mrb[0].mxu0
        %v5159 = vadd.f32 0.0, %v5158
        %v5160 = vpop.f32.mrb[0].mxu0
        %v5161 = vadd.f32 0.0, %v5160
        %v5162 = vpop.f32.mrb[0].mxu0
        %v5163 = vadd.f32 0.0, %v5162
        %5164 = vmatprep.mubr.bf16.mxu0 %v5051
        %5165 = vmatmul.mubr.bf16.gmra.mrb[0].mxu0 %v5050
        %v5166 = vpop.f32.mrb[0].mxu0
        %v5167 = vadd.f32 0.0, %v5166
        %v5168 = vpop.f32.mrb[0].mxu0
        %v5169 = vadd.f32 0.0, %v5168
        %v5170 = vpop.f32.mrb[0].mxu0
        %v5171 = vadd.f32 0.0, %v5170
        %v5172 = vpop.f32.mrb[0].mxu0
        %v5173 = vadd.f32 0.0, %v5172
        %5174 = vmatprep.mubr.bf16.mxu0 %v5054
        %5175 = vmatmul.mubr.bf16.gmra.mrb[0].mxu0 %v5053
        %v5176 = vpop.f32.mrb[0].mxu0
        %v5177 = vadd.f32 0.0, %v5176
        %v5178 = vpop.f32.mrb[0].mxu0
        %v5179 = vadd.f32 0.0, %v5178
        %v5180 = vpop.f32.mrb[0].mxu0
        %v5181 = vadd.f32 0.0, %v5180
        %v5182 = vpop.f32.mrb[0].mxu0
        %v5183 = vadd.f32 0.0, %v5182
        %5184 = vmatprep.mubr.bf16.mxu0 %v5057
        %5185 = vmatmul.mubr.bf16.gmra.mrb[0].mxu0 %v5056
        %v5186 = vpop.f32.mrb[0].mxu0
        %v5187 = vadd.f32 0.0, %v5186
        %v5188 = vpop.f32.mrb[0].mxu0
        %v5189 = vadd.f32 0.0, %v5188
        %v5190 = vpop.f32.mrb[0].mxu0
        %v5191 = vadd.f32 0.0, %v5190
        %v5192 = vpop.f32.mrb[0].mxu0
        %v5193 = vadd.f32 0.0, %v5192
        %5194 = vmatprep.mubr.bf16.mxu0 %v5060
        %5195 = vmatmul.mubr.bf16.gmra.mrb[0].mxu0 %v5059
        %v5196 = vpop.f32.mrb[0].mxu0
        %v5197 = vadd.f32 0.0, %v5196
        %v5198 = vpop.f32.mrb[0].mxu0
        %v5199 = vadd.f32 0.0, %v5198
        %v5200 = vpop.f32.mrb[0].mxu0
        %v5201 = vadd.f32 0.0, %v5200
        %v5202 = vpop.f32.mrb[0].mxu0
        %v5203 = vadd.f32 0.0, %v5202
        %5204 = vmatprep.mubr.bf16.mxu0 %v5063
        %5205 = vmatmul.mubr.bf16.gmra.mrb[0].mxu0 %v5062
        %v5206 = vpop.f32.mrb[0].mxu0
        %v5207 = vadd.f32 0.0, %v5206
        %v5208 = vpop.f32.mrb[0].mxu0
        %v5209 = vadd.f32 0.0, %v5208
        %v5210 = vpop.f32.mrb[0].mxu0
        %v5211 = vadd.f32 0.0, %v5210
        %v5212 = vpop.f32.mrb[0].mxu0
        %v5213 = vadd.f32 0.0, %v5212
        %5214 = vdwg.mxu0
        %5215 = vmatprep.subr.bf16.mxu0 %v1561
        %5216 = vmatpush1.bf16.msra.mxu0 %v1560
        %5217 = vmatprep.subr.bf16.mxu0 %v1565
        %5218 = vmatpush1.bf16.msra.mxu0 %v1564
        %5219 = vmatprep.subr.bf16.mxu0 %v1569
        %5220 = vmatpush1.bf16.msra.mxu0 %v1568
        %5221 = vmatprep.subr.bf16.mxu0 %v1573
        %5222 = vmatpush1.bf16.msra.mxu0 %v1572
        %5223 = vmatprep.subr.bf16.mxu0 %v1577
        %5224 = vmatpush1.bf16.msra.mxu0 %v1576
        %5225 = vmatprep.subr.bf16.mxu0 %v1581
        %5226 = vmatpush1.bf16.msra.mxu0 %v1580
        %5227 = vmatprep.subr.bf16.mxu0 %v1585
        %5228 = vmatpush1.bf16.msra.mxu0 %v1584
        %5229 = vmatprep.subr.bf16.mxu0 %v1589
        %5230 = vmatpush1.bf16.msra.mxu0 %v1588
        %5231 = vmatprep.subr.bf16.mxu0 0
        %5232 = vmatpush1.bf16.msra.mxu0 0
        %5233 = vmatprep.subr.bf16.mxu0 0
        %5234 = vmatpush1.bf16.msra.mxu0 0
        %5235 = vmatprep.subr.bf16.mxu0 0
        %5236 = vmatpush1.bf16.msra.mxu0 0
        %5237 = vmatprep.subr.bf16.mxu0 0
        %5238 = vmatpush1.bf16.msra.mxu0 0
        %5239 = vmatprep.subr.bf16.mxu0 0
        %5240 = vmatpush1.bf16.msra.mxu0 0
        %5241 = vmatprep.subr.bf16.mxu0 0
        %5242 = vmatpush1.bf16.msra.mxu0 0
        %5243 = vmatprep.subr.bf16.mxu0 0
        %5244 = vmatpush1.bf16.msra.mxu0 0
        %5245 = vmatprep.subr.bf16.mxu0 0
        %5246 = vmatpush1.bf16.msra.mxu0 0
        %5247 = vmatprep.mubr.bf16.mxu0 0
        %5248 = vmatmul.mubr.bf16.gmra.mrb[0].mxu0 %v5040
        %v5249 = vpop.f32.mrb[0].mxu0
        %v5250 = vadd.f32 %v5127, %v5249
        %v5251 = vpop.f32.mrb[0].mxu0
        %v5252 = vadd.f32 %v5129, %v5251
        %v5253 = vpop.f32.mrb[0].mxu0
        %v5254 = vadd.f32 %v5131, %v5253
        %v5255 = vpop.f32.mrb[0].mxu0
        %v5256 = vadd.f32 %v5133, %v5255
        %5257 = vmatprep.mubr.bf16.mxu0 0
        %5258 = vmatmul.mubr.bf16.gmra.mrb[0].mxu0 %v5043
        %v5259 = vpop.f32.mrb[0].mxu0
        %v5260 = vadd.f32 %v5137, %v5259
        %v5261 = vpop.f32.mrb[0].mxu0
        %v5262 = vadd.f32 %v5139, %v5261
        %v5263 = vpop.f32.mrb[0].mxu0
        %v5264 = vadd.f32 %v5141, %v5263
        %v5265 = vpop.f32.mrb[0].mxu0
        %v5266 = vadd.f32 %v5143, %v5265
        %5267 = vmatprep.mubr.bf16.mxu0 0
        %5268 = vmatmul.mubr.bf16.gmra.mrb[0].mxu0 %v5046
        %v5269 = vpop.f32.mrb[0].mxu0
        %v5270 = vadd.f32 %v5147, %v5269
        %v5271 = vpop.f32.mrb[0].mxu0
        %v5272 = vadd.f32 %v5149, %v5271
        %v5273 = vpop.f32.mrb[0].mxu0
        %v5274 = vadd.f32 %v5151, %v5273
        %v5275 = vpop.f32.mrb[0].mxu0
        %v5276 = vadd.f32 %v5153, %v5275
        %5277 = vmatprep.mubr.bf16.mxu0 0
        %5278 = vmatmul.mubr.bf16.gmra.mrb[0].mxu0 %v5049
        %v5279 = vpop.f32.mrb[0].mxu0
        %v5280 = vadd.f32 %v5157, %v5279
        %v5281 = vpop.f32.mrb[0].mxu0
        %v5282 = vadd.f32 %v5159, %v5281
        %v5283 = vpop.f32.mrb[0].mxu0
        %v5284 = vadd.f32 %v5161, %v5283
        %v5285 = vpop.f32.mrb[0].mxu0
        %v5286 = vadd.f32 %v5163, %v5285
        %5287 = vmatprep.mubr.bf16.mxu0 0
        %5288 = vmatmul.mubr.bf16.gmra.mrb[0].mxu0 %v5052
        %v5289 = vpop.f32.mrb[0].mxu0
        %v5290 = vadd.f32 %v5167, %v5289
        %v5291 = vpop.f32.mrb[0].mxu0
        %v5292 = vadd.f32 %v5169, %v5291
        %v5293 = vpop.f32.mrb[0].mxu0
        %v5294 = vadd.f32 %v5171, %v5293
        %v5295 = vpop.f32.mrb[0].mxu0
        %v5296 = vadd.f32 %v5173, %v5295
        %5297 = vmatprep.mubr.bf16.mxu0 0
        %5298 = vmatmul.mubr.bf16.gmra.mrb[0].mxu0 %v5055
        %v5299 = vpop.f32.mrb[0].mxu0
        %v5300 = vadd.f32 %v5177, %v5299
        %v5301 = vpop.f32.mrb[0].mxu0
        %v5302 = vadd.f32 %v5179, %v5301
        %v5303 = vpop.f32.mrb[0].mxu0
        %v5304 = vadd.f32 %v5181, %v5303
        %v5305 = vpop.f32.mrb[0].mxu0
        %v5306 = vadd.f32 %v5183, %v5305
        %5307 = vmatprep.mubr.bf16.mxu0 0
        %5308 = vmatmul.mubr.bf16.gmra.mrb[0].mxu0 %v5058
        %v5309 = vpop.f32.mrb[0].mxu0
        %v5310 = vadd.f32 %v5187, %v5309
        %v5311 = vpop.f32.mrb[0].mxu0
        %v5312 = vadd.f32 %v5189, %v5311
        %v5313 = vpop.f32.mrb[0].mxu0
        %v5314 = vadd.f32 %v5191, %v5313
        %v5315 = vpop.f32.mrb[0].mxu0
        %v5316 = vadd.f32 %v5193, %v5315
        %5317 = vmatprep.mubr.bf16.mxu0 0
        %5318 = vmatmul.mubr.bf16.gmra.mrb[0].mxu0 %v5061
        %v5319 = vpop.f32.mrb[0].mxu0
        %v5320 = vadd.f32 %v5197, %v5319
        %v5321 = vpop.f32.mrb[0].mxu0
        %v5322 = vadd.f32 %v5199, %v5321
        %v5323 = vpop.f32.mrb[0].mxu0
        %v5324 = vadd.f32 %v5201, %v5323
        %v5325 = vpop.f32.mrb[0].mxu0
        %v5326 = vadd.f32 %v5203, %v5325
        %5327 = vmatprep.mubr.bf16.mxu0 0
        %5328 = vmatmul.mubr.bf16.gmra.mrb[0].mxu0 %v5064
        %v5329 = vpop.f32.mrb[0].mxu0
        %v5330 = vadd.f32 %v5207, %v5329
        %v5331 = vpop.f32.mrb[0].mxu0
        %v5332 = vadd.f32 %v5209, %v5331
        %v5333 = vpop.f32.mrb[0].mxu0
        %v5334 = vadd.f32 %v5211, %v5333
        %v5335 = vpop.f32.mrb[0].mxu0
        %v5336 = vadd.f32 %v5213, %v5335
        %5337 = vdwg.mxu0
        %5338 = vmatprep.subr.bf16.mxu0 %v1499
        %5339 = vmatpush1.bf16.msra.mxu0 %v1498
        %5340 = vmatprep.subr.bf16.mxu0 %v1503
        %5341 = vmatpush1.bf16.msra.mxu0 %v1502
        %5342 = vmatprep.subr.bf16.mxu0 %v1507
        %5343 = vmatpush1.bf16.msra.mxu0 %v1506
        %5344 = vmatprep.subr.bf16.mxu0 %v1511
        %5345 = vmatpush1.bf16.msra.mxu0 %v1510
        %5346 = vmatprep.subr.bf16.mxu0 %v1515
        %5347 = vmatpush1.bf16.msra.mxu0 %v1514
        %5348 = vmatprep.subr.bf16.mxu0 %v1519
        %5349 = vmatpush1.bf16.msra.mxu0 %v1518
        %5350 = vmatprep.subr.bf16.mxu0 %v1523
        %5351 = vmatpush1.bf16.msra.mxu0 %v1522
        %5352 = vmatprep.subr.bf16.mxu0 %v1527
        %5353 = vmatpush1.bf16.msra.mxu0 %v1526
        %5354 = vmatprep.subr.bf16.mxu0 %v1531
        %5355 = vmatpush1.bf16.msra.mxu0 %v1530
        %5356 = vmatprep.subr.bf16.mxu0 %v1535
        %5357 = vmatpush1.bf16.msra.mxu0 %v1534
        %5358 = vmatprep.subr.bf16.mxu0 %v1539
        %5359 = vmatpush1.bf16.msra.mxu0 %v1538
        %5360 = vmatprep.subr.bf16.mxu0 %v1543
        %5361 = vmatpush1.bf16.msra.mxu0 %v1542
        %5362 = vmatprep.subr.bf16.mxu0 %v1547
        %5363 = vmatpush1.bf16.msra.mxu0 %v1546
        %5364 = vmatprep.subr.bf16.mxu0 %v1551
        %5365 = vmatpush1.bf16.msra.mxu0 %v1550
        %5366 = vmatprep.subr.bf16.mxu0 %v1555
        %5367 = vmatpush1.bf16.msra.mxu0 %v1554
        %5368 = vmatprep.subr.bf16.mxu0 %v1559
        %5369 = vmatpush1.bf16.msra.mxu0 %v1558
        %5370 = vmatprep.mubr.bf16.mxu0 %v5039
        %5371 = vmatmul.mubr.bf16.gmra.mrb[0].mxu0 %v5038
        %v5372 = vpop.f32.mrb[0].mxu0
        %v5373 = vadd.f32 0.0, %v5372
        %v5374 = vpop.f32.mrb[0].mxu0
        %v5375 = vadd.f32 0.0, %v5374
        %v5376 = vpop.f32.mrb[0].mxu0
        %v5377 = vadd.f32 0.0, %v5376
        %v5378 = vpop.f32.mrb[0].mxu0
        %v5379 = vadd.f32 0.0, %v5378
        %5380 = vmatprep.mubr.bf16.mxu0 %v5042
        %5381 = vmatmul.mubr.bf16.gmra.mrb[0].mxu0 %v5041
        %v5382 = vpop.f32.mrb[0].mxu0
        %v5383 = vadd.f32 0.0, %v5382
        %v5384 = vpop.f32.mrb[0].mxu0
        %v5385 = vadd.f32 0.0, %v5384
        %v5386 = vpop.f32.mrb[0].mxu0
        %v5387 = vadd.f32 0.0, %v5386
        %v5388 = vpop.f32.mrb[0].mxu0
        %v5389 = vadd.f32 0.0, %v5388
        %5390 = vmatprep.mubr.bf16.mxu0 %v5045
        %5391 = vmatmul.mubr.bf16.gmra.mrb[0].mxu0 %v5044
        %v5392 = vpop.f32.mrb[0].mxu0
        %v5393 = vadd.f32 0.0, %v5392
        %v5394 = vpop.f32.mrb[0].mxu0
        %v5395 = vadd.f32 0.0, %v5394
        %v5396 = vpop.f32.mrb[0].mxu0
        %v5397 = vadd.f32 0.0, %v5396
        %v5398 = vpop.f32.mrb[0].mxu0
        %v5399 = vadd.f32 0.0, %v5398
        %5400 = vmatprep.mubr.bf16.mxu0 %v5048
        %5401 = vmatmul.mubr.bf16.gmra.mrb[0].mxu0 %v5047
        %v5402 = vpop.f32.mrb[0].mxu0
        %v5403 = vadd.f32 0.0, %v5402
        %v5404 = vpop.f32.mrb[0].mxu0
        %v5405 = vadd.f32 0.0, %v5404
        %v5406 = vpop.f32.mrb[0].mxu0
        %v5407 = vadd.f32 0.0, %v5406
        %v5408 = vpop.f32.mrb[0].mxu0
        %v5409 = vadd.f32 0.0, %v5408
        %5410 = vmatprep.mubr.bf16.mxu0 %v5051
        %5411 = vmatmul.mubr.bf16.gmra.mrb[0].mxu0 %v5050
        %v5412 = vpop.f32.mrb[0].mxu0
        %v5413 = vadd.f32 0.0, %v5412
        %v5414 = vpop.f32.mrb[0].mxu0
        %v5415 = vadd.f32 0.0, %v5414
        %v5416 = vpop.f32.mrb[0].mxu0
        %v5417 = vadd.f32 0.0, %v5416
        %v5418 = vpop.f32.mrb[0].mxu0
        %v5419 = vadd.f32 0.0, %v5418
        %5420 = vmatprep.mubr.bf16.mxu0 %v5054
        %5421 = vmatmul.mubr.bf16.gmra.mrb[0].mxu0 %v5053
        %v5422 = vpop.f32.mrb[0].mxu0
        %v5423 = vadd.f32 0.0, %v5422
        %v5424 = vpop.f32.mrb[0].mxu0
        %v5425 = vadd.f32 0.0, %v5424
        %v5426 = vpop.f32.mrb[0].mxu0
        %v5427 = vadd.f32 0.0, %v5426
        %v5428 = vpop.f32.mrb[0].mxu0
        %v5429 = vadd.f32 0.0, %v5428
        %5430 = vmatprep.mubr.bf16.mxu0 %v5057
        %5431 = vmatmul.mubr.bf16.gmra.mrb[0].mxu0 %v5056
        %v5432 = vpop.f32.mrb[0].mxu0
        %v5433 = vadd.f32 0.0, %v5432
        %v5434 = vpop.f32.mrb[0].mxu0
        %v5435 = vadd.f32 0.0, %v5434
        %v5436 = vpop.f32.mrb[0].mxu0
        %v5437 = vadd.f32 0.0, %v5436
        %v5438 = vpop.f32.mrb[0].mxu0
        %v5439 = vadd.f32 0.0, %v5438
        %5440 = vmatprep.mubr.bf16.mxu0 %v5060
        %5441 = vmatmul.mubr.bf16.gmra.mrb[0].mxu0 %v5059
        %v5442 = vpop.f32.mrb[0].mxu0
        %v5443 = vadd.f32 0.0, %v5442
        %v5444 = vpop.f32.mrb[0].mxu0
        %v5445 = vadd.f32 0.0, %v5444
        %v5446 = vpop.f32.mrb[0].mxu0
        %v5447 = vadd.f32 0.0, %v5446
        %v5448 = vpop.f32.mrb[0].mxu0
        %v5449 = vadd.f32 0.0, %v5448
        %5450 = vmatprep.mubr.bf16.mxu0 %v5063
        %5451 = vmatmul.mubr.bf16.gmra.mrb[0].mxu0 %v5062
        %v5452 = vpop.f32.mrb[0].mxu0
        %v5453 = vadd.f32 0.0, %v5452
        %v5454 = vpop.f32.mrb[0].mxu0
        %v5455 = vadd.f32 0.0, %v5454
        %v5456 = vpop.f32.mrb[0].mxu0
        %v5457 = vadd.f32 0.0, %v5456
        %v5458 = vpop.f32.mrb[0].mxu0
        %v5459 = vadd.f32 0.0, %v5458
        %5460 = vdwg.mxu0
        %5461 = vmatprep.subr.bf16.mxu0 %v1563
        %5462 = vmatpush1.bf16.msra.mxu0 %v1562
        %5463 = vmatprep.subr.bf16.mxu0 %v1567
        %5464 = vmatpush1.bf16.msra.mxu0 %v1566
        %5465 = vmatprep.subr.bf16.mxu0 %v1571
        %5466 = vmatpush1.bf16.msra.mxu0 %v1570
        %5467 = vmatprep.subr.bf16.mxu0 %v1575
        %5468 = vmatpush1.bf16.msra.mxu0 %v1574
        %5469 = vmatprep.subr.bf16.mxu0 %v1579
        %5470 = vmatpush1.bf16.msra.mxu0 %v1578
        %5471 = vmatprep.subr.bf16.mxu0 %v1583
        %5472 = vmatpush1.bf16.msra.mxu0 %v1582
        %5473 = vmatprep.subr.bf16.mxu0 %v1587
        %5474 = vmatpush1.bf16.msra.mxu0 %v1586
        %5475 = vmatprep.subr.bf16.mxu0 %v1591
        %5476 = vmatpush1.bf16.msra.mxu0 %v1590
        %5477 = vmatprep.subr.bf16.mxu0 0
        %5478 = vmatpush1.bf16.msra.mxu0 0
        %5479 = vmatprep.subr.bf16.mxu0 0
        %5480 = vmatpush1.bf16.msra.mxu0 0
        %5481 = vmatprep.subr.bf16.mxu0 0
        %5482 = vmatpush1.bf16.msra.mxu0 0
        %5483 = vmatprep.subr.bf16.mxu0 0
        %5484 = vmatpush1.bf16.msra.mxu0 0
        %5485 = vmatprep.subr.bf16.mxu0 0
        %5486 = vmatpush1.bf16.msra.mxu0 0
        %5487 = vmatprep.subr.bf16.mxu0 0
        %5488 = vmatpush1.bf16.msra.mxu0 0
        %5489 = vmatprep.subr.bf16.mxu0 0
        %5490 = vmatpush1.bf16.msra.mxu0 0
        %5491 = vmatprep.subr.bf16.mxu0 0
        %5492 = vmatpush1.bf16.msra.mxu0 0
        %5493 = vmatprep.mubr.bf16.mxu0 0
        %5494 = vmatmul.mubr.bf16.gmra.mrb[0].mxu0 %v5040
        %v5495 = vpop.f32.mrb[0].mxu0
        %v5496 = vadd.f32 %v5373, %v5495
        %v5497 = vpop.f32.mrb[0].mxu0
        %v5498 = vadd.f32 %v5375, %v5497
        %v5499 = vpop.f32.mrb[0].mxu0
        %v5500 = vadd.f32 %v5377, %v5499
        %v5501 = vpop.f32.mrb[0].mxu0
        %v5502 = vadd.f32 %v5379, %v5501
        %5503 = vmatprep.mubr.bf16.mxu0 0
        %5504 = vmatmul.mubr.bf16.gmra.mrb[0].mxu0 %v5043
        %v5505 = vpop.f32.mrb[0].mxu0
        %v5506 = vadd.f32 %v5383, %v5505
        %v5507 = vpop.f32.mrb[0].mxu0
        %v5508 = vadd.f32 %v5385, %v5507
        %v5509 = vpop.f32.mrb[0].mxu0
        %v5510 = vadd.f32 %v5387, %v5509
        %v5511 = vpop.f32.mrb[0].mxu0
        %v5512 = vadd.f32 %v5389, %v5511
        %5513 = vmatprep.mubr.bf16.mxu0 0
        %5514 = vmatmul.mubr.bf16.gmra.mrb[0].mxu0 %v5046
        %v5515 = vpop.f32.mrb[0].mxu0
        %v5516 = vadd.f32 %v5393, %v5515
        %v5517 = vpop.f32.mrb[0].mxu0
        %v5518 = vadd.f32 %v5395, %v5517
        %v5519 = vpop.f32.mrb[0].mxu0
        %v5520 = vadd.f32 %v5397, %v5519
        %v5521 = vpop.f32.mrb[0].mxu0
        %v5522 = vadd.f32 %v5399, %v5521
        %5523 = vmatprep.mubr.bf16.mxu0 0
        %5524 = vmatmul.mubr.bf16.gmra.mrb[0].mxu0 %v5049
        %v5525 = vpop.f32.mrb[0].mxu0
        %v5526 = vadd.f32 %v5403, %v5525
        %v5527 = vpop.f32.mrb[0].mxu0
        %v5528 = vadd.f32 %v5405, %v5527
        %v5529 = vpop.f32.mrb[0].mxu0
        %v5530 = vadd.f32 %v5407, %v5529
        %v5531 = vpop.f32.mrb[0].mxu0
        %v5532 = vadd.f32 %v5409, %v5531
        %5533 = vmatprep.mubr.bf16.mxu0 0
        %5534 = vmatmul.mubr.bf16.gmra.mrb[0].mxu0 %v5052
        %v5535 = vpop.f32.mrb[0].mxu0
        %v5536 = vadd.f32 %v5413, %v5535
        %v5537 = vpop.f32.mrb[0].mxu0
        %v5538 = vadd.f32 %v5415, %v5537
        %v5539 = vpop.f32.mrb[0].mxu0
        %v5540 = vadd.f32 %v5417, %v5539
        %v5541 = vpop.f32.mrb[0].mxu0
        %v5542 = vadd.f32 %v5419, %v5541
        %5543 = vmatprep.mubr.bf16.mxu0 0
        %5544 = vmatmul.mubr.bf16.gmra.mrb[0].mxu0 %v5055
        %v5545 = vpop.f32.mrb[0].mxu0
        %v5546 = vadd.f32 %v5423, %v5545
        %v5547 = vpop.f32.mrb[0].mxu0
        %v5548 = vadd.f32 %v5425, %v5547
        %v5549 = vpop.f32.mrb[0].mxu0
        %v5550 = vadd.f32 %v5427, %v5549
        %v5551 = vpop.f32.mrb[0].mxu0
        %v5552 = vadd.f32 %v5429, %v5551
        %5553 = vmatprep.mubr.bf16.mxu0 0
        %5554 = vmatmul.mubr.bf16.gmra.mrb[0].mxu0 %v5058
        %v5555 = vpop.f32.mrb[0].mxu0
        %v5556 = vadd.f32 %v5433, %v5555
        %v5557 = vpop.f32.mrb[0].mxu0
        %v5558 = vadd.f32 %v5435, %v5557
        %v5559 = vpop.f32.mrb[0].mxu0
        %v5560 = vadd.f32 %v5437, %v5559
        %v5561 = vpop.f32.mrb[0].mxu0
        %v5562 = vadd.f32 %v5439, %v5561
        %5563 = vmatprep.mubr.bf16.mxu0 0
        %5564 = vmatmul.mubr.bf16.gmra.mrb[0].mxu0 %v5061
        %v5565 = vpop.f32.mrb[0].mxu0
        %v5566 = vadd.f32 %v5443, %v5565
        %v5567 = vpop.f32.mrb[0].mxu0
        %v5568 = vadd.f32 %v5445, %v5567
        %v5569 = vpop.f32.mrb[0].mxu0
        %v5570 = vadd.f32 %v5447, %v5569
        %v5571 = vpop.f32.mrb[0].mxu0
        %v5572 = vadd.f32 %v5449, %v5571
        %5573 = vmatprep.mubr.bf16.mxu0 0
        %5574 = vmatmul.mubr.bf16.gmra.mrb[0].mxu0 %v5064
        %v5575 = vpop.f32.mrb[0].mxu0
        %v5576 = vadd.f32 %v5453, %v5575
        %v5577 = vpop.f32.mrb[0].mxu0
        %v5578 = vadd.f32 %v5455, %v5577
        %v5579 = vpop.f32.mrb[0].mxu0
        %v5580 = vadd.f32 %v5457, %v5579
        %v5581 = vpop.f32.mrb[0].mxu0
        %v5582 = vadd.f32 %v5459, %v5581
        %5583 = vdwg.mxu0
        %v5588 = vunpack.c.l.b16 %v4908
        %v5589 = vunpack.c.h.b16 %v4908
        %v5590 = vunpack.c.l.b16 %v4909
        %v5591 = vunpack.c.l.b16 %v4910
        %v5592 = vunpack.c.h.b16 %v4910
        %v5593 = vunpack.c.l.b16 %v4911
        %v5594 = vpack.c.b16 %v5591, %v5588
        %v5595 = vpack.c.b16 %v5592, %v5589
        %v5596 = vpack.c.b16 %v5593, %v5590
        %5600 = vmatprep.subr.bf16.mxu0 %v2485
        %5601 = vmatpush1.bf16.msra.mxu0 %v2484
        %5602 = vmatprep.subr.bf16.mxu0 %v2489
        %5603 = vmatpush1.bf16.msra.mxu0 %v2488
        %5604 = vmatprep.subr.bf16.mxu0 %v2493
        %5605 = vmatpush1.bf16.msra.mxu0 %v2492
        %5606 = vmatprep.subr.bf16.mxu0 %v2497
        %5607 = vmatpush1.bf16.msra.mxu0 %v2496
        %5608 = vmatprep.subr.bf16.mxu0 %v2501
        %5609 = vmatpush1.bf16.msra.mxu0 %v2500
        %5610 = vmatprep.subr.bf16.mxu0 %v2505
        %5611 = vmatpush1.bf16.msra.mxu0 %v2504
        %5612 = vmatprep.subr.bf16.mxu0 %v2509
        %5613 = vmatpush1.bf16.msra.mxu0 %v2508
        %5614 = vmatprep.subr.bf16.mxu0 %v2513
        %5615 = vmatpush1.bf16.msra.mxu0 %v2512
        %5616 = vmatprep.subr.bf16.mxu0 %v2517
        %5617 = vmatpush1.bf16.msra.mxu0 %v2516
        %5618 = vmatprep.subr.bf16.mxu0 %v2521
        %5619 = vmatpush1.bf16.msra.mxu0 %v2520
        %5620 = vmatprep.subr.bf16.mxu0 %v2525
        %5621 = vmatpush1.bf16.msra.mxu0 %v2524
        %5622 = vmatprep.subr.bf16.mxu0 %v2529
        %5623 = vmatpush1.bf16.msra.mxu0 %v2528
        %5624 = vmatprep.subr.bf16.mxu0 %v2533
        %5625 = vmatpush1.bf16.msra.mxu0 %v2532
        %5626 = vmatprep.subr.bf16.mxu0 %v2537
        %5627 = vmatpush1.bf16.msra.mxu0 %v2536
        %5628 = vmatprep.subr.bf16.mxu0 %v2541
        %5629 = vmatpush1.bf16.msra.mxu0 %v2540
        %5630 = vmatprep.subr.bf16.mxu0 %v2545
        %5631 = vmatpush1.bf16.msra.mxu0 %v2544
        %5632 = vmatprep.mubr.bf16.mxu0 %v5595
        %5633 = vmatmul.mubr.bf16.gmra.mrb[0].mxu0 %v5594
        %v5634 = vpop.f32.mrb[0].mxu0
        %v5635 = vadd.f32 %v5250, %v5634
        %v5636 = vpop.f32.mrb[0].mxu0
        %v5637 = vadd.f32 %v5252, %v5636
        %v5638 = vpop.f32.mrb[0].mxu0
        %v5639 = vadd.f32 %v5254, %v5638
        %v5640 = vpop.f32.mrb[0].mxu0
        %v5641 = vadd.f32 %v5256, %v5640
        %5642 = vmatprep.mubr.bf16.mxu0 %v5039
        %5643 = vmatmul.mubr.bf16.gmra.mrb[0].mxu0 %v5038
        %v5644 = vpop.f32.mrb[0].mxu0
        %v5645 = vadd.f32 %v5260, %v5644
        %v5646 = vpop.f32.mrb[0].mxu0
        %v5647 = vadd.f32 %v5262, %v5646
        %v5648 = vpop.f32.mrb[0].mxu0
        %v5649 = vadd.f32 %v5264, %v5648
        %v5650 = vpop.f32.mrb[0].mxu0
        %v5651 = vadd.f32 %v5266, %v5650
        %5652 = vmatprep.mubr.bf16.mxu0 %v5042
        %5653 = vmatmul.mubr.bf16.gmra.mrb[0].mxu0 %v5041
        %v5654 = vpop.f32.mrb[0].mxu0
        %v5655 = vadd.f32 %v5270, %v5654
        %v5656 = vpop.f32.mrb[0].mxu0
        %v5657 = vadd.f32 %v5272, %v5656
        %v5658 = vpop.f32.mrb[0].mxu0
        %v5659 = vadd.f32 %v5274, %v5658
        %v5660 = vpop.f32.mrb[0].mxu0
        %v5661 = vadd.f32 %v5276, %v5660
        %5662 = vmatprep.mubr.bf16.mxu0 %v5045
        %5663 = vmatmul.mubr.bf16.gmra.mrb[0].mxu0 %v5044
        %v5664 = vpop.f32.mrb[0].mxu0
        %v5665 = vadd.f32 %v5280, %v5664
        %v5666 = vpop.f32.mrb[0].mxu0
        %v5667 = vadd.f32 %v5282, %v5666
        %v5668 = vpop.f32.mrb[0].mxu0
        %v5669 = vadd.f32 %v5284, %v5668
        %v5670 = vpop.f32.mrb[0].mxu0
        %v5671 = vadd.f32 %v5286, %v5670
        %5672 = vmatprep.mubr.bf16.mxu0 %v5048
        %5673 = vmatmul.mubr.bf16.gmra.mrb[0].mxu0 %v5047
        %v5674 = vpop.f32.mrb[0].mxu0
        %v5675 = vadd.f32 %v5290, %v5674
        %v5676 = vpop.f32.mrb[0].mxu0
        %v5677 = vadd.f32 %v5292, %v5676
        %v5678 = vpop.f32.mrb[0].mxu0
        %v5679 = vadd.f32 %v5294, %v5678
        %v5680 = vpop.f32.mrb[0].mxu0
        %v5681 = vadd.f32 %v5296, %v5680
        %5682 = vmatprep.mubr.bf16.mxu0 %v5051
        %5683 = vmatmul.mubr.bf16.gmra.mrb[0].mxu0 %v5050
        %v5684 = vpop.f32.mrb[0].mxu0
        %v5685 = vadd.f32 %v5300, %v5684
        %v5686 = vpop.f32.mrb[0].mxu0
        %v5687 = vadd.f32 %v5302, %v5686
        %v5688 = vpop.f32.mrb[0].mxu0
        %v5689 = vadd.f32 %v5304, %v5688
        %v5690 = vpop.f32.mrb[0].mxu0
        %v5691 = vadd.f32 %v5306, %v5690
        %5692 = vmatprep.mubr.bf16.mxu0 %v5054
        %5693 = vmatmul.mubr.bf16.gmra.mrb[0].mxu0 %v5053
        %v5694 = vpop.f32.mrb[0].mxu0
        %v5695 = vadd.f32 %v5310, %v5694
        %v5696 = vpop.f32.mrb[0].mxu0
        %v5697 = vadd.f32 %v5312, %v5696
        %v5698 = vpop.f32.mrb[0].mxu0
        %v5699 = vadd.f32 %v5314, %v5698
        %v5700 = vpop.f32.mrb[0].mxu0
        %v5701 = vadd.f32 %v5316, %v5700
        %5702 = vmatprep.mubr.bf16.mxu0 %v5057
        %5703 = vmatmul.mubr.bf16.gmra.mrb[0].mxu0 %v5056
        %v5704 = vpop.f32.mrb[0].mxu0
        %v5705 = vadd.f32 %v5320, %v5704
        %v5706 = vpop.f32.mrb[0].mxu0
        %v5707 = vadd.f32 %v5322, %v5706
        %v5708 = vpop.f32.mrb[0].mxu0
        %v5709 = vadd.f32 %v5324, %v5708
        %v5710 = vpop.f32.mrb[0].mxu0
        %v5711 = vadd.f32 %v5326, %v5710
        %5712 = vmatprep.mubr.bf16.mxu0 %v5060
        %5713 = vmatmul.mubr.bf16.gmra.mrb[0].mxu0 %v5059
        %v5714 = vpop.f32.mrb[0].mxu0
        %v5715 = vadd.f32 %v5330, %v5714
        %v5716 = vpop.f32.mrb[0].mxu0
        %v5717 = vadd.f32 %v5332, %v5716
        %v5718 = vpop.f32.mrb[0].mxu0
        %v5719 = vadd.f32 %v5334, %v5718
        %v5720 = vpop.f32.mrb[0].mxu0
        %v5721 = vadd.f32 %v5336, %v5720
        %5722 = vdwg.mxu0
        %5723 = vmatprep.subr.bf16.mxu0 %v2549
        %5724 = vmatpush1.bf16.msra.mxu0 %v2548
        %5725 = vmatprep.subr.bf16.mxu0 %v2553
        %5726 = vmatpush1.bf16.msra.mxu0 %v2552
        %5727 = vmatprep.subr.bf16.mxu0 %v2557
        %5728 = vmatpush1.bf16.msra.mxu0 %v2556
        %5729 = vmatprep.subr.bf16.mxu0 %v2561
        %5730 = vmatpush1.bf16.msra.mxu0 %v2560
        %5731 = vmatprep.subr.bf16.mxu0 %v2565
        %5732 = vmatpush1.bf16.msra.mxu0 %v2564
        %5733 = vmatprep.subr.bf16.mxu0 %v2569
        %5734 = vmatpush1.bf16.msra.mxu0 %v2568
        %5735 = vmatprep.subr.bf16.mxu0 %v2573
        %5736 = vmatpush1.bf16.msra.mxu0 %v2572
        %5737 = vmatprep.subr.bf16.mxu0 %v2577
        %5738 = vmatpush1.bf16.msra.mxu0 %v2576
        %5739 = vmatprep.subr.bf16.mxu0 0
        %5740 = vmatpush1.bf16.msra.mxu0 0
        %5741 = vmatprep.subr.bf16.mxu0 0
        %5742 = vmatpush1.bf16.msra.mxu0 0
        %5743 = vmatprep.subr.bf16.mxu0 0
        %5744 = vmatpush1.bf16.msra.mxu0 0
        %5745 = vmatprep.subr.bf16.mxu0 0
        %5746 = vmatpush1.bf16.msra.mxu0 0
        %5747 = vmatprep.subr.bf16.mxu0 0
        %5748 = vmatpush1.bf16.msra.mxu0 0
        %5749 = vmatprep.subr.bf16.mxu0 0
        %5750 = vmatpush1.bf16.msra.mxu0 0
        %5751 = vmatprep.subr.bf16.mxu0 0
        %5752 = vmatpush1.bf16.msra.mxu0 0
        %5753 = vmatprep.subr.bf16.mxu0 0
        %5754 = vmatpush1.bf16.msra.mxu0 0
        %5755 = vmatprep.mubr.bf16.mxu0 0
        %5756 = vmatmul.mubr.bf16.gmra.mrb[0].mxu0 %v5596
        %v5757 = vpop.f32.mrb[0].mxu0
        %v5758 = vadd.f32 %v5635, %v5757
        %v5759 = vpop.f32.mrb[0].mxu0
        %v5760 = vadd.f32 %v5637, %v5759
        %v5761 = vpop.f32.mrb[0].mxu0
        %v5762 = vadd.f32 %v5639, %v5761
        %v5763 = vpop.f32.mrb[0].mxu0
        %v5764 = vadd.f32 %v5641, %v5763
        %5765 = vmatprep.mubr.bf16.mxu0 0
        %5766 = vmatmul.mubr.bf16.gmra.mrb[0].mxu0 %v5040
        %v5767 = vpop.f32.mrb[0].mxu0
        %v5768 = vadd.f32 %v5645, %v5767
        %v5769 = vpop.f32.mrb[0].mxu0
        %v5770 = vadd.f32 %v5647, %v5769
        %v5771 = vpop.f32.mrb[0].mxu0
        %v5772 = vadd.f32 %v5649, %v5771
        %v5773 = vpop.f32.mrb[0].mxu0
        %v5774 = vadd.f32 %v5651, %v5773
        %5775 = vmatprep.mubr.bf16.mxu0 0
        %5776 = vmatmul.mubr.bf16.gmra.mrb[0].mxu0 %v5043
        %v5777 = vpop.f32.mrb[0].mxu0
        %v5778 = vadd.f32 %v5655, %v5777
        %v5779 = vpop.f32.mrb[0].mxu0
        %v5780 = vadd.f32 %v5657, %v5779
        %v5781 = vpop.f32.mrb[0].mxu0
        %v5782 = vadd.f32 %v5659, %v5781
        %v5783 = vpop.f32.mrb[0].mxu0
        %v5784 = vadd.f32 %v5661, %v5783
        %5785 = vmatprep.mubr.bf16.mxu0 0
        %5786 = vmatmul.mubr.bf16.gmra.mrb[0].mxu0 %v5046
        %v5787 = vpop.f32.mrb[0].mxu0
        %v5788 = vadd.f32 %v5665, %v5787
        %v5789 = vpop.f32.mrb[0].mxu0
        %v5790 = vadd.f32 %v5667, %v5789
        %v5791 = vpop.f32.mrb[0].mxu0
        %v5792 = vadd.f32 %v5669, %v5791
        %v5793 = vpop.f32.mrb[0].mxu0
        %v5794 = vadd.f32 %v5671, %v5793
        %5795 = vmatprep.mubr.bf16.mxu0 0
        %5796 = vmatmul.mubr.bf16.gmra.mrb[0].mxu0 %v5049
        %v5797 = vpop.f32.mrb[0].mxu0
        %v5798 = vadd.f32 %v5675, %v5797
        %v5799 = vpop.f32.mrb[0].mxu0
        %v5800 = vadd.f32 %v5677, %v5799
        %v5801 = vpop.f32.mrb[0].mxu0
        %v5802 = vadd.f32 %v5679, %v5801
        %v5803 = vpop.f32.mrb[0].mxu0
        %v5804 = vadd.f32 %v5681, %v5803
        %5805 = vmatprep.mubr.bf16.mxu0 0
        %5806 = vmatmul.mubr.bf16.gmra.mrb[0].mxu0 %v5052
        %v5807 = vpop.f32.mrb[0].mxu0
        %v5808 = vadd.f32 %v5685, %v5807
        %v5809 = vpop.f32.mrb[0].mxu0
        %v5810 = vadd.f32 %v5687, %v5809
        %v5811 = vpop.f32.mrb[0].mxu0
        %v5812 = vadd.f32 %v5689, %v5811
        %v5813 = vpop.f32.mrb[0].mxu0
        %v5814 = vadd.f32 %v5691, %v5813
        %5815 = vmatprep.mubr.bf16.mxu0 0
        %5816 = vmatmul.mubr.bf16.gmra.mrb[0].mxu0 %v5055
        %v5817 = vpop.f32.mrb[0].mxu0
        %v5818 = vadd.f32 %v5695, %v5817
        %v5819 = vpop.f32.mrb[0].mxu0
        %v5820 = vadd.f32 %v5697, %v5819
        %v5821 = vpop.f32.mrb[0].mxu0
        %v5822 = vadd.f32 %v5699, %v5821
        %v5823 = vpop.f32.mrb[0].mxu0
        %v5824 = vadd.f32 %v5701, %v5823
        %5825 = vmatprep.mubr.bf16.mxu0 0
        %5826 = vmatmul.mubr.bf16.gmra.mrb[0].mxu0 %v5058
        %v5827 = vpop.f32.mrb[0].mxu0
        %v5828 = vadd.f32 %v5705, %v5827
        %v5829 = vpop.f32.mrb[0].mxu0
        %v5830 = vadd.f32 %v5707, %v5829
        %v5831 = vpop.f32.mrb[0].mxu0
        %v5832 = vadd.f32 %v5709, %v5831
        %v5833 = vpop.f32.mrb[0].mxu0
        %v5834 = vadd.f32 %v5711, %v5833
        %5835 = vmatprep.mubr.bf16.mxu0 0
        %5836 = vmatmul.mubr.bf16.gmra.mrb[0].mxu0 %v5061
        %v5837 = vpop.f32.mrb[0].mxu0
        %v5838 = vadd.f32 %v5715, %v5837
        %v5839 = vpop.f32.mrb[0].mxu0
        %v5840 = vadd.f32 %v5717, %v5839
        %v5841 = vpop.f32.mrb[0].mxu0
        %v5842 = vadd.f32 %v5719, %v5841
        %v5843 = vpop.f32.mrb[0].mxu0
        %v5844 = vadd.f32 %v5721, %v5843
        %5845 = vdwg.mxu0
        %5846 = vmatprep.subr.bf16.mxu0 %v2487
        %5847 = vmatpush1.bf16.msra.mxu0 %v2486
        %5848 = vmatprep.subr.bf16.mxu0 %v2491
        %5849 = vmatpush1.bf16.msra.mxu0 %v2490
        %5850 = vmatprep.subr.bf16.mxu0 %v2495
        %5851 = vmatpush1.bf16.msra.mxu0 %v2494
        %5852 = vmatprep.subr.bf16.mxu0 %v2499
        %5853 = vmatpush1.bf16.msra.mxu0 %v2498
        %5854 = vmatprep.subr.bf16.mxu0 %v2503
        %5855 = vmatpush1.bf16.msra.mxu0 %v2502
        %5856 = vmatprep.subr.bf16.mxu0 %v2507
        %5857 = vmatpush1.bf16.msra.mxu0 %v2506
        %5858 = vmatprep.subr.bf16.mxu0 %v2511
        %5859 = vmatpush1.bf16.msra.mxu0 %v2510
        %5860 = vmatprep.subr.bf16.mxu0 %v2515
        %5861 = vmatpush1.bf16.msra.mxu0 %v2514
        %5862 = vmatprep.subr.bf16.mxu0 %v2519
        %5863 = vmatpush1.bf16.msra.mxu0 %v2518
        %5864 = vmatprep.subr.bf16.mxu0 %v2523
        %5865 = vmatpush1.bf16.msra.mxu0 %v2522
        %5866 = vmatprep.subr.bf16.mxu0 %v2527
        %5867 = vmatpush1.bf16.msra.mxu0 %v2526
        %5868 = vmatprep.subr.bf16.mxu0 %v2531
        %5869 = vmatpush1.bf16.msra.mxu0 %v2530
        %5870 = vmatprep.subr.bf16.mxu0 %v2535
        %5871 = vmatpush1.bf16.msra.mxu0 %v2534
        %5872 = vmatprep.subr.bf16.mxu0 %v2539
        %5873 = vmatpush1.bf16.msra.mxu0 %v2538
        %5874 = vmatprep.subr.bf16.mxu0 %v2543
        %5875 = vmatpush1.bf16.msra.mxu0 %v2542
        %5876 = vmatprep.subr.bf16.mxu0 %v2547
        %5877 = vmatpush1.bf16.msra.mxu0 %v2546
        %5878 = vmatprep.mubr.bf16.mxu0 %v5595
        %5879 = vmatmul.mubr.bf16.gmra.mrb[0].mxu0 %v5594
        %v5880 = vpop.f32.mrb[0].mxu0
        %v5881 = vadd.f32 %v5496, %v5880
        %v5882 = vpop.f32.mrb[0].mxu0
        %v5883 = vadd.f32 %v5498, %v5882
        %v5884 = vpop.f32.mrb[0].mxu0
        %v5885 = vadd.f32 %v5500, %v5884
        %v5886 = vpop.f32.mrb[0].mxu0
        %v5887 = vadd.f32 %v5502, %v5886
        %5888 = vmatprep.mubr.bf16.mxu0 %v5039
        %5889 = vmatmul.mubr.bf16.gmra.mrb[0].mxu0 %v5038
        %v5890 = vpop.f32.mrb[0].mxu0
        %v5891 = vadd.f32 %v5506, %v5890
        %v5892 = vpop.f32.mrb[0].mxu0
        %v5893 = vadd.f32 %v5508, %v5892
        %v5894 = vpop.f32.mrb[0].mxu0
        %v5895 = vadd.f32 %v5510, %v5894
        %v5896 = vpop.f32.mrb[0].mxu0
        %v5897 = vadd.f32 %v5512, %v5896
        %5898 = vmatprep.mubr.bf16.mxu0 %v5042
        %5899 = vmatmul.mubr.bf16.gmra.mrb[0].mxu0 %v5041
        %v5900 = vpop.f32.mrb[0].mxu0
        %v5901 = vadd.f32 %v5516, %v5900
        %v5902 = vpop.f32.mrb[0].mxu0
        %v5903 = vadd.f32 %v5518, %v5902
        %v5904 = vpop.f32.mrb[0].mxu0
        %v5905 = vadd.f32 %v5520, %v5904
        %v5906 = vpop.f32.mrb[0].mxu0
        %v5907 = vadd.f32 %v5522, %v5906
        %5908 = vmatprep.mubr.bf16.mxu0 %v5045
        %5909 = vmatmul.mubr.bf16.gmra.mrb[0].mxu0 %v5044
        %v5910 = vpop.f32.mrb[0].mxu0
        %v5911 = vadd.f32 %v5526, %v5910
        %v5912 = vpop.f32.mrb[0].mxu0
        %v5913 = vadd.f32 %v5528, %v5912
        %v5914 = vpop.f32.mrb[0].mxu0
        %v5915 = vadd.f32 %v5530, %v5914
        %v5916 = vpop.f32.mrb[0].mxu0
        %v5917 = vadd.f32 %v5532, %v5916
        %5918 = vmatprep.mubr.bf16.mxu0 %v5048
        %5919 = vmatmul.mubr.bf16.gmra.mrb[0].mxu0 %v5047
        %v5920 = vpop.f32.mrb[0].mxu0
        %v5921 = vadd.f32 %v5536, %v5920
        %v5922 = vpop.f32.mrb[0].mxu0
        %v5923 = vadd.f32 %v5538, %v5922
        %v5924 = vpop.f32.mrb[0].mxu0
        %v5925 = vadd.f32 %v5540, %v5924
        %v5926 = vpop.f32.mrb[0].mxu0
        %v5927 = vadd.f32 %v5542, %v5926
        %5928 = vmatprep.mubr.bf16.mxu0 %v5051
        %5929 = vmatmul.mubr.bf16.gmra.mrb[0].mxu0 %v5050
        %v5930 = vpop.f32.mrb[0].mxu0
        %v5931 = vadd.f32 %v5546, %v5930
        %v5932 = vpop.f32.mrb[0].mxu0
        %v5933 = vadd.f32 %v5548, %v5932
        %v5934 = vpop.f32.mrb[0].mxu0
        %v5935 = vadd.f32 %v5550, %v5934
        %v5936 = vpop.f32.mrb[0].mxu0
        %v5937 = vadd.f32 %v5552, %v5936
        %5938 = vmatprep.mubr.bf16.mxu0 %v5054
        %5939 = vmatmul.mubr.bf16.gmra.mrb[0].mxu0 %v5053
        %v5940 = vpop.f32.mrb[0].mxu0
        %v5941 = vadd.f32 %v5556, %v5940
        %v5942 = vpop.f32.mrb[0].mxu0
        %v5943 = vadd.f32 %v5558, %v5942
        %v5944 = vpop.f32.mrb[0].mxu0
        %v5945 = vadd.f32 %v5560, %v5944
        %v5946 = vpop.f32.mrb[0].mxu0
        %v5947 = vadd.f32 %v5562, %v5946
        %5948 = vmatprep.mubr.bf16.mxu0 %v5057
        %5949 = vmatmul.mubr.bf16.gmra.mrb[0].mxu0 %v5056
        %v5950 = vpop.f32.mrb[0].mxu0
        %v5951 = vadd.f32 %v5566, %v5950
        %v5952 = vpop.f32.mrb[0].mxu0
        %v5953 = vadd.f32 %v5568, %v5952
        %v5954 = vpop.f32.mrb[0].mxu0
        %v5955 = vadd.f32 %v5570, %v5954
        %v5956 = vpop.f32.mrb[0].mxu0
        %v5957 = vadd.f32 %v5572, %v5956
        %5958 = vmatprep.mubr.bf16.mxu0 %v5060
        %5959 = vmatmul.mubr.bf16.gmra.mrb[0].mxu0 %v5059
        %v5960 = vpop.f32.mrb[0].mxu0
        %v5961 = vadd.f32 %v5576, %v5960
        %v5962 = vpop.f32.mrb[0].mxu0
        %v5963 = vadd.f32 %v5578, %v5962
        %v5964 = vpop.f32.mrb[0].mxu0
        %v5965 = vadd.f32 %v5580, %v5964
        %v5966 = vpop.f32.mrb[0].mxu0
        %v5967 = vadd.f32 %v5582, %v5966
        %5968 = vdwg.mxu0
        %5969 = vmatprep.subr.bf16.mxu0 %v2551
        %5970 = vmatpush1.bf16.msra.mxu0 %v2550
        %5971 = vmatprep.subr.bf16.mxu0 %v2555
        %5972 = vmatpush1.bf16.msra.mxu0 %v2554
        %5973 = vmatprep.subr.bf16.mxu0 %v2559
        %5974 = vmatpush1.bf16.msra.mxu0 %v2558
        %5975 = vmatprep.subr.bf16.mxu0 %v2563
        %5976 = vmatpush1.bf16.msra.mxu0 %v2562
        %5977 = vmatprep.subr.bf16.mxu0 %v2567
        %5978 = vmatpush1.bf16.msra.mxu0 %v2566
        %5979 = vmatprep.subr.bf16.mxu0 %v2571
        %5980 = vmatpush1.bf16.msra.mxu0 %v2570
        %5981 = vmatprep.subr.bf16.mxu0 %v2575
        %5982 = vmatpush1.bf16.msra.mxu0 %v2574
        %5983 = vmatprep.subr.bf16.mxu0 %v2579
        %5984 = vmatpush1.bf16.msra.mxu0 %v2578
        %5985 = vmatprep.subr.bf16.mxu0 0
        %5986 = vmatpush1.bf16.msra.mxu0 0
        %5987 = vmatprep.subr.bf16.mxu0 0
        %5988 = vmatpush1.bf16.msra.mxu0 0
        %5989 = vmatprep.subr.bf16.mxu0 0
        %5990 = vmatpush1.bf16.msra.mxu0 0
        %5991 = vmatprep.subr.bf16.mxu0 0
        %5992 = vmatpush1.bf16.msra.mxu0 0
        %5993 = vmatprep.subr.bf16.mxu0 0
        %5994 = vmatpush1.bf16.msra.mxu0 0
        %5995 = vmatprep.subr.bf16.mxu0 0
        %5996 = vmatpush1.bf16.msra.mxu0 0
        %5997 = vmatprep.subr.bf16.mxu0 0
        %5998 = vmatpush1.bf16.msra.mxu0 0
        %5999 = vmatprep.subr.bf16.mxu0 0
        %6000 = vmatpush1.bf16.msra.mxu0 0
        %6001 = vmatprep.mubr.bf16.mxu0 0
        %6002 = vmatmul.mubr.bf16.gmra.mrb[0].mxu0 %v5596
        %v6003 = vpop.f32.mrb[0].mxu0
        %v6004 = vadd.f32 %v5881, %v6003
        %v6005 = vpop.f32.mrb[0].mxu0
        %v6006 = vadd.f32 %v5883, %v6005
        %v6007 = vpop.f32.mrb[0].mxu0
        %v6008 = vadd.f32 %v5885, %v6007
        %v6009 = vpop.f32.mrb[0].mxu0
        %v6010 = vadd.f32 %v5887, %v6009
        %6011 = vmatprep.mubr.bf16.mxu0 0
        %6012 = vmatmul.mubr.bf16.gmra.mrb[0].mxu0 %v5040
        %v6013 = vpop.f32.mrb[0].mxu0
        %v6014 = vadd.f32 %v5891, %v6013
        %v6015 = vpop.f32.mrb[0].mxu0
        %v6016 = vadd.f32 %v5893, %v6015
        %v6017 = vpop.f32.mrb[0].mxu0
        %v6018 = vadd.f32 %v5895, %v6017
        %v6019 = vpop.f32.mrb[0].mxu0
        %v6020 = vadd.f32 %v5897, %v6019
        %6021 = vmatprep.mubr.bf16.mxu0 0
        %6022 = vmatmul.mubr.bf16.gmra.mrb[0].mxu0 %v5043
        %v6023 = vpop.f32.mrb[0].mxu0
        %v6024 = vadd.f32 %v5901, %v6023
        %v6025 = vpop.f32.mrb[0].mxu0
        %v6026 = vadd.f32 %v5903, %v6025
        %v6027 = vpop.f32.mrb[0].mxu0
        %v6028 = vadd.f32 %v5905, %v6027
        %v6029 = vpop.f32.mrb[0].mxu0
        %v6030 = vadd.f32 %v5907, %v6029
        %6031 = vmatprep.mubr.bf16.mxu0 0
        %6032 = vmatmul.mubr.bf16.gmra.mrb[0].mxu0 %v5046
        %v6033 = vpop.f32.mrb[0].mxu0
        %v6034 = vadd.f32 %v5911, %v6033
        %v6035 = vpop.f32.mrb[0].mxu0
        %v6036 = vadd.f32 %v5913, %v6035
        %v6037 = vpop.f32.mrb[0].mxu0
        %v6038 = vadd.f32 %v5915, %v6037
        %v6039 = vpop.f32.mrb[0].mxu0
        %v6040 = vadd.f32 %v5917, %v6039
        %6041 = vmatprep.mubr.bf16.mxu0 0
        %6042 = vmatmul.mubr.bf16.gmra.mrb[0].mxu0 %v5049
        %v6043 = vpop.f32.mrb[0].mxu0
        %v6044 = vadd.f32 %v5921, %v6043
        %v6045 = vpop.f32.mrb[0].mxu0
        %v6046 = vadd.f32 %v5923, %v6045
        %v6047 = vpop.f32.mrb[0].mxu0
        %v6048 = vadd.f32 %v5925, %v6047
        %v6049 = vpop.f32.mrb[0].mxu0
        %v6050 = vadd.f32 %v5927, %v6049
        %6051 = vmatprep.mubr.bf16.mxu0 0
        %6052 = vmatmul.mubr.bf16.gmra.mrb[0].mxu0 %v5052
        %v6053 = vpop.f32.mrb[0].mxu0
        %v6054 = vadd.f32 %v5931, %v6053
        %v6055 = vpop.f32.mrb[0].mxu0
        %v6056 = vadd.f32 %v5933, %v6055
        %v6057 = vpop.f32.mrb[0].mxu0
        %v6058 = vadd.f32 %v5935, %v6057
        %v6059 = vpop.f32.mrb[0].mxu0
        %v6060 = vadd.f32 %v5937, %v6059
        %6061 = vmatprep.mubr.bf16.mxu0 0
        %6062 = vmatmul.mubr.bf16.gmra.mrb[0].mxu0 %v5055
        %v6063 = vpop.f32.mrb[0].mxu0
        %v6064 = vadd.f32 %v5941, %v6063
        %v6065 = vpop.f32.mrb[0].mxu0
        %v6066 = vadd.f32 %v5943, %v6065
        %v6067 = vpop.f32.mrb[0].mxu0
        %v6068 = vadd.f32 %v5945, %v6067
        %v6069 = vpop.f32.mrb[0].mxu0
        %v6070 = vadd.f32 %v5947, %v6069
        %6071 = vmatprep.mubr.bf16.mxu0 0
        %6072 = vmatmul.mubr.bf16.gmra.mrb[0].mxu0 %v5058
        %v6073 = vpop.f32.mrb[0].mxu0
        %v6074 = vadd.f32 %v5951, %v6073
        %v6075 = vpop.f32.mrb[0].mxu0
        %v6076 = vadd.f32 %v5953, %v6075
        %v6077 = vpop.f32.mrb[0].mxu0
        %v6078 = vadd.f32 %v5955, %v6077
        %v6079 = vpop.f32.mrb[0].mxu0
        %v6080 = vadd.f32 %v5957, %v6079
        %6081 = vmatprep.mubr.bf16.mxu0 0
        %6082 = vmatmul.mubr.bf16.gmra.mrb[0].mxu0 %v5061
        %v6083 = vpop.f32.mrb[0].mxu0
        %v6084 = vadd.f32 %v5961, %v6083
        %v6085 = vpop.f32.mrb[0].mxu0
        %v6086 = vadd.f32 %v5963, %v6085
        %v6087 = vpop.f32.mrb[0].mxu0
        %v6088 = vadd.f32 %v5965, %v6087
        %v6089 = vpop.f32.mrb[0].mxu0
        %v6090 = vadd.f32 %v5967, %v6089
        %6091 = vdwg.mxu0
        %v6092 = vld [vmem:[%s4907 + $0x30] sm:$0xff]
        %v6093 = vld [vmem:[%s4907 + $0x38] sm:$0xf]
        %v6094 = vld [vmem:[%s4907 + $0x3c] sm:$0xff]
        %v6095 = vld [vmem:[%s4907 + $0x44] sm:$0xf]
        %v6096 = vld [vmem:[%s4907 + $0x48] sm:$0xff]
        %v6097 = vld [vmem:[%s4907 + $0x50] sm:$0xf]
        %v6098 = vld [vmem:[%s4907 + $0x54] sm:$0xff]
        %v6099 = vld [vmem:[%s4907 + $0x5c] sm:$0xf]
        %v6100 = vld [vmem:[%s4907 + $0x60] sm:$0xff]
        %v6101 = vld [vmem:[%s4907 + $0x68] sm:$0xf]
        %v6102 = vld [vmem:[%s4907 + $0x6c] sm:$0xff]
        %v6103 = vld [vmem:[%s4907 + $0x74] sm:$0xf]
        %v6104 = vld [vmem:[%s4907 + $0x78] sm:$0xff]
        %v6105 = vld [vmem:[%s4907 + $0x80] sm:$0xf]
        %v6106 = vld [vmem:[%s4907 + $0x84] sm:$0xff]
        %v6107 = vld [vmem:[%s4907 + $0x8c] sm:$0xf]
        %v6108 = vld [vmem:[%s4907 + $0x90] sm:$0xff]
        %v6109 = vld [vmem:[%s4907 + $0x98] sm:$0xf]
        %v6110 = vld [vmem:[%s4907 + $0x9c] sm:$0xff]
        %v6111 = vld [vmem:[%s4907 + $0xa4] sm:$0xf]
        %v6112 = vld [vmem:[%s4907 + $0xa8] sm:$0xff]
        %v6113 = vld [vmem:[%s4907 + $0xb0] sm:$0xf]
        %v6114 = vld [vmem:[%s4907 + $0xb4] sm:$0xff]
        %v6115 = vld [vmem:[%s4907 + $0xbc] sm:$0xf]
        %v6116 = vld [vmem:[%s4907 + $0xc0] sm:$0xff]
        %v6117 = vld [vmem:[%s4907 + $0xc8] sm:$0xf]
        %v6118 = vld [vmem:[%s4907 + $0xcc] sm:$0xff]
        %v6119 = vld [vmem:[%s4907 + $0xd4] sm:$0xf]
        %v6120 = vld [vmem:[%s4907 + $0xd8] sm:$0xff]
        %v6121 = vld [vmem:[%s4907 + $0xe0] sm:$0xf]
        %v6122 = vld [vmem:[%s4907 + $0xe4] sm:$0xff]
        %v6123 = vld [vmem:[%s4907 + $0xec] sm:$0xf]
        %v6124 = vld [vmem:[%s4907 + $0xf0] sm:$0xff]
        %v6125 = vld [vmem:[%s4907 + $0xf8] sm:$0xf]
        %v6126 = vld [vmem:[%s4907 + $0xfc] sm:$0xff]
        %v6127 = vld [vmem:[%s4907 + $0x104] sm:$0xf]
        %v6164 = vunpack.c.l.b16 %v6092
        %v6165 = vunpack.c.h.b16 %v6092
        %v6166 = vunpack.c.l.b16 %v6093
        %v6167 = vunpack.c.l.b16 %v6094
        %v6168 = vunpack.c.h.b16 %v6094
        %v6169 = vunpack.c.l.b16 %v6095
        %v6170 = vunpack.c.l.b16 %v6096
        %v6171 = vunpack.c.h.b16 %v6096
        %v6172 = vunpack.c.l.b16 %v6097
        %v6173 = vunpack.c.l.b16 %v6098
        %v6174 = vunpack.c.h.b16 %v6098
        %v6175 = vunpack.c.l.b16 %v6099
        %v6176 = vunpack.c.l.b16 %v6100
        %v6177 = vunpack.c.h.b16 %v6100
        %v6178 = vunpack.c.l.b16 %v6101
        %v6179 = vunpack.c.l.b16 %v6102
        %v6180 = vunpack.c.h.b16 %v6102
        %v6181 = vunpack.c.l.b16 %v6103
        %v6182 = vunpack.c.l.b16 %v6104
        %v6183 = vunpack.c.h.b16 %v6104
        %v6184 = vunpack.c.l.b16 %v6105
        %v6185 = vunpack.c.l.b16 %v6106
        %v6186 = vunpack.c.h.b16 %v6106
        %v6187 = vunpack.c.l.b16 %v6107
        %v6188 = vunpack.c.l.b16 %v6108
        %v6189 = vunpack.c.h.b16 %v6108
        %v6190 = vunpack.c.l.b16 %v6109
        %v6191 = vunpack.c.l.b16 %v6110
        %v6192 = vunpack.c.h.b16 %v6110
        %v6193 = vunpack.c.l.b16 %v6111
        %v6194 = vunpack.c.l.b16 %v6112
        %v6195 = vunpack.c.h.b16 %v6112
        %v6196 = vunpack.c.l.b16 %v6113
        %v6197 = vunpack.c.l.b16 %v6114
        %v6198 = vunpack.c.h.b16 %v6114
        %v6199 = vunpack.c.l.b16 %v6115
        %v6200 = vunpack.c.l.b16 %v6116
        %v6201 = vunpack.c.h.b16 %v6116
        %v6202 = vunpack.c.l.b16 %v6117
        %v6203 = vunpack.c.l.b16 %v6118
        %v6204 = vunpack.c.h.b16 %v6118
        %v6205 = vunpack.c.l.b16 %v6119
        %v6206 = vunpack.c.l.b16 %v6120
        %v6207 = vunpack.c.h.b16 %v6120
        %v6208 = vunpack.c.l.b16 %v6121
        %v6209 = vunpack.c.l.b16 %v6122
        %v6210 = vunpack.c.h.b16 %v6122
        %v6211 = vunpack.c.l.b16 %v6123
        %v6212 = vunpack.c.l.b16 %v6124
        %v6213 = vunpack.c.h.b16 %v6124
        %v6214 = vunpack.c.l.b16 %v6125
        %v6215 = vunpack.c.l.b16 %v6126
        %v6216 = vunpack.c.h.b16 %v6126
        %v6217 = vunpack.c.l.b16 %v6127
        %v6218 = vpack.c.b16 %v6167, %v6164
        %v6219 = vpack.c.b16 %v6168, %v6165
        %v6220 = vpack.c.b16 %v6169, %v6166
        %v6221 = vpack.c.b16 %v6173, %v6170
        %v6222 = vpack.c.b16 %v6174, %v6171
        %v6223 = vpack.c.b16 %v6175, %v6172
        %v6224 = vpack.c.b16 %v6179, %v6176
        %v6225 = vpack.c.b16 %v6180, %v6177
        %v6226 = vpack.c.b16 %v6181, %v6178
        %v6227 = vpack.c.b16 %v6185, %v6182
        %v6228 = vpack.c.b16 %v6186, %v6183
        %v6229 = vpack.c.b16 %v6187, %v6184
        %v6230 = vpack.c.b16 %v6191, %v6188
        %v6231 = vpack.c.b16 %v6192, %v6189
        %v6232 = vpack.c.b16 %v6193, %v6190
        %v6233 = vpack.c.b16 %v6197, %v6194
        %v6234 = vpack.c.b16 %v6198, %v6195
        %v6235 = vpack.c.b16 %v6199, %v6196
        %v6236 = vpack.c.b16 %v6203, %v6200
        %v6237 = vpack.c.b16 %v6204, %v6201
        %v6238 = vpack.c.b16 %v6205, %v6202
        %v6239 = vpack.c.b16 %v6209, %v6206
        %v6240 = vpack.c.b16 %v6210, %v6207
        %v6241 = vpack.c.b16 %v6211, %v6208
        %v6242 = vpack.c.b16 %v6215, %v6212
        %v6243 = vpack.c.b16 %v6216, %v6213
        %v6244 = vpack.c.b16 %v6217, %v6214
        %6272 = vmatprep.subr.bf16.mxu0 %v3733
        %6273 = vmatpush1.bf16.msra.mxu0 %v3732
        %6274 = vmatprep.subr.bf16.mxu0 %v3737
        %6275 = vmatpush1.bf16.msra.mxu0 %v3736
        %6276 = vmatprep.subr.bf16.mxu0 %v3741
        %6277 = vmatpush1.bf16.msra.mxu0 %v3740
        %6278 = vmatprep.subr.bf16.mxu0 %v3745
        %6279 = vmatpush1.bf16.msra.mxu0 %v3744
        %6280 = vmatprep.subr.bf16.mxu0 %v3749
        %6281 = vmatpush1.bf16.msra.mxu0 %v3748
        %6282 = vmatprep.subr.bf16.mxu0 %v3753
        %6283 = vmatpush1.bf16.msra.mxu0 %v3752
        %6284 = vmatprep.subr.bf16.mxu0 %v3757
        %6285 = vmatpush1.bf16.msra.mxu0 %v3756
        %6286 = vmatprep.subr.bf16.mxu0 %v3761
        %6287 = vmatpush1.bf16.msra.mxu0 %v3760
        %6288 = vmatprep.subr.bf16.mxu0 %v3765
        %6289 = vmatpush1.bf16.msra.mxu0 %v3764
        %6290 = vmatprep.subr.bf16.mxu0 %v3769
        %6291 = vmatpush1.bf16.msra.mxu0 %v3768
        %6292 = vmatprep.subr.bf16.mxu0 %v3773
        %6293 = vmatpush1.bf16.msra.mxu0 %v3772
        %6294 = vmatprep.subr.bf16.mxu0 %v3777
        %6295 = vmatpush1.bf16.msra.mxu0 %v3776
        %6296 = vmatprep.subr.bf16.mxu0 %v3781
        %6297 = vmatpush1.bf16.msra.mxu0 %v3780
        %6298 = vmatprep.subr.bf16.mxu0 %v3785
        %6299 = vmatpush1.bf16.msra.mxu0 %v3784
        %6300 = vmatprep.subr.bf16.mxu0 %v3789
        %6301 = vmatpush1.bf16.msra.mxu0 %v3788
        %6302 = vmatprep.subr.bf16.mxu0 %v3793
        %6303 = vmatpush1.bf16.msra.mxu0 %v3792
        %6304 = vmatprep.mubr.bf16.mxu0 %v6219
        %6305 = vmatmul.mubr.bf16.gmra.mrb[0].mxu0 %v6218
        %v6306 = vpop.f32.mrb[0].mxu0
        %v6307 = vadd.f32 0.0, %v6306
        %v6308 = vpop.f32.mrb[0].mxu0
        %v6309 = vadd.f32 0.0, %v6308
        %v6310 = vpop.f32.mrb[0].mxu0
        %v6311 = vadd.f32 0.0, %v6310
        %v6312 = vpop.f32.mrb[0].mxu0
        %v6313 = vadd.f32 0.0, %v6312
        %6314 = vmatprep.mubr.bf16.mxu0 %v6222
        %6315 = vmatmul.mubr.bf16.gmra.mrb[0].mxu0 %v6221
        %v6316 = vpop.f32.mrb[0].mxu0
        %v6317 = vadd.f32 0.0, %v6316
        %v6318 = vpop.f32.mrb[0].mxu0
        %v6319 = vadd.f32 0.0, %v6318
        %v6320 = vpop.f32.mrb[0].mxu0
        %v6321 = vadd.f32 0.0, %v6320
        %v6322 = vpop.f32.mrb[0].mxu0
        %v6323 = vadd.f32 0.0, %v6322
        %6324 = vmatprep.mubr.bf16.mxu0 %v6225
        %6325 = vmatmul.mubr.bf16.gmra.mrb[0].mxu0 %v6224
        %v6326 = vpop.f32.mrb[0].mxu0
        %v6327 = vadd.f32 0.0, %v6326
        %v6328 = vpop.f32.mrb[0].mxu0
        %v6329 = vadd.f32 0.0, %v6328
        %v6330 = vpop.f32.mrb[0].mxu0
        %v6331 = vadd.f32 0.0, %v6330
        %v6332 = vpop.f32.mrb[0].mxu0
        %v6333 = vadd.f32 0.0, %v6332
        %6334 = vmatprep.mubr.bf16.mxu0 %v6228
        %6335 = vmatmul.mubr.bf16.gmra.mrb[0].mxu0 %v6227
        %v6336 = vpop.f32.mrb[0].mxu0
        %v6337 = vadd.f32 0.0, %v6336
        %v6338 = vpop.f32.mrb[0].mxu0
        %v6339 = vadd.f32 0.0, %v6338
        %v6340 = vpop.f32.mrb[0].mxu0
        %v6341 = vadd.f32 0.0, %v6340
        %v6342 = vpop.f32.mrb[0].mxu0
        %v6343 = vadd.f32 0.0, %v6342
        %6344 = vmatprep.mubr.bf16.mxu0 %v6231
        %6345 = vmatmul.mubr.bf16.gmra.mrb[0].mxu0 %v6230
        %v6346 = vpop.f32.mrb[0].mxu0
        %v6347 = vadd.f32 0.0, %v6346
        %v6348 = vpop.f32.mrb[0].mxu0
        %v6349 = vadd.f32 0.0, %v6348
        %v6350 = vpop.f32.mrb[0].mxu0
        %v6351 = vadd.f32 0.0, %v6350
        %v6352 = vpop.f32.mrb[0].mxu0
        %v6353 = vadd.f32 0.0, %v6352
        %6354 = vmatprep.mubr.bf16.mxu0 %v6234
        %6355 = vmatmul.mubr.bf16.gmra.mrb[0].mxu0 %v6233
        %v6356 = vpop.f32.mrb[0].mxu0
        %v6357 = vadd.f32 0.0, %v6356
        %v6358 = vpop.f32.mrb[0].mxu0
        %v6359 = vadd.f32 0.0, %v6358
        %v6360 = vpop.f32.mrb[0].mxu0
        %v6361 = vadd.f32 0.0, %v6360
        %v6362 = vpop.f32.mrb[0].mxu0
        %v6363 = vadd.f32 0.0, %v6362
        %6364 = vmatprep.mubr.bf16.mxu0 %v6237
        %6365 = vmatmul.mubr.bf16.gmra.mrb[0].mxu0 %v6236
        %v6366 = vpop.f32.mrb[0].mxu0
        %v6367 = vadd.f32 0.0, %v6366
        %v6368 = vpop.f32.mrb[0].mxu0
        %v6369 = vadd.f32 0.0, %v6368
        %v6370 = vpop.f32.mrb[0].mxu0
        %v6371 = vadd.f32 0.0, %v6370
        %v6372 = vpop.f32.mrb[0].mxu0
        %v6373 = vadd.f32 0.0, %v6372
        %6374 = vmatprep.mubr.bf16.mxu0 %v6240
        %6375 = vmatmul.mubr.bf16.gmra.mrb[0].mxu0 %v6239
        %v6376 = vpop.f32.mrb[0].mxu0
        %v6377 = vadd.f32 0.0, %v6376
        %v6378 = vpop.f32.mrb[0].mxu0
        %v6379 = vadd.f32 0.0, %v6378
        %v6380 = vpop.f32.mrb[0].mxu0
        %v6381 = vadd.f32 0.0, %v6380
        %v6382 = vpop.f32.mrb[0].mxu0
        %v6383 = vadd.f32 0.0, %v6382
        %6384 = vmatprep.mubr.bf16.mxu0 %v6243
        %6385 = vmatmul.mubr.bf16.gmra.mrb[0].mxu0 %v6242
        %v6386 = vpop.f32.mrb[0].mxu0
        %v6387 = vadd.f32 0.0, %v6386
        %v6388 = vpop.f32.mrb[0].mxu0
        %v6389 = vadd.f32 0.0, %v6388
        %v6390 = vpop.f32.mrb[0].mxu0
        %v6391 = vadd.f32 0.0, %v6390
        %v6392 = vpop.f32.mrb[0].mxu0
        %v6393 = vadd.f32 0.0, %v6392
        %6394 = vdwg.mxu0
        %6395 = vmatprep.subr.bf16.mxu0 %v3797
        %6396 = vmatpush1.bf16.msra.mxu0 %v3796
        %6397 = vmatprep.subr.bf16.mxu0 %v3801
        %6398 = vmatpush1.bf16.msra.mxu0 %v3800
        %6399 = vmatprep.subr.bf16.mxu0 %v3805
        %6400 = vmatpush1.bf16.msra.mxu0 %v3804
        %6401 = vmatprep.subr.bf16.mxu0 %v3809
        %6402 = vmatpush1.bf16.msra.mxu0 %v3808
        %6403 = vmatprep.subr.bf16.mxu0 %v3813
        %6404 = vmatpush1.bf16.msra.mxu0 %v3812
        %6405 = vmatprep.subr.bf16.mxu0 %v3817
        %6406 = vmatpush1.bf16.msra.mxu0 %v3816
        %6407 = vmatprep.subr.bf16.mxu0 %v3821
        %6408 = vmatpush1.bf16.msra.mxu0 %v3820
        %6409 = vmatprep.subr.bf16.mxu0 %v3825
        %6410 = vmatpush1.bf16.msra.mxu0 %v3824
        %6411 = vmatprep.subr.bf16.mxu0 0
        %6412 = vmatpush1.bf16.msra.mxu0 0
        %6413 = vmatprep.subr.bf16.mxu0 0
        %6414 = vmatpush1.bf16.msra.mxu0 0
        %6415 = vmatprep.subr.bf16.mxu0 0
        %6416 = vmatpush1.bf16.msra.mxu0 0
        %6417 = vmatprep.subr.bf16.mxu0 0
        %6418 = vmatpush1.bf16.msra.mxu0 0
        %6419 = vmatprep.subr.bf16.mxu0 0
        %6420 = vmatpush1.bf16.msra.mxu0 0
        %6421 = vmatprep.subr.bf16.mxu0 0
        %6422 = vmatpush1.bf16.msra.mxu0 0
        %6423 = vmatprep.subr.bf16.mxu0 0
        %6424 = vmatpush1.bf16.msra.mxu0 0
        %6425 = vmatprep.subr.bf16.mxu0 0
        %6426 = vmatpush1.bf16.msra.mxu0 0
        %6427 = vmatprep.mubr.bf16.mxu0 0
        %6428 = vmatmul.mubr.bf16.gmra.mrb[0].mxu0 %v6220
        %v6429 = vpop.f32.mrb[0].mxu0
        %v6430 = vadd.f32 %v6307, %v6429
        %v6431 = vpop.f32.mrb[0].mxu0
        %v6432 = vadd.f32 %v6309, %v6431
        %v6433 = vpop.f32.mrb[0].mxu0
        %v6434 = vadd.f32 %v6311, %v6433
        %v6435 = vpop.f32.mrb[0].mxu0
        %v6436 = vadd.f32 %v6313, %v6435
        %6437 = vmatprep.mubr.bf16.mxu0 0
        %6438 = vmatmul.mubr.bf16.gmra.mrb[0].mxu0 %v6223
        %v6439 = vpop.f32.mrb[0].mxu0
        %v6440 = vadd.f32 %v6317, %v6439
        %v6441 = vpop.f32.mrb[0].mxu0
        %v6442 = vadd.f32 %v6319, %v6441
        %v6443 = vpop.f32.mrb[0].mxu0
        %v6444 = vadd.f32 %v6321, %v6443
        %v6445 = vpop.f32.mrb[0].mxu0
        %v6446 = vadd.f32 %v6323, %v6445
        %6447 = vmatprep.mubr.bf16.mxu0 0
        %6448 = vmatmul.mubr.bf16.gmra.mrb[0].mxu0 %v6226
        %v6449 = vpop.f32.mrb[0].mxu0
        %v6450 = vadd.f32 %v6327, %v6449
        %v6451 = vpop.f32.mrb[0].mxu0
        %v6452 = vadd.f32 %v6329, %v6451
        %v6453 = vpop.f32.mrb[0].mxu0
        %v6454 = vadd.f32 %v6331, %v6453
        %v6455 = vpop.f32.mrb[0].mxu0
        %v6456 = vadd.f32 %v6333, %v6455
        %6457 = vmatprep.mubr.bf16.mxu0 0
        %6458 = vmatmul.mubr.bf16.gmra.mrb[0].mxu0 %v6229
        %v6459 = vpop.f32.mrb[0].mxu0
        %v6460 = vadd.f32 %v6337, %v6459
        %v6461 = vpop.f32.mrb[0].mxu0
        %v6462 = vadd.f32 %v6339, %v6461
        %v6463 = vpop.f32.mrb[0].mxu0
        %v6464 = vadd.f32 %v6341, %v6463
        %v6465 = vpop.f32.mrb[0].mxu0
        %v6466 = vadd.f32 %v6343, %v6465
        %6467 = vmatprep.mubr.bf16.mxu0 0
        %6468 = vmatmul.mubr.bf16.gmra.mrb[0].mxu0 %v6232
        %v6469 = vpop.f32.mrb[0].mxu0
        %v6470 = vadd.f32 %v6347, %v6469
        %v6471 = vpop.f32.mrb[0].mxu0
        %v6472 = vadd.f32 %v6349, %v6471
        %v6473 = vpop.f32.mrb[0].mxu0
        %v6474 = vadd.f32 %v6351, %v6473
        %v6475 = vpop.f32.mrb[0].mxu0
        %v6476 = vadd.f32 %v6353, %v6475
        %6477 = vmatprep.mubr.bf16.mxu0 0
        %6478 = vmatmul.mubr.bf16.gmra.mrb[0].mxu0 %v6235
        %v6479 = vpop.f32.mrb[0].mxu0
        %v6480 = vadd.f32 %v6357, %v6479
        %v6481 = vpop.f32.mrb[0].mxu0
        %v6482 = vadd.f32 %v6359, %v6481
        %v6483 = vpop.f32.mrb[0].mxu0
        %v6484 = vadd.f32 %v6361, %v6483
        %v6485 = vpop.f32.mrb[0].mxu0
        %v6486 = vadd.f32 %v6363, %v6485
        %6487 = vmatprep.mubr.bf16.mxu0 0
        %6488 = vmatmul.mubr.bf16.gmra.mrb[0].mxu0 %v6238
        %v6489 = vpop.f32.mrb[0].mxu0
        %v6490 = vadd.f32 %v6367, %v6489
        %v6491 = vpop.f32.mrb[0].mxu0
        %v6492 = vadd.f32 %v6369, %v6491
        %v6493 = vpop.f32.mrb[0].mxu0
        %v6494 = vadd.f32 %v6371, %v6493
        %v6495 = vpop.f32.mrb[0].mxu0
        %v6496 = vadd.f32 %v6373, %v6495
        %6497 = vmatprep.mubr.bf16.mxu0 0
        %6498 = vmatmul.mubr.bf16.gmra.mrb[0].mxu0 %v6241
        %v6499 = vpop.f32.mrb[0].mxu0
        %v6500 = vadd.f32 %v6377, %v6499
        %v6501 = vpop.f32.mrb[0].mxu0
        %v6502 = vadd.f32 %v6379, %v6501
        %v6503 = vpop.f32.mrb[0].mxu0
        %v6504 = vadd.f32 %v6381, %v6503
        %v6505 = vpop.f32.mrb[0].mxu0
        %v6506 = vadd.f32 %v6383, %v6505
        %6507 = vmatprep.mubr.bf16.mxu0 0
        %6508 = vmatmul.mubr.bf16.gmra.mrb[0].mxu0 %v6244
        %v6509 = vpop.f32.mrb[0].mxu0
        %v6510 = vadd.f32 %v6387, %v6509
        %v6511 = vpop.f32.mrb[0].mxu0
        %v6512 = vadd.f32 %v6389, %v6511
        %v6513 = vpop.f32.mrb[0].mxu0
        %v6514 = vadd.f32 %v6391, %v6513
        %v6515 = vpop.f32.mrb[0].mxu0
        %v6516 = vadd.f32 %v6393, %v6515
        %6517 = vdwg.mxu0
        %6518 = vmatprep.subr.bf16.mxu0 %v3735
        %6519 = vmatpush1.bf16.msra.mxu0 %v3734
        %6520 = vmatprep.subr.bf16.mxu0 %v3739
        %6521 = vmatpush1.bf16.msra.mxu0 %v3738
        %6522 = vmatprep.subr.bf16.mxu0 %v3743
        %6523 = vmatpush1.bf16.msra.mxu0 %v3742
        %6524 = vmatprep.subr.bf16.mxu0 %v3747
        %6525 = vmatpush1.bf16.msra.mxu0 %v3746
        %6526 = vmatprep.subr.bf16.mxu0 %v3751
        %6527 = vmatpush1.bf16.msra.mxu0 %v3750
        %6528 = vmatprep.subr.bf16.mxu0 %v3755
        %6529 = vmatpush1.bf16.msra.mxu0 %v3754
        %6530 = vmatprep.subr.bf16.mxu0 %v3759
        %6531 = vmatpush1.bf16.msra.mxu0 %v3758
        %6532 = vmatprep.subr.bf16.mxu0 %v3763
        %6533 = vmatpush1.bf16.msra.mxu0 %v3762
        %6534 = vmatprep.subr.bf16.mxu0 %v3767
        %6535 = vmatpush1.bf16.msra.mxu0 %v3766
        %6536 = vmatprep.subr.bf16.mxu0 %v3771
        %6537 = vmatpush1.bf16.msra.mxu0 %v3770
        %6538 = vmatprep.subr.bf16.mxu0 %v3775
        %6539 = vmatpush1.bf16.msra.mxu0 %v3774
        %6540 = vmatprep.subr.bf16.mxu0 %v3779
        %6541 = vmatpush1.bf16.msra.mxu0 %v3778
        %6542 = vmatprep.subr.bf16.mxu0 %v3783
        %6543 = vmatpush1.bf16.msra.mxu0 %v3782
        %6544 = vmatprep.subr.bf16.mxu0 %v3787
        %6545 = vmatpush1.bf16.msra.mxu0 %v3786
        %6546 = vmatprep.subr.bf16.mxu0 %v3791
        %6547 = vmatpush1.bf16.msra.mxu0 %v3790
        %6548 = vmatprep.subr.bf16.mxu0 %v3795
        %6549 = vmatpush1.bf16.msra.mxu0 %v3794
        %6550 = vmatprep.mubr.bf16.mxu0 %v6219
        %6551 = vmatmul.mubr.bf16.gmra.mrb[0].mxu0 %v6218
        %v6552 = vpop.f32.mrb[0].mxu0
        %v6553 = vadd.f32 0.0, %v6552
        %v6554 = vpop.f32.mrb[0].mxu0
        %v6555 = vadd.f32 0.0, %v6554
        %v6556 = vpop.f32.mrb[0].mxu0
        %v6557 = vadd.f32 0.0, %v6556
        %v6558 = vpop.f32.mrb[0].mxu0
        %v6559 = vadd.f32 0.0, %v6558
        %6560 = vmatprep.mubr.bf16.mxu0 %v6222
        %6561 = vmatmul.mubr.bf16.gmra.mrb[0].mxu0 %v6221
        %v6562 = vpop.f32.mrb[0].mxu0
        %v6563 = vadd.f32 0.0, %v6562
        %v6564 = vpop.f32.mrb[0].mxu0
        %v6565 = vadd.f32 0.0, %v6564
        %v6566 = vpop.f32.mrb[0].mxu0
        %v6567 = vadd.f32 0.0, %v6566
        %v6568 = vpop.f32.mrb[0].mxu0
        %v6569 = vadd.f32 0.0, %v6568
        %6570 = vmatprep.mubr.bf16.mxu0 %v6225
        %6571 = vmatmul.mubr.bf16.gmra.mrb[0].mxu0 %v6224
        %v6572 = vpop.f32.mrb[0].mxu0
        %v6573 = vadd.f32 0.0, %v6572
        %v6574 = vpop.f32.mrb[0].mxu0
        %v6575 = vadd.f32 0.0, %v6574
        %v6576 = vpop.f32.mrb[0].mxu0
        %v6577 = vadd.f32 0.0, %v6576
        %v6578 = vpop.f32.mrb[0].mxu0
        %v6579 = vadd.f32 0.0, %v6578
        %6580 = vmatprep.mubr.bf16.mxu0 %v6228
        %6581 = vmatmul.mubr.bf16.gmra.mrb[0].mxu0 %v6227
        %v6582 = vpop.f32.mrb[0].mxu0
        %v6583 = vadd.f32 0.0, %v6582
        %v6584 = vpop.f32.mrb[0].mxu0
        %v6585 = vadd.f32 0.0, %v6584
        %v6586 = vpop.f32.mrb[0].mxu0
        %v6587 = vadd.f32 0.0, %v6586
        %v6588 = vpop.f32.mrb[0].mxu0
        %v6589 = vadd.f32 0.0, %v6588
        %6590 = vmatprep.mubr.bf16.mxu0 %v6231
        %6591 = vmatmul.mubr.bf16.gmra.mrb[0].mxu0 %v6230
        %v6592 = vpop.f32.mrb[0].mxu0
        %v6593 = vadd.f32 0.0, %v6592
        %v6594 = vpop.f32.mrb[0].mxu0
        %v6595 = vadd.f32 0.0, %v6594
        %v6596 = vpop.f32.mrb[0].mxu0
        %v6597 = vadd.f32 0.0, %v6596
        %v6598 = vpop.f32.mrb[0].mxu0
        %v6599 = vadd.f32 0.0, %v6598
        %6600 = vmatprep.mubr.bf16.mxu0 %v6234
        %6601 = vmatmul.mubr.bf16.gmra.mrb[0].mxu0 %v6233
        %v6602 = vpop.f32.mrb[0].mxu0
        %v6603 = vadd.f32 0.0, %v6602
        %v6604 = vpop.f32.mrb[0].mxu0
        %v6605 = vadd.f32 0.0, %v6604
        %v6606 = vpop.f32.mrb[0].mxu0
        %v6607 = vadd.f32 0.0, %v6606
        %v6608 = vpop.f32.mrb[0].mxu0
        %v6609 = vadd.f32 0.0, %v6608
        %6610 = vmatprep.mubr.bf16.mxu0 %v6237
        %6611 = vmatmul.mubr.bf16.gmra.mrb[0].mxu0 %v6236
        %v6612 = vpop.f32.mrb[0].mxu0
        %v6613 = vadd.f32 0.0, %v6612
        %v6614 = vpop.f32.mrb[0].mxu0
        %v6615 = vadd.f32 0.0, %v6614
        %v6616 = vpop.f32.mrb[0].mxu0
        %v6617 = vadd.f32 0.0, %v6616
        %v6618 = vpop.f32.mrb[0].mxu0
        %v6619 = vadd.f32 0.0, %v6618
        %6620 = vmatprep.mubr.bf16.mxu0 %v6240
        %6621 = vmatmul.mubr.bf16.gmra.mrb[0].mxu0 %v6239
        %v6622 = vpop.f32.mrb[0].mxu0
        %v6623 = vadd.f32 0.0, %v6622
        %v6624 = vpop.f32.mrb[0].mxu0
        %v6625 = vadd.f32 0.0, %v6624
        %v6626 = vpop.f32.mrb[0].mxu0
        %v6627 = vadd.f32 0.0, %v6626
        %v6628 = vpop.f32.mrb[0].mxu0
        %v6629 = vadd.f32 0.0, %v6628
        %6630 = vmatprep.mubr.bf16.mxu0 %v6243
        %6631 = vmatmul.mubr.bf16.gmra.mrb[0].mxu0 %v6242
        %v6632 = vpop.f32.mrb[0].mxu0
        %v6633 = vadd.f32 0.0, %v6632
        %v6634 = vpop.f32.mrb[0].mxu0
        %v6635 = vadd.f32 0.0, %v6634
        %v6636 = vpop.f32.mrb[0].mxu0
        %v6637 = vadd.f32 0.0, %v6636
        %v6638 = vpop.f32.mrb[0].mxu0
        %v6639 = vadd.f32 0.0, %v6638
        %6640 = vdwg.mxu0
        %6641 = vmatprep.subr.bf16.mxu0 %v3799
        %6642 = vmatpush1.bf16.msra.mxu0 %v3798
        %6643 = vmatprep.subr.bf16.mxu0 %v3803
        %6644 = vmatpush1.bf16.msra.mxu0 %v3802
        %6645 = vmatprep.subr.bf16.mxu0 %v3807
        %6646 = vmatpush1.bf16.msra.mxu0 %v3806
        %6647 = vmatprep.subr.bf16.mxu0 %v3811
        %6648 = vmatpush1.bf16.msra.mxu0 %v3810
        %6649 = vmatprep.subr.bf16.mxu0 %v3815
        %6650 = vmatpush1.bf16.msra.mxu0 %v3814
        %6651 = vmatprep.subr.bf16.mxu0 %v3819
        %6652 = vmatpush1.bf16.msra.mxu0 %v3818
        %6653 = vmatprep.subr.bf16.mxu0 %v3823
        %6654 = vmatpush1.bf16.msra.mxu0 %v3822
        %6655 = vmatprep.subr.bf16.mxu0 %v3827
        %6656 = vmatpush1.bf16.msra.mxu0 %v3826
        %6657 = vmatprep.subr.bf16.mxu0 0
        %6658 = vmatpush1.bf16.msra.mxu0 0
        %6659 = vmatprep.subr.bf16.mxu0 0
        %6660 = vmatpush1.bf16.msra.mxu0 0
        %6661 = vmatprep.subr.bf16.mxu0 0
        %6662 = vmatpush1.bf16.msra.mxu0 0
        %6663 = vmatprep.subr.bf16.mxu0 0
        %6664 = vmatpush1.bf16.msra.mxu0 0
        %6665 = vmatprep.subr.bf16.mxu0 0
        %6666 = vmatpush1.bf16.msra.mxu0 0
        %6667 = vmatprep.subr.bf16.mxu0 0
        %6668 = vmatpush1.bf16.msra.mxu0 0
        %6669 = vmatprep.subr.bf16.mxu0 0
        %6670 = vmatpush1.bf16.msra.mxu0 0
        %6671 = vmatprep.subr.bf16.mxu0 0
        %6672 = vmatpush1.bf16.msra.mxu0 0
        %6673 = vmatprep.mubr.bf16.mxu0 0
        %6674 = vmatmul.mubr.bf16.gmra.mrb[0].mxu0 %v6220
        %v6675 = vpop.f32.mrb[0].mxu0
        %v6676 = vadd.f32 %v6553, %v6675
        %v6677 = vpop.f32.mrb[0].mxu0
        %v6678 = vadd.f32 %v6555, %v6677
        %v6679 = vpop.f32.mrb[0].mxu0
        %v6680 = vadd.f32 %v6557, %v6679
        %v6681 = vpop.f32.mrb[0].mxu0
        %v6682 = vadd.f32 %v6559, %v6681
        %6683 = vmatprep.mubr.bf16.mxu0 0
        %6684 = vmatmul.mubr.bf16.gmra.mrb[0].mxu0 %v6223
        %v6685 = vpop.f32.mrb[0].mxu0
        %v6686 = vadd.f32 %v6563, %v6685
        %v6687 = vpop.f32.mrb[0].mxu0
        %v6688 = vadd.f32 %v6565, %v6687
        %v6689 = vpop.f32.mrb[0].mxu0
        %v6690 = vadd.f32 %v6567, %v6689
        %v6691 = vpop.f32.mrb[0].mxu0
        %v6692 = vadd.f32 %v6569, %v6691
        %6693 = vmatprep.mubr.bf16.mxu0 0
        %6694 = vmatmul.mubr.bf16.gmra.mrb[0].mxu0 %v6226
        %v6695 = vpop.f32.mrb[0].mxu0
        %v6696 = vadd.f32 %v6573, %v6695
        %v6697 = vpop.f32.mrb[0].mxu0
        %v6698 = vadd.f32 %v6575, %v6697
        %v6699 = vpop.f32.mrb[0].mxu0
        %v6700 = vadd.f32 %v6577, %v6699
        %v6701 = vpop.f32.mrb[0].mxu0
        %v6702 = vadd.f32 %v6579, %v6701
        %6703 = vmatprep.mubr.bf16.mxu0 0
        %6704 = vmatmul.mubr.bf16.gmra.mrb[0].mxu0 %v6229
        %v6705 = vpop.f32.mrb[0].mxu0
        %v6706 = vadd.f32 %v6583, %v6705
        %v6707 = vpop.f32.mrb[0].mxu0
        %v6708 = vadd.f32 %v6585, %v6707
        %v6709 = vpop.f32.mrb[0].mxu0
        %v6710 = vadd.f32 %v6587, %v6709
        %v6711 = vpop.f32.mrb[0].mxu0
        %v6712 = vadd.f32 %v6589, %v6711
        %6713 = vmatprep.mubr.bf16.mxu0 0
        %6714 = vmatmul.mubr.bf16.gmra.mrb[0].mxu0 %v6232
        %v6715 = vpop.f32.mrb[0].mxu0
        %v6716 = vadd.f32 %v6593, %v6715
        %v6717 = vpop.f32.mrb[0].mxu0
        %v6718 = vadd.f32 %v6595, %v6717
        %v6719 = vpop.f32.mrb[0].mxu0
        %v6720 = vadd.f32 %v6597, %v6719
        %v6721 = vpop.f32.mrb[0].mxu0
        %v6722 = vadd.f32 %v6599, %v6721
        %6723 = vmatprep.mubr.bf16.mxu0 0
        %6724 = vmatmul.mubr.bf16.gmra.mrb[0].mxu0 %v6235
        %v6725 = vpop.f32.mrb[0].mxu0
        %v6726 = vadd.f32 %v6603, %v6725
        %v6727 = vpop.f32.mrb[0].mxu0
        %v6728 = vadd.f32 %v6605, %v6727
        %v6729 = vpop.f32.mrb[0].mxu0
        %v6730 = vadd.f32 %v6607, %v6729
        %v6731 = vpop.f32.mrb[0].mxu0
        %v6732 = vadd.f32 %v6609, %v6731
        %6733 = vmatprep.mubr.bf16.mxu0 0
        %6734 = vmatmul.mubr.bf16.gmra.mrb[0].mxu0 %v6238
        %v6735 = vpop.f32.mrb[0].mxu0
        %v6736 = vadd.f32 %v6613, %v6735
        %v6737 = vpop.f32.mrb[0].mxu0
        %v6738 = vadd.f32 %v6615, %v6737
        %v6739 = vpop.f32.mrb[0].mxu0
        %v6740 = vadd.f32 %v6617, %v6739
        %v6741 = vpop.f32.mrb[0].mxu0
        %v6742 = vadd.f32 %v6619, %v6741
        %6743 = vmatprep.mubr.bf16.mxu0 0
        %6744 = vmatmul.mubr.bf16.gmra.mrb[0].mxu0 %v6241
        %v6745 = vpop.f32.mrb[0].mxu0
        %v6746 = vadd.f32 %v6623, %v6745
        %v6747 = vpop.f32.mrb[0].mxu0
        %v6748 = vadd.f32 %v6625, %v6747
        %v6749 = vpop.f32.mrb[0].mxu0
        %v6750 = vadd.f32 %v6627, %v6749
        %v6751 = vpop.f32.mrb[0].mxu0
        %v6752 = vadd.f32 %v6629, %v6751
        %6753 = vmatprep.mubr.bf16.mxu0 0
        %6754 = vmatmul.mubr.bf16.gmra.mrb[0].mxu0 %v6244
        %v6755 = vpop.f32.mrb[0].mxu0
        %v6756 = vadd.f32 %v6633, %v6755
        %v6757 = vpop.f32.mrb[0].mxu0
        %v6758 = vadd.f32 %v6635, %v6757
        %v6759 = vpop.f32.mrb[0].mxu0
        %v6760 = vadd.f32 %v6637, %v6759
        %v6761 = vpop.f32.mrb[0].mxu0
        %v6762 = vadd.f32 %v6639, %v6761
        %6763 = vdwg.mxu0
        %v6764 = vadd.f32 %v5758, %v6430
        %v6765 = vadd.f32 %v5760, %v6432
        %v6766 = vadd.f32 %v6004, %v6676
        %v6767 = vadd.f32 %v6006, %v6678
        %v6768 = vadd.f32 %v5762, %v6434
        %v6769 = vadd.f32 %v5764, %v6436
        %v6770 = vadd.f32 %v6008, %v6680
        %v6771 = vadd.f32 %v6010, %v6682
        %v6772 = vadd.f32 %v5768, %v6440
        %v6773 = vadd.f32 %v5770, %v6442
        %v6774 = vadd.f32 %v6014, %v6686
        %v6775 = vadd.f32 %v6016, %v6688
        %v6776 = vadd.f32 %v5772, %v6444
        %v6777 = vadd.f32 %v5774, %v6446
        %v6778 = vadd.f32 %v6018, %v6690
        %v6779 = vadd.f32 %v6020, %v6692
        %v6780 = vadd.f32 %v5778, %v6450
        %v6781 = vadd.f32 %v5780, %v6452
        %v6782 = vadd.f32 %v6024, %v6696
        %v6783 = vadd.f32 %v6026, %v6698
        %v6784 = vadd.f32 %v5782, %v6454
        %v6785 = vadd.f32 %v5784, %v6456
        %v6786 = vadd.f32 %v6028, %v6700
        %v6787 = vadd.f32 %v6030, %v6702
        %v6788 = vadd.f32 %v5788, %v6460
        %v6789 = vadd.f32 %v5790, %v6462
        %v6790 = vadd.f32 %v6034, %v6706
        %v6791 = vadd.f32 %v6036, %v6708
        %v6792 = vadd.f32 %v5792, %v6464
        %v6793 = vadd.f32 %v5794, %v6466
        %v6794 = vadd.f32 %v6038, %v6710
        %v6795 = vadd.f32 %v6040, %v6712
        %v6796 = vadd.f32 %v5798, %v6470
        %v6797 = vadd.f32 %v5800, %v6472
        %v6798 = vadd.f32 %v6044, %v6716
        %v6799 = vadd.f32 %v6046, %v6718
        %v6800 = vadd.f32 %v5802, %v6474
        %v6801 = vadd.f32 %v5804, %v6476
        %v6802 = vadd.f32 %v6048, %v6720
        %v6803 = vadd.f32 %v6050, %v6722
        %v6804 = vadd.f32 %v5808, %v6480
        %v6805 = vadd.f32 %v5810, %v6482
        %v6806 = vadd.f32 %v6054, %v6726
        %v6807 = vadd.f32 %v6056, %v6728
        %v6808 = vadd.f32 %v5812, %v6484
        %v6809 = vadd.f32 %v5814, %v6486
        %v6810 = vadd.f32 %v6058, %v6730
        %v6811 = vadd.f32 %v6060, %v6732
        %v6812 = vadd.f32 %v5818, %v6490
        %v6813 = vadd.f32 %v5820, %v6492
        %v6814 = vadd.f32 %v6064, %v6736
        %v6815 = vadd.f32 %v6066, %v6738
        %v6816 = vadd.f32 %v5822, %v6494
        %v6817 = vadd.f32 %v5824, %v6496
        %v6818 = vadd.f32 %v6068, %v6740
        %v6819 = vadd.f32 %v6070, %v6742
        %v6820 = vadd.f32 %v5828, %v6500
        %v6821 = vadd.f32 %v5830, %v6502
        %v6822 = vadd.f32 %v6074, %v6746
        %v6823 = vadd.f32 %v6076, %v6748
        %v6824 = vadd.f32 %v5832, %v6504
        %v6825 = vadd.f32 %v5834, %v6506
        %v6826 = vadd.f32 %v6078, %v6750
        %v6827 = vadd.f32 %v6080, %v6752
        %v6828 = vadd.f32 %v5838, %v6510
        %v6829 = vadd.f32 %v5840, %v6512
        %v6830 = vadd.f32 %v6084, %v6756
        %v6831 = vadd.f32 %v6086, %v6758
        %v6832 = vadd.f32 %v5842, %v6514
        %v6833 = vadd.f32 %v5844, %v6516
        %v6834 = vadd.f32 %v6088, %v6760
        %v6835 = vadd.f32 %v6090, %v6762
        %v6836 = vadd.f32 %v6764, %v4492
        %v6837 = vadd.f32 %v6765, %v4496
        %v6838 = vadd.f32 %v6766, %v4500
        %v6839 = vadd.f32 %v6767, %v4504
        %v6840 = vadd.f32 %v6768, %v4492
        %v6841 = vadd.f32 %v6769, %v4496
        %v6842 = vadd.f32 %v6770, %v4500
        %v6843 = vadd.f32 %v6771, %v4504
        %v6844 = vadd.f32 %v6772, %v4492
        %v6845 = vadd.f32 %v6773, %v4496
        %v6846 = vadd.f32 %v6774, %v4500
        %v6847 = vadd.f32 %v6775, %v4504
        %v6848 = vadd.f32 %v6776, %v4492
        %v6849 = vadd.f32 %v6777, %v4496
        %v6850 = vadd.f32 %v6778, %v4500
        %v6851 = vadd.f32 %v6779, %v4504
        %v6852 = vadd.f32 %v6780, %v4492
        %v6853 = vadd.f32 %v6781, %v4496
        %v6854 = vadd.f32 %v6782, %v4500
        %v6855 = vadd.f32 %v6783, %v4504
        %v6856 = vadd.f32 %v6784, %v4492
        %v6857 = vadd.f32 %v6785, %v4496
        %v6858 = vadd.f32 %v6786, %v4500
        %v6859 = vadd.f32 %v6787, %v4504
        %v6860 = vadd.f32 %v6788, %v4492
        %v6861 = vadd.f32 %v6789, %v4496
        %v6862 = vadd.f32 %v6790, %v4500
        %v6863 = vadd.f32 %v6791, %v4504
        %v6864 = vadd.f32 %v6792, %v4492
        %v6865 = vadd.f32 %v6793, %v4496
        %v6866 = vadd.f32 %v6794, %v4500
        %v6867 = vadd.f32 %v6795, %v4504
        %v6868 = vadd.f32 %v6796, %v4492
        %v6869 = vadd.f32 %v6797, %v4496
        %v6870 = vadd.f32 %v6798, %v4500
        %v6871 = vadd.f32 %v6799, %v4504
        %v6872 = vadd.f32 %v6800, %v4492
        %v6873 = vadd.f32 %v6801, %v4496
        %v6874 = vadd.f32 %v6802, %v4500
        %v6875 = vadd.f32 %v6803, %v4504
        %v6876 = vadd.f32 %v6804, %v4492
        %v6877 = vadd.f32 %v6805, %v4496
        %v6878 = vadd.f32 %v6806, %v4500
        %v6879 = vadd.f32 %v6807, %v4504
        %v6880 = vadd.f32 %v6808, %v4492
        %v6881 = vadd.f32 %v6809, %v4496
        %v6882 = vadd.f32 %v6810, %v4500
        %v6883 = vadd.f32 %v6811, %v4504
        %v6884 = vadd.f32 %v6812, %v4492
        %v6885 = vadd.f32 %v6813, %v4496
        %v6886 = vadd.f32 %v6814, %v4500
        %v6887 = vadd.f32 %v6815, %v4504
        %v6888 = vadd.f32 %v6816, %v4492
        %v6889 = vadd.f32 %v6817, %v4496
        %v6890 = vadd.f32 %v6818, %v4500
        %v6891 = vadd.f32 %v6819, %v4504
        %v6892 = vadd.f32 %v6820, %v4492
        %v6893 = vadd.f32 %v6821, %v4496
        %v6894 = vadd.f32 %v6822, %v4500
        %v6895 = vadd.f32 %v6823, %v4504
        %v6896 = vadd.f32 %v6824, %v4492
        %v6897 = vadd.f32 %v6825, %v4496
        %v6898 = vadd.f32 %v6826, %v4500
        %v6899 = vadd.f32 %v6827, %v4504
        %v6900 = vadd.f32 %v6828, %v4492
        %v6901 = vadd.f32 %v6829, %v4496
        %v6902 = vadd.f32 %v6830, %v4500
        %v6903 = vadd.f32 %v6831, %v4504
        %v6904 = vadd.f32 %v6832, %v4492
        %v6905 = vadd.f32 %v6833, %v4496
        %v6906 = vadd.f32 %v6834, %v4500
        %v6907 = vadd.f32 %v6835, %v4504
        %v6908 = vmax.f32 %v6836, 0.0
        %v6909 = vmax.f32 %v6837, 0.0
        %v6910 = vmax.f32 %v6838, 0.0
        %v6911 = vmax.f32 %v6839, 0.0
        %v6912 = vmax.f32 %v6840, 0.0
        %v6913 = vmax.f32 %v6841, 0.0
        %v6914 = vmax.f32 %v6842, 0.0
        %v6915 = vmax.f32 %v6843, 0.0
        %v6916 = vmax.f32 %v6844, 0.0
        %v6917 = vmax.f32 %v6845, 0.0
        %v6918 = vmax.f32 %v6846, 0.0
        %v6919 = vmax.f32 %v6847, 0.0
        %v6920 = vmax.f32 %v6848, 0.0
        %v6921 = vmax.f32 %v6849, 0.0
        %v6922 = vmax.f32 %v6850, 0.0
        %v6923 = vmax.f32 %v6851, 0.0
        %v6924 = vmax.f32 %v6852, 0.0
        %v6925 = vmax.f32 %v6853, 0.0
        %v6926 = vmax.f32 %v6854, 0.0
        %v6927 = vmax.f32 %v6855, 0.0
        %v6928 = vmax.f32 %v6856, 0.0
        %v6929 = vmax.f32 %v6857, 0.0
        %v6930 = vmax.f32 %v6858, 0.0
        %v6931 = vmax.f32 %v6859, 0.0
        %v6932 = vmax.f32 %v6860, 0.0
        %v6933 = vmax.f32 %v6861, 0.0
        %v6934 = vmax.f32 %v6862, 0.0
        %v6935 = vmax.f32 %v6863, 0.0
        %v6936 = vmax.f32 %v6864, 0.0
        %v6937 = vmax.f32 %v6865, 0.0
        %v6938 = vmax.f32 %v6866, 0.0
        %v6939 = vmax.f32 %v6867, 0.0
        %v6940 = vmax.f32 %v6868, 0.0
        %v6941 = vmax.f32 %v6869, 0.0
        %v6942 = vmax.f32 %v6870, 0.0
        %v6943 = vmax.f32 %v6871, 0.0
        %v6944 = vmax.f32 %v6872, 0.0
        %v6945 = vmax.f32 %v6873, 0.0
        %v6946 = vmax.f32 %v6874, 0.0
        %v6947 = vmax.f32 %v6875, 0.0
        %v6948 = vmax.f32 %v6876, 0.0
        %v6949 = vmax.f32 %v6877, 0.0
        %v6950 = vmax.f32 %v6878, 0.0
        %v6951 = vmax.f32 %v6879, 0.0
        %v6952 = vmax.f32 %v6880, 0.0
        %v6953 = vmax.f32 %v6881, 0.0
        %v6954 = vmax.f32 %v6882, 0.0
        %v6955 = vmax.f32 %v6883, 0.0
        %v6956 = vmax.f32 %v6884, 0.0
        %v6957 = vmax.f32 %v6885, 0.0
        %v6958 = vmax.f32 %v6886, 0.0
        %v6959 = vmax.f32 %v6887, 0.0
        %v6960 = vmax.f32 %v6888, 0.0
        %v6961 = vmax.f32 %v6889, 0.0
        %v6962 = vmax.f32 %v6890, 0.0
        %v6963 = vmax.f32 %v6891, 0.0
        %v6964 = vmax.f32 %v6892, 0.0
        %v6965 = vmax.f32 %v6893, 0.0
        %v6966 = vmax.f32 %v6894, 0.0
        %v6967 = vmax.f32 %v6895, 0.0
        %v6968 = vmax.f32 %v6896, 0.0
        %v6969 = vmax.f32 %v6897, 0.0
        %v6970 = vmax.f32 %v6898, 0.0
        %v6971 = vmax.f32 %v6899, 0.0
        %v6972 = vmax.f32 %v6900, 0.0
        %v6973 = vmax.f32 %v6901, 0.0
        %v6974 = vmax.f32 %v6902, 0.0
        %v6975 = vmax.f32 %v6903, 0.0
        %v6976 = vmax.f32 %v6904, 0.0
        %v6977 = vmax.f32 %v6905, 0.0
        %v6978 = vmax.f32 %v6906, 0.0
        %v6979 = vmax.f32 %v6907, 0.0
        %v6980 = vmul.f32 %v6908, %v4656
        %v6981 = vmul.f32 %v6909, %v4656
        %v6982 = vmul.f32 %v6910, %v4656
        %v6983 = vmul.f32 %v6911, %v4656
        %v6984 = vmul.f32 %v6912, %v4661
        %v6985 = vmul.f32 %v6913, %v4661
        %v6986 = vmul.f32 %v6914, %v4661
        %v6987 = vmul.f32 %v6915, %v4661
        %v6988 = vmul.f32 %v6916, %v4666
        %v6989 = vmul.f32 %v6917, %v4666
        %v6990 = vmul.f32 %v6918, %v4666
        %v6991 = vmul.f32 %v6919, %v4666
        %v6992 = vmul.f32 %v6920, %v4671
        %v6993 = vmul.f32 %v6921, %v4671
        %v6994 = vmul.f32 %v6922, %v4671
        %v6995 = vmul.f32 %v6923, %v4671
        %v6996 = vmul.f32 %v6924, %v4676
        %v6997 = vmul.f32 %v6925, %v4676
        %v6998 = vmul.f32 %v6926, %v4676
        %v6999 = vmul.f32 %v6927, %v4676
        %v7000 = vmul.f32 %v6928, %v4681
        %v7001 = vmul.f32 %v6929, %v4681
        %v7002 = vmul.f32 %v6930, %v4681
        %v7003 = vmul.f32 %v6931, %v4681
        %v7004 = vmul.f32 %v6932, %v4686
        %v7005 = vmul.f32 %v6933, %v4686
        %v7006 = vmul.f32 %v6934, %v4686
        %v7007 = vmul.f32 %v6935, %v4686
        %v7008 = vmul.f32 %v6936, %v4691
        %v7009 = vmul.f32 %v6937, %v4691
        %v7010 = vmul.f32 %v6938, %v4691
        %v7011 = vmul.f32 %v6939, %v4691
        %v7012 = vmul.f32 %v6940, %v4696
        %v7013 = vmul.f32 %v6941, %v4696
        %v7014 = vmul.f32 %v6942, %v4696
        %v7015 = vmul.f32 %v6943, %v4696
        %v7016 = vmul.f32 %v6944, %v4701
        %v7017 = vmul.f32 %v6945, %v4701
        %v7018 = vmul.f32 %v6946, %v4701
        %v7019 = vmul.f32 %v6947, %v4701
        %v7020 = vmul.f32 %v6948, %v4706
        %v7021 = vmul.f32 %v6949, %v4706
        %v7022 = vmul.f32 %v6950, %v4706
        %v7023 = vmul.f32 %v6951, %v4706
        %v7024 = vmul.f32 %v6952, %v4711
        %v7025 = vmul.f32 %v6953, %v4711
        %v7026 = vmul.f32 %v6954, %v4711
        %v7027 = vmul.f32 %v6955, %v4711
        %v7028 = vmul.f32 %v6956, %v4716
        %v7029 = vmul.f32 %v6957, %v4716
        %v7030 = vmul.f32 %v6958, %v4716
        %v7031 = vmul.f32 %v6959, %v4716
        %v7032 = vmul.f32 %v6960, %v4721
        %v7033 = vmul.f32 %v6961, %v4721
        %v7034 = vmul.f32 %v6962, %v4721
        %v7035 = vmul.f32 %v6963, %v4721
        %v7036 = vmul.f32 %v6964, %v4726
        %v7037 = vmul.f32 %v6965, %v4726
        %v7038 = vmul.f32 %v6966, %v4726
        %v7039 = vmul.f32 %v6967, %v4726
        %v7040 = vmul.f32 %v6968, %v4731
        %v7041 = vmul.f32 %v6969, %v4731
        %v7042 = vmul.f32 %v6970, %v4731
        %v7043 = vmul.f32 %v6971, %v4731
        %v7044 = vmul.f32 %v6972, %v4736
        %v7045 = vmul.f32 %v6973, %v4736
        %v7046 = vmul.f32 %v6974, %v4736
        %v7047 = vmul.f32 %v6975, %v4736
        %v7048 = vmul.f32 %v6976, %v4741
        %v7049 = vmul.f32 %v6977, %v4741
        %v7050 = vmul.f32 %v6978, %v4741
        %v7051 = vmul.f32 %v6979, %v4741
        %v7052 = vadd.f32 %v6980, %v6984
        %v7053 = vadd.f32 %v7052, %v6988
        %v7054 = vadd.f32 %v7053, %v6992
        %v7055 = vadd.f32 %v7054, %v6996
        %v7056 = vadd.f32 %v7055, %v7000
        %v7057 = vadd.f32 %v7056, %v7004
        %v7058 = vadd.f32 %v7057, %v7008
        %v7059 = vadd.f32 %v7058, %v7012
        %v7060 = vadd.f32 %v7059, %v7016
        %v7061 = vadd.f32 %v7060, %v7020
        %v7062 = vadd.f32 %v7061, %v7024
        %v7063 = vadd.f32 %v7062, %v7028
        %v7064 = vadd.f32 %v7063, %v7032
        %v7065 = vadd.f32 %v7064, %v7036
        %v7066 = vadd.f32 %v7065, %v7040
        %v7067 = vadd.f32 %v7066, %v7044
        %v7068 = vadd.f32 %v7067, %v7048
        %v7069 = vrot.slane %v7068, 4
        %v7070 = vadd.f32 %v7068, %v7069
        %v7071 = vrot.slane %v7070, 2
        %v7072 = vadd.f32 %v7070, %v7071
        %v7073 = vrot.slane %v7072, 1
        %v7074 = vadd.f32 %v7072, %v7073
        %v7075 = vadd.f32 %v6981, %v6985
        %v7076 = vadd.f32 %v7075, %v6989
        %v7077 = vadd.f32 %v7076, %v6993
        %v7078 = vadd.f32 %v7077, %v6997
        %v7079 = vadd.f32 %v7078, %v7001
        %v7080 = vadd.f32 %v7079, %v7005
        %v7081 = vadd.f32 %v7080, %v7009
        %v7082 = vadd.f32 %v7081, %v7013
        %v7083 = vadd.f32 %v7082, %v7017
        %v7084 = vadd.f32 %v7083, %v7021
        %v7085 = vadd.f32 %v7084, %v7025
        %v7086 = vadd.f32 %v7085, %v7029
        %v7087 = vadd.f32 %v7086, %v7033
        %v7088 = vadd.f32 %v7087, %v7037
        %v7089 = vadd.f32 %v7088, %v7041
        %v7090 = vadd.f32 %v7089, %v7045
        %v7091 = vadd.f32 %v7090, %v7049
        %v7092 = vrot.slane %v7091, 4
        %v7093 = vadd.f32 %v7091, %v7092
        %v7094 = vrot.slane %v7093, 2
        %v7095 = vadd.f32 %v7093, %v7094
        %v7096 = vrot.slane %v7095, 1
        %v7097 = vadd.f32 %v7095, %v7096
        %v7098 = vadd.f32 %v6982, %v6986
        %v7099 = vadd.f32 %v7098, %v6990
        %v7100 = vadd.f32 %v7099, %v6994
        %v7101 = vadd.f32 %v7100, %v6998
        %v7102 = vadd.f32 %v7101, %v7002
        %v7103 = vadd.f32 %v7102, %v7006
        %v7104 = vadd.f32 %v7103, %v7010
        %v7105 = vadd.f32 %v7104, %v7014
        %v7106 = vadd.f32 %v7105, %v7018
        %v7107 = vadd.f32 %v7106, %v7022
        %v7108 = vadd.f32 %v7107, %v7026
        %v7109 = vadd.f32 %v7108, %v7030
        %v7110 = vadd.f32 %v7109, %v7034
        %v7111 = vadd.f32 %v7110, %v7038
        %v7112 = vadd.f32 %v7111, %v7042
        %v7113 = vadd.f32 %v7112, %v7046
        %v7114 = vadd.f32 %v7113, %v7050
        %v7115 = vrot.slane %v7114, 4
        %v7116 = vadd.f32 %v7114, %v7115
        %v7117 = vrot.slane %v7116, 2
        %v7118 = vadd.f32 %v7116, %v7117
        %v7119 = vrot.slane %v7118, 1
        %v7120 = vadd.f32 %v7118, %v7119
        %v7121 = vadd.f32 %v6983, %v6987
        %v7122 = vadd.f32 %v7121, %v6991
        %v7123 = vadd.f32 %v7122, %v6995
        %v7124 = vadd.f32 %v7123, %v6999
        %v7125 = vadd.f32 %v7124, %v7003
        %v7126 = vadd.f32 %v7125, %v7007
        %v7127 = vadd.f32 %v7126, %v7011
        %v7128 = vadd.f32 %v7127, %v7015
        %v7129 = vadd.f32 %v7128, %v7019
        %v7130 = vadd.f32 %v7129, %v7023
        %v7131 = vadd.f32 %v7130, %v7027
        %v7132 = vadd.f32 %v7131, %v7031
        %v7133 = vadd.f32 %v7132, %v7035
        %v7134 = vadd.f32 %v7133, %v7039
        %v7135 = vadd.f32 %v7134, %v7043
        %v7136 = vadd.f32 %v7135, %v7047
        %v7137 = vadd.f32 %v7136, %v7051
        %v7138 = vrot.slane %v7137, 4
        %v7139 = vadd.f32 %v7137, %v7138
        %v7140 = vrot.slane %v7139, 2
        %v7141 = vadd.f32 %v7139, %v7140
        %v7142 = vrot.slane %v7141, 1
        %v7143 = vadd.f32 %v7141, %v7142
        %vm7144 = vcmask 1040384
        %v7145 = vsel %vm7144, %v4837, %v7074
        %v7146 = vsel %vm7144, %v4860, %v7097
        %v7147 = vsel %vm7144, %v4883, %v7120
        %v7148 = vsel %vm7144, %v4906, %v7143
        %v7153 = vcombine.low %v7145, %v7146
        %v7154 = vcombine.low %v7147, %v7148
        %v7156 = vunpack.c.l.s4 1983009808
        %v7157 = vunpack.c.0.s8 %v7156
        %v7158 = vlaneseq
        %v7159 = vshrl.u32 %v7158, 7
        %v7160 = vsub.s32 %v7157, %v7159
        %v7161 = vrot.slane %v7153, %v7160
        %v7163 = vunpack.c.l.s4 1983009808
        %v7164 = vunpack.c.0.s8 %v7163
        %v7165 = vlaneseq
        %v7166 = vshrl.u32 %v7165, 7
        %v7167 = vsub.s32 %v7164, %v7166
        %v7168 = vrot.slane %v7154, %v7167
        %v7169 = vcombine.low %v7161, %v7168
        %7171 = vst [vmem:[%s811] sm:$0xff] %v7169
        %p7172 = scmp.lt.s32.totalorder %s15, 1
        %s7173 = scalar_select %p7172, %s15, 1
        %s7174 = smul.addr %s7173, 4
        %s7175 = smul.addr %s7174, 2
        %s7176 = scalar_lea.vmem %s4, %s7175
        // Predicated region
        $region60: #{condition_network2_forward.4} parent=54 // pred_check
          %p7177 = pneg %p127
        $region61: #{condition_network2_forward.4} parent=54 // pred_check_branch
          %7179 = sbr.rel (%p7177) target = $region63
        $region62: #{condition_network2_forward.4} parent=54 // pred_region
          _
        $region63: #{condition_network2_forward.4} parent=54 // pred_fallthru
          _
      $region55: #{condition_network2_forward.4} parent=5 // pred_fallthru
        _
      %p7180 = scmp.le.s32.totalorder 2, %s10
      // Predicated region
      $region64: #{condition_network2_forward.4} parent=5 // pred_check
        %p7181 = pneg %p7180
      $region65: #{condition_network2_forward.4} parent=5 // pred_check_branch
        %7183 = sbr.rel (%p7181) target = $region67
      $region66: #{condition_network2_forward.4} parent=5 // pred_region
        %s7184 = ssub.s32 %s10, 2
        // Predicated region
        $region68: #{condition_network2_forward.4} parent=66 // pred_check
          %p7185 = pneg %p133
        $region69: #{condition_network2_forward.4} parent=66 // pred_check_branch
          %7187 = sbr.rel (%p7185) target = $region71
        $region70: #{condition_network2_forward.4} parent=66 // pred_region
          %p7188 = scmp.lt.s32.totalorder %s16, 1
          %s7189 = scalar_select %p7188, %s16, 1
          %s7190 = smul.addr %s7189, 4
          %s7191 = smul.addr %s7190, 2
          %s7192 = scalar_lea.vmem %s4, %s7191
        $region71: #{condition_network2_forward.4} parent=66 // pred_fallthru
          _
      $region67: #{condition_network2_forward.4} parent=5 // pred_fallthru
        _
    $region6: #{condition_network2_forward.4} parent=1 // loop_footer
      %s14 = sadd.s32 1, %s10
    $region7: #{condition_network2_forward.4} parent=1 // loop_footer_branch
      %9 = sbr.rel target = $region3
    $region8: #{condition_network2_forward.4} parent=1 // loop_exit
      _

</llo_original>
